<compile_context>
chip_gen: v7x
topology: tpu7x:2x2x1
jax: 0.10.0
libtpu: 0.0.40
codegen_flags: <defaults>
</compile_context>

<pallas_src>
import functools

import jax
import jax.numpy as jnp
from jax.experimental import pallas as pl
from jax.experimental.pallas import tpu as pltpu


# Layer order and whether LeakyReLU is applied after each Linear.
_LAYER_ORDER = ["e1", "e2", "e3", "z", "d1", "d2", "d3", "xb"]
_LAYER_ACT = [True, True, True, False, True, True, True, False]
_Z_LAYER_IDX = 3  # output of the "z" layer is the latent z_ae


def _round_up(v, m):
    return (v + m - 1) // m * m


def _leaky_relu(h, negative_slope=0.2):
    return jnp.where(h > 0, h, negative_slope * h)


# --------------------------------------------------------------------------
# Parameter packing: one lane-dense resident slab.
# --------------------------------------------------------------------------
def pack_ae_params(params, slab_dtype=jnp.float32):
    """Pack all 8 (W, b) pairs into one lane-dense slab (single DMA).

    Per layer: a weight block [k_rows_pad, slab_w] followed by a `row_align`
    row bias block (row 0 = bias).  Output widths are zero-padded to
    multiples of 128; the padded width of layer L is the contraction row
    count of layer L+1, so zero columns stay exactly zero through the whole
    network (LeakyReLU(0)=0, padded biases are 0).

    NOTE: for realistic AE widths that differ a lot (e.g. n_input=784) a
    per-layer slab width would shrink the resident DMA further; for the demo
    every layer pads to 128 lanes so max-width packing is free.

    Returns (slab, meta, x_feat_pad) where meta is a static tuple of
    (w_row_off, k_rows, b_row_off, out_pad, apply_act) per layer and
    x_feat_pad is the feature width the wrapper must pad x to.
    """
    # f32 tiles are (8,128); bf16 packs sublanes in pairs -> align rows to 16.
    row_align = 8 if slab_dtype == jnp.float32 else 16

    out_pads = [_round_up(params[f"w_{n}"].shape[1], 128) for n in _LAYER_ORDER]
    slab_w = max(out_pads)

    blocks, meta = [], []
    row = 0
    prev_out_pad = None
    x_feat_pad = None
    for li, name in enumerate(_LAYER_ORDER):
        w = params[f"w_{name}"].astype(jnp.float32)
        b = params[f"b_{name}"].astype(jnp.float32).reshape(1, -1)
        din, dout = w.shape
        out_pad = out_pads[li]

        if li == 0:
            # Wrapper pads x's feature dim to keep the layer-0 LHS load on
            # the aligned fast path even when n_input % row_align != 0.
            k_rows = _round_up(din, row_align)
            x_feat_pad = k_rows
        else:
            k_rows = prev_out_pad  # padded width of the previous activation
        k_rows_pad = _round_up(k_rows, row_align)

        w_blk = jnp.zeros((k_rows_pad, slab_w), jnp.float32).at[:din, :dout].set(w)
        b_blk = jnp.zeros((row_align, slab_w), jnp.float32).at[:1, :dout].set(b)

        w_off = row
        b_off = row + k_rows_pad
        blocks += [w_blk, b_blk]
        meta.append((w_off, k_rows, b_off, out_pad, _LAYER_ACT[li]))

        row = b_off + row_align
        prev_out_pad = out_pad

    slab = jnp.concatenate(blocks, axis=0).astype(slab_dtype)
    return slab, tuple(meta), x_feat_pad


# --------------------------------------------------------------------------
# Kernel body: fused encoder + decoder for one batch tile.
# --------------------------------------------------------------------------
def ae_kernel(x_ref, slab_ref, xhat_ref, z_ref, *, meta, z_layer_idx):
    """All params live in the single VMEM-resident `slab_ref`; per-layer
    weights/biases are static ref slices (aligned rows, 128-multiple lanes).
    Matmuls run in the slab dtype (f32 or bf16) with f32 accumulation;
    bias-add / LeakyReLU math stays in f32.
    """
    mxu_dtype = slab_ref.dtype
    h = x_ref[...].astype(jnp.float32)
    for li, (w_off, k_rows, b_off, out_pad, act) in enumerate(meta):
        w = slab_ref[w_off:w_off + k_rows, :out_pad]
        b = slab_ref[b_off:b_off + 1, :out_pad].astype(jnp.float32)
        lhs = h if mxu_dtype == jnp.float32 else h.astype(mxu_dtype)
        # TODO(synk): minor MXU win skipped: d1 could contract over
        # round_up(n_z, 8) instead of the 128-padded z width.
        h = jnp.dot(lhs, w, preferred_element_type=jnp.float32) + b
        if act:
            h = _leaky_relu(h)
        if li == z_layer_idx:
            z_ref[...] = h.astype(z_ref.dtype)      # full 128-lane store
    xhat_ref[...] = h.astype(xhat_ref.dtype)        # full 128-lane store


# --------------------------------------------------------------------------
# Generation-aware tiling / VMEM planning.
# --------------------------------------------------------------------------
def _tensorcores_per_chip():
    """TensorCores a single pallas_call can shard a 'parallel' axis over."""
    try:
        kind = jax.devices()[0].device_kind.lower()
    except Exception:
        return 1
    single_tc = ("v5 lite", "v5e", "v6 lite", "v6e", "v2", "v3")
    dual_tc = ("v5p", "v4", "v7")
    for tag in single_tc:
        if tag in kind:
            return 1
    for tag in dual_tc:
        if tag in kind:
            return 2
    return 1


def _pick_tile_m(n, n_cores, cap):
    """Pick tile_m (multiple of 8, dividing n).

    Single TC: prefer grid=1 (tile_m=n) -- this kernel is step-overhead
    bound, so fewer steps win.  Multi TC: prefer 256-row tiles (full MXU M)
    and a grid that is a multiple of the core count (balanced split).
    """
    cap = min(cap, n)
    cap = max(8, cap - cap % 8)
    if n_cores <= 1 and n <= cap:
        return n
    prefs = ((256, True), (8, True), (256, False), (8, False))
    for align, balanced in prefs:
        best = None
        t = align
        while t <= cap:
            if n % t == 0:
                g = n // t
                if (not balanced) or n_cores <= 1 or (g % n_cores == 0):
                    best = t
            t += align
        if best is not None:
            return best
    return n


def _vmem_plan(n, x_itemsize, out_itemsize, x_feat_pad, n_in_pad, n_z_pad,
               slab_nbytes, slab_w, n_cores):
    """Choose tile_m and an explicit vmem_limit_bytes with margin."""
    budget = 24 << 20  # conservative: below v7x's 32 MiB default scoped VMEM
    per_row = (2 * x_feat_pad * x_itemsize                 # double-buffered input tile
               + 2 * (n_in_pad + n_z_pad) * out_itemsize   # double-buffered output tiles
               + 2 * slab_w * 4)                           # live f32 activation (+slack)
    cap = max(8, (budget - 2 * slab_nbytes) // per_row)
    cap = min(cap, 1024 if n_cores > 1 else 2048)          # lower cap on 2-TC (v7x: 64 MiB VMEM)
    tile_m = _pick_tile_m(n, n_cores, cap)
    footprint = 2 * slab_nbytes + tile_m * per_row
    vmem_limit = int(min(max(2 * footprint, 16 << 20), 48 << 20))
    return tile_m, vmem_limit


# --------------------------------------------------------------------------
# Wrapper.
# --------------------------------------------------------------------------
def ae_forward(x, slab, meta, x_feat_pad, n_input, n_z, *,
               tile_m=None, slice_outputs=False):
    """Fused AE forward.

    Returns (x_hat, z_ae).  By default the lane-padded outputs
    ([N, pad128(n_input)], [N, pad128(n_z)]) are returned -- padded columns
    are exact zeros -- so no extra XLA slice-copies are added; pass
    slice_outputs=True to get exactly [N, n_input] / [N, n_z].
    """
    N, d = x.shape
    assert d == n_input
    if d < x_feat_pad:
        x = jnp.pad(x, ((0, 0), (0, x_feat_pad - d)))

    n_in_pad = meta[-1][3]           # x_bar_layer padded width
    n_z_pad = meta[_Z_LAYER_IDX][3]  # z_layer padded width

    n_cores = _tensorcores_per_chip()
    slab_nbytes = slab.size * slab.dtype.itemsize
    auto_tile, vmem_limit = _vmem_plan(
        N, x.dtype.itemsize, x.dtype.itemsize, x_feat_pad, n_in_pad, n_z_pad,
        slab_nbytes, slab.shape[1], n_cores)
    if tile_m is None:
        tile_m = auto_tile
    assert N % tile_m == 0, "batch must be divisible by tile_m"
    grid = (N // tile_m,)

    kernel = functools.partial(ae_kernel, meta=meta, z_layer_idx=_Z_LAYER_IDX)

    flops = 2 * N * sum(k * o for (_, k, _, o, _) in meta)
    bytes_accessed = (x.size * x.dtype.itemsize + slab_nbytes
                      + N * (n_in_pad + n_z_pad) * x.dtype.itemsize)
    cost = pl.CostEstimate(flops=flops, transcendentals=0,
                           bytes_accessed=bytes_accessed)

    def build(single_buffer_slab):
        slab_kwargs = ({"pipeline_mode": pl.Buffered(1)}
                       if single_buffer_slab else {})
        return pl.pallas_call(
            kernel,
            out_shape=(
                jax.ShapeDtypeStruct((N, n_in_pad), x.dtype),
                jax.ShapeDtypeStruct((N, n_z_pad), x.dtype),
            ),
            grid_spec=pltpu.PrefetchScalarGridSpec(
                num_scalar_prefetch=0,
                grid=grid,
                in_specs=[
                    pl.BlockSpec((tile_m, x_feat_pad), lambda i: (i, 0)),
                    # Invariant weight slab: constant index_map, single buffer.
                    pl.BlockSpec(slab.shape, lambda i: (0, 0), **slab_kwargs),
                ],
                out_specs=[
                    pl.BlockSpec((tile_m, n_in_pad), lambda i: (i, 0)),
                    pl.BlockSpec((tile_m, n_z_pad), lambda i: (i, 0)),
                ],
            ),
            compiler_params=pltpu.CompilerParams(
                dimension_semantics=("parallel",),
                vmem_limit_bytes=vmem_limit,
            ),
            cost_estimate=cost,
        )

    try:
        x_hat_pad, z_pad = build(True)(x, slab)
    except Exception:
        # pipeline_mode=Buffered(1) unsupported on this jax version: fall back
        # to the default spec (constant index_map is still never re-fetched).
        x_hat_pad, z_pad = build(False)(x, slab)

    if slice_outputs:
        return x_hat_pad[:, :n_input], z_pad[:, :n_z]
    return x_hat_pad, z_pad


# --------------------------------------------------------------------------
# Init + pure-JAX reference (for correctness checks).
# --------------------------------------------------------------------------
def init_ae_params(key, ae_n_enc_1, ae_n_enc_2, ae_n_enc_3,
                   ae_n_dec_1, ae_n_dec_2, ae_n_dec_3, n_input, n_z):
    """Deterministic init mimicking nn.Linear's U(-1/sqrt(fan_in), 1/sqrt(fan_in))."""
    dims = [
        ("e1", n_input, ae_n_enc_1),
        ("e2", ae_n_enc_1, ae_n_enc_2),
        ("e3", ae_n_enc_2, ae_n_enc_3),
        ("z",  ae_n_enc_3, n_z),
        ("d1", n_z, ae_n_dec_1),
        ("d2", ae_n_dec_1, ae_n_dec_2),
        ("d3", ae_n_dec_2, ae_n_dec_3),
        ("xb", ae_n_dec_3, n_input),
    ]
    params = {}
    keys = jax.random.split(key, 2 * len(dims))
    for i, (name, din, dout) in enumerate(dims):
        bound = 1.0 / jnp.sqrt(jnp.float32(din))
        params[f"w_{name}"] = jax.random.uniform(
            keys[2 * i], (din, dout), jnp.float32, -bound, bound)
        params[f"b_{name}"] = jax.random.uniform(
            keys[2 * i + 1], (1, dout), jnp.float32, -bound, bound)
    return params


def ae_forward_ref(x, params, mxu_dtype=jnp.float32):
    """Pure-JAX reference mirroring the kernel's per-layer numerics."""
    def lin(h, w, b):
        return (jnp.dot(h.astype(mxu_dtype), w.astype(mxu_dtype),
                        preferred_element_type=jnp.float32)
                + b.astype(mxu_dtype).astype(jnp.float32))

    h = _leaky_relu(lin(x, params["w_e1"], params["b_e1"]))
    h = _leaky_relu(lin(h, params["w_e2"], params["b_e2"]))
    h = _leaky_relu(lin(h, params["w_e3"], params["b_e3"]))
    z = lin(h, params["w_z"], params["b_z"])
    h = _leaky_relu(lin(z, params["w_d1"], params["b_d1"]))
    h = _leaky_relu(lin(h, params["w_d2"], params["b_d2"]))
    h = _leaky_relu(lin(h, params["w_d3"], params["b_d3"]))
    x_hat = lin(h, params["w_xb"], params["b_xb"])
    return x_hat, z


if __name__ == "__main__":
    # Small, AE-consistent shapes.
    N = 256          # batch of samples
    n_input = 64
    ae_n_enc_1, ae_n_enc_2, ae_n_enc_3 = 128, 64, 32
    ae_n_dec_1, ae_n_dec_2, ae_n_dec_3 = 32, 64, 128
    n_z = 16

    key = jax.random.PRNGKey(0)
    kx, kp = jax.random.split(key)
    x = jax.random.normal(kx, (N, n_input), jnp.float32)
    params = init_ae_params(
        kp, ae_n_enc_1, ae_n_enc_2, ae_n_enc_3,
        ae_n_dec_1, ae_n_dec_2, ae_n_dec_3, n_input, n_z)

    # ---- f32 slab: semantics-exact path (matches the PyTorch fp32 module) --
    slab32, meta32, xpad32 = pack_ae_params(params, jnp.float32)
    slab32 = jax.block_until_ready(slab32)

    x_hat_pad, z_pad = ae_forward(x, slab32, meta32, xpad32, n_input, n_z)
    x_hat_pad = jax.block_until_ready(x_hat_pad)
    z_pad = jax.block_until_ready(z_pad)

    x_hat_ref, z_ref = ae_forward_ref(x, params)
    assert x_hat_pad.shape[0] == N and z_pad.shape[0] == N
    assert jnp.allclose(x_hat_pad[:, :n_input], x_hat_ref, atol=1e-4, rtol=1e-4)
    assert jnp.allclose(z_pad[:, :n_z], z_ref, atol=1e-4, rtol=1e-4)
    # Padded lanes are exact zeros, so downstream consumers may use the slabs.
    assert not bool(jnp.any(x_hat_pad[:, n_input:]))
    assert not bool(jnp.any(z_pad[:, n_z:]))

    # ---- bf16 slab: halves weight DMA, single-pass MXU (checked vs a
    # reference that mirrors the same bf16 matmul / f32-accumulate recipe) ---
    slab16, meta16, xpad16 = pack_ae_params(params, jnp.bfloat16)
    slab16 = jax.block_until_ready(slab16)
    x_hat16, z16 = ae_forward(x, slab16, meta16, xpad16, n_input, n_z,
                              slice_outputs=True)
    x_hat16 = jax.block_until_ready(x_hat16)
    z16 = jax.block_until_ready(z16)
    x_hat_ref16, z_ref16 = ae_forward_ref(x, params, mxu_dtype=jnp.bfloat16)
    assert jnp.allclose(x_hat16, x_hat_ref16, atol=1e-3, rtol=1e-3)
    assert jnp.allclose(z16, z_ref16, atol=1e-3, rtol=1e-3)

    # TODO(synk): pretrain()/evaluate() (Adam loop, KMeans, metrics) are host-side
    # training utilities, not forward-pass kernel work; intentionally not ported.
    print("KERNEL_OK")
</pallas_src>

<mosaic_0001>
module attributes {stable_mosaic.version = 11 : i64} {
  func.func @ae_kernel(%arg0: i32, %arg1: memref<256x64xf32, #tpu.memory_space<vmem>>, %arg2: memref<1024x128xf32, #tpu.memory_space<vmem>>, %arg3: memref<256x128xf32, #tpu.memory_space<vmem>>, %arg4: memref<256x128xf32, #tpu.memory_space<vmem>>) attributes {dimension_semantics = [#tpu.dimension_semantics<parallel>], iteration_bounds = array<i64: 1>, scalar_prefetch = 0 : i64, scratch_operands = 0 : i64, tpu.core_type = #tpu.core_type<tc>, window_params = [{transform_indices = @transform_0, window_bounds = array<i64: 256, 64>}, {pipeline_mode = #tpu.pipeline_mode<synchronous>, transform_indices = @transform_1, window_bounds = array<i64: 1024, 128>}, {transform_indices = @transform_2, window_bounds = array<i64: 256, 128>}, {transform_indices = @transform_3, window_bounds = array<i64: 256, 128>}]} {
    %c0 = arith.constant 0 : index
    %c0_0 = arith.constant 0 : index
    %0 = vector.load %arg1[%c0, %c0_0] : memref<256x64xf32, #tpu.memory_space<vmem>>, vector<256x64xf32>
    %c0_1 = arith.constant 0 : index
    %c0_2 = arith.constant 0 : index
    %1 = vector.load %arg2[%c0_1, %c0_2] : memref<1024x128xf32, #tpu.memory_space<vmem>>, vector<64x128xf32>
    %c64 = arith.constant 64 : index
    %c0_3 = arith.constant 0 : index
    %2 = vector.load %arg2[%c64, %c0_3] : memref<1024x128xf32, #tpu.memory_space<vmem>>, vector<1x128xf32>
    %cst = arith.constant dense<0.000000e+00> : vector<256x128xf32>
    %3 = tpu.matmul %0, %1, %cst {dimension_numbers = #tpu.dot_dimension_numbers<[1], [0], [0], [1], [0, 0, 1, 1], [], []>} : vector<256x64xf32>, vector<64x128xf32>, vector<256x128xf32> -> vector<256x128xf32>
    %4 = vector.broadcast %2 : vector<1x128xf32> to vector<256x128xf32>
    %5 = arith.addf %3, %4 : vector<256x128xf32>
    %cst_4 = arith.constant 0.000000e+00 : f32
    %6 = vector.broadcast %cst_4 : f32 to vector<256x128xf32>
    %7 = arith.cmpf ogt, %5, %6 : vector<256x128xf32>
    %cst_5 = arith.constant 2.000000e-01 : f32
    %8 = vector.broadcast %cst_5 : f32 to vector<256x128xf32>
    %9 = arith.mulf %8, %5 : vector<256x128xf32>
    %10 = arith.select %7, %5, %9 : vector<256x128xi1>, vector<256x128xf32>
    %c72 = arith.constant 72 : index
    %c0_6 = arith.constant 0 : index
    %11 = vector.load %arg2[%c72, %c0_6] : memref<1024x128xf32, #tpu.memory_space<vmem>>, vector<128x128xf32>
    %c200 = arith.constant 200 : index
    %c0_7 = arith.constant 0 : index
    %12 = vector.load %arg2[%c200, %c0_7] : memref<1024x128xf32, #tpu.memory_space<vmem>>, vector<1x128xf32>
    %cst_8 = arith.constant dense<0.000000e+00> : vector<256x128xf32>
    %13 = tpu.matmul %10, %11, %cst_8 {dimension_numbers = #tpu.dot_dimension_numbers<[1], [0], [0], [1], [0, 0, 1, 1], [], []>} : vector<256x128xf32>, vector<128x128xf32>, vector<256x128xf32> -> vector<256x128xf32>
    %14 = vector.broadcast %12 : vector<1x128xf32> to vector<256x128xf32>
    %15 = arith.addf %13, %14 : vector<256x128xf32>
    %cst_9 = arith.constant 0.000000e+00 : f32
    %16 = vector.broadcast %cst_9 : f32 to vector<256x128xf32>
    %17 = arith.cmpf ogt, %15, %16 : vector<256x128xf32>
    %cst_10 = arith.constant 2.000000e-01 : f32
    %18 = vector.broadcast %cst_10 : f32 to vector<256x128xf32>
    %19 = arith.mulf %18, %15 : vector<256x128xf32>
    %20 = arith.select %17, %15, %19 : vector<256x128xi1>, vector<256x128xf32>
    %c208 = arith.constant 208 : index
    %c0_11 = arith.constant 0 : index
    %21 = vector.load %arg2[%c208, %c0_11] : memref<1024x128xf32, #tpu.memory_space<vmem>>, vector<128x128xf32>
    %c336 = arith.constant 336 : index
    %c0_12 = arith.constant 0 : index
    %22 = vector.load %arg2[%c336, %c0_12] : memref<1024x128xf32, #tpu.memory_space<vmem>>, vector<1x128xf32>
    %cst_13 = arith.constant dense<0.000000e+00> : vector<256x128xf32>
    %23 = tpu.matmul %20, %21, %cst_13 {dimension_numbers = #tpu.dot_dimension_numbers<[1], [0], [0], [1], [0, 0, 1, 1], [], []>} : vector<256x128xf32>, vector<128x128xf32>, vector<256x128xf32> -> vector<256x128xf32>
    %24 = vector.broadcast %22 : vector<1x128xf32> to vector<256x128xf32>
    %25 = arith.addf %23, %24 : vector<256x128xf32>
    %cst_14 = arith.constant 0.000000e+00 : f32
    %26 = vector.broadcast %cst_14 : f32 to vector<256x128xf32>
    %27 = arith.cmpf ogt, %25, %26 : vector<256x128xf32>
    %cst_15 = arith.constant 2.000000e-01 : f32
    %28 = vector.broadcast %cst_15 : f32 to vector<256x128xf32>
    %29 = arith.mulf %28, %25 : vector<256x128xf32>
    %30 = arith.select %27, %25, %29 : vector<256x128xi1>, vector<256x128xf32>
    %c344 = arith.constant 344 : index
    %c0_16 = arith.constant 0 : index
    %31 = vector.load %arg2[%c344, %c0_16] : memref<1024x128xf32, #tpu.memory_space<vmem>>, vector<128x128xf32>
    %c472 = arith.constant 472 : index
    %c0_17 = arith.constant 0 : index
    %32 = vector.load %arg2[%c472, %c0_17] : memref<1024x128xf32, #tpu.memory_space<vmem>>, vector<1x128xf32>
    %cst_18 = arith.constant dense<0.000000e+00> : vector<256x128xf32>
    %33 = tpu.matmul %30, %31, %cst_18 {dimension_numbers = #tpu.dot_dimension_numbers<[1], [0], [0], [1], [0, 0, 1, 1], [], []>} : vector<256x128xf32>, vector<128x128xf32>, vector<256x128xf32> -> vector<256x128xf32>
    %34 = vector.broadcast %32 : vector<1x128xf32> to vector<256x128xf32>
    %35 = arith.addf %33, %34 : vector<256x128xf32>
    %c0_19 = arith.constant 0 : index
    %c0_20 = arith.constant 0 : index
    %36 = vector.load %arg4[%c0_19, %c0_20] : memref<256x128xf32, #tpu.memory_space<vmem>>, vector<256x128xf32>
    tpu.vector_store %arg4[%c0_19, %c0_20], %35 {strides = array<i32>} : memref<256x128xf32, #tpu.memory_space<vmem>>, vector<256x128xf32>,
    %c480 = arith.constant 480 : index
    %c0_21 = arith.constant 0 : index
    %37 = vector.load %arg2[%c480, %c0_21] : memref<1024x128xf32, #tpu.memory_space<vmem>>, vector<128x128xf32>
    %c608 = arith.constant 608 : index
    %c0_22 = arith.constant 0 : index
    %38 = vector.load %arg2[%c608, %c0_22] : memref<1024x128xf32, #tpu.memory_space<vmem>>, vector<1x128xf32>
    %cst_23 = arith.constant dense<0.000000e+00> : vector<256x128xf32>
    %39 = tpu.matmul %35, %37, %cst_23 {dimension_numbers = #tpu.dot_dimension_numbers<[1], [0], [0], [1], [0, 0, 1, 1], [], []>} : vector<256x128xf32>, vector<128x128xf32>, vector<256x128xf32> -> vector<256x128xf32>
    %40 = vector.broadcast %38 : vector<1x128xf32> to vector<256x128xf32>
    %41 = arith.addf %39, %40 : vector<256x128xf32>
    %cst_24 = arith.constant 0.000000e+00 : f32
    %42 = vector.broadcast %cst_24 : f32 to vector<256x128xf32>
    %43 = arith.cmpf ogt, %41, %42 : vector<256x128xf32>
    %cst_25 = arith.constant 2.000000e-01 : f32
    %44 = vector.broadcast %cst_25 : f32 to vector<256x128xf32>
    %45 = arith.mulf %44, %41 : vector<256x128xf32>
    %46 = arith.select %43, %41, %45 : vector<256x128xi1>, vector<256x128xf32>
    %c616 = arith.constant 616 : index
    %c0_26 = arith.constant 0 : index
    %47 = vector.load %arg2[%c616, %c0_26] : memref<1024x128xf32, #tpu.memory_space<vmem>>, vector<128x128xf32>
    %c744 = arith.constant 744 : index
    %c0_27 = arith.constant 0 : index
    %48 = vector.load %arg2[%c744, %c0_27] : memref<1024x128xf32, #tpu.memory_space<vmem>>, vector<1x128xf32>
    %cst_28 = arith.constant dense<0.000000e+00> : vector<256x128xf32>
    %49 = tpu.matmul %46, %47, %cst_28 {dimension_numbers = #tpu.dot_dimension_numbers<[1], [0], [0], [1], [0, 0, 1, 1], [], []>} : vector<256x128xf32>, vector<128x128xf32>, vector<256x128xf32> -> vector<256x128xf32>
    %50 = vector.broadcast %48 : vector<1x128xf32> to vector<256x128xf32>
    %51 = arith.addf %49, %50 : vector<256x128xf32>
    %cst_29 = arith.constant 0.000000e+00 : f32
    %52 = vector.broadcast %cst_29 : f32 to vector<256x128xf32>
    %53 = arith.cmpf ogt, %51, %52 : vector<256x128xf32>
    %cst_30 = arith.constant 2.000000e-01 : f32
    %54 = vector.broadcast %cst_30 : f32 to vector<256x128xf32>
    %55 = arith.mulf %54, %51 : vector<256x128xf32>
    %56 = arith.select %53, %51, %55 : vector<256x128xi1>, vector<256x128xf32>
    %c752 = arith.constant 752 : index
    %c0_31 = arith.constant 0 : index
    %57 = vector.load %arg2[%c752, %c0_31] : memref<1024x128xf32, #tpu.memory_space<vmem>>, vector<128x128xf32>
    %c880 = arith.constant 880 : index
    %c0_32 = arith.constant 0 : index
    %58 = vector.load %arg2[%c880, %c0_32] : memref<1024x128xf32, #tpu.memory_space<vmem>>, vector<1x128xf32>
    %cst_33 = arith.constant dense<0.000000e+00> : vector<256x128xf32>
    %59 = tpu.matmul %56, %57, %cst_33 {dimension_numbers = #tpu.dot_dimension_numbers<[1], [0], [0], [1], [0, 0, 1, 1], [], []>} : vector<256x128xf32>, vector<128x128xf32>, vector<256x128xf32> -> vector<256x128xf32>
    %60 = vector.broadcast %58 : vector<1x128xf32> to vector<256x128xf32>
    %61 = arith.addf %59, %60 : vector<256x128xf32>
    %cst_34 = arith.constant 0.000000e+00 : f32
    %62 = vector.broadcast %cst_34 : f32 to vector<256x128xf32>
    %63 = arith.cmpf ogt, %61, %62 : vector<256x128xf32>
    %cst_35 = arith.constant 2.000000e-01 : f32
    %64 = vector.broadcast %cst_35 : f32 to vector<256x128xf32>
    %65 = arith.mulf %64, %61 : vector<256x128xf32>
    %66 = arith.select %63, %61, %65 : vector<256x128xi1>, vector<256x128xf32>
    %c888 = arith.constant 888 : index
    %c0_36 = arith.constant 0 : index
    %67 = vector.load %arg2[%c888, %c0_36] : memref<1024x128xf32, #tpu.memory_space<vmem>>, vector<128x128xf32>
    %c1016 = arith.constant 1016 : index
    %c0_37 = arith.constant 0 : index
    %68 = vector.load %arg2[%c1016, %c0_37] : memref<1024x128xf32, #tpu.memory_space<vmem>>, vector<1x128xf32>
    %cst_38 = arith.constant dense<0.000000e+00> : vector<256x128xf32>
    %69 = tpu.matmul %66, %67, %cst_38 {dimension_numbers = #tpu.dot_dimension_numbers<[1], [0], [0], [1], [0, 0, 1, 1], [], []>} : vector<256x128xf32>, vector<128x128xf32>, vector<256x128xf32> -> vector<256x128xf32>
    %70 = vector.broadcast %68 : vector<1x128xf32> to vector<256x128xf32>
    %71 = arith.addf %69, %70 : vector<256x128xf32>
    %c0_39 = arith.constant 0 : index
    %c0_40 = arith.constant 0 : index
    %72 = vector.load %arg3[%c0_39, %c0_40] : memref<256x128xf32, #tpu.memory_space<vmem>>, vector<256x128xf32>
    tpu.vector_store %arg3[%c0_39, %c0_40], %71 {strides = array<i32>} : memref<256x128xf32, #tpu.memory_space<vmem>>, vector<256x128xf32>,
    return
  }
  func.func @transform_0(%arg0: i32) -> (i32, i32) {
    %c0_i32 = arith.constant 0 : i32
    %c0_i32_0 = arith.constant 0 : i32
    return %arg0, %c0_i32 : i32, i32
  }
  func.func @transform_1(%arg0: i32) -> (i32, i32) {
    %c0_i32 = arith.constant 0 : i32
    %c0_i32_0 = arith.constant 0 : i32
    %c0_i32_1 = arith.constant 0 : i32
    return %c0_i32, %c0_i32_0 : i32, i32
  }
  func.func @transform_2(%arg0: i32) -> (i32, i32) {
    %c0_i32 = arith.constant 0 : i32
    %c0_i32_0 = arith.constant 0 : i32
    return %arg0, %c0_i32 : i32, i32
  }
  func.func @transform_3(%arg0: i32) -> (i32, i32) {
    %c0_i32 = arith.constant 0 : i32
    %c0_i32_0 = arith.constant 0 : i32
    return %arg0, %c0_i32 : i32, i32
  }
}

module attributes {stable_mosaic.version = 11 : i64} {
  func.func @ae_kernel(%arg0: i32, %arg1: memref<256x64xf32, #tpu.memory_space<vmem>>, %arg2: memref<1024x128xf32, #tpu.memory_space<vmem>>, %arg3: memref<256x128xf32, #tpu.memory_space<vmem>>, %arg4: memref<256x128xf32, #tpu.memory_space<vmem>>) attributes {dimension_semantics = [#tpu.dimension_semantics<parallel>], iteration_bounds = array<i64: 1>, scalar_prefetch = 0 : i64, scratch_operands = 0 : i64, tpu.core_type = #tpu.core_type<tc>, window_params = [{transform_indices = @transform_0, window_bounds = array<i64: 256, 64>}, {pipeline_mode = #tpu.pipeline_mode<synchronous>, transform_indices = @transform_1, window_bounds = array<i64: 1024, 128>}, {transform_indices = @transform_2, window_bounds = array<i64: 256, 128>}, {transform_indices = @transform_3, window_bounds = array<i64: 256, 128>}]} {
    %c0 = arith.constant 0 : index
    %c0_0 = arith.constant 0 : index
    %0 = vector.load %arg1[%c0, %c0_0] : memref<256x64xf32, #tpu.memory_space<vmem>>, vector<256x64xf32>
    %c0_1 = arith.constant 0 : index
    %c0_2 = arith.constant 0 : index
    %1 = vector.load %arg2[%c0_1, %c0_2] : memref<1024x128xf32, #tpu.memory_space<vmem>>, vector<64x128xf32>
    %c64 = arith.constant 64 : index
    %c0_3 = arith.constant 0 : index
    %2 = vector.load %arg2[%c64, %c0_3] : memref<1024x128xf32, #tpu.memory_space<vmem>>, vector<1x128xf32>
    %cst = arith.constant dense<0.000000e+00> : vector<256x128xf32>
    %3 = tpu.matmul %0, %1, %cst {dimension_numbers = #tpu.dot_dimension_numbers<[1], [0], [0], [1], [0, 0, 1, 1], [], []>} : vector<256x64xf32>, vector<64x128xf32>, vector<256x128xf32> -> vector<256x128xf32>
    %4 = vector.broadcast %2 : vector<1x128xf32> to vector<256x128xf32>
    %5 = arith.addf %3, %4 : vector<256x128xf32>
    %cst_4 = arith.constant 0.000000e+00 : f32
    %6 = vector.broadcast %cst_4 : f32 to vector<256x128xf32>
    %7 = arith.cmpf ogt, %5, %6 : vector<256x128xf32>
    %cst_5 = arith.constant 2.000000e-01 : f32
    %8 = vector.broadcast %cst_5 : f32 to vector<256x128xf32>
    %9 = arith.mulf %8, %5 : vector<256x128xf32>
    %10 = arith.select %7, %5, %9 : vector<256x128xi1>, vector<256x128xf32>
    %c72 = arith.constant 72 : index
    %c0_6 = arith.constant 0 : index
    %11 = vector.load %arg2[%c72, %c0_6] : memref<1024x128xf32, #tpu.memory_space<vmem>>, vector<128x128xf32>
    %c200 = arith.constant 200 : index
    %c0_7 = arith.constant 0 : index
    %12 = vector.load %arg2[%c200, %c0_7] : memref<1024x128xf32, #tpu.memory_space<vmem>>, vector<1x128xf32>
    %cst_8 = arith.constant dense<0.000000e+00> : vector<256x128xf32>
    %13 = tpu.matmul %10, %11, %cst_8 {dimension_numbers = #tpu.dot_dimension_numbers<[1], [0], [0], [1], [0, 0, 1, 1], [], []>} : vector<256x128xf32>, vector<128x128xf32>, vector<256x128xf32> -> vector<256x128xf32>
    %14 = vector.broadcast %12 : vector<1x128xf32> to vector<256x128xf32>
    %15 = arith.addf %13, %14 : vector<256x128xf32>
    %cst_9 = arith.constant 0.000000e+00 : f32
    %16 = vector.broadcast %cst_9 : f32 to vector<256x128xf32>
    %17 = arith.cmpf ogt, %15, %16 : vector<256x128xf32>
    %cst_10 = arith.constant 2.000000e-01 : f32
    %18 = vector.broadcast %cst_10 : f32 to vector<256x128xf32>
    %19 = arith.mulf %18, %15 : vector<256x128xf32>
    %20 = arith.select %17, %15, %19 : vector<256x128xi1>, vector<256x128xf32>
    %c208 = arith.constant 208 : index
    %c0_11 = arith.constant 0 : index
    %21 = vector.load %arg2[%c208, %c0_11] : memref<1024x128xf32, #tpu.memory_space<vmem>>, vector<128x128xf32>
    %c336 = arith.constant 336 : index
    %c0_12 = arith.constant 0 : index
    %22 = vector.load %arg2[%c336, %c0_12] : memref<1024x128xf32, #tpu.memory_space<vmem>>, vector<1x128xf32>
    %cst_13 = arith.constant dense<0.000000e+00> : vector<256x128xf32>
    %23 = tpu.matmul %20, %21, %cst_13 {dimension_numbers = #tpu.dot_dimension_numbers<[1], [0], [0], [1], [0, 0, 1, 1], [], []>} : vector<256x128xf32>, vector<128x128xf32>, vector<256x128xf32> -> vector<256x128xf32>
    %24 = vector.broadcast %22 : vector<1x128xf32> to vector<256x128xf32>
    %25 = arith.addf %23, %24 : vector<256x128xf32>
    %cst_14 = arith.constant 0.000000e+00 : f32
    %26 = vector.broadcast %cst_14 : f32 to vector<256x128xf32>
    %27 = arith.cmpf ogt, %25, %26 : vector<256x128xf32>
    %cst_15 = arith.constant 2.000000e-01 : f32
    %28 = vector.broadcast %cst_15 : f32 to vector<256x128xf32>
    %29 = arith.mulf %28, %25 : vector<256x128xf32>
    %30 = arith.select %27, %25, %29 : vector<256x128xi1>, vector<256x128xf32>
    %c344 = arith.constant 344 : index
    %c0_16 = arith.constant 0 : index
    %31 = vector.load %arg2[%c344, %c0_16] : memref<1024x128xf32, #tpu.memory_space<vmem>>, vector<128x128xf32>
    %c472 = arith.constant 472 : index
    %c0_17 = arith.constant 0 : index
    %32 = vector.load %arg2[%c472, %c0_17] : memref<1024x128xf32, #tpu.memory_space<vmem>>, vector<1x128xf32>
    %cst_18 = arith.constant dense<0.000000e+00> : vector<256x128xf32>
    %33 = tpu.matmul %30, %31, %cst_18 {dimension_numbers = #tpu.dot_dimension_numbers<[1], [0], [0], [1], [0, 0, 1, 1], [], []>} : vector<256x128xf32>, vector<128x128xf32>, vector<256x128xf32> -> vector<256x128xf32>
    %34 = vector.broadcast %32 : vector<1x128xf32> to vector<256x128xf32>
    %35 = arith.addf %33, %34 : vector<256x128xf32>
    %c0_19 = arith.constant 0 : index
    %c0_20 = arith.constant 0 : index
    %36 = vector.load %arg4[%c0_19, %c0_20] : memref<256x128xf32, #tpu.memory_space<vmem>>, vector<256x128xf32>
    tpu.vector_store %arg4[%c0_19, %c0_20], %35 {strides = array<i32>} : memref<256x128xf32, #tpu.memory_space<vmem>>, vector<256x128xf32>,
    %c480 = arith.constant 480 : index
    %c0_21 = arith.constant 0 : index
    %37 = vector.load %arg2[%c480, %c0_21] : memref<1024x128xf32, #tpu.memory_space<vmem>>, vector<128x128xf32>
    %c608 = arith.constant 608 : index
    %c0_22 = arith.constant 0 : index
    %38 = vector.load %arg2[%c608, %c0_22] : memref<1024x128xf32, #tpu.memory_space<vmem>>, vector<1x128xf32>
    %cst_23 = arith.constant dense<0.000000e+00> : vector<256x128xf32>
    %39 = tpu.matmul %35, %37, %cst_23 {dimension_numbers = #tpu.dot_dimension_numbers<[1], [0], [0], [1], [0, 0, 1, 1], [], []>} : vector<256x128xf32>, vector<128x128xf32>, vector<256x128xf32> -> vector<256x128xf32>
    %40 = vector.broadcast %38 : vector<1x128xf32> to vector<256x128xf32>
    %41 = arith.addf %39, %40 : vector<256x128xf32>
    %cst_24 = arith.constant 0.000000e+00 : f32
    %42 = vector.broadcast %cst_24 : f32 to vector<256x128xf32>
    %43 = arith.cmpf ogt, %41, %42 : vector<256x128xf32>
    %cst_25 = arith.constant 2.000000e-01 : f32
    %44 = vector.broadcast %cst_25 : f32 to vector<256x128xf32>
    %45 = arith.mulf %44, %41 : vector<256x128xf32>
    %46 = arith.select %43, %41, %45 : vector<256x128xi1>, vector<256x128xf32>
    %c616 = arith.constant 616 : index
    %c0_26 = arith.constant 0 : index
    %47 = vector.load %arg2[%c616, %c0_26] : memref<1024x128xf32, #tpu.memory_space<vmem>>, vector<128x128xf32>
    %c744 = arith.constant 744 : index
    %c0_27 = arith.constant 0 : index
    %48 = vector.load %arg2[%c744, %c0_27] : memref<1024x128xf32, #tpu.memory_space<vmem>>, vector<1x128xf32>
    %cst_28 = arith.constant dense<0.000000e+00> : vector<256x128xf32>
    %49 = tpu.matmul %46, %47, %cst_28 {dimension_numbers = #tpu.dot_dimension_numbers<[1], [0], [0], [1], [0, 0, 1, 1], [], []>} : vector<256x128xf32>, vector<128x128xf32>, vector<256x128xf32> -> vector<256x128xf32>
    %50 = vector.broadcast %48 : vector<1x128xf32> to vector<256x128xf32>
    %51 = arith.addf %49, %50 : vector<256x128xf32>
    %cst_29 = arith.constant 0.000000e+00 : f32
    %52 = vector.broadcast %cst_29 : f32 to vector<256x128xf32>
    %53 = arith.cmpf ogt, %51, %52 : vector<256x128xf32>
    %cst_30 = arith.constant 2.000000e-01 : f32
    %54 = vector.broadcast %cst_30 : f32 to vector<256x128xf32>
    %55 = arith.mulf %54, %51 : vector<256x128xf32>
    %56 = arith.select %53, %51, %55 : vector<256x128xi1>, vector<256x128xf32>
    %c752 = arith.constant 752 : index
    %c0_31 = arith.constant 0 : index
    %57 = vector.load %arg2[%c752, %c0_31] : memref<1024x128xf32, #tpu.memory_space<vmem>>, vector<128x128xf32>
    %c880 = arith.constant 880 : index
    %c0_32 = arith.constant 0 : index
    %58 = vector.load %arg2[%c880, %c0_32] : memref<1024x128xf32, #tpu.memory_space<vmem>>, vector<1x128xf32>
    %cst_33 = arith.constant dense<0.000000e+00> : vector<256x128xf32>
    %59 = tpu.matmul %56, %57, %cst_33 {dimension_numbers = #tpu.dot_dimension_numbers<[1], [0], [0], [1], [0, 0, 1, 1], [], []>} : vector<256x128xf32>, vector<128x128xf32>, vector<256x128xf32> -> vector<256x128xf32>
    %60 = vector.broadcast %58 : vector<1x128xf32> to vector<256x128xf32>
    %61 = arith.addf %59, %60 : vector<256x128xf32>
    %cst_34 = arith.constant 0.000000e+00 : f32
    %62 = vector.broadcast %cst_34 : f32 to vector<256x128xf32>
    %63 = arith.cmpf ogt, %61, %62 : vector<256x128xf32>
    %cst_35 = arith.constant 2.000000e-01 : f32
    %64 = vector.broadcast %cst_35 : f32 to vector<256x128xf32>
    %65 = arith.mulf %64, %61 : vector<256x128xf32>
    %66 = arith.select %63, %61, %65 : vector<256x128xi1>, vector<256x128xf32>
    %c888 = arith.constant 888 : index
    %c0_36 = arith.constant 0 : index
    %67 = vector.load %arg2[%c888, %c0_36] : memref<1024x128xf32, #tpu.memory_space<vmem>>, vector<128x128xf32>
    %c1016 = arith.constant 1016 : index
    %c0_37 = arith.constant 0 : index
    %68 = vector.load %arg2[%c1016, %c0_37] : memref<1024x128xf32, #tpu.memory_space<vmem>>, vector<1x128xf32>
    %cst_38 = arith.constant dense<0.000000e+00> : vector<256x128xf32>
    %69 = tpu.matmul %66, %67, %cst_38 {dimension_numbers = #tpu.dot_dimension_numbers<[1], [0], [0], [1], [0, 0, 1, 1], [], []>} : vector<256x128xf32>, vector<128x128xf32>, vector<256x128xf32> -> vector<256x128xf32>
    %70 = vector.broadcast %68 : vector<1x128xf32> to vector<256x128xf32>
    %71 = arith.addf %69, %70 : vector<256x128xf32>
    %c0_39 = arith.constant 0 : index
    %c0_40 = arith.constant 0 : index
    %72 = vector.load %arg3[%c0_39, %c0_40] : memref<256x128xf32, #tpu.memory_space<vmem>>, vector<256x128xf32>
    tpu.vector_store %arg3[%c0_39, %c0_40], %71 {strides = array<i32>} : memref<256x128xf32, #tpu.memory_space<vmem>>, vector<256x128xf32>,
    return
  }
  func.func @transform_0(%arg0: i32) -> (i32, i32) {
    %c0_i32 = arith.constant 0 : i32
    %c0_i32_0 = arith.constant 0 : i32
    return %arg0, %c0_i32 : i32, i32
  }
  func.func @transform_1(%arg0: i32) -> (i32, i32) {
    %c0_i32 = arith.constant 0 : i32
    %c0_i32_0 = arith.constant 0 : i32
    %c0_i32_1 = arith.constant 0 : i32
    return %c0_i32, %c0_i32_0 : i32, i32
  }
  func.func @transform_2(%arg0: i32) -> (i32, i32) {
    %c0_i32 = arith.constant 0 : i32
    %c0_i32_0 = arith.constant 0 : i32
    return %arg0, %c0_i32 : i32, i32
  }
  func.func @transform_3(%arg0: i32) -> (i32, i32) {
    %c0_i32 = arith.constant 0 : i32
    %c0_i32_0 = arith.constant 0 : i32
    return %arg0, %c0_i32 : i32, i32
  }
}

</mosaic_0001>

<llo_original>
// kernel: tpu_custom_call.1
$region0: #{tpu_custom_call.1}
  #allocation0 [shape = 'u32[]', space=smem, size = 0x4, offset = 0x4, fixed_abs, tag = 'smem constant byte address 0x4 - core index']
  #allocation1 [shape = 'u32[144,128]{1,0:T(1,128)}', space=vmem, size = 0x12000, scoped, tag = 'internal scratch']
  %s0 = inlined_call_operand.vmem [shape: f32[256,64], index: 0, kind: input, shape index: {}]
  %s1 = inlined_call_operand.hbm [shape: f32[1024,128], index: 1, kind: input, shape index: {}]
  %s2 = inlined_call_operand.hbm [shape: f32[256,128], index: 2, kind: output, shape index: {0}]
  %s3 = inlined_call_operand.hbm [shape: f32[256,128], index: 3, kind: output, shape index: {1}]
  %4 = xla_tuple %s2, %s3
  %s5 = sld [smem:[#allocation0]]
  $region30: #{tpu_custom_call.1} parent=0
    _
  %s7 = ssub.s32 1, %s5
  %s8 = scalar_select 0, %s7, %s5
  $region1: #{tpu_custom_call.1} parent=0
    #allocation2 [shape = 'u8[524288]{0}', space=vmem, size = 0x80000, scoped, tag = 'input window, operand 1, single buffered']
    #allocation3 [shape = 's32[1]{0}', space=sflag, size = 0x4, scoped, tag = 'scoped memory for tpu_custom_call.1']
    #allocation4 [shape = 's32[1]{0}', space=sflag, size = 0x4, scoped, tag = 'scoped memory for tpu_custom_call.1']
    #allocation5 [shape = 'u8[131072]{0}', space=vmem, size = 0x20000, scoped, tag = 'output window, operand 0, single buffered']
    #allocation6 [shape = 'u8[131072]{0}', space=vmem, size = 0x20000, scoped, tag = 'output window, operand 1, single buffered']
    #allocation7 [shape = 's32[1]{0}', space=sflag, size = 0x4, scoped, tag = 'scoped memory for tpu_custom_call.1']
    %9 = vsyncpa [#allocation3], 0
    %10 = vsyncpa [#allocation4], 0
    %11 = vsyncpa [#allocation7], 0
    // Predicated region
    $region2: #{tpu_custom_call.1} parent=1 // pred_check
      _
    $region3: #{tpu_custom_call.1} parent=1 // pred_check_branch
      %13 = sbr.rel (0) target = $region5
    $region4: #{tpu_custom_call.1} parent=1 // pred_region
      _
    $region5: #{tpu_custom_call.1} parent=1 // pred_fallthru
      _
    // Predicated region
    $region6: #{tpu_custom_call.1} parent=1 // pred_check
      _
    $region7: #{tpu_custom_call.1} parent=1 // pred_check_branch
      %15 = sbr.rel (0) target = $region9
    $region8: #{tpu_custom_call.1} parent=1 // pred_region
      %s17 = ssub.s32 16384, 16384
      %18 = vsyncadd [#allocation3], %s17
      %s19 = sshll.u32 [#allocation2], 4
      %s20 = int_to_ptr.vmem [resolvable:$true] %s19
      %25 = dma.hbm_to_vmem [thread:$0]  %s1, 16384, %s20, [#allocation3], 128, 128, 8
    $region9: #{tpu_custom_call.1} parent=1 // pred_fallthru
      _
    // Predicated region
    $region10: #{tpu_custom_call.1} parent=1 // pred_check
      _
    $region11: #{tpu_custom_call.1} parent=1 // pred_check_branch
      %27 = sbr.rel (0) target = $region13
    $region12: #{tpu_custom_call.1} parent=1 // pred_region
      %28 = dma.done [#allocation3], 16384
    $region13: #{tpu_custom_call.1} parent=1 // pred_fallthru
      _
    %v29 = vld [vmem:[%s0] sm:$0xff]
    %v30 = vld [vmem:[%s0 + $0x8] sm:$0xff]
    %v31 = vld [vmem:[%s0 + $0x10] sm:$0xff]
    %v32 = vld [vmem:[%s0 + $0x18] sm:$0xff]
    %v33 = vld [vmem:[%s0 + $0x20] sm:$0xff]
    %v34 = vld [vmem:[%s0 + $0x28] sm:$0xff]
    %v35 = vld [vmem:[%s0 + $0x30] sm:$0xff]
    %v36 = vld [vmem:[%s0 + $0x38] sm:$0xff]
    %v37 = vld [vmem:[%s0 + $0x40] sm:$0xff]
    %v38 = vld [vmem:[%s0 + $0x48] sm:$0xff]
    %v39 = vld [vmem:[%s0 + $0x50] sm:$0xff]
    %v40 = vld [vmem:[%s0 + $0x58] sm:$0xff]
    %v41 = vld [vmem:[%s0 + $0x60] sm:$0xff]
    %v42 = vld [vmem:[%s0 + $0x68] sm:$0xff]
    %v43 = vld [vmem:[%s0 + $0x70] sm:$0xff]
    %v44 = vld [vmem:[%s0 + $0x78] sm:$0xff]
    %v45 = vld [vmem:[%s0 + $0x80] sm:$0xff]
    %v46 = vld [vmem:[%s0 + $0x88] sm:$0xff]
    %v47 = vld [vmem:[%s0 + $0x90] sm:$0xff]
    %v48 = vld [vmem:[%s0 + $0x98] sm:$0xff]
    %v49 = vld [vmem:[%s0 + $0xa0] sm:$0xff]
    %v50 = vld [vmem:[%s0 + $0xa8] sm:$0xff]
    %v51 = vld [vmem:[%s0 + $0xb0] sm:$0xff]
    %v52 = vld [vmem:[%s0 + $0xb8] sm:$0xff]
    %v53 = vld [vmem:[%s0 + $0xc0] sm:$0xff]
    %v54 = vld [vmem:[%s0 + $0xc8] sm:$0xff]
    %v55 = vld [vmem:[%s0 + $0xd0] sm:$0xff]
    %v56 = vld [vmem:[%s0 + $0xd8] sm:$0xff]
    %v57 = vld [vmem:[%s0 + $0xe0] sm:$0xff]
    %v58 = vld [vmem:[%s0 + $0xe8] sm:$0xff]
    %v59 = vld [vmem:[%s0 + $0xf0] sm:$0xff]
    %v60 = vld [vmem:[%s0 + $0xf8] sm:$0xff]
    %v61 = vld [vmem:[#allocation2] sm:$0xff]
    %v62 = vld [vmem:[#allocation2 + $0x8] sm:$0xff]
    %v63 = vld [vmem:[#allocation2 + $0x10] sm:$0xff]
    %v64 = vld [vmem:[#allocation2 + $0x18] sm:$0xff]
    %v65 = vld [vmem:[#allocation2 + $0x20] sm:$0xff]
    %v66 = vld [vmem:[#allocation2 + $0x28] sm:$0xff]
    %v67 = vld [vmem:[#allocation2 + $0x30] sm:$0xff]
    %v68 = vld [vmem:[#allocation2 + $0x38] sm:$0xff]
    %v69 = vld [vmem:[#allocation2 + $0x40] sm:$0x1]
    %v70 = vlaneseq
    %v71 = vshrl.u32 %v70, 7
    %v72 = vsub.s32 0, %v71
    %v73 = vrot.slane %v69, %v72
    %vm74 = vcmask 523264
    %v76 = vsel %vm74, %v29, 0
    %v79 = vsel %vm74, %v30, 0
    %v82 = vsel %vm74, %v31, 0
    %v85 = vsel %vm74, %v32, 0
    %v88 = vsel %vm74, %v33, 0
    %v91 = vsel %vm74, %v34, 0
    %v94 = vsel %vm74, %v35, 0
    %v97 = vsel %vm74, %v36, 0
    %v100 = vsel %vm74, %v37, 0
    %v103 = vsel %vm74, %v38, 0
    %v106 = vsel %vm74, %v39, 0
    %v109 = vsel %vm74, %v40, 0
    %v112 = vsel %vm74, %v41, 0
    %v115 = vsel %vm74, %v42, 0
    %v118 = vsel %vm74, %v43, 0
    %v121 = vsel %vm74, %v44, 0
    %v124 = vsel %vm74, %v45, 0
    %v127 = vsel %vm74, %v46, 0
    %v130 = vsel %vm74, %v47, 0
    %v133 = vsel %vm74, %v48, 0
    %v136 = vsel %vm74, %v49, 0
    %v139 = vsel %vm74, %v50, 0
    %v142 = vsel %vm74, %v51, 0
    %v145 = vsel %vm74, %v52, 0
    %v148 = vsel %vm74, %v53, 0
    %v151 = vsel %vm74, %v54, 0
    %v154 = vsel %vm74, %v55, 0
    %v157 = vsel %vm74, %v56, 0
    %v160 = vsel %vm74, %v57, 0
    %v163 = vsel %vm74, %v58, 0
    %v166 = vsel %vm74, %v59, 0
    %v169 = vsel %vm74, %v60, 0
    %171 = vmatprep.subr.mxu0 0.0
    %172 = vmatpush1.msra.mxu0 %v61
    %173 = vmatprep.subr.mxu0 0.0
    %174 = vmatpush1.msra.mxu0 %v62
    %175 = vmatprep.subr.mxu0 0.0
    %176 = vmatpush1.msra.mxu0 %v63
    %177 = vmatprep.subr.mxu0 0.0
    %178 = vmatpush1.msra.mxu0 %v64
    %179 = vmatprep.subr.mxu0 0.0
    %180 = vmatpush1.msra.mxu0 %v65
    %181 = vmatprep.subr.mxu0 0.0
    %182 = vmatpush1.msra.mxu0 %v66
    %183 = vmatprep.subr.mxu0 0.0
    %184 = vmatpush1.msra.mxu0 %v67
    %185 = vmatprep.subr.mxu0 0.0
    %186 = vmatpush1.msra.mxu0 %v68
    %187 = vmatprep.subr.mxu0 0.0
    %188 = vmatpush1.msra.mxu0 0.0
    %189 = vmatprep.subr.mxu0 0.0
    %190 = vmatpush1.msra.mxu0 0.0
    %191 = vmatprep.subr.mxu0 0.0
    %192 = vmatpush1.msra.mxu0 0.0
    %193 = vmatprep.subr.mxu0 0.0
    %194 = vmatpush1.msra.mxu0 0.0
    %195 = vmatprep.subr.mxu0 0.0
    %196 = vmatpush1.msra.mxu0 0.0
    %197 = vmatprep.subr.mxu0 0.0
    %198 = vmatpush1.msra.mxu0 0.0
    %199 = vmatprep.subr.mxu0 0.0
    %200 = vmatpush1.msra.mxu0 0.0
    %201 = vmatprep.subr.mxu0 0.0
    %202 = vmatpush1.msra.mxu0 0.0
    %203 = vmatprep.subr.mxu0 0.0
    %204 = vmatpush1.msra.mxu0 0.0
    %205 = vmatprep.subr.mxu0 0.0
    %206 = vmatpush1.msra.mxu0 0.0
    %207 = vmatprep.subr.mxu0 0.0
    %208 = vmatpush1.msra.mxu0 0.0
    %209 = vmatprep.subr.mxu0 0.0
    %210 = vmatpush1.msra.mxu0 0.0
    %211 = vmatprep.subr.mxu0 0.0
    %212 = vmatpush1.msra.mxu0 0.0
    %213 = vmatprep.subr.mxu0 0.0
    %214 = vmatpush1.msra.mxu0 0.0
    %215 = vmatprep.subr.mxu0 0.0
    %216 = vmatpush1.msra.mxu0 0.0
    %217 = vmatprep.subr.mxu0 0.0
    %218 = vmatpush1.msra.mxu0 0.0
    %219 = vmatprep.subr.mxu0 0.0
    %220 = vmatpush1.msra.mxu0 0.0
    %221 = vmatprep.subr.mxu0 0.0
    %222 = vmatpush1.msra.mxu0 0.0
    %223 = vmatprep.subr.mxu0 0.0
    %224 = vmatpush1.msra.mxu0 0.0
    %225 = vmatprep.subr.mxu0 0.0
    %226 = vmatpush1.msra.mxu0 0.0
    %227 = vmatprep.subr.mxu0 0.0
    %228 = vmatpush1.msra.mxu0 0.0
    %229 = vmatprep.subr.mxu0 0.0
    %230 = vmatpush1.msra.mxu0 0.0
    %231 = vmatprep.subr.mxu0 0.0
    %232 = vmatpush1.msra.mxu0 0.0
    %233 = vmatprep.subr.mxu0 0.0
    %234 = vmatpush1.msra.mxu0 0.0
    %235 = vmatprep.mubr.f32.mxu0 0.0
    %236 = vmatmul.mubr.f32.gmra.mrb[0].mxu0 %v76
    %v237 = vpop.f32.mrb[0].mxu0
    %v238 = vadd.f32 %v73, %v237
    %v239 = vpop.f32.mrb[0].mxu0
    %240 = vmatprep.mubr.f32.mxu0 0.0
    %241 = vmatmul.mubr.f32.gmra.mrb[0].mxu0 %v79
    %v242 = vpop.f32.mrb[0].mxu0
    %v243 = vadd.f32 %v73, %v242
    %v244 = vpop.f32.mrb[0].mxu0
    %245 = vmatprep.mubr.f32.mxu0 0.0
    %246 = vmatmul.mubr.f32.gmra.mrb[0].mxu0 %v82
    %v247 = vpop.f32.mrb[0].mxu0
    %v248 = vadd.f32 %v73, %v247
    %v249 = vpop.f32.mrb[0].mxu0
    %250 = vmatprep.mubr.f32.mxu0 0.0
    %251 = vmatmul.mubr.f32.gmra.mrb[0].mxu0 %v85
    %v252 = vpop.f32.mrb[0].mxu0
    %v253 = vadd.f32 %v73, %v252
    %v254 = vpop.f32.mrb[0].mxu0
    %255 = vmatprep.mubr.f32.mxu0 0.0
    %256 = vmatmul.mubr.f32.gmra.mrb[0].mxu0 %v88
    %v257 = vpop.f32.mrb[0].mxu0
    %v258 = vadd.f32 %v73, %v257
    %v259 = vpop.f32.mrb[0].mxu0
    %260 = vmatprep.mubr.f32.mxu0 0.0
    %261 = vmatmul.mubr.f32.gmra.mrb[0].mxu0 %v91
    %v262 = vpop.f32.mrb[0].mxu0
    %v263 = vadd.f32 %v73, %v262
    %v264 = vpop.f32.mrb[0].mxu0
    %265 = vmatprep.mubr.f32.mxu0 0.0
    %266 = vmatmul.mubr.f32.gmra.mrb[0].mxu0 %v94
    %v267 = vpop.f32.mrb[0].mxu0
    %v268 = vadd.f32 %v73, %v267
    %v269 = vpop.f32.mrb[0].mxu0
    %270 = vmatprep.mubr.f32.mxu0 0.0
    %271 = vmatmul.mubr.f32.gmra.mrb[0].mxu0 %v97
    %v272 = vpop.f32.mrb[0].mxu0
    %v273 = vadd.f32 %v73, %v272
    %v274 = vpop.f32.mrb[0].mxu0
    %275 = vmatprep.mubr.f32.mxu0 0.0
    %276 = vmatmul.mubr.f32.gmra.mrb[0].mxu0 %v100
    %v277 = vpop.f32.mrb[0].mxu0
    %v278 = vadd.f32 %v73, %v277
    %v279 = vpop.f32.mrb[0].mxu0
    %280 = vmatprep.mubr.f32.mxu0 0.0
    %281 = vmatmul.mubr.f32.gmra.mrb[0].mxu0 %v103
    %v282 = vpop.f32.mrb[0].mxu0
    %v283 = vadd.f32 %v73, %v282
    %v284 = vpop.f32.mrb[0].mxu0
    %285 = vmatprep.mubr.f32.mxu0 0.0
    %286 = vmatmul.mubr.f32.gmra.mrb[0].mxu0 %v106
    %v287 = vpop.f32.mrb[0].mxu0
    %v288 = vadd.f32 %v73, %v287
    %v289 = vpop.f32.mrb[0].mxu0
    %290 = vmatprep.mubr.f32.mxu0 0.0
    %291 = vmatmul.mubr.f32.gmra.mrb[0].mxu0 %v109
    %v292 = vpop.f32.mrb[0].mxu0
    %v293 = vadd.f32 %v73, %v292
    %v294 = vpop.f32.mrb[0].mxu0
    %295 = vmatprep.mubr.f32.mxu0 0.0
    %296 = vmatmul.mubr.f32.gmra.mrb[0].mxu0 %v112
    %v297 = vpop.f32.mrb[0].mxu0
    %v298 = vadd.f32 %v73, %v297
    %v299 = vpop.f32.mrb[0].mxu0
    %300 = vmatprep.mubr.f32.mxu0 0.0
    %301 = vmatmul.mubr.f32.gmra.mrb[0].mxu0 %v115
    %v302 = vpop.f32.mrb[0].mxu0
    %v303 = vadd.f32 %v73, %v302
    %v304 = vpop.f32.mrb[0].mxu0
    %305 = vmatprep.mubr.f32.mxu0 0.0
    %306 = vmatmul.mubr.f32.gmra.mrb[0].mxu0 %v118
    %v307 = vpop.f32.mrb[0].mxu0
    %v308 = vadd.f32 %v73, %v307
    %v309 = vpop.f32.mrb[0].mxu0
    %310 = vmatprep.mubr.f32.mxu0 0.0
    %311 = vmatmul.mubr.f32.gmra.mrb[0].mxu0 %v121
    %v312 = vpop.f32.mrb[0].mxu0
    %v313 = vadd.f32 %v73, %v312
    %v314 = vpop.f32.mrb[0].mxu0
    %315 = vmatprep.mubr.f32.mxu0 0.0
    %316 = vmatmul.mubr.f32.gmra.mrb[0].mxu0 %v124
    %v317 = vpop.f32.mrb[0].mxu0
    %v318 = vadd.f32 %v73, %v317
    %v319 = vpop.f32.mrb[0].mxu0
    %320 = vmatprep.mubr.f32.mxu0 0.0
    %321 = vmatmul.mubr.f32.gmra.mrb[0].mxu0 %v127
    %v322 = vpop.f32.mrb[0].mxu0
    %v323 = vadd.f32 %v73, %v322
    %v324 = vpop.f32.mrb[0].mxu0
    %325 = vmatprep.mubr.f32.mxu0 0.0
    %326 = vmatmul.mubr.f32.gmra.mrb[0].mxu0 %v130
    %v327 = vpop.f32.mrb[0].mxu0
    %v328 = vadd.f32 %v73, %v327
    %v329 = vpop.f32.mrb[0].mxu0
    %330 = vmatprep.mubr.f32.mxu0 0.0
    %331 = vmatmul.mubr.f32.gmra.mrb[0].mxu0 %v133
    %v332 = vpop.f32.mrb[0].mxu0
    %v333 = vadd.f32 %v73, %v332
    %v334 = vpop.f32.mrb[0].mxu0
    %335 = vmatprep.mubr.f32.mxu0 0.0
    %336 = vmatmul.mubr.f32.gmra.mrb[0].mxu0 %v136
    %v337 = vpop.f32.mrb[0].mxu0
    %v338 = vadd.f32 %v73, %v337
    %v339 = vpop.f32.mrb[0].mxu0
    %340 = vmatprep.mubr.f32.mxu0 0.0
    %341 = vmatmul.mubr.f32.gmra.mrb[0].mxu0 %v139
    %v342 = vpop.f32.mrb[0].mxu0
    %v343 = vadd.f32 %v73, %v342
    %v344 = vpop.f32.mrb[0].mxu0
    %345 = vmatprep.mubr.f32.mxu0 0.0
    %346 = vmatmul.mubr.f32.gmra.mrb[0].mxu0 %v142
    %v347 = vpop.f32.mrb[0].mxu0
    %v348 = vadd.f32 %v73, %v347
    %v349 = vpop.f32.mrb[0].mxu0
    %350 = vmatprep.mubr.f32.mxu0 0.0
    %351 = vmatmul.mubr.f32.gmra.mrb[0].mxu0 %v145
    %v352 = vpop.f32.mrb[0].mxu0
    %v353 = vadd.f32 %v73, %v352
    %v354 = vpop.f32.mrb[0].mxu0
    %355 = vmatprep.mubr.f32.mxu0 0.0
    %356 = vmatmul.mubr.f32.gmra.mrb[0].mxu0 %v148
    %v357 = vpop.f32.mrb[0].mxu0
    %v358 = vadd.f32 %v73, %v357
    %v359 = vpop.f32.mrb[0].mxu0
    %360 = vmatprep.mubr.f32.mxu0 0.0
    %361 = vmatmul.mubr.f32.gmra.mrb[0].mxu0 %v151
    %v362 = vpop.f32.mrb[0].mxu0
    %v363 = vadd.f32 %v73, %v362
    %v364 = vpop.f32.mrb[0].mxu0
    %365 = vmatprep.mubr.f32.mxu0 0.0
    %366 = vmatmul.mubr.f32.gmra.mrb[0].mxu0 %v154
    %v367 = vpop.f32.mrb[0].mxu0
    %v368 = vadd.f32 %v73, %v367
    %v369 = vpop.f32.mrb[0].mxu0
    %370 = vmatprep.mubr.f32.mxu0 0.0
    %371 = vmatmul.mubr.f32.gmra.mrb[0].mxu0 %v157
    %v372 = vpop.f32.mrb[0].mxu0
    %v373 = vadd.f32 %v73, %v372
    %v374 = vpop.f32.mrb[0].mxu0
    %375 = vmatprep.mubr.f32.mxu0 0.0
    %376 = vmatmul.mubr.f32.gmra.mrb[0].mxu0 %v160
    %v377 = vpop.f32.mrb[0].mxu0
    %v378 = vadd.f32 %v73, %v377
    %v379 = vpop.f32.mrb[0].mxu0
    %380 = vmatprep.mubr.f32.mxu0 0.0
    %381 = vmatmul.mubr.f32.gmra.mrb[0].mxu0 %v163
    %v382 = vpop.f32.mrb[0].mxu0
    %v383 = vadd.f32 %v73, %v382
    %v384 = vpop.f32.mrb[0].mxu0
    %385 = vmatprep.mubr.f32.mxu0 0.0
    %386 = vmatmul.mubr.f32.gmra.mrb[0].mxu0 %v166
    %v387 = vpop.f32.mrb[0].mxu0
    %v388 = vadd.f32 %v73, %v387
    %v389 = vpop.f32.mrb[0].mxu0
    %390 = vmatprep.mubr.f32.mxu0 0.0
    %391 = vmatmul.mubr.f32.gmra.mrb[0].mxu0 %v169
    %v392 = vpop.f32.mrb[0].mxu0
    %v393 = vadd.f32 %v73, %v392
    %v394 = vpop.f32.mrb[0].mxu0
    %395 = vdwg.mxu0
    %vm396 = vcmp.gt.f32.partialorder %v238, 0.0
    %vm397 = vcmp.gt.f32.partialorder %v243, 0.0
    %vm398 = vcmp.gt.f32.partialorder %v248, 0.0
    %vm399 = vcmp.gt.f32.partialorder %v253, 0.0
    %vm400 = vcmp.gt.f32.partialorder %v258, 0.0
    %vm401 = vcmp.gt.f32.partialorder %v263, 0.0
    %vm402 = vcmp.gt.f32.partialorder %v268, 0.0
    %vm403 = vcmp.gt.f32.partialorder %v273, 0.0
    %vm404 = vcmp.gt.f32.partialorder %v278, 0.0
    %vm405 = vcmp.gt.f32.partialorder %v283, 0.0
    %vm406 = vcmp.gt.f32.partialorder %v288, 0.0
    %vm407 = vcmp.gt.f32.partialorder %v293, 0.0
    %vm408 = vcmp.gt.f32.partialorder %v298, 0.0
    %vm409 = vcmp.gt.f32.partialorder %v303, 0.0
    %vm410 = vcmp.gt.f32.partialorder %v308, 0.0
    %vm411 = vcmp.gt.f32.partialorder %v313, 0.0
    %vm412 = vcmp.gt.f32.partialorder %v318, 0.0
    %vm413 = vcmp.gt.f32.partialorder %v323, 0.0
    %vm414 = vcmp.gt.f32.partialorder %v328, 0.0
    %vm415 = vcmp.gt.f32.partialorder %v333, 0.0
    %vm416 = vcmp.gt.f32.partialorder %v338, 0.0
    %vm417 = vcmp.gt.f32.partialorder %v343, 0.0
    %vm418 = vcmp.gt.f32.partialorder %v348, 0.0
    %vm419 = vcmp.gt.f32.partialorder %v353, 0.0
    %vm420 = vcmp.gt.f32.partialorder %v358, 0.0
    %vm421 = vcmp.gt.f32.partialorder %v363, 0.0
    %vm422 = vcmp.gt.f32.partialorder %v368, 0.0
    %vm423 = vcmp.gt.f32.partialorder %v373, 0.0
    %vm424 = vcmp.gt.f32.partialorder %v378, 0.0
    %vm425 = vcmp.gt.f32.partialorder %v383, 0.0
    %vm426 = vcmp.gt.f32.partialorder %v388, 0.0
    %vm427 = vcmp.gt.f32.partialorder %v393, 0.0
    %v428 = vmul.f32 %v238, 0.2
    %v429 = vmul.f32 %v243, 0.2
    %v430 = vmul.f32 %v248, 0.2
    %v431 = vmul.f32 %v253, 0.2
    %v432 = vmul.f32 %v258, 0.2
    %v433 = vmul.f32 %v263, 0.2
    %v434 = vmul.f32 %v268, 0.2
    %v435 = vmul.f32 %v273, 0.2
    %v436 = vmul.f32 %v278, 0.2
    %v437 = vmul.f32 %v283, 0.2
    %v438 = vmul.f32 %v288, 0.2
    %v439 = vmul.f32 %v293, 0.2
    %v440 = vmul.f32 %v298, 0.2
    %v441 = vmul.f32 %v303, 0.2
    %v442 = vmul.f32 %v308, 0.2
    %v443 = vmul.f32 %v313, 0.2
    %v444 = vmul.f32 %v318, 0.2
    %v445 = vmul.f32 %v323, 0.2
    %v446 = vmul.f32 %v328, 0.2
    %v447 = vmul.f32 %v333, 0.2
    %v448 = vmul.f32 %v338, 0.2
    %v449 = vmul.f32 %v343, 0.2
    %v450 = vmul.f32 %v348, 0.2
    %v451 = vmul.f32 %v353, 0.2
    %v452 = vmul.f32 %v358, 0.2
    %v453 = vmul.f32 %v363, 0.2
    %v454 = vmul.f32 %v368, 0.2
    %v455 = vmul.f32 %v373, 0.2
    %v456 = vmul.f32 %v378, 0.2
    %v457 = vmul.f32 %v383, 0.2
    %v458 = vmul.f32 %v388, 0.2
    %v459 = vmul.f32 %v393, 0.2
    %v460 = vsel %vm396, %v238, %v428
    %v461 = vsel %vm397, %v243, %v429
    %v462 = vsel %vm398, %v248, %v430
    %v463 = vsel %vm399, %v253, %v431
    %v464 = vsel %vm400, %v258, %v432
    %v465 = vsel %vm401, %v263, %v433
    %v466 = vsel %vm402, %v268, %v434
    %v467 = vsel %vm403, %v273, %v435
    %v468 = vsel %vm404, %v278, %v436
    %v469 = vsel %vm405, %v283, %v437
    %v470 = vsel %vm406, %v288, %v438
    %v471 = vsel %vm407, %v293, %v439
    %v472 = vsel %vm408, %v298, %v440
    %v473 = vsel %vm409, %v303, %v441
    %v474 = vsel %vm410, %v308, %v442
    %v475 = vsel %vm411, %v313, %v443
    %v476 = vsel %vm412, %v318, %v444
    %v477 = vsel %vm413, %v323, %v445
    %v478 = vsel %vm414, %v328, %v446
    %v479 = vsel %vm415, %v333, %v447
    %v480 = vsel %vm416, %v338, %v448
    %v481 = vsel %vm417, %v343, %v449
    %v482 = vsel %vm418, %v348, %v450
    %v483 = vsel %vm419, %v353, %v451
    %v484 = vsel %vm420, %v358, %v452
    %v485 = vsel %vm421, %v363, %v453
    %v486 = vsel %vm422, %v368, %v454
    %v487 = vsel %vm423, %v373, %v455
    %v488 = vsel %vm424, %v378, %v456
    %v489 = vsel %vm425, %v383, %v457
    %v490 = vsel %vm426, %v388, %v458
    %v491 = vsel %vm427, %v393, %v459
    %v492 = vld [vmem:[#allocation2 + $0x48] sm:$0xff]
    %v493 = vld [vmem:[#allocation2 + $0x50] sm:$0xff]
    %v494 = vld [vmem:[#allocation2 + $0x58] sm:$0xff]
    %v495 = vld [vmem:[#allocation2 + $0x60] sm:$0xff]
    %v496 = vld [vmem:[#allocation2 + $0x68] sm:$0xff]
    %v497 = vld [vmem:[#allocation2 + $0x70] sm:$0xff]
    %v498 = vld [vmem:[#allocation2 + $0x78] sm:$0xff]
    %v499 = vld [vmem:[#allocation2 + $0x80] sm:$0xff]
    %v500 = vld [vmem:[#allocation2 + $0x88] sm:$0xff]
    %v501 = vld [vmem:[#allocation2 + $0x90] sm:$0xff]
    %v502 = vld [vmem:[#allocation2 + $0x98] sm:$0xff]
    %v503 = vld [vmem:[#allocation2 + $0xa0] sm:$0xff]
    %v504 = vld [vmem:[#allocation2 + $0xa8] sm:$0xff]
    %v505 = vld [vmem:[#allocation2 + $0xb0] sm:$0xff]
    %v506 = vld [vmem:[#allocation2 + $0xb8] sm:$0xff]
    %v507 = vld [vmem:[#allocation2 + $0xc0] sm:$0xff]
    %v508 = vld [vmem:[#allocation2 + $0xc8] sm:$0x1]
    %v509 = vlaneseq
    %v510 = vshrl.u32 %v509, 7
    %v511 = vsub.s32 0, %v510
    %v512 = vrot.slane %v508, %v511
    %513 = vmatprep.subr.mxu0 0.0
    %514 = vmatpush1.msra.mxu0 %v492
    %515 = vmatprep.subr.mxu0 0.0
    %516 = vmatpush1.msra.mxu0 %v493
    %517 = vmatprep.subr.mxu0 0.0
    %518 = vmatpush1.msra.mxu0 %v494
    %519 = vmatprep.subr.mxu0 0.0
    %520 = vmatpush1.msra.mxu0 %v495
    %521 = vmatprep.subr.mxu0 0.0
    %522 = vmatpush1.msra.mxu0 %v496
    %523 = vmatprep.subr.mxu0 0.0
    %524 = vmatpush1.msra.mxu0 %v497
    %525 = vmatprep.subr.mxu0 0.0
    %526 = vmatpush1.msra.mxu0 %v498
    %527 = vmatprep.subr.mxu0 0.0
    %528 = vmatpush1.msra.mxu0 %v499
    %529 = vmatprep.subr.mxu0 0.0
    %530 = vmatpush1.msra.mxu0 %v500
    %531 = vmatprep.subr.mxu0 0.0
    %532 = vmatpush1.msra.mxu0 %v501
    %533 = vmatprep.subr.mxu0 0.0
    %534 = vmatpush1.msra.mxu0 %v502
    %535 = vmatprep.subr.mxu0 0.0
    %536 = vmatpush1.msra.mxu0 %v503
    %537 = vmatprep.subr.mxu0 0.0
    %538 = vmatpush1.msra.mxu0 %v504
    %539 = vmatprep.subr.mxu0 0.0
    %540 = vmatpush1.msra.mxu0 %v505
    %541 = vmatprep.subr.mxu0 0.0
    %542 = vmatpush1.msra.mxu0 %v506
    %543 = vmatprep.subr.mxu0 0.0
    %544 = vmatpush1.msra.mxu0 %v507
    %545 = vmatprep.subr.mxu0 0.0
    %546 = vmatpush1.msra.mxu0 0.0
    %547 = vmatprep.subr.mxu0 0.0
    %548 = vmatpush1.msra.mxu0 0.0
    %549 = vmatprep.subr.mxu0 0.0
    %550 = vmatpush1.msra.mxu0 0.0
    %551 = vmatprep.subr.mxu0 0.0
    %552 = vmatpush1.msra.mxu0 0.0
    %553 = vmatprep.subr.mxu0 0.0
    %554 = vmatpush1.msra.mxu0 0.0
    %555 = vmatprep.subr.mxu0 0.0
    %556 = vmatpush1.msra.mxu0 0.0
    %557 = vmatprep.subr.mxu0 0.0
    %558 = vmatpush1.msra.mxu0 0.0
    %559 = vmatprep.subr.mxu0 0.0
    %560 = vmatpush1.msra.mxu0 0.0
    %561 = vmatprep.subr.mxu0 0.0
    %562 = vmatpush1.msra.mxu0 0.0
    %563 = vmatprep.subr.mxu0 0.0
    %564 = vmatpush1.msra.mxu0 0.0
    %565 = vmatprep.subr.mxu0 0.0
    %566 = vmatpush1.msra.mxu0 0.0
    %567 = vmatprep.subr.mxu0 0.0
    %568 = vmatpush1.msra.mxu0 0.0
    %569 = vmatprep.subr.mxu0 0.0
    %570 = vmatpush1.msra.mxu0 0.0
    %571 = vmatprep.subr.mxu0 0.0
    %572 = vmatpush1.msra.mxu0 0.0
    %573 = vmatprep.subr.mxu0 0.0
    %574 = vmatpush1.msra.mxu0 0.0
    %575 = vmatprep.subr.mxu0 0.0
    %576 = vmatpush1.msra.mxu0 0.0
    %577 = vmatprep.mubr.f32.mxu0 0.0
    %578 = vmatmul.mubr.f32.gmra.mrb[0].mxu0 %v460
    %v579 = vpop.f32.mrb[0].mxu0
    %v580 = vadd.f32 %v512, %v579
    %v581 = vpop.f32.mrb[0].mxu0
    %582 = vmatprep.mubr.f32.mxu0 0.0
    %583 = vmatmul.mubr.f32.gmra.mrb[0].mxu0 %v461
    %v584 = vpop.f32.mrb[0].mxu0
    %v585 = vadd.f32 %v512, %v584
    %v586 = vpop.f32.mrb[0].mxu0
    %587 = vmatprep.mubr.f32.mxu0 0.0
    %588 = vmatmul.mubr.f32.gmra.mrb[0].mxu0 %v462
    %v589 = vpop.f32.mrb[0].mxu0
    %v590 = vadd.f32 %v512, %v589
    %v591 = vpop.f32.mrb[0].mxu0
    %592 = vmatprep.mubr.f32.mxu0 0.0
    %593 = vmatmul.mubr.f32.gmra.mrb[0].mxu0 %v463
    %v594 = vpop.f32.mrb[0].mxu0
    %v595 = vadd.f32 %v512, %v594
    %v596 = vpop.f32.mrb[0].mxu0
    %597 = vmatprep.mubr.f32.mxu0 0.0
    %598 = vmatmul.mubr.f32.gmra.mrb[0].mxu0 %v464
    %v599 = vpop.f32.mrb[0].mxu0
    %v600 = vadd.f32 %v512, %v599
    %v601 = vpop.f32.mrb[0].mxu0
    %602 = vmatprep.mubr.f32.mxu0 0.0
    %603 = vmatmul.mubr.f32.gmra.mrb[0].mxu0 %v465
    %v604 = vpop.f32.mrb[0].mxu0
    %v605 = vadd.f32 %v512, %v604
    %v606 = vpop.f32.mrb[0].mxu0
    %607 = vmatprep.mubr.f32.mxu0 0.0
    %608 = vmatmul.mubr.f32.gmra.mrb[0].mxu0 %v466
    %v609 = vpop.f32.mrb[0].mxu0
    %v610 = vadd.f32 %v512, %v609
    %v611 = vpop.f32.mrb[0].mxu0
    %612 = vmatprep.mubr.f32.mxu0 0.0
    %613 = vmatmul.mubr.f32.gmra.mrb[0].mxu0 %v467
    %v614 = vpop.f32.mrb[0].mxu0
    %v615 = vadd.f32 %v512, %v614
    %v616 = vpop.f32.mrb[0].mxu0
    %617 = vmatprep.mubr.f32.mxu0 0.0
    %618 = vmatmul.mubr.f32.gmra.mrb[0].mxu0 %v468
    %v619 = vpop.f32.mrb[0].mxu0
    %v620 = vadd.f32 %v512, %v619
    %v621 = vpop.f32.mrb[0].mxu0
    %622 = vmatprep.mubr.f32.mxu0 0.0
    %623 = vmatmul.mubr.f32.gmra.mrb[0].mxu0 %v469
    %v624 = vpop.f32.mrb[0].mxu0
    %v625 = vadd.f32 %v512, %v624
    %v626 = vpop.f32.mrb[0].mxu0
    %627 = vmatprep.mubr.f32.mxu0 0.0
    %628 = vmatmul.mubr.f32.gmra.mrb[0].mxu0 %v470
    %v629 = vpop.f32.mrb[0].mxu0
    %v630 = vadd.f32 %v512, %v629
    %v631 = vpop.f32.mrb[0].mxu0
    %632 = vmatprep.mubr.f32.mxu0 0.0
    %633 = vmatmul.mubr.f32.gmra.mrb[0].mxu0 %v471
    %v634 = vpop.f32.mrb[0].mxu0
    %v635 = vadd.f32 %v512, %v634
    %v636 = vpop.f32.mrb[0].mxu0
    %637 = vmatprep.mubr.f32.mxu0 0.0
    %638 = vmatmul.mubr.f32.gmra.mrb[0].mxu0 %v472
    %v639 = vpop.f32.mrb[0].mxu0
    %v640 = vadd.f32 %v512, %v639
    %v641 = vpop.f32.mrb[0].mxu0
    %642 = vmatprep.mubr.f32.mxu0 0.0
    %643 = vmatmul.mubr.f32.gmra.mrb[0].mxu0 %v473
    %v644 = vpop.f32.mrb[0].mxu0
    %v645 = vadd.f32 %v512, %v644
    %v646 = vpop.f32.mrb[0].mxu0
    %647 = vmatprep.mubr.f32.mxu0 0.0
    %648 = vmatmul.mubr.f32.gmra.mrb[0].mxu0 %v474
    %v649 = vpop.f32.mrb[0].mxu0
    %v650 = vadd.f32 %v512, %v649
    %v651 = vpop.f32.mrb[0].mxu0
    %652 = vmatprep.mubr.f32.mxu0 0.0
    %653 = vmatmul.mubr.f32.gmra.mrb[0].mxu0 %v475
    %v654 = vpop.f32.mrb[0].mxu0
    %v655 = vadd.f32 %v512, %v654
    %v656 = vpop.f32.mrb[0].mxu0
    %657 = vmatprep.mubr.f32.mxu0 0.0
    %658 = vmatmul.mubr.f32.gmra.mrb[0].mxu0 %v476
    %v659 = vpop.f32.mrb[0].mxu0
    %v660 = vadd.f32 %v512, %v659
    %v661 = vpop.f32.mrb[0].mxu0
    %662 = vmatprep.mubr.f32.mxu0 0.0
    %663 = vmatmul.mubr.f32.gmra.mrb[0].mxu0 %v477
    %v664 = vpop.f32.mrb[0].mxu0
    %v665 = vadd.f32 %v512, %v664
    %v666 = vpop.f32.mrb[0].mxu0
    %667 = vmatprep.mubr.f32.mxu0 0.0
    %668 = vmatmul.mubr.f32.gmra.mrb[0].mxu0 %v478
    %v669 = vpop.f32.mrb[0].mxu0
    %v670 = vadd.f32 %v512, %v669
    %v671 = vpop.f32.mrb[0].mxu0
    %672 = vmatprep.mubr.f32.mxu0 0.0
    %673 = vmatmul.mubr.f32.gmra.mrb[0].mxu0 %v479
    %v674 = vpop.f32.mrb[0].mxu0
    %v675 = vadd.f32 %v512, %v674
    %v676 = vpop.f32.mrb[0].mxu0
    %677 = vmatprep.mubr.f32.mxu0 0.0
    %678 = vmatmul.mubr.f32.gmra.mrb[0].mxu0 %v480
    %v679 = vpop.f32.mrb[0].mxu0
    %v680 = vadd.f32 %v512, %v679
    %v681 = vpop.f32.mrb[0].mxu0
    %682 = vmatprep.mubr.f32.mxu0 0.0
    %683 = vmatmul.mubr.f32.gmra.mrb[0].mxu0 %v481
    %v684 = vpop.f32.mrb[0].mxu0
    %v685 = vadd.f32 %v512, %v684
    %v686 = vpop.f32.mrb[0].mxu0
    %687 = vmatprep.mubr.f32.mxu0 0.0
    %688 = vmatmul.mubr.f32.gmra.mrb[0].mxu0 %v482
    %v689 = vpop.f32.mrb[0].mxu0
    %v690 = vadd.f32 %v512, %v689
    %v691 = vpop.f32.mrb[0].mxu0
    %692 = vmatprep.mubr.f32.mxu0 0.0
    %693 = vmatmul.mubr.f32.gmra.mrb[0].mxu0 %v483
    %v694 = vpop.f32.mrb[0].mxu0
    %v695 = vadd.f32 %v512, %v694
    %v696 = vpop.f32.mrb[0].mxu0
    %697 = vmatprep.mubr.f32.mxu0 0.0
    %698 = vmatmul.mubr.f32.gmra.mrb[0].mxu0 %v484
    %v699 = vpop.f32.mrb[0].mxu0
    %v700 = vadd.f32 %v512, %v699
    %v701 = vpop.f32.mrb[0].mxu0
    %702 = vmatprep.mubr.f32.mxu0 0.0
    %703 = vmatmul.mubr.f32.gmra.mrb[0].mxu0 %v485
    %v704 = vpop.f32.mrb[0].mxu0
    %v705 = vadd.f32 %v512, %v704
    %v706 = vpop.f32.mrb[0].mxu0
    %707 = vmatprep.mubr.f32.mxu0 0.0
    %708 = vmatmul.mubr.f32.gmra.mrb[0].mxu0 %v486
    %v709 = vpop.f32.mrb[0].mxu0
    %v710 = vadd.f32 %v512, %v709
    %v711 = vpop.f32.mrb[0].mxu0
    %712 = vmatprep.mubr.f32.mxu0 0.0
    %713 = vmatmul.mubr.f32.gmra.mrb[0].mxu0 %v487
    %v714 = vpop.f32.mrb[0].mxu0
    %v715 = vadd.f32 %v512, %v714
    %v716 = vpop.f32.mrb[0].mxu0
    %717 = vmatprep.mubr.f32.mxu0 0.0
    %718 = vmatmul.mubr.f32.gmra.mrb[0].mxu0 %v488
    %v719 = vpop.f32.mrb[0].mxu0
    %v720 = vadd.f32 %v512, %v719
    %v721 = vpop.f32.mrb[0].mxu0
    %722 = vmatprep.mubr.f32.mxu0 0.0
    %723 = vmatmul.mubr.f32.gmra.mrb[0].mxu0 %v489
    %v724 = vpop.f32.mrb[0].mxu0
    %v725 = vadd.f32 %v512, %v724
    %v726 = vpop.f32.mrb[0].mxu0
    %727 = vmatprep.mubr.f32.mxu0 0.0
    %728 = vmatmul.mubr.f32.gmra.mrb[0].mxu0 %v490
    %v729 = vpop.f32.mrb[0].mxu0
    %v730 = vadd.f32 %v512, %v729
    %v731 = vpop.f32.mrb[0].mxu0
    %732 = vmatprep.mubr.f32.mxu0 0.0
    %733 = vmatmul.mubr.f32.gmra.mrb[0].mxu0 %v491
    %v734 = vpop.f32.mrb[0].mxu0
    %v735 = vadd.f32 %v512, %v734
    %v736 = vpop.f32.mrb[0].mxu0
    %737 = vdwg.mxu0
    %vm738 = vcmp.gt.f32.partialorder %v580, 0.0
    %vm739 = vcmp.gt.f32.partialorder %v585, 0.0
    %vm740 = vcmp.gt.f32.partialorder %v590, 0.0
    %vm741 = vcmp.gt.f32.partialorder %v595, 0.0
    %vm742 = vcmp.gt.f32.partialorder %v600, 0.0
    %vm743 = vcmp.gt.f32.partialorder %v605, 0.0
    %vm744 = vcmp.gt.f32.partialorder %v610, 0.0
    %vm745 = vcmp.gt.f32.partialorder %v615, 0.0
    %vm746 = vcmp.gt.f32.partialorder %v620, 0.0
    %vm747 = vcmp.gt.f32.partialorder %v625, 0.0
    %vm748 = vcmp.gt.f32.partialorder %v630, 0.0
    %vm749 = vcmp.gt.f32.partialorder %v635, 0.0
    %vm750 = vcmp.gt.f32.partialorder %v640, 0.0
    %vm751 = vcmp.gt.f32.partialorder %v645, 0.0
    %vm752 = vcmp.gt.f32.partialorder %v650, 0.0
    %vm753 = vcmp.gt.f32.partialorder %v655, 0.0
    %vm754 = vcmp.gt.f32.partialorder %v660, 0.0
    %vm755 = vcmp.gt.f32.partialorder %v665, 0.0
    %vm756 = vcmp.gt.f32.partialorder %v670, 0.0
    %vm757 = vcmp.gt.f32.partialorder %v675, 0.0
    %vm758 = vcmp.gt.f32.partialorder %v680, 0.0
    %vm759 = vcmp.gt.f32.partialorder %v685, 0.0
    %vm760 = vcmp.gt.f32.partialorder %v690, 0.0
    %vm761 = vcmp.gt.f32.partialorder %v695, 0.0
    %vm762 = vcmp.gt.f32.partialorder %v700, 0.0
    %vm763 = vcmp.gt.f32.partialorder %v705, 0.0
    %vm764 = vcmp.gt.f32.partialorder %v710, 0.0
    %vm765 = vcmp.gt.f32.partialorder %v715, 0.0
    %vm766 = vcmp.gt.f32.partialorder %v720, 0.0
    %vm767 = vcmp.gt.f32.partialorder %v725, 0.0
    %vm768 = vcmp.gt.f32.partialorder %v730, 0.0
    %vm769 = vcmp.gt.f32.partialorder %v735, 0.0
    %v770 = vmul.f32 %v580, 0.2
    %v771 = vmul.f32 %v585, 0.2
    %v772 = vmul.f32 %v590, 0.2
    %v773 = vmul.f32 %v595, 0.2
    %v774 = vmul.f32 %v600, 0.2
    %v775 = vmul.f32 %v605, 0.2
    %v776 = vmul.f32 %v610, 0.2
    %v777 = vmul.f32 %v615, 0.2
    %v778 = vmul.f32 %v620, 0.2
    %v779 = vmul.f32 %v625, 0.2
    %v780 = vmul.f32 %v630, 0.2
    %v781 = vmul.f32 %v635, 0.2
    %v782 = vmul.f32 %v640, 0.2
    %v783 = vmul.f32 %v645, 0.2
    %v784 = vmul.f32 %v650, 0.2
    %v785 = vmul.f32 %v655, 0.2
    %v786 = vmul.f32 %v660, 0.2
    %v787 = vmul.f32 %v665, 0.2
    %v788 = vmul.f32 %v670, 0.2
    %v789 = vmul.f32 %v675, 0.2
    %v790 = vmul.f32 %v680, 0.2
    %v791 = vmul.f32 %v685, 0.2
    %v792 = vmul.f32 %v690, 0.2
    %v793 = vmul.f32 %v695, 0.2
    %v794 = vmul.f32 %v700, 0.2
    %v795 = vmul.f32 %v705, 0.2
    %v796 = vmul.f32 %v710, 0.2
    %v797 = vmul.f32 %v715, 0.2
    %v798 = vmul.f32 %v720, 0.2
    %v799 = vmul.f32 %v725, 0.2
    %v800 = vmul.f32 %v730, 0.2
    %v801 = vmul.f32 %v735, 0.2
    %v802 = vsel %vm738, %v580, %v770
    %v803 = vsel %vm739, %v585, %v771
    %v804 = vsel %vm740, %v590, %v772
    %v805 = vsel %vm741, %v595, %v773
    %v806 = vsel %vm742, %v600, %v774
    %v807 = vsel %vm743, %v605, %v775
    %v808 = vsel %vm744, %v610, %v776
    %v809 = vsel %vm745, %v615, %v777
    %v810 = vsel %vm746, %v620, %v778
    %v811 = vsel %vm747, %v625, %v779
    %v812 = vsel %vm748, %v630, %v780
    %v813 = vsel %vm749, %v635, %v781
    %v814 = vsel %vm750, %v640, %v782
    %v815 = vsel %vm751, %v645, %v783
    %v816 = vsel %vm752, %v650, %v784
    %v817 = vsel %vm753, %v655, %v785
    %v818 = vsel %vm754, %v660, %v786
    %v819 = vsel %vm755, %v665, %v787
    %v820 = vsel %vm756, %v670, %v788
    %v821 = vsel %vm757, %v675, %v789
    %v822 = vsel %vm758, %v680, %v790
    %v823 = vsel %vm759, %v685, %v791
    %v824 = vsel %vm760, %v690, %v792
    %v825 = vsel %vm761, %v695, %v793
    %v826 = vsel %vm762, %v700, %v794
    %v827 = vsel %vm763, %v705, %v795
    %v828 = vsel %vm764, %v710, %v796
    %v829 = vsel %vm765, %v715, %v797
    %v830 = vsel %vm766, %v720, %v798
    %v831 = vsel %vm767, %v725, %v799
    %v832 = vsel %vm768, %v730, %v800
    %v833 = vsel %vm769, %v735, %v801
    %v834 = vld [vmem:[#allocation2 + $0xd0] sm:$0xff]
    %v835 = vld [vmem:[#allocation2 + $0xd8] sm:$0xff]
    %v836 = vld [vmem:[#allocation2 + $0xe0] sm:$0xff]
    %v837 = vld [vmem:[#allocation2 + $0xe8] sm:$0xff]
    %v838 = vld [vmem:[#allocation2 + $0xf0] sm:$0xff]
    %v839 = vld [vmem:[#allocation2 + $0xf8] sm:$0xff]
    %v840 = vld [vmem:[#allocation2 + $0x100] sm:$0xff]
    %v841 = vld [vmem:[#allocation2 + $0x108] sm:$0xff]
    %v842 = vld [vmem:[#allocation2 + $0x110] sm:$0xff]
    %v843 = vld [vmem:[#allocation2 + $0x118] sm:$0xff]
    %v844 = vld [vmem:[#allocation2 + $0x120] sm:$0xff]
    %v845 = vld [vmem:[#allocation2 + $0x128] sm:$0xff]
    %v846 = vld [vmem:[#allocation2 + $0x130] sm:$0xff]
    %v847 = vld [vmem:[#allocation2 + $0x138] sm:$0xff]
    %v848 = vld [vmem:[#allocation2 + $0x140] sm:$0xff]
    %v849 = vld [vmem:[#allocation2 + $0x148] sm:$0xff]
    %v850 = vld [vmem:[#allocation2 + $0x150] sm:$0x1]
    %v851 = vlaneseq
    %v852 = vshrl.u32 %v851, 7
    %v853 = vsub.s32 0, %v852
    %v854 = vrot.slane %v850, %v853
    %855 = vmatprep.subr.mxu0 0.0
    %856 = vmatpush1.msra.mxu0 %v834
    %857 = vmatprep.subr.mxu0 0.0
    %858 = vmatpush1.msra.mxu0 %v835
    %859 = vmatprep.subr.mxu0 0.0
    %860 = vmatpush1.msra.mxu0 %v836
    %861 = vmatprep.subr.mxu0 0.0
    %862 = vmatpush1.msra.mxu0 %v837
    %863 = vmatprep.subr.mxu0 0.0
    %864 = vmatpush1.msra.mxu0 %v838
    %865 = vmatprep.subr.mxu0 0.0
    %866 = vmatpush1.msra.mxu0 %v839
    %867 = vmatprep.subr.mxu0 0.0
    %868 = vmatpush1.msra.mxu0 %v840
    %869 = vmatprep.subr.mxu0 0.0
    %870 = vmatpush1.msra.mxu0 %v841
    %871 = vmatprep.subr.mxu0 0.0
    %872 = vmatpush1.msra.mxu0 %v842
    %873 = vmatprep.subr.mxu0 0.0
    %874 = vmatpush1.msra.mxu0 %v843
    %875 = vmatprep.subr.mxu0 0.0
    %876 = vmatpush1.msra.mxu0 %v844
    %877 = vmatprep.subr.mxu0 0.0
    %878 = vmatpush1.msra.mxu0 %v845
    %879 = vmatprep.subr.mxu0 0.0
    %880 = vmatpush1.msra.mxu0 %v846
    %881 = vmatprep.subr.mxu0 0.0
    %882 = vmatpush1.msra.mxu0 %v847
    %883 = vmatprep.subr.mxu0 0.0
    %884 = vmatpush1.msra.mxu0 %v848
    %885 = vmatprep.subr.mxu0 0.0
    %886 = vmatpush1.msra.mxu0 %v849
    %887 = vmatprep.subr.mxu0 0.0
    %888 = vmatpush1.msra.mxu0 0.0
    %889 = vmatprep.subr.mxu0 0.0
    %890 = vmatpush1.msra.mxu0 0.0
    %891 = vmatprep.subr.mxu0 0.0
    %892 = vmatpush1.msra.mxu0 0.0
    %893 = vmatprep.subr.mxu0 0.0
    %894 = vmatpush1.msra.mxu0 0.0
    %895 = vmatprep.subr.mxu0 0.0
    %896 = vmatpush1.msra.mxu0 0.0
    %897 = vmatprep.subr.mxu0 0.0
    %898 = vmatpush1.msra.mxu0 0.0
    %899 = vmatprep.subr.mxu0 0.0
    %900 = vmatpush1.msra.mxu0 0.0
    %901 = vmatprep.subr.mxu0 0.0
    %902 = vmatpush1.msra.mxu0 0.0
    %903 = vmatprep.subr.mxu0 0.0
    %904 = vmatpush1.msra.mxu0 0.0
    %905 = vmatprep.subr.mxu0 0.0
    %906 = vmatpush1.msra.mxu0 0.0
    %907 = vmatprep.subr.mxu0 0.0
    %908 = vmatpush1.msra.mxu0 0.0
    %909 = vmatprep.subr.mxu0 0.0
    %910 = vmatpush1.msra.mxu0 0.0
    %911 = vmatprep.subr.mxu0 0.0
    %912 = vmatpush1.msra.mxu0 0.0
    %913 = vmatprep.subr.mxu0 0.0
    %914 = vmatpush1.msra.mxu0 0.0
    %915 = vmatprep.subr.mxu0 0.0
    %916 = vmatpush1.msra.mxu0 0.0
    %917 = vmatprep.subr.mxu0 0.0
    %918 = vmatpush1.msra.mxu0 0.0
    %919 = vmatprep.mubr.f32.mxu0 0.0
    %920 = vmatmul.mubr.f32.gmra.mrb[0].mxu0 %v802
    %v921 = vpop.f32.mrb[0].mxu0
    %v922 = vadd.f32 %v854, %v921
    %v923 = vpop.f32.mrb[0].mxu0
    %924 = vmatprep.mubr.f32.mxu0 0.0
    %925 = vmatmul.mubr.f32.gmra.mrb[0].mxu0 %v803
    %v926 = vpop.f32.mrb[0].mxu0
    %v927 = vadd.f32 %v854, %v926
    %v928 = vpop.f32.mrb[0].mxu0
    %929 = vmatprep.mubr.f32.mxu0 0.0
    %930 = vmatmul.mubr.f32.gmra.mrb[0].mxu0 %v804
    %v931 = vpop.f32.mrb[0].mxu0
    %v932 = vadd.f32 %v854, %v931
    %v933 = vpop.f32.mrb[0].mxu0
    %934 = vmatprep.mubr.f32.mxu0 0.0
    %935 = vmatmul.mubr.f32.gmra.mrb[0].mxu0 %v805
    %v936 = vpop.f32.mrb[0].mxu0
    %v937 = vadd.f32 %v854, %v936
    %v938 = vpop.f32.mrb[0].mxu0
    %939 = vmatprep.mubr.f32.mxu0 0.0
    %940 = vmatmul.mubr.f32.gmra.mrb[0].mxu0 %v806
    %v941 = vpop.f32.mrb[0].mxu0
    %v942 = vadd.f32 %v854, %v941
    %v943 = vpop.f32.mrb[0].mxu0
    %944 = vmatprep.mubr.f32.mxu0 0.0
    %945 = vmatmul.mubr.f32.gmra.mrb[0].mxu0 %v807
    %v946 = vpop.f32.mrb[0].mxu0
    %v947 = vadd.f32 %v854, %v946
    %v948 = vpop.f32.mrb[0].mxu0
    %949 = vmatprep.mubr.f32.mxu0 0.0
    %950 = vmatmul.mubr.f32.gmra.mrb[0].mxu0 %v808
    %v951 = vpop.f32.mrb[0].mxu0
    %v952 = vadd.f32 %v854, %v951
    %v953 = vpop.f32.mrb[0].mxu0
    %954 = vmatprep.mubr.f32.mxu0 0.0
    %955 = vmatmul.mubr.f32.gmra.mrb[0].mxu0 %v809
    %v956 = vpop.f32.mrb[0].mxu0
    %v957 = vadd.f32 %v854, %v956
    %v958 = vpop.f32.mrb[0].mxu0
    %959 = vmatprep.mubr.f32.mxu0 0.0
    %960 = vmatmul.mubr.f32.gmra.mrb[0].mxu0 %v810
    %v961 = vpop.f32.mrb[0].mxu0
    %v962 = vadd.f32 %v854, %v961
    %v963 = vpop.f32.mrb[0].mxu0
    %964 = vmatprep.mubr.f32.mxu0 0.0
    %965 = vmatmul.mubr.f32.gmra.mrb[0].mxu0 %v811
    %v966 = vpop.f32.mrb[0].mxu0
    %v967 = vadd.f32 %v854, %v966
    %v968 = vpop.f32.mrb[0].mxu0
    %969 = vmatprep.mubr.f32.mxu0 0.0
    %970 = vmatmul.mubr.f32.gmra.mrb[0].mxu0 %v812
    %v971 = vpop.f32.mrb[0].mxu0
    %v972 = vadd.f32 %v854, %v971
    %v973 = vpop.f32.mrb[0].mxu0
    %974 = vmatprep.mubr.f32.mxu0 0.0
    %975 = vmatmul.mubr.f32.gmra.mrb[0].mxu0 %v813
    %v976 = vpop.f32.mrb[0].mxu0
    %v977 = vadd.f32 %v854, %v976
    %v978 = vpop.f32.mrb[0].mxu0
    %979 = vmatprep.mubr.f32.mxu0 0.0
    %980 = vmatmul.mubr.f32.gmra.mrb[0].mxu0 %v814
    %v981 = vpop.f32.mrb[0].mxu0
    %v982 = vadd.f32 %v854, %v981
    %v983 = vpop.f32.mrb[0].mxu0
    %984 = vmatprep.mubr.f32.mxu0 0.0
    %985 = vmatmul.mubr.f32.gmra.mrb[0].mxu0 %v815
    %v986 = vpop.f32.mrb[0].mxu0
    %v987 = vadd.f32 %v854, %v986
    %v988 = vpop.f32.mrb[0].mxu0
    %989 = vmatprep.mubr.f32.mxu0 0.0
    %990 = vmatmul.mubr.f32.gmra.mrb[0].mxu0 %v816
    %v991 = vpop.f32.mrb[0].mxu0
    %v992 = vadd.f32 %v854, %v991
    %v993 = vpop.f32.mrb[0].mxu0
    %994 = vmatprep.mubr.f32.mxu0 0.0
    %995 = vmatmul.mubr.f32.gmra.mrb[0].mxu0 %v817
    %v996 = vpop.f32.mrb[0].mxu0
    %v997 = vadd.f32 %v854, %v996
    %v998 = vpop.f32.mrb[0].mxu0
    %999 = vmatprep.mubr.f32.mxu0 0.0
    %1000 = vmatmul.mubr.f32.gmra.mrb[0].mxu0 %v818
    %v1001 = vpop.f32.mrb[0].mxu0
    %v1002 = vadd.f32 %v854, %v1001
    %v1003 = vpop.f32.mrb[0].mxu0
    %1004 = vmatprep.mubr.f32.mxu0 0.0
    %1005 = vmatmul.mubr.f32.gmra.mrb[0].mxu0 %v819
    %v1006 = vpop.f32.mrb[0].mxu0
    %v1007 = vadd.f32 %v854, %v1006
    %v1008 = vpop.f32.mrb[0].mxu0
    %1009 = vmatprep.mubr.f32.mxu0 0.0
    %1010 = vmatmul.mubr.f32.gmra.mrb[0].mxu0 %v820
    %v1011 = vpop.f32.mrb[0].mxu0
    %v1012 = vadd.f32 %v854, %v1011
    %v1013 = vpop.f32.mrb[0].mxu0
    %1014 = vmatprep.mubr.f32.mxu0 0.0
    %1015 = vmatmul.mubr.f32.gmra.mrb[0].mxu0 %v821
    %v1016 = vpop.f32.mrb[0].mxu0
    %v1017 = vadd.f32 %v854, %v1016
    %v1018 = vpop.f32.mrb[0].mxu0
    %1019 = vmatprep.mubr.f32.mxu0 0.0
    %1020 = vmatmul.mubr.f32.gmra.mrb[0].mxu0 %v822
    %v1021 = vpop.f32.mrb[0].mxu0
    %v1022 = vadd.f32 %v854, %v1021
    %v1023 = vpop.f32.mrb[0].mxu0
    %1024 = vmatprep.mubr.f32.mxu0 0.0
    %1025 = vmatmul.mubr.f32.gmra.mrb[0].mxu0 %v823
    %v1026 = vpop.f32.mrb[0].mxu0
    %v1027 = vadd.f32 %v854, %v1026
    %v1028 = vpop.f32.mrb[0].mxu0
    %1029 = vmatprep.mubr.f32.mxu0 0.0
    %1030 = vmatmul.mubr.f32.gmra.mrb[0].mxu0 %v824
    %v1031 = vpop.f32.mrb[0].mxu0
    %v1032 = vadd.f32 %v854, %v1031
    %v1033 = vpop.f32.mrb[0].mxu0
    %1034 = vmatprep.mubr.f32.mxu0 0.0
    %1035 = vmatmul.mubr.f32.gmra.mrb[0].mxu0 %v825
    %v1036 = vpop.f32.mrb[0].mxu0
    %v1037 = vadd.f32 %v854, %v1036
    %v1038 = vpop.f32.mrb[0].mxu0
    %1039 = vmatprep.mubr.f32.mxu0 0.0
    %1040 = vmatmul.mubr.f32.gmra.mrb[0].mxu0 %v826
    %v1041 = vpop.f32.mrb[0].mxu0
    %v1042 = vadd.f32 %v854, %v1041
    %v1043 = vpop.f32.mrb[0].mxu0
    %1044 = vmatprep.mubr.f32.mxu0 0.0
    %1045 = vmatmul.mubr.f32.gmra.mrb[0].mxu0 %v827
    %v1046 = vpop.f32.mrb[0].mxu0
    %v1047 = vadd.f32 %v854, %v1046
    %v1048 = vpop.f32.mrb[0].mxu0
    %1049 = vmatprep.mubr.f32.mxu0 0.0
    %1050 = vmatmul.mubr.f32.gmra.mrb[0].mxu0 %v828
    %v1051 = vpop.f32.mrb[0].mxu0
    %v1052 = vadd.f32 %v854, %v1051
    %v1053 = vpop.f32.mrb[0].mxu0
    %1054 = vmatprep.mubr.f32.mxu0 0.0
    %1055 = vmatmul.mubr.f32.gmra.mrb[0].mxu0 %v829
    %v1056 = vpop.f32.mrb[0].mxu0
    %v1057 = vadd.f32 %v854, %v1056
    %v1058 = vpop.f32.mrb[0].mxu0
    %1059 = vmatprep.mubr.f32.mxu0 0.0
    %1060 = vmatmul.mubr.f32.gmra.mrb[0].mxu0 %v830
    %v1061 = vpop.f32.mrb[0].mxu0
    %v1062 = vadd.f32 %v854, %v1061
    %v1063 = vpop.f32.mrb[0].mxu0
    %1064 = vmatprep.mubr.f32.mxu0 0.0
    %1065 = vmatmul.mubr.f32.gmra.mrb[0].mxu0 %v831
    %v1066 = vpop.f32.mrb[0].mxu0
    %v1067 = vadd.f32 %v854, %v1066
    %v1068 = vpop.f32.mrb[0].mxu0
    %1069 = vmatprep.mubr.f32.mxu0 0.0
    %1070 = vmatmul.mubr.f32.gmra.mrb[0].mxu0 %v832
    %v1071 = vpop.f32.mrb[0].mxu0
    %v1072 = vadd.f32 %v854, %v1071
    %v1073 = vpop.f32.mrb[0].mxu0
    %1074 = vmatprep.mubr.f32.mxu0 0.0
    %1075 = vmatmul.mubr.f32.gmra.mrb[0].mxu0 %v833
    %v1076 = vpop.f32.mrb[0].mxu0
    %v1077 = vadd.f32 %v854, %v1076
    %v1078 = vpop.f32.mrb[0].mxu0
    %1079 = vdwg.mxu0
    %vm1080 = vcmp.gt.f32.partialorder %v922, 0.0
    %vm1081 = vcmp.gt.f32.partialorder %v927, 0.0
    %vm1082 = vcmp.gt.f32.partialorder %v932, 0.0
    %vm1083 = vcmp.gt.f32.partialorder %v937, 0.0
    %vm1084 = vcmp.gt.f32.partialorder %v942, 0.0
    %vm1085 = vcmp.gt.f32.partialorder %v947, 0.0
    %vm1086 = vcmp.gt.f32.partialorder %v952, 0.0
    %vm1087 = vcmp.gt.f32.partialorder %v957, 0.0
    %vm1088 = vcmp.gt.f32.partialorder %v962, 0.0
    %vm1089 = vcmp.gt.f32.partialorder %v967, 0.0
    %vm1090 = vcmp.gt.f32.partialorder %v972, 0.0
    %vm1091 = vcmp.gt.f32.partialorder %v977, 0.0
    %vm1092 = vcmp.gt.f32.partialorder %v982, 0.0
    %vm1093 = vcmp.gt.f32.partialorder %v987, 0.0
    %vm1094 = vcmp.gt.f32.partialorder %v992, 0.0
    %vm1095 = vcmp.gt.f32.partialorder %v997, 0.0
    %vm1096 = vcmp.gt.f32.partialorder %v1002, 0.0
    %vm1097 = vcmp.gt.f32.partialorder %v1007, 0.0
    %vm1098 = vcmp.gt.f32.partialorder %v1012, 0.0
    %vm1099 = vcmp.gt.f32.partialorder %v1017, 0.0
    %vm1100 = vcmp.gt.f32.partialorder %v1022, 0.0
    %vm1101 = vcmp.gt.f32.partialorder %v1027, 0.0
    %vm1102 = vcmp.gt.f32.partialorder %v1032, 0.0
    %vm1103 = vcmp.gt.f32.partialorder %v1037, 0.0
    %vm1104 = vcmp.gt.f32.partialorder %v1042, 0.0
    %vm1105 = vcmp.gt.f32.partialorder %v1047, 0.0
    %vm1106 = vcmp.gt.f32.partialorder %v1052, 0.0
    %vm1107 = vcmp.gt.f32.partialorder %v1057, 0.0
    %vm1108 = vcmp.gt.f32.partialorder %v1062, 0.0
    %vm1109 = vcmp.gt.f32.partialorder %v1067, 0.0
    %vm1110 = vcmp.gt.f32.partialorder %v1072, 0.0
    %vm1111 = vcmp.gt.f32.partialorder %v1077, 0.0
    %v1112 = vmul.f32 %v922, 0.2
    %v1113 = vmul.f32 %v927, 0.2
    %v1114 = vmul.f32 %v932, 0.2
    %v1115 = vmul.f32 %v937, 0.2
    %v1116 = vmul.f32 %v942, 0.2
    %v1117 = vmul.f32 %v947, 0.2
    %v1118 = vmul.f32 %v952, 0.2
    %v1119 = vmul.f32 %v957, 0.2
    %v1120 = vmul.f32 %v962, 0.2
    %v1121 = vmul.f32 %v967, 0.2
    %v1122 = vmul.f32 %v972, 0.2
    %v1123 = vmul.f32 %v977, 0.2
    %v1124 = vmul.f32 %v982, 0.2
    %v1125 = vmul.f32 %v987, 0.2
    %v1126 = vmul.f32 %v992, 0.2
    %v1127 = vmul.f32 %v997, 0.2
    %v1128 = vmul.f32 %v1002, 0.2
    %v1129 = vmul.f32 %v1007, 0.2
    %v1130 = vmul.f32 %v1012, 0.2
    %v1131 = vmul.f32 %v1017, 0.2
    %v1132 = vmul.f32 %v1022, 0.2
    %v1133 = vmul.f32 %v1027, 0.2
    %v1134 = vmul.f32 %v1032, 0.2
    %v1135 = vmul.f32 %v1037, 0.2
    %v1136 = vmul.f32 %v1042, 0.2
    %v1137 = vmul.f32 %v1047, 0.2
    %v1138 = vmul.f32 %v1052, 0.2
    %v1139 = vmul.f32 %v1057, 0.2
    %v1140 = vmul.f32 %v1062, 0.2
    %v1141 = vmul.f32 %v1067, 0.2
    %v1142 = vmul.f32 %v1072, 0.2
    %v1143 = vmul.f32 %v1077, 0.2
    %v1144 = vsel %vm1080, %v922, %v1112
    %v1145 = vsel %vm1081, %v927, %v1113
    %v1146 = vsel %vm1082, %v932, %v1114
    %v1147 = vsel %vm1083, %v937, %v1115
    %v1148 = vsel %vm1084, %v942, %v1116
    %v1149 = vsel %vm1085, %v947, %v1117
    %v1150 = vsel %vm1086, %v952, %v1118
    %v1151 = vsel %vm1087, %v957, %v1119
    %v1152 = vsel %vm1088, %v962, %v1120
    %v1153 = vsel %vm1089, %v967, %v1121
    %v1154 = vsel %vm1090, %v972, %v1122
    %v1155 = vsel %vm1091, %v977, %v1123
    %v1156 = vsel %vm1092, %v982, %v1124
    %v1157 = vsel %vm1093, %v987, %v1125
    %v1158 = vsel %vm1094, %v992, %v1126
    %v1159 = vsel %vm1095, %v997, %v1127
    %v1160 = vsel %vm1096, %v1002, %v1128
    %v1161 = vsel %vm1097, %v1007, %v1129
    %v1162 = vsel %vm1098, %v1012, %v1130
    %v1163 = vsel %vm1099, %v1017, %v1131
    %v1164 = vsel %vm1100, %v1022, %v1132
    %v1165 = vsel %vm1101, %v1027, %v1133
    %v1166 = vsel %vm1102, %v1032, %v1134
    %v1167 = vsel %vm1103, %v1037, %v1135
    %v1168 = vsel %vm1104, %v1042, %v1136
    %v1169 = vsel %vm1105, %v1047, %v1137
    %v1170 = vsel %vm1106, %v1052, %v1138
    %v1171 = vsel %vm1107, %v1057, %v1139
    %v1172 = vsel %vm1108, %v1062, %v1140
    %v1173 = vsel %vm1109, %v1067, %v1141
    %v1174 = vsel %vm1110, %v1072, %v1142
    %v1175 = vsel %vm1111, %v1077, %v1143
    %v1176 = vld [vmem:[#allocation2 + $0x158] sm:$0xff]
    %v1177 = vld [vmem:[#allocation2 + $0x160] sm:$0xff]
    %v1178 = vld [vmem:[#allocation2 + $0x168] sm:$0xff]
    %v1179 = vld [vmem:[#allocation2 + $0x170] sm:$0xff]
    %v1180 = vld [vmem:[#allocation2 + $0x178] sm:$0xff]
    %v1181 = vld [vmem:[#allocation2 + $0x180] sm:$0xff]
    %v1182 = vld [vmem:[#allocation2 + $0x188] sm:$0xff]
    %v1183 = vld [vmem:[#allocation2 + $0x190] sm:$0xff]
    %v1184 = vld [vmem:[#allocation2 + $0x198] sm:$0xff]
    %v1185 = vld [vmem:[#allocation2 + $0x1a0] sm:$0xff]
    %v1186 = vld [vmem:[#allocation2 + $0x1a8] sm:$0xff]
    %v1187 = vld [vmem:[#allocation2 + $0x1b0] sm:$0xff]
    %v1188 = vld [vmem:[#allocation2 + $0x1b8] sm:$0xff]
    %v1189 = vld [vmem:[#allocation2 + $0x1c0] sm:$0xff]
    %v1190 = vld [vmem:[#allocation2 + $0x1c8] sm:$0xff]
    %v1191 = vld [vmem:[#allocation2 + $0x1d0] sm:$0xff]
    %v1192 = vld [vmem:[#allocation2 + $0x1d8] sm:$0x1]
    %v1193 = vlaneseq
    %v1194 = vshrl.u32 %v1193, 7
    %v1195 = vsub.s32 0, %v1194
    %v1196 = vrot.slane %v1192, %v1195
    %1197 = vmatprep.subr.mxu0 0.0
    %1198 = vmatpush1.msra.mxu0 %v1176
    %1199 = vmatprep.subr.mxu0 0.0
    %1200 = vmatpush1.msra.mxu0 %v1177
    %1201 = vmatprep.subr.mxu0 0.0
    %1202 = vmatpush1.msra.mxu0 %v1178
    %1203 = vmatprep.subr.mxu0 0.0
    %1204 = vmatpush1.msra.mxu0 %v1179
    %1205 = vmatprep.subr.mxu0 0.0
    %1206 = vmatpush1.msra.mxu0 %v1180
    %1207 = vmatprep.subr.mxu0 0.0
    %1208 = vmatpush1.msra.mxu0 %v1181
    %1209 = vmatprep.subr.mxu0 0.0
    %1210 = vmatpush1.msra.mxu0 %v1182
    %1211 = vmatprep.subr.mxu0 0.0
    %1212 = vmatpush1.msra.mxu0 %v1183
    %1213 = vmatprep.subr.mxu0 0.0
    %1214 = vmatpush1.msra.mxu0 %v1184
    %1215 = vmatprep.subr.mxu0 0.0
    %1216 = vmatpush1.msra.mxu0 %v1185
    %1217 = vmatprep.subr.mxu0 0.0
    %1218 = vmatpush1.msra.mxu0 %v1186
    %1219 = vmatprep.subr.mxu0 0.0
    %1220 = vmatpush1.msra.mxu0 %v1187
    %1221 = vmatprep.subr.mxu0 0.0
    %1222 = vmatpush1.msra.mxu0 %v1188
    %1223 = vmatprep.subr.mxu0 0.0
    %1224 = vmatpush1.msra.mxu0 %v1189
    %1225 = vmatprep.subr.mxu0 0.0
    %1226 = vmatpush1.msra.mxu0 %v1190
    %1227 = vmatprep.subr.mxu0 0.0
    %1228 = vmatpush1.msra.mxu0 %v1191
    %1229 = vmatprep.subr.mxu0 0.0
    %1230 = vmatpush1.msra.mxu0 0.0
    %1231 = vmatprep.subr.mxu0 0.0
    %1232 = vmatpush1.msra.mxu0 0.0
    %1233 = vmatprep.subr.mxu0 0.0
    %1234 = vmatpush1.msra.mxu0 0.0
    %1235 = vmatprep.subr.mxu0 0.0
    %1236 = vmatpush1.msra.mxu0 0.0
    %1237 = vmatprep.subr.mxu0 0.0
    %1238 = vmatpush1.msra.mxu0 0.0
    %1239 = vmatprep.subr.mxu0 0.0
    %1240 = vmatpush1.msra.mxu0 0.0
    %1241 = vmatprep.subr.mxu0 0.0
    %1242 = vmatpush1.msra.mxu0 0.0
    %1243 = vmatprep.subr.mxu0 0.0
    %1244 = vmatpush1.msra.mxu0 0.0
    %1245 = vmatprep.subr.mxu0 0.0
    %1246 = vmatpush1.msra.mxu0 0.0
    %1247 = vmatprep.subr.mxu0 0.0
    %1248 = vmatpush1.msra.mxu0 0.0
    %1249 = vmatprep.subr.mxu0 0.0
    %1250 = vmatpush1.msra.mxu0 0.0
    %1251 = vmatprep.subr.mxu0 0.0
    %1252 = vmatpush1.msra.mxu0 0.0
    %1253 = vmatprep.subr.mxu0 0.0
    %1254 = vmatpush1.msra.mxu0 0.0
    %1255 = vmatprep.subr.mxu0 0.0
    %1256 = vmatpush1.msra.mxu0 0.0
    %1257 = vmatprep.subr.mxu0 0.0
    %1258 = vmatpush1.msra.mxu0 0.0
    %1259 = vmatprep.subr.mxu0 0.0
    %1260 = vmatpush1.msra.mxu0 0.0
    %1261 = vmatprep.mubr.f32.mxu0 0.0
    %1262 = vmatmul.mubr.f32.gmra.mrb[0].mxu0 %v1144
    %v1263 = vpop.f32.mrb[0].mxu0
    %v1264 = vadd.f32 %v1196, %v1263
    %v1265 = vpop.f32.mrb[0].mxu0
    %1266 = vmatprep.mubr.f32.mxu0 0.0
    %1267 = vmatmul.mubr.f32.gmra.mrb[0].mxu0 %v1145
    %v1268 = vpop.f32.mrb[0].mxu0
    %v1269 = vadd.f32 %v1196, %v1268
    %v1270 = vpop.f32.mrb[0].mxu0
    %1271 = vmatprep.mubr.f32.mxu0 0.0
    %1272 = vmatmul.mubr.f32.gmra.mrb[0].mxu0 %v1146
    %v1273 = vpop.f32.mrb[0].mxu0
    %v1274 = vadd.f32 %v1196, %v1273
    %v1275 = vpop.f32.mrb[0].mxu0
    %1276 = vmatprep.mubr.f32.mxu0 0.0
    %1277 = vmatmul.mubr.f32.gmra.mrb[0].mxu0 %v1147
    %v1278 = vpop.f32.mrb[0].mxu0
    %v1279 = vadd.f32 %v1196, %v1278
    %v1280 = vpop.f32.mrb[0].mxu0
    %1281 = vmatprep.mubr.f32.mxu0 0.0
    %1282 = vmatmul.mubr.f32.gmra.mrb[0].mxu0 %v1148
    %v1283 = vpop.f32.mrb[0].mxu0
    %v1284 = vadd.f32 %v1196, %v1283
    %v1285 = vpop.f32.mrb[0].mxu0
    %1286 = vmatprep.mubr.f32.mxu0 0.0
    %1287 = vmatmul.mubr.f32.gmra.mrb[0].mxu0 %v1149
    %v1288 = vpop.f32.mrb[0].mxu0
    %v1289 = vadd.f32 %v1196, %v1288
    %v1290 = vpop.f32.mrb[0].mxu0
    %1291 = vmatprep.mubr.f32.mxu0 0.0
    %1292 = vmatmul.mubr.f32.gmra.mrb[0].mxu0 %v1150
    %v1293 = vpop.f32.mrb[0].mxu0
    %v1294 = vadd.f32 %v1196, %v1293
    %v1295 = vpop.f32.mrb[0].mxu0
    %1296 = vmatprep.mubr.f32.mxu0 0.0
    %1297 = vmatmul.mubr.f32.gmra.mrb[0].mxu0 %v1151
    %v1298 = vpop.f32.mrb[0].mxu0
    %v1299 = vadd.f32 %v1196, %v1298
    %v1300 = vpop.f32.mrb[0].mxu0
    %1301 = vmatprep.mubr.f32.mxu0 0.0
    %1302 = vmatmul.mubr.f32.gmra.mrb[0].mxu0 %v1152
    %v1303 = vpop.f32.mrb[0].mxu0
    %v1304 = vadd.f32 %v1196, %v1303
    %v1305 = vpop.f32.mrb[0].mxu0
    %1306 = vmatprep.mubr.f32.mxu0 0.0
    %1307 = vmatmul.mubr.f32.gmra.mrb[0].mxu0 %v1153
    %v1308 = vpop.f32.mrb[0].mxu0
    %v1309 = vadd.f32 %v1196, %v1308
    %v1310 = vpop.f32.mrb[0].mxu0
    %1311 = vmatprep.mubr.f32.mxu0 0.0
    %1312 = vmatmul.mubr.f32.gmra.mrb[0].mxu0 %v1154
    %v1313 = vpop.f32.mrb[0].mxu0
    %v1314 = vadd.f32 %v1196, %v1313
    %v1315 = vpop.f32.mrb[0].mxu0
    %1316 = vmatprep.mubr.f32.mxu0 0.0
    %1317 = vmatmul.mubr.f32.gmra.mrb[0].mxu0 %v1155
    %v1318 = vpop.f32.mrb[0].mxu0
    %v1319 = vadd.f32 %v1196, %v1318
    %v1320 = vpop.f32.mrb[0].mxu0
    %1321 = vmatprep.mubr.f32.mxu0 0.0
    %1322 = vmatmul.mubr.f32.gmra.mrb[0].mxu0 %v1156
    %v1323 = vpop.f32.mrb[0].mxu0
    %v1324 = vadd.f32 %v1196, %v1323
    %v1325 = vpop.f32.mrb[0].mxu0
    %1326 = vmatprep.mubr.f32.mxu0 0.0
    %1327 = vmatmul.mubr.f32.gmra.mrb[0].mxu0 %v1157
    %v1328 = vpop.f32.mrb[0].mxu0
    %v1329 = vadd.f32 %v1196, %v1328
    %v1330 = vpop.f32.mrb[0].mxu0
    %1331 = vmatprep.mubr.f32.mxu0 0.0
    %1332 = vmatmul.mubr.f32.gmra.mrb[0].mxu0 %v1158
    %v1333 = vpop.f32.mrb[0].mxu0
    %v1334 = vadd.f32 %v1196, %v1333
    %v1335 = vpop.f32.mrb[0].mxu0
    %1336 = vmatprep.mubr.f32.mxu0 0.0
    %1337 = vmatmul.mubr.f32.gmra.mrb[0].mxu0 %v1159
    %v1338 = vpop.f32.mrb[0].mxu0
    %v1339 = vadd.f32 %v1196, %v1338
    %v1340 = vpop.f32.mrb[0].mxu0
    %1341 = vmatprep.mubr.f32.mxu0 0.0
    %1342 = vmatmul.mubr.f32.gmra.mrb[0].mxu0 %v1160
    %v1343 = vpop.f32.mrb[0].mxu0
    %v1344 = vadd.f32 %v1196, %v1343
    %v1345 = vpop.f32.mrb[0].mxu0
    %1346 = vmatprep.mubr.f32.mxu0 0.0
    %1347 = vmatmul.mubr.f32.gmra.mrb[0].mxu0 %v1161
    %v1348 = vpop.f32.mrb[0].mxu0
    %v1349 = vadd.f32 %v1196, %v1348
    %v1350 = vpop.f32.mrb[0].mxu0
    %1351 = vmatprep.mubr.f32.mxu0 0.0
    %1352 = vmatmul.mubr.f32.gmra.mrb[0].mxu0 %v1162
    %v1353 = vpop.f32.mrb[0].mxu0
    %v1354 = vadd.f32 %v1196, %v1353
    %v1355 = vpop.f32.mrb[0].mxu0
    %1356 = vmatprep.mubr.f32.mxu0 0.0
    %1357 = vmatmul.mubr.f32.gmra.mrb[0].mxu0 %v1163
    %v1358 = vpop.f32.mrb[0].mxu0
    %v1359 = vadd.f32 %v1196, %v1358
    %v1360 = vpop.f32.mrb[0].mxu0
    %1361 = vmatprep.mubr.f32.mxu0 0.0
    %1362 = vmatmul.mubr.f32.gmra.mrb[0].mxu0 %v1164
    %v1363 = vpop.f32.mrb[0].mxu0
    %v1364 = vadd.f32 %v1196, %v1363
    %v1365 = vpop.f32.mrb[0].mxu0
    %1366 = vmatprep.mubr.f32.mxu0 0.0
    %1367 = vmatmul.mubr.f32.gmra.mrb[0].mxu0 %v1165
    %v1368 = vpop.f32.mrb[0].mxu0
    %v1369 = vadd.f32 %v1196, %v1368
    %v1370 = vpop.f32.mrb[0].mxu0
    %1371 = vmatprep.mubr.f32.mxu0 0.0
    %1372 = vmatmul.mubr.f32.gmra.mrb[0].mxu0 %v1166
    %v1373 = vpop.f32.mrb[0].mxu0
    %v1374 = vadd.f32 %v1196, %v1373
    %v1375 = vpop.f32.mrb[0].mxu0
    %1376 = vmatprep.mubr.f32.mxu0 0.0
    %1377 = vmatmul.mubr.f32.gmra.mrb[0].mxu0 %v1167
    %v1378 = vpop.f32.mrb[0].mxu0
    %v1379 = vadd.f32 %v1196, %v1378
    %v1380 = vpop.f32.mrb[0].mxu0
    %1381 = vmatprep.mubr.f32.mxu0 0.0
    %1382 = vmatmul.mubr.f32.gmra.mrb[0].mxu0 %v1168
    %v1383 = vpop.f32.mrb[0].mxu0
    %v1384 = vadd.f32 %v1196, %v1383
    %v1385 = vpop.f32.mrb[0].mxu0
    %1386 = vmatprep.mubr.f32.mxu0 0.0
    %1387 = vmatmul.mubr.f32.gmra.mrb[0].mxu0 %v1169
    %v1388 = vpop.f32.mrb[0].mxu0
    %v1389 = vadd.f32 %v1196, %v1388
    %v1390 = vpop.f32.mrb[0].mxu0
    %1391 = vmatprep.mubr.f32.mxu0 0.0
    %1392 = vmatmul.mubr.f32.gmra.mrb[0].mxu0 %v1170
    %v1393 = vpop.f32.mrb[0].mxu0
    %v1394 = vadd.f32 %v1196, %v1393
    %v1395 = vpop.f32.mrb[0].mxu0
    %1396 = vmatprep.mubr.f32.mxu0 0.0
    %1397 = vmatmul.mubr.f32.gmra.mrb[0].mxu0 %v1171
    %v1398 = vpop.f32.mrb[0].mxu0
    %v1399 = vadd.f32 %v1196, %v1398
    %v1400 = vpop.f32.mrb[0].mxu0
    %1401 = vmatprep.mubr.f32.mxu0 0.0
    %1402 = vmatmul.mubr.f32.gmra.mrb[0].mxu0 %v1172
    %v1403 = vpop.f32.mrb[0].mxu0
    %v1404 = vadd.f32 %v1196, %v1403
    %v1405 = vpop.f32.mrb[0].mxu0
    %1406 = vmatprep.mubr.f32.mxu0 0.0
    %1407 = vmatmul.mubr.f32.gmra.mrb[0].mxu0 %v1173
    %v1408 = vpop.f32.mrb[0].mxu0
    %v1409 = vadd.f32 %v1196, %v1408
    %v1410 = vpop.f32.mrb[0].mxu0
    %1411 = vmatprep.mubr.f32.mxu0 0.0
    %1412 = vmatmul.mubr.f32.gmra.mrb[0].mxu0 %v1174
    %v1413 = vpop.f32.mrb[0].mxu0
    %v1414 = vadd.f32 %v1196, %v1413
    %v1415 = vpop.f32.mrb[0].mxu0
    %1416 = vmatprep.mubr.f32.mxu0 0.0
    %1417 = vmatmul.mubr.f32.gmra.mrb[0].mxu0 %v1175
    %v1418 = vpop.f32.mrb[0].mxu0
    %v1419 = vadd.f32 %v1196, %v1418
    %v1420 = vpop.f32.mrb[0].mxu0
    %1421 = vdwg.mxu0
    %1422 = vst [vmem:[#allocation6] sm:$0xff] %v1264
    %1423 = vst [vmem:[#allocation6 + $0x8] sm:$0xff] %v1269
    %1424 = vst [vmem:[#allocation6 + $0x10] sm:$0xff] %v1274
    %1425 = vst [vmem:[#allocation6 + $0x18] sm:$0xff] %v1279
    %1426 = vst [vmem:[#allocation6 + $0x20] sm:$0xff] %v1284
    %1427 = vst [vmem:[#allocation6 + $0x28] sm:$0xff] %v1289
    %1428 = vst [vmem:[#allocation6 + $0x30] sm:$0xff] %v1294
    %1429 = vst [vmem:[#allocation6 + $0x38] sm:$0xff] %v1299
    %1430 = vst [vmem:[#allocation6 + $0x40] sm:$0xff] %v1304
    %1431 = vst [vmem:[#allocation6 + $0x48] sm:$0xff] %v1309
    %1432 = vst [vmem:[#allocation6 + $0x50] sm:$0xff] %v1314
    %1433 = vst [vmem:[#allocation6 + $0x58] sm:$0xff] %v1319
    %1434 = vst [vmem:[#allocation6 + $0x60] sm:$0xff] %v1324
    %1435 = vst [vmem:[#allocation6 + $0x68] sm:$0xff] %v1329
    %1436 = vst [vmem:[#allocation6 + $0x70] sm:$0xff] %v1334
    %1437 = vst [vmem:[#allocation6 + $0x78] sm:$0xff] %v1339
    %1438 = vst [vmem:[#allocation6 + $0x80] sm:$0xff] %v1344
    %1439 = vst [vmem:[#allocation6 + $0x88] sm:$0xff] %v1349
    %1440 = vst [vmem:[#allocation6 + $0x90] sm:$0xff] %v1354
    %1441 = vst [vmem:[#allocation6 + $0x98] sm:$0xff] %v1359
    %1442 = vst [vmem:[#allocation6 + $0xa0] sm:$0xff] %v1364
    %1443 = vst [vmem:[#allocation6 + $0xa8] sm:$0xff] %v1369
    %1444 = vst [vmem:[#allocation6 + $0xb0] sm:$0xff] %v1374
    %1445 = vst [vmem:[#allocation6 + $0xb8] sm:$0xff] %v1379
    %1446 = vst [vmem:[#allocation6 + $0xc0] sm:$0xff] %v1384
    %1447 = vst [vmem:[#allocation6 + $0xc8] sm:$0xff] %v1389
    %1448 = vst [vmem:[#allocation6 + $0xd0] sm:$0xff] %v1394
    %1449 = vst [vmem:[#allocation6 + $0xd8] sm:$0xff] %v1399
    %1450 = vst [vmem:[#allocation6 + $0xe0] sm:$0xff] %v1404
    %1451 = vst [vmem:[#allocation6 + $0xe8] sm:$0xff] %v1409
    %1452 = vst [vmem:[#allocation6 + $0xf0] sm:$0xff] %v1414
    %1453 = vst [vmem:[#allocation6 + $0xf8] sm:$0xff] %v1419
    %v1454 = vld [vmem:[#allocation2 + $0x1e0] sm:$0xff]
    %v1455 = vld [vmem:[#allocation2 + $0x1e8] sm:$0xff]
    %v1456 = vld [vmem:[#allocation2 + $0x1f0] sm:$0xff]
    %v1457 = vld [vmem:[#allocation2 + $0x1f8] sm:$0xff]
    %v1458 = vld [vmem:[#allocation2 + $0x200] sm:$0xff]
    %v1459 = vld [vmem:[#allocation2 + $0x208] sm:$0xff]
    %v1460 = vld [vmem:[#allocation2 + $0x210] sm:$0xff]
    %v1461 = vld [vmem:[#allocation2 + $0x218] sm:$0xff]
    %v1462 = vld [vmem:[#allocation2 + $0x220] sm:$0xff]
    %v1463 = vld [vmem:[#allocation2 + $0x228] sm:$0xff]
    %v1464 = vld [vmem:[#allocation2 + $0x230] sm:$0xff]
    %v1465 = vld [vmem:[#allocation2 + $0x238] sm:$0xff]
    %v1466 = vld [vmem:[#allocation2 + $0x240] sm:$0xff]
    %v1467 = vld [vmem:[#allocation2 + $0x248] sm:$0xff]
    %v1468 = vld [vmem:[#allocation2 + $0x250] sm:$0xff]
    %v1469 = vld [vmem:[#allocation2 + $0x258] sm:$0xff]
    %v1470 = vld [vmem:[#allocation2 + $0x260] sm:$0x1]
    %v1471 = vlaneseq
    %v1472 = vshrl.u32 %v1471, 7
    %v1473 = vsub.s32 0, %v1472
    %v1474 = vrot.slane %v1470, %v1473
    %1475 = vmatprep.subr.mxu0 0.0
    %1476 = vmatpush1.msra.mxu0 %v1454
    %1477 = vmatprep.subr.mxu0 0.0
    %1478 = vmatpush1.msra.mxu0 %v1455
    %1479 = vmatprep.subr.mxu0 0.0
    %1480 = vmatpush1.msra.mxu0 %v1456
    %1481 = vmatprep.subr.mxu0 0.0
    %1482 = vmatpush1.msra.mxu0 %v1457
    %1483 = vmatprep.subr.mxu0 0.0
    %1484 = vmatpush1.msra.mxu0 %v1458
    %1485 = vmatprep.subr.mxu0 0.0
    %1486 = vmatpush1.msra.mxu0 %v1459
    %1487 = vmatprep.subr.mxu0 0.0
    %1488 = vmatpush1.msra.mxu0 %v1460
    %1489 = vmatprep.subr.mxu0 0.0
    %1490 = vmatpush1.msra.mxu0 %v1461
    %1491 = vmatprep.subr.mxu0 0.0
    %1492 = vmatpush1.msra.mxu0 %v1462
    %1493 = vmatprep.subr.mxu0 0.0
    %1494 = vmatpush1.msra.mxu0 %v1463
    %1495 = vmatprep.subr.mxu0 0.0
    %1496 = vmatpush1.msra.mxu0 %v1464
    %1497 = vmatprep.subr.mxu0 0.0
    %1498 = vmatpush1.msra.mxu0 %v1465
    %1499 = vmatprep.subr.mxu0 0.0
    %1500 = vmatpush1.msra.mxu0 %v1466
    %1501 = vmatprep.subr.mxu0 0.0
    %1502 = vmatpush1.msra.mxu0 %v1467
    %1503 = vmatprep.subr.mxu0 0.0
    %1504 = vmatpush1.msra.mxu0 %v1468
    %1505 = vmatprep.subr.mxu0 0.0
    %1506 = vmatpush1.msra.mxu0 %v1469
    %1507 = vmatprep.subr.mxu0 0.0
    %1508 = vmatpush1.msra.mxu0 0.0
    %1509 = vmatprep.subr.mxu0 0.0
    %1510 = vmatpush1.msra.mxu0 0.0
    %1511 = vmatprep.subr.mxu0 0.0
    %1512 = vmatpush1.msra.mxu0 0.0
    %1513 = vmatprep.subr.mxu0 0.0
    %1514 = vmatpush1.msra.mxu0 0.0
    %1515 = vmatprep.subr.mxu0 0.0
    %1516 = vmatpush1.msra.mxu0 0.0
    %1517 = vmatprep.subr.mxu0 0.0
    %1518 = vmatpush1.msra.mxu0 0.0
    %1519 = vmatprep.subr.mxu0 0.0
    %1520 = vmatpush1.msra.mxu0 0.0
    %1521 = vmatprep.subr.mxu0 0.0
    %1522 = vmatpush1.msra.mxu0 0.0
    %1523 = vmatprep.subr.mxu0 0.0
    %1524 = vmatpush1.msra.mxu0 0.0
    %1525 = vmatprep.subr.mxu0 0.0
    %1526 = vmatpush1.msra.mxu0 0.0
    %1527 = vmatprep.subr.mxu0 0.0
    %1528 = vmatpush1.msra.mxu0 0.0
    %1529 = vmatprep.subr.mxu0 0.0
    %1530 = vmatpush1.msra.mxu0 0.0
    %1531 = vmatprep.subr.mxu0 0.0
    %1532 = vmatpush1.msra.mxu0 0.0
    %1533 = vmatprep.subr.mxu0 0.0
    %1534 = vmatpush1.msra.mxu0 0.0
    %1535 = vmatprep.subr.mxu0 0.0
    %1536 = vmatpush1.msra.mxu0 0.0
    %1537 = vmatprep.subr.mxu0 0.0
    %1538 = vmatpush1.msra.mxu0 0.0
    %1539 = vmatprep.mubr.f32.mxu0 0.0
    %1540 = vmatmul.mubr.f32.gmra.mrb[0].mxu0 %v1264
    %v1541 = vpop.f32.mrb[0].mxu0
    %v1542 = vadd.f32 %v1474, %v1541
    %v1543 = vpop.f32.mrb[0].mxu0
    %1544 = vmatprep.mubr.f32.mxu0 0.0
    %1545 = vmatmul.mubr.f32.gmra.mrb[0].mxu0 %v1269
    %v1546 = vpop.f32.mrb[0].mxu0
    %v1547 = vadd.f32 %v1474, %v1546
    %v1548 = vpop.f32.mrb[0].mxu0
    %1549 = vmatprep.mubr.f32.mxu0 0.0
    %1550 = vmatmul.mubr.f32.gmra.mrb[0].mxu0 %v1274
    %v1551 = vpop.f32.mrb[0].mxu0
    %v1552 = vadd.f32 %v1474, %v1551
    %v1553 = vpop.f32.mrb[0].mxu0
    %1554 = vmatprep.mubr.f32.mxu0 0.0
    %1555 = vmatmul.mubr.f32.gmra.mrb[0].mxu0 %v1279
    %v1556 = vpop.f32.mrb[0].mxu0
    %v1557 = vadd.f32 %v1474, %v1556
    %v1558 = vpop.f32.mrb[0].mxu0
    %1559 = vmatprep.mubr.f32.mxu0 0.0
    %1560 = vmatmul.mubr.f32.gmra.mrb[0].mxu0 %v1284
    %v1561 = vpop.f32.mrb[0].mxu0
    %v1562 = vadd.f32 %v1474, %v1561
    %v1563 = vpop.f32.mrb[0].mxu0
    %1564 = vmatprep.mubr.f32.mxu0 0.0
    %1565 = vmatmul.mubr.f32.gmra.mrb[0].mxu0 %v1289
    %v1566 = vpop.f32.mrb[0].mxu0
    %v1567 = vadd.f32 %v1474, %v1566
    %v1568 = vpop.f32.mrb[0].mxu0
    %1569 = vmatprep.mubr.f32.mxu0 0.0
    %1570 = vmatmul.mubr.f32.gmra.mrb[0].mxu0 %v1294
    %v1571 = vpop.f32.mrb[0].mxu0
    %v1572 = vadd.f32 %v1474, %v1571
    %v1573 = vpop.f32.mrb[0].mxu0
    %1574 = vmatprep.mubr.f32.mxu0 0.0
    %1575 = vmatmul.mubr.f32.gmra.mrb[0].mxu0 %v1299
    %v1576 = vpop.f32.mrb[0].mxu0
    %v1577 = vadd.f32 %v1474, %v1576
    %v1578 = vpop.f32.mrb[0].mxu0
    %1579 = vmatprep.mubr.f32.mxu0 0.0
    %1580 = vmatmul.mubr.f32.gmra.mrb[0].mxu0 %v1304
    %v1581 = vpop.f32.mrb[0].mxu0
    %v1582 = vadd.f32 %v1474, %v1581
    %v1583 = vpop.f32.mrb[0].mxu0
    %1584 = vmatprep.mubr.f32.mxu0 0.0
    %1585 = vmatmul.mubr.f32.gmra.mrb[0].mxu0 %v1309
    %v1586 = vpop.f32.mrb[0].mxu0
    %v1587 = vadd.f32 %v1474, %v1586
    %v1588 = vpop.f32.mrb[0].mxu0
    %1589 = vmatprep.mubr.f32.mxu0 0.0
    %1590 = vmatmul.mubr.f32.gmra.mrb[0].mxu0 %v1314
    %v1591 = vpop.f32.mrb[0].mxu0
    %v1592 = vadd.f32 %v1474, %v1591
    %v1593 = vpop.f32.mrb[0].mxu0
    %1594 = vmatprep.mubr.f32.mxu0 0.0
    %1595 = vmatmul.mubr.f32.gmra.mrb[0].mxu0 %v1319
    %v1596 = vpop.f32.mrb[0].mxu0
    %v1597 = vadd.f32 %v1474, %v1596
    %v1598 = vpop.f32.mrb[0].mxu0
    %1599 = vmatprep.mubr.f32.mxu0 0.0
    %1600 = vmatmul.mubr.f32.gmra.mrb[0].mxu0 %v1324
    %v1601 = vpop.f32.mrb[0].mxu0
    %v1602 = vadd.f32 %v1474, %v1601
    %v1603 = vpop.f32.mrb[0].mxu0
    %1604 = vmatprep.mubr.f32.mxu0 0.0
    %1605 = vmatmul.mubr.f32.gmra.mrb[0].mxu0 %v1329
    %v1606 = vpop.f32.mrb[0].mxu0
    %v1607 = vadd.f32 %v1474, %v1606
    %v1608 = vpop.f32.mrb[0].mxu0
    %1609 = vmatprep.mubr.f32.mxu0 0.0
    %1610 = vmatmul.mubr.f32.gmra.mrb[0].mxu0 %v1334
    %v1611 = vpop.f32.mrb[0].mxu0
    %v1612 = vadd.f32 %v1474, %v1611
    %v1613 = vpop.f32.mrb[0].mxu0
    %1614 = vmatprep.mubr.f32.mxu0 0.0
    %1615 = vmatmul.mubr.f32.gmra.mrb[0].mxu0 %v1339
    %v1616 = vpop.f32.mrb[0].mxu0
    %v1617 = vadd.f32 %v1474, %v1616
    %v1618 = vpop.f32.mrb[0].mxu0
    %1619 = vmatprep.mubr.f32.mxu0 0.0
    %1620 = vmatmul.mubr.f32.gmra.mrb[0].mxu0 %v1344
    %v1621 = vpop.f32.mrb[0].mxu0
    %v1622 = vadd.f32 %v1474, %v1621
    %v1623 = vpop.f32.mrb[0].mxu0
    %1624 = vmatprep.mubr.f32.mxu0 0.0
    %1625 = vmatmul.mubr.f32.gmra.mrb[0].mxu0 %v1349
    %v1626 = vpop.f32.mrb[0].mxu0
    %v1627 = vadd.f32 %v1474, %v1626
    %v1628 = vpop.f32.mrb[0].mxu0
    %1629 = vmatprep.mubr.f32.mxu0 0.0
    %1630 = vmatmul.mubr.f32.gmra.mrb[0].mxu0 %v1354
    %v1631 = vpop.f32.mrb[0].mxu0
    %v1632 = vadd.f32 %v1474, %v1631
    %v1633 = vpop.f32.mrb[0].mxu0
    %1634 = vmatprep.mubr.f32.mxu0 0.0
    %1635 = vmatmul.mubr.f32.gmra.mrb[0].mxu0 %v1359
    %v1636 = vpop.f32.mrb[0].mxu0
    %v1637 = vadd.f32 %v1474, %v1636
    %v1638 = vpop.f32.mrb[0].mxu0
    %1639 = vmatprep.mubr.f32.mxu0 0.0
    %1640 = vmatmul.mubr.f32.gmra.mrb[0].mxu0 %v1364
    %v1641 = vpop.f32.mrb[0].mxu0
    %v1642 = vadd.f32 %v1474, %v1641
    %v1643 = vpop.f32.mrb[0].mxu0
    %1644 = vmatprep.mubr.f32.mxu0 0.0
    %1645 = vmatmul.mubr.f32.gmra.mrb[0].mxu0 %v1369
    %v1646 = vpop.f32.mrb[0].mxu0
    %v1647 = vadd.f32 %v1474, %v1646
    %v1648 = vpop.f32.mrb[0].mxu0
    %1649 = vmatprep.mubr.f32.mxu0 0.0
    %1650 = vmatmul.mubr.f32.gmra.mrb[0].mxu0 %v1374
    %v1651 = vpop.f32.mrb[0].mxu0
    %v1652 = vadd.f32 %v1474, %v1651
    %v1653 = vpop.f32.mrb[0].mxu0
    %1654 = vmatprep.mubr.f32.mxu0 0.0
    %1655 = vmatmul.mubr.f32.gmra.mrb[0].mxu0 %v1379
    %v1656 = vpop.f32.mrb[0].mxu0
    %v1657 = vadd.f32 %v1474, %v1656
    %v1658 = vpop.f32.mrb[0].mxu0
    %1659 = vmatprep.mubr.f32.mxu0 0.0
    %1660 = vmatmul.mubr.f32.gmra.mrb[0].mxu0 %v1384
    %v1661 = vpop.f32.mrb[0].mxu0
    %v1662 = vadd.f32 %v1474, %v1661
    %v1663 = vpop.f32.mrb[0].mxu0
    %1664 = vmatprep.mubr.f32.mxu0 0.0
    %1665 = vmatmul.mubr.f32.gmra.mrb[0].mxu0 %v1389
    %v1666 = vpop.f32.mrb[0].mxu0
    %v1667 = vadd.f32 %v1474, %v1666
    %v1668 = vpop.f32.mrb[0].mxu0
    %1669 = vmatprep.mubr.f32.mxu0 0.0
    %1670 = vmatmul.mubr.f32.gmra.mrb[0].mxu0 %v1394
    %v1671 = vpop.f32.mrb[0].mxu0
    %v1672 = vadd.f32 %v1474, %v1671
    %v1673 = vpop.f32.mrb[0].mxu0
    %1674 = vmatprep.mubr.f32.mxu0 0.0
    %1675 = vmatmul.mubr.f32.gmra.mrb[0].mxu0 %v1399
    %v1676 = vpop.f32.mrb[0].mxu0
    %v1677 = vadd.f32 %v1474, %v1676
    %v1678 = vpop.f32.mrb[0].mxu0
    %1679 = vmatprep.mubr.f32.mxu0 0.0
    %1680 = vmatmul.mubr.f32.gmra.mrb[0].mxu0 %v1404
    %v1681 = vpop.f32.mrb[0].mxu0
    %v1682 = vadd.f32 %v1474, %v1681
    %v1683 = vpop.f32.mrb[0].mxu0
    %1684 = vmatprep.mubr.f32.mxu0 0.0
    %1685 = vmatmul.mubr.f32.gmra.mrb[0].mxu0 %v1409
    %v1686 = vpop.f32.mrb[0].mxu0
    %v1687 = vadd.f32 %v1474, %v1686
    %v1688 = vpop.f32.mrb[0].mxu0
    %1689 = vmatprep.mubr.f32.mxu0 0.0
    %1690 = vmatmul.mubr.f32.gmra.mrb[0].mxu0 %v1414
    %v1691 = vpop.f32.mrb[0].mxu0
    %v1692 = vadd.f32 %v1474, %v1691
    %v1693 = vpop.f32.mrb[0].mxu0
    %1694 = vmatprep.mubr.f32.mxu0 0.0
    %1695 = vmatmul.mubr.f32.gmra.mrb[0].mxu0 %v1419
    %v1696 = vpop.f32.mrb[0].mxu0
    %v1697 = vadd.f32 %v1474, %v1696
    %v1698 = vpop.f32.mrb[0].mxu0
    %1699 = vdwg.mxu0
    %vm1700 = vcmp.gt.f32.partialorder %v1542, 0.0
    %vm1701 = vcmp.gt.f32.partialorder %v1547, 0.0
    %vm1702 = vcmp.gt.f32.partialorder %v1552, 0.0
    %vm1703 = vcmp.gt.f32.partialorder %v1557, 0.0
    %vm1704 = vcmp.gt.f32.partialorder %v1562, 0.0
    %vm1705 = vcmp.gt.f32.partialorder %v1567, 0.0
    %vm1706 = vcmp.gt.f32.partialorder %v1572, 0.0
    %vm1707 = vcmp.gt.f32.partialorder %v1577, 0.0
    %vm1708 = vcmp.gt.f32.partialorder %v1582, 0.0
    %vm1709 = vcmp.gt.f32.partialorder %v1587, 0.0
    %vm1710 = vcmp.gt.f32.partialorder %v1592, 0.0
    %vm1711 = vcmp.gt.f32.partialorder %v1597, 0.0
    %vm1712 = vcmp.gt.f32.partialorder %v1602, 0.0
    %vm1713 = vcmp.gt.f32.partialorder %v1607, 0.0
    %vm1714 = vcmp.gt.f32.partialorder %v1612, 0.0
    %vm1715 = vcmp.gt.f32.partialorder %v1617, 0.0
    %vm1716 = vcmp.gt.f32.partialorder %v1622, 0.0
    %vm1717 = vcmp.gt.f32.partialorder %v1627, 0.0
    %vm1718 = vcmp.gt.f32.partialorder %v1632, 0.0
    %vm1719 = vcmp.gt.f32.partialorder %v1637, 0.0
    %vm1720 = vcmp.gt.f32.partialorder %v1642, 0.0
    %vm1721 = vcmp.gt.f32.partialorder %v1647, 0.0
    %vm1722 = vcmp.gt.f32.partialorder %v1652, 0.0
    %vm1723 = vcmp.gt.f32.partialorder %v1657, 0.0
    %vm1724 = vcmp.gt.f32.partialorder %v1662, 0.0
    %vm1725 = vcmp.gt.f32.partialorder %v1667, 0.0
    %vm1726 = vcmp.gt.f32.partialorder %v1672, 0.0
    %vm1727 = vcmp.gt.f32.partialorder %v1677, 0.0
    %vm1728 = vcmp.gt.f32.partialorder %v1682, 0.0
    %vm1729 = vcmp.gt.f32.partialorder %v1687, 0.0
    %vm1730 = vcmp.gt.f32.partialorder %v1692, 0.0
    %vm1731 = vcmp.gt.f32.partialorder %v1697, 0.0
    %v1732 = vmul.f32 %v1542, 0.2
    %v1733 = vmul.f32 %v1547, 0.2
    %v1734 = vmul.f32 %v1552, 0.2
    %v1735 = vmul.f32 %v1557, 0.2
    %v1736 = vmul.f32 %v1562, 0.2
    %v1737 = vmul.f32 %v1567, 0.2
    %v1738 = vmul.f32 %v1572, 0.2
    %v1739 = vmul.f32 %v1577, 0.2
    %v1740 = vmul.f32 %v1582, 0.2
    %v1741 = vmul.f32 %v1587, 0.2
    %v1742 = vmul.f32 %v1592, 0.2
    %v1743 = vmul.f32 %v1597, 0.2
    %v1744 = vmul.f32 %v1602, 0.2
    %v1745 = vmul.f32 %v1607, 0.2
    %v1746 = vmul.f32 %v1612, 0.2
    %v1747 = vmul.f32 %v1617, 0.2
    %v1748 = vmul.f32 %v1622, 0.2
    %v1749 = vmul.f32 %v1627, 0.2
    %v1750 = vmul.f32 %v1632, 0.2
    %v1751 = vmul.f32 %v1637, 0.2
    %v1752 = vmul.f32 %v1642, 0.2
    %v1753 = vmul.f32 %v1647, 0.2
    %v1754 = vmul.f32 %v1652, 0.2
    %v1755 = vmul.f32 %v1657, 0.2
    %v1756 = vmul.f32 %v1662, 0.2
    %v1757 = vmul.f32 %v1667, 0.2
    %v1758 = vmul.f32 %v1672, 0.2
    %v1759 = vmul.f32 %v1677, 0.2
    %v1760 = vmul.f32 %v1682, 0.2
    %v1761 = vmul.f32 %v1687, 0.2
    %v1762 = vmul.f32 %v1692, 0.2
    %v1763 = vmul.f32 %v1697, 0.2
    %v1764 = vsel %vm1700, %v1542, %v1732
    %v1765 = vsel %vm1701, %v1547, %v1733
    %v1766 = vsel %vm1702, %v1552, %v1734
    %v1767 = vsel %vm1703, %v1557, %v1735
    %v1768 = vsel %vm1704, %v1562, %v1736
    %v1769 = vsel %vm1705, %v1567, %v1737
    %v1770 = vsel %vm1706, %v1572, %v1738
    %v1771 = vsel %vm1707, %v1577, %v1739
    %v1772 = vsel %vm1708, %v1582, %v1740
    %v1773 = vsel %vm1709, %v1587, %v1741
    %v1774 = vsel %vm1710, %v1592, %v1742
    %v1775 = vsel %vm1711, %v1597, %v1743
    %v1776 = vsel %vm1712, %v1602, %v1744
    %v1777 = vsel %vm1713, %v1607, %v1745
    %v1778 = vsel %vm1714, %v1612, %v1746
    %v1779 = vsel %vm1715, %v1617, %v1747
    %v1780 = vsel %vm1716, %v1622, %v1748
    %v1781 = vsel %vm1717, %v1627, %v1749
    %v1782 = vsel %vm1718, %v1632, %v1750
    %v1783 = vsel %vm1719, %v1637, %v1751
    %v1784 = vsel %vm1720, %v1642, %v1752
    %v1785 = vsel %vm1721, %v1647, %v1753
    %v1786 = vsel %vm1722, %v1652, %v1754
    %v1787 = vsel %vm1723, %v1657, %v1755
    %v1788 = vsel %vm1724, %v1662, %v1756
    %v1789 = vsel %vm1725, %v1667, %v1757
    %v1790 = vsel %vm1726, %v1672, %v1758
    %v1791 = vsel %vm1727, %v1677, %v1759
    %v1792 = vsel %vm1728, %v1682, %v1760
    %v1793 = vsel %vm1729, %v1687, %v1761
    %v1794 = vsel %vm1730, %v1692, %v1762
    %v1795 = vsel %vm1731, %v1697, %v1763
    %v1796 = vld [vmem:[#allocation2 + $0x268] sm:$0xff]
    %v1797 = vld [vmem:[#allocation2 + $0x270] sm:$0xff]
    %v1798 = vld [vmem:[#allocation2 + $0x278] sm:$0xff]
    %v1799 = vld [vmem:[#allocation2 + $0x280] sm:$0xff]
    %v1800 = vld [vmem:[#allocation2 + $0x288] sm:$0xff]
    %v1801 = vld [vmem:[#allocation2 + $0x290] sm:$0xff]
    %v1802 = vld [vmem:[#allocation2 + $0x298] sm:$0xff]
    %v1803 = vld [vmem:[#allocation2 + $0x2a0] sm:$0xff]
    %v1804 = vld [vmem:[#allocation2 + $0x2a8] sm:$0xff]
    %v1805 = vld [vmem:[#allocation2 + $0x2b0] sm:$0xff]
    %v1806 = vld [vmem:[#allocation2 + $0x2b8] sm:$0xff]
    %v1807 = vld [vmem:[#allocation2 + $0x2c0] sm:$0xff]
    %v1808 = vld [vmem:[#allocation2 + $0x2c8] sm:$0xff]
    %v1809 = vld [vmem:[#allocation2 + $0x2d0] sm:$0xff]
    %v1810 = vld [vmem:[#allocation2 + $0x2d8] sm:$0xff]
    %v1811 = vld [vmem:[#allocation2 + $0x2e0] sm:$0xff]
    %v1812 = vld [vmem:[#allocation2 + $0x2e8] sm:$0x1]
    %v1813 = vlaneseq
    %v1814 = vshrl.u32 %v1813, 7
    %v1815 = vsub.s32 0, %v1814
    %v1816 = vrot.slane %v1812, %v1815
    %1817 = vmatprep.subr.mxu0 0.0
    %1818 = vmatpush1.msra.mxu0 %v1796
    %1819 = vmatprep.subr.mxu0 0.0
    %1820 = vmatpush1.msra.mxu0 %v1797
    %1821 = vmatprep.subr.mxu0 0.0
    %1822 = vmatpush1.msra.mxu0 %v1798
    %1823 = vmatprep.subr.mxu0 0.0
    %1824 = vmatpush1.msra.mxu0 %v1799
    %1825 = vmatprep.subr.mxu0 0.0
    %1826 = vmatpush1.msra.mxu0 %v1800
    %1827 = vmatprep.subr.mxu0 0.0
    %1828 = vmatpush1.msra.mxu0 %v1801
    %1829 = vmatprep.subr.mxu0 0.0
    %1830 = vmatpush1.msra.mxu0 %v1802
    %1831 = vmatprep.subr.mxu0 0.0
    %1832 = vmatpush1.msra.mxu0 %v1803
    %1833 = vmatprep.subr.mxu0 0.0
    %1834 = vmatpush1.msra.mxu0 %v1804
    %1835 = vmatprep.subr.mxu0 0.0
    %1836 = vmatpush1.msra.mxu0 %v1805
    %1837 = vmatprep.subr.mxu0 0.0
    %1838 = vmatpush1.msra.mxu0 %v1806
    %1839 = vmatprep.subr.mxu0 0.0
    %1840 = vmatpush1.msra.mxu0 %v1807
    %1841 = vmatprep.subr.mxu0 0.0
    %1842 = vmatpush1.msra.mxu0 %v1808
    %1843 = vmatprep.subr.mxu0 0.0
    %1844 = vmatpush1.msra.mxu0 %v1809
    %1845 = vmatprep.subr.mxu0 0.0
    %1846 = vmatpush1.msra.mxu0 %v1810
    %1847 = vmatprep.subr.mxu0 0.0
    %1848 = vmatpush1.msra.mxu0 %v1811
    %1849 = vmatprep.subr.mxu0 0.0
    %1850 = vmatpush1.msra.mxu0 0.0
    %1851 = vmatprep.subr.mxu0 0.0
    %1852 = vmatpush1.msra.mxu0 0.0
    %1853 = vmatprep.subr.mxu0 0.0
    %1854 = vmatpush1.msra.mxu0 0.0
    %1855 = vmatprep.subr.mxu0 0.0
    %1856 = vmatpush1.msra.mxu0 0.0
    %1857 = vmatprep.subr.mxu0 0.0
    %1858 = vmatpush1.msra.mxu0 0.0
    %1859 = vmatprep.subr.mxu0 0.0
    %1860 = vmatpush1.msra.mxu0 0.0
    %1861 = vmatprep.subr.mxu0 0.0
    %1862 = vmatpush1.msra.mxu0 0.0
    %1863 = vmatprep.subr.mxu0 0.0
    %1864 = vmatpush1.msra.mxu0 0.0
    %1865 = vmatprep.subr.mxu0 0.0
    %1866 = vmatpush1.msra.mxu0 0.0
    %1867 = vmatprep.subr.mxu0 0.0
    %1868 = vmatpush1.msra.mxu0 0.0
    %1869 = vmatprep.subr.mxu0 0.0
    %1870 = vmatpush1.msra.mxu0 0.0
    %1871 = vmatprep.subr.mxu0 0.0
    %1872 = vmatpush1.msra.mxu0 0.0
    %1873 = vmatprep.subr.mxu0 0.0
    %1874 = vmatpush1.msra.mxu0 0.0
    %1875 = vmatprep.subr.mxu0 0.0
    %1876 = vmatpush1.msra.mxu0 0.0
    %1877 = vmatprep.subr.mxu0 0.0
    %1878 = vmatpush1.msra.mxu0 0.0
    %1879 = vmatprep.subr.mxu0 0.0
    %1880 = vmatpush1.msra.mxu0 0.0
    %1881 = vmatprep.mubr.f32.mxu0 0.0
    %1882 = vmatmul.mubr.f32.gmra.mrb[0].mxu0 %v1764
    %v1883 = vpop.f32.mrb[0].mxu0
    %v1884 = vadd.f32 %v1816, %v1883
    %v1885 = vpop.f32.mrb[0].mxu0
    %1886 = vmatprep.mubr.f32.mxu0 0.0
    %1887 = vmatmul.mubr.f32.gmra.mrb[0].mxu0 %v1765
    %v1888 = vpop.f32.mrb[0].mxu0
    %v1889 = vadd.f32 %v1816, %v1888
    %v1890 = vpop.f32.mrb[0].mxu0
    %1891 = vmatprep.mubr.f32.mxu0 0.0
    %1892 = vmatmul.mubr.f32.gmra.mrb[0].mxu0 %v1766
    %v1893 = vpop.f32.mrb[0].mxu0
    %v1894 = vadd.f32 %v1816, %v1893
    %v1895 = vpop.f32.mrb[0].mxu0
    %1896 = vmatprep.mubr.f32.mxu0 0.0
    %1897 = vmatmul.mubr.f32.gmra.mrb[0].mxu0 %v1767
    %v1898 = vpop.f32.mrb[0].mxu0
    %v1899 = vadd.f32 %v1816, %v1898
    %v1900 = vpop.f32.mrb[0].mxu0
    %1901 = vmatprep.mubr.f32.mxu0 0.0
    %1902 = vmatmul.mubr.f32.gmra.mrb[0].mxu0 %v1768
    %v1903 = vpop.f32.mrb[0].mxu0
    %v1904 = vadd.f32 %v1816, %v1903
    %v1905 = vpop.f32.mrb[0].mxu0
    %1906 = vmatprep.mubr.f32.mxu0 0.0
    %1907 = vmatmul.mubr.f32.gmra.mrb[0].mxu0 %v1769
    %v1908 = vpop.f32.mrb[0].mxu0
    %v1909 = vadd.f32 %v1816, %v1908
    %v1910 = vpop.f32.mrb[0].mxu0
    %1911 = vmatprep.mubr.f32.mxu0 0.0
    %1912 = vmatmul.mubr.f32.gmra.mrb[0].mxu0 %v1770
    %v1913 = vpop.f32.mrb[0].mxu0
    %v1914 = vadd.f32 %v1816, %v1913
    %v1915 = vpop.f32.mrb[0].mxu0
    %1916 = vmatprep.mubr.f32.mxu0 0.0
    %1917 = vmatmul.mubr.f32.gmra.mrb[0].mxu0 %v1771
    %v1918 = vpop.f32.mrb[0].mxu0
    %v1919 = vadd.f32 %v1816, %v1918
    %v1920 = vpop.f32.mrb[0].mxu0
    %1921 = vmatprep.mubr.f32.mxu0 0.0
    %1922 = vmatmul.mubr.f32.gmra.mrb[0].mxu0 %v1772
    %v1923 = vpop.f32.mrb[0].mxu0
    %v1924 = vadd.f32 %v1816, %v1923
    %v1925 = vpop.f32.mrb[0].mxu0
    %1926 = vmatprep.mubr.f32.mxu0 0.0
    %1927 = vmatmul.mubr.f32.gmra.mrb[0].mxu0 %v1773
    %v1928 = vpop.f32.mrb[0].mxu0
    %v1929 = vadd.f32 %v1816, %v1928
    %v1930 = vpop.f32.mrb[0].mxu0
    %1931 = vmatprep.mubr.f32.mxu0 0.0
    %1932 = vmatmul.mubr.f32.gmra.mrb[0].mxu0 %v1774
    %v1933 = vpop.f32.mrb[0].mxu0
    %v1934 = vadd.f32 %v1816, %v1933
    %v1935 = vpop.f32.mrb[0].mxu0
    %1936 = vmatprep.mubr.f32.mxu0 0.0
    %1937 = vmatmul.mubr.f32.gmra.mrb[0].mxu0 %v1775
    %v1938 = vpop.f32.mrb[0].mxu0
    %v1939 = vadd.f32 %v1816, %v1938
    %v1940 = vpop.f32.mrb[0].mxu0
    %1941 = vmatprep.mubr.f32.mxu0 0.0
    %1942 = vmatmul.mubr.f32.gmra.mrb[0].mxu0 %v1776
    %v1943 = vpop.f32.mrb[0].mxu0
    %v1944 = vadd.f32 %v1816, %v1943
    %v1945 = vpop.f32.mrb[0].mxu0
    %1946 = vmatprep.mubr.f32.mxu0 0.0
    %1947 = vmatmul.mubr.f32.gmra.mrb[0].mxu0 %v1777
    %v1948 = vpop.f32.mrb[0].mxu0
    %v1949 = vadd.f32 %v1816, %v1948
    %v1950 = vpop.f32.mrb[0].mxu0
    %1951 = vmatprep.mubr.f32.mxu0 0.0
    %1952 = vmatmul.mubr.f32.gmra.mrb[0].mxu0 %v1778
    %v1953 = vpop.f32.mrb[0].mxu0
    %v1954 = vadd.f32 %v1816, %v1953
    %v1955 = vpop.f32.mrb[0].mxu0
    %1956 = vmatprep.mubr.f32.mxu0 0.0
    %1957 = vmatmul.mubr.f32.gmra.mrb[0].mxu0 %v1779
    %v1958 = vpop.f32.mrb[0].mxu0
    %v1959 = vadd.f32 %v1816, %v1958
    %v1960 = vpop.f32.mrb[0].mxu0
    %1961 = vmatprep.mubr.f32.mxu0 0.0
    %1962 = vmatmul.mubr.f32.gmra.mrb[0].mxu0 %v1780
    %v1963 = vpop.f32.mrb[0].mxu0
    %v1964 = vadd.f32 %v1816, %v1963
    %v1965 = vpop.f32.mrb[0].mxu0
    %1966 = vmatprep.mubr.f32.mxu0 0.0
    %1967 = vmatmul.mubr.f32.gmra.mrb[0].mxu0 %v1781
    %v1968 = vpop.f32.mrb[0].mxu0
    %v1969 = vadd.f32 %v1816, %v1968
    %v1970 = vpop.f32.mrb[0].mxu0
    %1971 = vmatprep.mubr.f32.mxu0 0.0
    %1972 = vmatmul.mubr.f32.gmra.mrb[0].mxu0 %v1782
    %v1973 = vpop.f32.mrb[0].mxu0
    %v1974 = vadd.f32 %v1816, %v1973
    %v1975 = vpop.f32.mrb[0].mxu0
    %1976 = vmatprep.mubr.f32.mxu0 0.0
    %1977 = vmatmul.mubr.f32.gmra.mrb[0].mxu0 %v1783
    %v1978 = vpop.f32.mrb[0].mxu0
    %v1979 = vadd.f32 %v1816, %v1978
    %v1980 = vpop.f32.mrb[0].mxu0
    %1981 = vmatprep.mubr.f32.mxu0 0.0
    %1982 = vmatmul.mubr.f32.gmra.mrb[0].mxu0 %v1784
    %v1983 = vpop.f32.mrb[0].mxu0
    %v1984 = vadd.f32 %v1816, %v1983
    %v1985 = vpop.f32.mrb[0].mxu0
    %1986 = vmatprep.mubr.f32.mxu0 0.0
    %1987 = vmatmul.mubr.f32.gmra.mrb[0].mxu0 %v1785
    %v1988 = vpop.f32.mrb[0].mxu0
    %v1989 = vadd.f32 %v1816, %v1988
    %v1990 = vpop.f32.mrb[0].mxu0
    %1991 = vmatprep.mubr.f32.mxu0 0.0
    %1992 = vmatmul.mubr.f32.gmra.mrb[0].mxu0 %v1786
    %v1993 = vpop.f32.mrb[0].mxu0
    %v1994 = vadd.f32 %v1816, %v1993
    %v1995 = vpop.f32.mrb[0].mxu0
    %1996 = vmatprep.mubr.f32.mxu0 0.0
    %1997 = vmatmul.mubr.f32.gmra.mrb[0].mxu0 %v1787
    %v1998 = vpop.f32.mrb[0].mxu0
    %v1999 = vadd.f32 %v1816, %v1998
    %v2000 = vpop.f32.mrb[0].mxu0
    %2001 = vmatprep.mubr.f32.mxu0 0.0
    %2002 = vmatmul.mubr.f32.gmra.mrb[0].mxu0 %v1788
    %v2003 = vpop.f32.mrb[0].mxu0
    %v2004 = vadd.f32 %v1816, %v2003
    %v2005 = vpop.f32.mrb[0].mxu0
    %2006 = vmatprep.mubr.f32.mxu0 0.0
    %2007 = vmatmul.mubr.f32.gmra.mrb[0].mxu0 %v1789
    %v2008 = vpop.f32.mrb[0].mxu0
    %v2009 = vadd.f32 %v1816, %v2008
    %v2010 = vpop.f32.mrb[0].mxu0
    %2011 = vmatprep.mubr.f32.mxu0 0.0
    %2012 = vmatmul.mubr.f32.gmra.mrb[0].mxu0 %v1790
    %v2013 = vpop.f32.mrb[0].mxu0
    %v2014 = vadd.f32 %v1816, %v2013
    %v2015 = vpop.f32.mrb[0].mxu0
    %2016 = vmatprep.mubr.f32.mxu0 0.0
    %2017 = vmatmul.mubr.f32.gmra.mrb[0].mxu0 %v1791
    %v2018 = vpop.f32.mrb[0].mxu0
    %v2019 = vadd.f32 %v1816, %v2018
    %v2020 = vpop.f32.mrb[0].mxu0
    %2021 = vmatprep.mubr.f32.mxu0 0.0
    %2022 = vmatmul.mubr.f32.gmra.mrb[0].mxu0 %v1792
    %v2023 = vpop.f32.mrb[0].mxu0
    %v2024 = vadd.f32 %v1816, %v2023
    %v2025 = vpop.f32.mrb[0].mxu0
    %2026 = vmatprep.mubr.f32.mxu0 0.0
    %2027 = vmatmul.mubr.f32.gmra.mrb[0].mxu0 %v1793
    %v2028 = vpop.f32.mrb[0].mxu0
    %v2029 = vadd.f32 %v1816, %v2028
    %v2030 = vpop.f32.mrb[0].mxu0
    %2031 = vmatprep.mubr.f32.mxu0 0.0
    %2032 = vmatmul.mubr.f32.gmra.mrb[0].mxu0 %v1794
    %v2033 = vpop.f32.mrb[0].mxu0
    %v2034 = vadd.f32 %v1816, %v2033
    %v2035 = vpop.f32.mrb[0].mxu0
    %2036 = vmatprep.mubr.f32.mxu0 0.0
    %2037 = vmatmul.mubr.f32.gmra.mrb[0].mxu0 %v1795
    %v2038 = vpop.f32.mrb[0].mxu0
    %v2039 = vadd.f32 %v1816, %v2038
    %v2040 = vpop.f32.mrb[0].mxu0
    %2041 = vdwg.mxu0
    %vm2042 = vcmp.gt.f32.partialorder %v1884, 0.0
    %vm2043 = vcmp.gt.f32.partialorder %v1889, 0.0
    %vm2044 = vcmp.gt.f32.partialorder %v1894, 0.0
    %vm2045 = vcmp.gt.f32.partialorder %v1899, 0.0
    %vm2046 = vcmp.gt.f32.partialorder %v1904, 0.0
    %vm2047 = vcmp.gt.f32.partialorder %v1909, 0.0
    %vm2048 = vcmp.gt.f32.partialorder %v1914, 0.0
    %vm2049 = vcmp.gt.f32.partialorder %v1919, 0.0
    %vm2050 = vcmp.gt.f32.partialorder %v1924, 0.0
    %vm2051 = vcmp.gt.f32.partialorder %v1929, 0.0
    %vm2052 = vcmp.gt.f32.partialorder %v1934, 0.0
    %vm2053 = vcmp.gt.f32.partialorder %v1939, 0.0
    %vm2054 = vcmp.gt.f32.partialorder %v1944, 0.0
    %vm2055 = vcmp.gt.f32.partialorder %v1949, 0.0
    %vm2056 = vcmp.gt.f32.partialorder %v1954, 0.0
    %vm2057 = vcmp.gt.f32.partialorder %v1959, 0.0
    %vm2058 = vcmp.gt.f32.partialorder %v1964, 0.0
    %vm2059 = vcmp.gt.f32.partialorder %v1969, 0.0
    %vm2060 = vcmp.gt.f32.partialorder %v1974, 0.0
    %vm2061 = vcmp.gt.f32.partialorder %v1979, 0.0
    %vm2062 = vcmp.gt.f32.partialorder %v1984, 0.0
    %vm2063 = vcmp.gt.f32.partialorder %v1989, 0.0
    %vm2064 = vcmp.gt.f32.partialorder %v1994, 0.0
    %vm2065 = vcmp.gt.f32.partialorder %v1999, 0.0
    %vm2066 = vcmp.gt.f32.partialorder %v2004, 0.0
    %vm2067 = vcmp.gt.f32.partialorder %v2009, 0.0
    %vm2068 = vcmp.gt.f32.partialorder %v2014, 0.0
    %vm2069 = vcmp.gt.f32.partialorder %v2019, 0.0
    %vm2070 = vcmp.gt.f32.partialorder %v2024, 0.0
    %vm2071 = vcmp.gt.f32.partialorder %v2029, 0.0
    %vm2072 = vcmp.gt.f32.partialorder %v2034, 0.0
    %vm2073 = vcmp.gt.f32.partialorder %v2039, 0.0
    %v2074 = vmul.f32 %v1884, 0.2
    %v2075 = vmul.f32 %v1889, 0.2
    %v2076 = vmul.f32 %v1894, 0.2
    %v2077 = vmul.f32 %v1899, 0.2
    %v2078 = vmul.f32 %v1904, 0.2
    %v2079 = vmul.f32 %v1909, 0.2
    %v2080 = vmul.f32 %v1914, 0.2
    %v2081 = vmul.f32 %v1919, 0.2
    %v2082 = vmul.f32 %v1924, 0.2
    %v2083 = vmul.f32 %v1929, 0.2
    %v2084 = vmul.f32 %v1934, 0.2
    %v2085 = vmul.f32 %v1939, 0.2
    %v2086 = vmul.f32 %v1944, 0.2
    %v2087 = vmul.f32 %v1949, 0.2
    %v2088 = vmul.f32 %v1954, 0.2
    %v2089 = vmul.f32 %v1959, 0.2
    %v2090 = vmul.f32 %v1964, 0.2
    %v2091 = vmul.f32 %v1969, 0.2
    %v2092 = vmul.f32 %v1974, 0.2
    %v2093 = vmul.f32 %v1979, 0.2
    %v2094 = vmul.f32 %v1984, 0.2
    %v2095 = vmul.f32 %v1989, 0.2
    %v2096 = vmul.f32 %v1994, 0.2
    %v2097 = vmul.f32 %v1999, 0.2
    %v2098 = vmul.f32 %v2004, 0.2
    %v2099 = vmul.f32 %v2009, 0.2
    %v2100 = vmul.f32 %v2014, 0.2
    %v2101 = vmul.f32 %v2019, 0.2
    %v2102 = vmul.f32 %v2024, 0.2
    %v2103 = vmul.f32 %v2029, 0.2
    %v2104 = vmul.f32 %v2034, 0.2
    %v2105 = vmul.f32 %v2039, 0.2
    %v2106 = vsel %vm2042, %v1884, %v2074
    %v2107 = vsel %vm2043, %v1889, %v2075
    %v2108 = vsel %vm2044, %v1894, %v2076
    %v2109 = vsel %vm2045, %v1899, %v2077
    %v2110 = vsel %vm2046, %v1904, %v2078
    %v2111 = vsel %vm2047, %v1909, %v2079
    %v2112 = vsel %vm2048, %v1914, %v2080
    %v2113 = vsel %vm2049, %v1919, %v2081
    %v2114 = vsel %vm2050, %v1924, %v2082
    %v2115 = vsel %vm2051, %v1929, %v2083
    %v2116 = vsel %vm2052, %v1934, %v2084
    %v2117 = vsel %vm2053, %v1939, %v2085
    %v2118 = vsel %vm2054, %v1944, %v2086
    %v2119 = vsel %vm2055, %v1949, %v2087
    %v2120 = vsel %vm2056, %v1954, %v2088
    %v2121 = vsel %vm2057, %v1959, %v2089
    %v2122 = vsel %vm2058, %v1964, %v2090
    %v2123 = vsel %vm2059, %v1969, %v2091
    %v2124 = vsel %vm2060, %v1974, %v2092
    %v2125 = vsel %vm2061, %v1979, %v2093
    %v2126 = vsel %vm2062, %v1984, %v2094
    %v2127 = vsel %vm2063, %v1989, %v2095
    %v2128 = vsel %vm2064, %v1994, %v2096
    %v2129 = vsel %vm2065, %v1999, %v2097
    %v2130 = vsel %vm2066, %v2004, %v2098
    %v2131 = vsel %vm2067, %v2009, %v2099
    %v2132 = vsel %vm2068, %v2014, %v2100
    %v2133 = vsel %vm2069, %v2019, %v2101
    %v2134 = vsel %vm2070, %v2024, %v2102
    %v2135 = vsel %vm2071, %v2029, %v2103
    %v2136 = vsel %vm2072, %v2034, %v2104
    %v2137 = vsel %vm2073, %v2039, %v2105
    %v2138 = vld [vmem:[#allocation2 + $0x2f0] sm:$0xff]
    %v2139 = vld [vmem:[#allocation2 + $0x2f8] sm:$0xff]
    %v2140 = vld [vmem:[#allocation2 + $0x300] sm:$0xff]
    %v2141 = vld [vmem:[#allocation2 + $0x308] sm:$0xff]
    %v2142 = vld [vmem:[#allocation2 + $0x310] sm:$0xff]
    %v2143 = vld [vmem:[#allocation2 + $0x318] sm:$0xff]
    %v2144 = vld [vmem:[#allocation2 + $0x320] sm:$0xff]
    %v2145 = vld [vmem:[#allocation2 + $0x328] sm:$0xff]
    %v2146 = vld [vmem:[#allocation2 + $0x330] sm:$0xff]
    %v2147 = vld [vmem:[#allocation2 + $0x338] sm:$0xff]
    %v2148 = vld [vmem:[#allocation2 + $0x340] sm:$0xff]
    %v2149 = vld [vmem:[#allocation2 + $0x348] sm:$0xff]
    %v2150 = vld [vmem:[#allocation2 + $0x350] sm:$0xff]
    %v2151 = vld [vmem:[#allocation2 + $0x358] sm:$0xff]
    %v2152 = vld [vmem:[#allocation2 + $0x360] sm:$0xff]
    %v2153 = vld [vmem:[#allocation2 + $0x368] sm:$0xff]
    %v2154 = vld [vmem:[#allocation2 + $0x370] sm:$0x1]
    %v2155 = vlaneseq
    %v2156 = vshrl.u32 %v2155, 7
    %v2157 = vsub.s32 0, %v2156
    %v2158 = vrot.slane %v2154, %v2157
    %2159 = vmatprep.subr.mxu0 0.0
    %2160 = vmatpush1.msra.mxu0 %v2138
    %2161 = vmatprep.subr.mxu0 0.0
    %2162 = vmatpush1.msra.mxu0 %v2139
    %2163 = vmatprep.subr.mxu0 0.0
    %2164 = vmatpush1.msra.mxu0 %v2140
    %2165 = vmatprep.subr.mxu0 0.0
    %2166 = vmatpush1.msra.mxu0 %v2141
    %2167 = vmatprep.subr.mxu0 0.0
    %2168 = vmatpush1.msra.mxu0 %v2142
    %2169 = vmatprep.subr.mxu0 0.0
    %2170 = vmatpush1.msra.mxu0 %v2143
    %2171 = vmatprep.subr.mxu0 0.0
    %2172 = vmatpush1.msra.mxu0 %v2144
    %2173 = vmatprep.subr.mxu0 0.0
    %2174 = vmatpush1.msra.mxu0 %v2145
    %2175 = vmatprep.subr.mxu0 0.0
    %2176 = vmatpush1.msra.mxu0 %v2146
    %2177 = vmatprep.subr.mxu0 0.0
    %2178 = vmatpush1.msra.mxu0 %v2147
    %2179 = vmatprep.subr.mxu0 0.0
    %2180 = vmatpush1.msra.mxu0 %v2148
    %2181 = vmatprep.subr.mxu0 0.0
    %2182 = vmatpush1.msra.mxu0 %v2149
    %2183 = vmatprep.subr.mxu0 0.0
    %2184 = vmatpush1.msra.mxu0 %v2150
    %2185 = vmatprep.subr.mxu0 0.0
    %2186 = vmatpush1.msra.mxu0 %v2151
    %2187 = vmatprep.subr.mxu0 0.0
    %2188 = vmatpush1.msra.mxu0 %v2152
    %2189 = vmatprep.subr.mxu0 0.0
    %2190 = vmatpush1.msra.mxu0 %v2153
    %2191 = vmatprep.subr.mxu0 0.0
    %2192 = vmatpush1.msra.mxu0 0.0
    %2193 = vmatprep.subr.mxu0 0.0
    %2194 = vmatpush1.msra.mxu0 0.0
    %2195 = vmatprep.subr.mxu0 0.0
    %2196 = vmatpush1.msra.mxu0 0.0
    %2197 = vmatprep.subr.mxu0 0.0
    %2198 = vmatpush1.msra.mxu0 0.0
    %2199 = vmatprep.subr.mxu0 0.0
    %2200 = vmatpush1.msra.mxu0 0.0
    %2201 = vmatprep.subr.mxu0 0.0
    %2202 = vmatpush1.msra.mxu0 0.0
    %2203 = vmatprep.subr.mxu0 0.0
    %2204 = vmatpush1.msra.mxu0 0.0
    %2205 = vmatprep.subr.mxu0 0.0
    %2206 = vmatpush1.msra.mxu0 0.0
    %2207 = vmatprep.subr.mxu0 0.0
    %2208 = vmatpush1.msra.mxu0 0.0
    %2209 = vmatprep.subr.mxu0 0.0
    %2210 = vmatpush1.msra.mxu0 0.0
    %2211 = vmatprep.subr.mxu0 0.0
    %2212 = vmatpush1.msra.mxu0 0.0
    %2213 = vmatprep.subr.mxu0 0.0
    %2214 = vmatpush1.msra.mxu0 0.0
    %2215 = vmatprep.subr.mxu0 0.0
    %2216 = vmatpush1.msra.mxu0 0.0
    %2217 = vmatprep.subr.mxu0 0.0
    %2218 = vmatpush1.msra.mxu0 0.0
    %2219 = vmatprep.subr.mxu0 0.0
    %2220 = vmatpush1.msra.mxu0 0.0
    %2221 = vmatprep.subr.mxu0 0.0
    %2222 = vmatpush1.msra.mxu0 0.0
    %2223 = vmatprep.mubr.f32.mxu0 0.0
    %2224 = vmatmul.mubr.f32.gmra.mrb[0].mxu0 %v2106
    %v2225 = vpop.f32.mrb[0].mxu0
    %v2226 = vadd.f32 %v2158, %v2225
    %v2227 = vpop.f32.mrb[0].mxu0
    %2228 = vmatprep.mubr.f32.mxu0 0.0
    %2229 = vmatmul.mubr.f32.gmra.mrb[0].mxu0 %v2107
    %v2230 = vpop.f32.mrb[0].mxu0
    %v2231 = vadd.f32 %v2158, %v2230
    %v2232 = vpop.f32.mrb[0].mxu0
    %2233 = vmatprep.mubr.f32.mxu0 0.0
    %2234 = vmatmul.mubr.f32.gmra.mrb[0].mxu0 %v2108
    %v2235 = vpop.f32.mrb[0].mxu0
    %v2236 = vadd.f32 %v2158, %v2235
    %v2237 = vpop.f32.mrb[0].mxu0
    %2238 = vmatprep.mubr.f32.mxu0 0.0
    %2239 = vmatmul.mubr.f32.gmra.mrb[0].mxu0 %v2109
    %v2240 = vpop.f32.mrb[0].mxu0
    %v2241 = vadd.f32 %v2158, %v2240
    %v2242 = vpop.f32.mrb[0].mxu0
    %2243 = vmatprep.mubr.f32.mxu0 0.0
    %2244 = vmatmul.mubr.f32.gmra.mrb[0].mxu0 %v2110
    %v2245 = vpop.f32.mrb[0].mxu0
    %v2246 = vadd.f32 %v2158, %v2245
    %v2247 = vpop.f32.mrb[0].mxu0
    %2248 = vmatprep.mubr.f32.mxu0 0.0
    %2249 = vmatmul.mubr.f32.gmra.mrb[0].mxu0 %v2111
    %v2250 = vpop.f32.mrb[0].mxu0
    %v2251 = vadd.f32 %v2158, %v2250
    %v2252 = vpop.f32.mrb[0].mxu0
    %2253 = vmatprep.mubr.f32.mxu0 0.0
    %2254 = vmatmul.mubr.f32.gmra.mrb[0].mxu0 %v2112
    %v2255 = vpop.f32.mrb[0].mxu0
    %v2256 = vadd.f32 %v2158, %v2255
    %v2257 = vpop.f32.mrb[0].mxu0
    %2258 = vmatprep.mubr.f32.mxu0 0.0
    %2259 = vmatmul.mubr.f32.gmra.mrb[0].mxu0 %v2113
    %v2260 = vpop.f32.mrb[0].mxu0
    %v2261 = vadd.f32 %v2158, %v2260
    %v2262 = vpop.f32.mrb[0].mxu0
    %2263 = vmatprep.mubr.f32.mxu0 0.0
    %2264 = vmatmul.mubr.f32.gmra.mrb[0].mxu0 %v2114
    %v2265 = vpop.f32.mrb[0].mxu0
    %v2266 = vadd.f32 %v2158, %v2265
    %v2267 = vpop.f32.mrb[0].mxu0
    %2268 = vmatprep.mubr.f32.mxu0 0.0
    %2269 = vmatmul.mubr.f32.gmra.mrb[0].mxu0 %v2115
    %v2270 = vpop.f32.mrb[0].mxu0
    %v2271 = vadd.f32 %v2158, %v2270
    %v2272 = vpop.f32.mrb[0].mxu0
    %2273 = vmatprep.mubr.f32.mxu0 0.0
    %2274 = vmatmul.mubr.f32.gmra.mrb[0].mxu0 %v2116
    %v2275 = vpop.f32.mrb[0].mxu0
    %v2276 = vadd.f32 %v2158, %v2275
    %v2277 = vpop.f32.mrb[0].mxu0
    %2278 = vmatprep.mubr.f32.mxu0 0.0
    %2279 = vmatmul.mubr.f32.gmra.mrb[0].mxu0 %v2117
    %v2280 = vpop.f32.mrb[0].mxu0
    %v2281 = vadd.f32 %v2158, %v2280
    %v2282 = vpop.f32.mrb[0].mxu0
    %2283 = vmatprep.mubr.f32.mxu0 0.0
    %2284 = vmatmul.mubr.f32.gmra.mrb[0].mxu0 %v2118
    %v2285 = vpop.f32.mrb[0].mxu0
    %v2286 = vadd.f32 %v2158, %v2285
    %v2287 = vpop.f32.mrb[0].mxu0
    %2288 = vmatprep.mubr.f32.mxu0 0.0
    %2289 = vmatmul.mubr.f32.gmra.mrb[0].mxu0 %v2119
    %v2290 = vpop.f32.mrb[0].mxu0
    %v2291 = vadd.f32 %v2158, %v2290
    %v2292 = vpop.f32.mrb[0].mxu0
    %2293 = vmatprep.mubr.f32.mxu0 0.0
    %2294 = vmatmul.mubr.f32.gmra.mrb[0].mxu0 %v2120
    %v2295 = vpop.f32.mrb[0].mxu0
    %v2296 = vadd.f32 %v2158, %v2295
    %v2297 = vpop.f32.mrb[0].mxu0
    %2298 = vmatprep.mubr.f32.mxu0 0.0
    %2299 = vmatmul.mubr.f32.gmra.mrb[0].mxu0 %v2121
    %v2300 = vpop.f32.mrb[0].mxu0
    %v2301 = vadd.f32 %v2158, %v2300
    %v2302 = vpop.f32.mrb[0].mxu0
    %2303 = vmatprep.mubr.f32.mxu0 0.0
    %2304 = vmatmul.mubr.f32.gmra.mrb[0].mxu0 %v2122
    %v2305 = vpop.f32.mrb[0].mxu0
    %v2306 = vadd.f32 %v2158, %v2305
    %v2307 = vpop.f32.mrb[0].mxu0
    %2308 = vmatprep.mubr.f32.mxu0 0.0
    %2309 = vmatmul.mubr.f32.gmra.mrb[0].mxu0 %v2123
    %v2310 = vpop.f32.mrb[0].mxu0
    %v2311 = vadd.f32 %v2158, %v2310
    %v2312 = vpop.f32.mrb[0].mxu0
    %2313 = vmatprep.mubr.f32.mxu0 0.0
    %2314 = vmatmul.mubr.f32.gmra.mrb[0].mxu0 %v2124
    %v2315 = vpop.f32.mrb[0].mxu0
    %v2316 = vadd.f32 %v2158, %v2315
    %v2317 = vpop.f32.mrb[0].mxu0
    %2318 = vmatprep.mubr.f32.mxu0 0.0
    %2319 = vmatmul.mubr.f32.gmra.mrb[0].mxu0 %v2125
    %v2320 = vpop.f32.mrb[0].mxu0
    %v2321 = vadd.f32 %v2158, %v2320
    %v2322 = vpop.f32.mrb[0].mxu0
    %2323 = vmatprep.mubr.f32.mxu0 0.0
    %2324 = vmatmul.mubr.f32.gmra.mrb[0].mxu0 %v2126
    %v2325 = vpop.f32.mrb[0].mxu0
    %v2326 = vadd.f32 %v2158, %v2325
    %v2327 = vpop.f32.mrb[0].mxu0
    %2328 = vmatprep.mubr.f32.mxu0 0.0
    %2329 = vmatmul.mubr.f32.gmra.mrb[0].mxu0 %v2127
    %v2330 = vpop.f32.mrb[0].mxu0
    %v2331 = vadd.f32 %v2158, %v2330
    %v2332 = vpop.f32.mrb[0].mxu0
    %2333 = vmatprep.mubr.f32.mxu0 0.0
    %2334 = vmatmul.mubr.f32.gmra.mrb[0].mxu0 %v2128
    %v2335 = vpop.f32.mrb[0].mxu0
    %v2336 = vadd.f32 %v2158, %v2335
    %v2337 = vpop.f32.mrb[0].mxu0
    %2338 = vmatprep.mubr.f32.mxu0 0.0
    %2339 = vmatmul.mubr.f32.gmra.mrb[0].mxu0 %v2129
    %v2340 = vpop.f32.mrb[0].mxu0
    %v2341 = vadd.f32 %v2158, %v2340
    %v2342 = vpop.f32.mrb[0].mxu0
    %2343 = vmatprep.mubr.f32.mxu0 0.0
    %2344 = vmatmul.mubr.f32.gmra.mrb[0].mxu0 %v2130
    %v2345 = vpop.f32.mrb[0].mxu0
    %v2346 = vadd.f32 %v2158, %v2345
    %v2347 = vpop.f32.mrb[0].mxu0
    %2348 = vmatprep.mubr.f32.mxu0 0.0
    %2349 = vmatmul.mubr.f32.gmra.mrb[0].mxu0 %v2131
    %v2350 = vpop.f32.mrb[0].mxu0
    %v2351 = vadd.f32 %v2158, %v2350
    %v2352 = vpop.f32.mrb[0].mxu0
    %2353 = vmatprep.mubr.f32.mxu0 0.0
    %2354 = vmatmul.mubr.f32.gmra.mrb[0].mxu0 %v2132
    %v2355 = vpop.f32.mrb[0].mxu0
    %v2356 = vadd.f32 %v2158, %v2355
    %v2357 = vpop.f32.mrb[0].mxu0
    %2358 = vmatprep.mubr.f32.mxu0 0.0
    %2359 = vmatmul.mubr.f32.gmra.mrb[0].mxu0 %v2133
    %v2360 = vpop.f32.mrb[0].mxu0
    %v2361 = vadd.f32 %v2158, %v2360
    %v2362 = vpop.f32.mrb[0].mxu0
    %2363 = vmatprep.mubr.f32.mxu0 0.0
    %2364 = vmatmul.mubr.f32.gmra.mrb[0].mxu0 %v2134
    %v2365 = vpop.f32.mrb[0].mxu0
    %v2366 = vadd.f32 %v2158, %v2365
    %v2367 = vpop.f32.mrb[0].mxu0
    %2368 = vmatprep.mubr.f32.mxu0 0.0
    %2369 = vmatmul.mubr.f32.gmra.mrb[0].mxu0 %v2135
    %v2370 = vpop.f32.mrb[0].mxu0
    %v2371 = vadd.f32 %v2158, %v2370
    %v2372 = vpop.f32.mrb[0].mxu0
    %2373 = vmatprep.mubr.f32.mxu0 0.0
    %2374 = vmatmul.mubr.f32.gmra.mrb[0].mxu0 %v2136
    %v2375 = vpop.f32.mrb[0].mxu0
    %v2376 = vadd.f32 %v2158, %v2375
    %v2377 = vpop.f32.mrb[0].mxu0
    %2378 = vmatprep.mubr.f32.mxu0 0.0
    %2379 = vmatmul.mubr.f32.gmra.mrb[0].mxu0 %v2137
    %v2380 = vpop.f32.mrb[0].mxu0
    %v2381 = vadd.f32 %v2158, %v2380
    %v2382 = vpop.f32.mrb[0].mxu0
    %2383 = vdwg.mxu0
    %vm2384 = vcmp.gt.f32.partialorder %v2226, 0.0
    %vm2385 = vcmp.gt.f32.partialorder %v2231, 0.0
    %vm2386 = vcmp.gt.f32.partialorder %v2236, 0.0
    %vm2387 = vcmp.gt.f32.partialorder %v2241, 0.0
    %vm2388 = vcmp.gt.f32.partialorder %v2246, 0.0
    %vm2389 = vcmp.gt.f32.partialorder %v2251, 0.0
    %vm2390 = vcmp.gt.f32.partialorder %v2256, 0.0
    %vm2391 = vcmp.gt.f32.partialorder %v2261, 0.0
    %vm2392 = vcmp.gt.f32.partialorder %v2266, 0.0
    %vm2393 = vcmp.gt.f32.partialorder %v2271, 0.0
    %vm2394 = vcmp.gt.f32.partialorder %v2276, 0.0
    %vm2395 = vcmp.gt.f32.partialorder %v2281, 0.0
    %vm2396 = vcmp.gt.f32.partialorder %v2286, 0.0
    %vm2397 = vcmp.gt.f32.partialorder %v2291, 0.0
    %vm2398 = vcmp.gt.f32.partialorder %v2296, 0.0
    %vm2399 = vcmp.gt.f32.partialorder %v2301, 0.0
    %vm2400 = vcmp.gt.f32.partialorder %v2306, 0.0
    %vm2401 = vcmp.gt.f32.partialorder %v2311, 0.0
    %vm2402 = vcmp.gt.f32.partialorder %v2316, 0.0
    %vm2403 = vcmp.gt.f32.partialorder %v2321, 0.0
    %vm2404 = vcmp.gt.f32.partialorder %v2326, 0.0
    %vm2405 = vcmp.gt.f32.partialorder %v2331, 0.0
    %vm2406 = vcmp.gt.f32.partialorder %v2336, 0.0
    %vm2407 = vcmp.gt.f32.partialorder %v2341, 0.0
    %vm2408 = vcmp.gt.f32.partialorder %v2346, 0.0
    %vm2409 = vcmp.gt.f32.partialorder %v2351, 0.0
    %vm2410 = vcmp.gt.f32.partialorder %v2356, 0.0
    %vm2411 = vcmp.gt.f32.partialorder %v2361, 0.0
    %vm2412 = vcmp.gt.f32.partialorder %v2366, 0.0
    %vm2413 = vcmp.gt.f32.partialorder %v2371, 0.0
    %vm2414 = vcmp.gt.f32.partialorder %v2376, 0.0
    %vm2415 = vcmp.gt.f32.partialorder %v2381, 0.0
    %v2416 = vmul.f32 %v2226, 0.2
    %v2417 = vmul.f32 %v2231, 0.2
    %v2418 = vmul.f32 %v2236, 0.2
    %v2419 = vmul.f32 %v2241, 0.2
    %v2420 = vmul.f32 %v2246, 0.2
    %v2421 = vmul.f32 %v2251, 0.2
    %v2422 = vmul.f32 %v2256, 0.2
    %v2423 = vmul.f32 %v2261, 0.2
    %v2424 = vmul.f32 %v2266, 0.2
    %v2425 = vmul.f32 %v2271, 0.2
    %v2426 = vmul.f32 %v2276, 0.2
    %v2427 = vmul.f32 %v2281, 0.2
    %v2428 = vmul.f32 %v2286, 0.2
    %v2429 = vmul.f32 %v2291, 0.2
    %v2430 = vmul.f32 %v2296, 0.2
    %v2431 = vmul.f32 %v2301, 0.2
    %v2432 = vmul.f32 %v2306, 0.2
    %v2433 = vmul.f32 %v2311, 0.2
    %v2434 = vmul.f32 %v2316, 0.2
    %v2435 = vmul.f32 %v2321, 0.2
    %v2436 = vmul.f32 %v2326, 0.2
    %v2437 = vmul.f32 %v2331, 0.2
    %v2438 = vmul.f32 %v2336, 0.2
    %v2439 = vmul.f32 %v2341, 0.2
    %v2440 = vmul.f32 %v2346, 0.2
    %v2441 = vmul.f32 %v2351, 0.2
    %v2442 = vmul.f32 %v2356, 0.2
    %v2443 = vmul.f32 %v2361, 0.2
    %v2444 = vmul.f32 %v2366, 0.2
    %v2445 = vmul.f32 %v2371, 0.2
    %v2446 = vmul.f32 %v2376, 0.2
    %v2447 = vmul.f32 %v2381, 0.2
    %v2448 = vsel %vm2384, %v2226, %v2416
    %v2449 = vsel %vm2385, %v2231, %v2417
    %v2450 = vsel %vm2386, %v2236, %v2418
    %v2451 = vsel %vm2387, %v2241, %v2419
    %v2452 = vsel %vm2388, %v2246, %v2420
    %v2453 = vsel %vm2389, %v2251, %v2421
    %v2454 = vsel %vm2390, %v2256, %v2422
    %v2455 = vsel %vm2391, %v2261, %v2423
    %v2456 = vsel %vm2392, %v2266, %v2424
    %v2457 = vsel %vm2393, %v2271, %v2425
    %v2458 = vsel %vm2394, %v2276, %v2426
    %v2459 = vsel %vm2395, %v2281, %v2427
    %v2460 = vsel %vm2396, %v2286, %v2428
    %v2461 = vsel %vm2397, %v2291, %v2429
    %v2462 = vsel %vm2398, %v2296, %v2430
    %v2463 = vsel %vm2399, %v2301, %v2431
    %v2464 = vsel %vm2400, %v2306, %v2432
    %v2465 = vsel %vm2401, %v2311, %v2433
    %v2466 = vsel %vm2402, %v2316, %v2434
    %v2467 = vsel %vm2403, %v2321, %v2435
    %v2468 = vsel %vm2404, %v2326, %v2436
    %v2469 = vsel %vm2405, %v2331, %v2437
    %v2470 = vsel %vm2406, %v2336, %v2438
    %v2471 = vsel %vm2407, %v2341, %v2439
    %v2472 = vsel %vm2408, %v2346, %v2440
    %v2473 = vsel %vm2409, %v2351, %v2441
    %v2474 = vsel %vm2410, %v2356, %v2442
    %v2475 = vsel %vm2411, %v2361, %v2443
    %v2476 = vsel %vm2412, %v2366, %v2444
    %v2477 = vsel %vm2413, %v2371, %v2445
    %v2478 = vsel %vm2414, %v2376, %v2446
    %v2479 = vsel %vm2415, %v2381, %v2447
    %v2480 = vld [vmem:[#allocation2 + $0x378] sm:$0xff]
    %v2481 = vld [vmem:[#allocation2 + $0x380] sm:$0xff]
    %v2482 = vld [vmem:[#allocation2 + $0x388] sm:$0xff]
    %v2483 = vld [vmem:[#allocation2 + $0x390] sm:$0xff]
    %v2484 = vld [vmem:[#allocation2 + $0x398] sm:$0xff]
    %v2485 = vld [vmem:[#allocation2 + $0x3a0] sm:$0xff]
    %v2486 = vld [vmem:[#allocation2 + $0x3a8] sm:$0xff]
    %v2487 = vld [vmem:[#allocation2 + $0x3b0] sm:$0xff]
    %v2488 = vld [vmem:[#allocation2 + $0x3b8] sm:$0xff]
    %v2489 = vld [vmem:[#allocation2 + $0x3c0] sm:$0xff]
    %v2490 = vld [vmem:[#allocation2 + $0x3c8] sm:$0xff]
    %v2491 = vld [vmem:[#allocation2 + $0x3d0] sm:$0xff]
    %v2492 = vld [vmem:[#allocation2 + $0x3d8] sm:$0xff]
    %v2493 = vld [vmem:[#allocation2 + $0x3e0] sm:$0xff]
    %v2494 = vld [vmem:[#allocation2 + $0x3e8] sm:$0xff]
    %v2495 = vld [vmem:[#allocation2 + $0x3f0] sm:$0xff]
    %v2496 = vld [vmem:[#allocation2 + $0x3f8] sm:$0x1]
    %v2497 = vlaneseq
    %v2498 = vshrl.u32 %v2497, 7
    %v2499 = vsub.s32 0, %v2498
    %v2500 = vrot.slane %v2496, %v2499
    %2501 = vmatprep.subr.mxu0 0.0
    %2502 = vmatpush1.msra.mxu0 %v2480
    %2503 = vmatprep.subr.mxu0 0.0
    %2504 = vmatpush1.msra.mxu0 %v2481
    %2505 = vmatprep.subr.mxu0 0.0
    %2506 = vmatpush1.msra.mxu0 %v2482
    %2507 = vmatprep.subr.mxu0 0.0
    %2508 = vmatpush1.msra.mxu0 %v2483
    %2509 = vmatprep.subr.mxu0 0.0
    %2510 = vmatpush1.msra.mxu0 %v2484
    %2511 = vmatprep.subr.mxu0 0.0
    %2512 = vmatpush1.msra.mxu0 %v2485
    %2513 = vmatprep.subr.mxu0 0.0
    %2514 = vmatpush1.msra.mxu0 %v2486
    %2515 = vmatprep.subr.mxu0 0.0
    %2516 = vmatpush1.msra.mxu0 %v2487
    %2517 = vmatprep.subr.mxu0 0.0
    %2518 = vmatpush1.msra.mxu0 %v2488
    %2519 = vmatprep.subr.mxu0 0.0
    %2520 = vmatpush1.msra.mxu0 %v2489
    %2521 = vmatprep.subr.mxu0 0.0
    %2522 = vmatpush1.msra.mxu0 %v2490
    %2523 = vmatprep.subr.mxu0 0.0
    %2524 = vmatpush1.msra.mxu0 %v2491
    %2525 = vmatprep.subr.mxu0 0.0
    %2526 = vmatpush1.msra.mxu0 %v2492
    %2527 = vmatprep.subr.mxu0 0.0
    %2528 = vmatpush1.msra.mxu0 %v2493
    %2529 = vmatprep.subr.mxu0 0.0
    %2530 = vmatpush1.msra.mxu0 %v2494
    %2531 = vmatprep.subr.mxu0 0.0
    %2532 = vmatpush1.msra.mxu0 %v2495
    %2533 = vmatprep.subr.mxu0 0.0
    %2534 = vmatpush1.msra.mxu0 0.0
    %2535 = vmatprep.subr.mxu0 0.0
    %2536 = vmatpush1.msra.mxu0 0.0
    %2537 = vmatprep.subr.mxu0 0.0
    %2538 = vmatpush1.msra.mxu0 0.0
    %2539 = vmatprep.subr.mxu0 0.0
    %2540 = vmatpush1.msra.mxu0 0.0
    %2541 = vmatprep.subr.mxu0 0.0
    %2542 = vmatpush1.msra.mxu0 0.0
    %2543 = vmatprep.subr.mxu0 0.0
    %2544 = vmatpush1.msra.mxu0 0.0
    %2545 = vmatprep.subr.mxu0 0.0
    %2546 = vmatpush1.msra.mxu0 0.0
    %2547 = vmatprep.subr.mxu0 0.0
    %2548 = vmatpush1.msra.mxu0 0.0
    %2549 = vmatprep.subr.mxu0 0.0
    %2550 = vmatpush1.msra.mxu0 0.0
    %2551 = vmatprep.subr.mxu0 0.0
    %2552 = vmatpush1.msra.mxu0 0.0
    %2553 = vmatprep.subr.mxu0 0.0
    %2554 = vmatpush1.msra.mxu0 0.0
    %2555 = vmatprep.subr.mxu0 0.0
    %2556 = vmatpush1.msra.mxu0 0.0
    %2557 = vmatprep.subr.mxu0 0.0
    %2558 = vmatpush1.msra.mxu0 0.0
    %2559 = vmatprep.subr.mxu0 0.0
    %2560 = vmatpush1.msra.mxu0 0.0
    %2561 = vmatprep.subr.mxu0 0.0
    %2562 = vmatpush1.msra.mxu0 0.0
    %2563 = vmatprep.subr.mxu0 0.0
    %2564 = vmatpush1.msra.mxu0 0.0
    %2565 = vmatprep.mubr.f32.mxu0 0.0
    %2566 = vmatmul.mubr.f32.gmra.mrb[0].mxu0 %v2448
    %v2567 = vpop.f32.mrb[0].mxu0
    %v2568 = vadd.f32 %v2500, %v2567
    %v2569 = vpop.f32.mrb[0].mxu0
    %2570 = vmatprep.mubr.f32.mxu0 0.0
    %2571 = vmatmul.mubr.f32.gmra.mrb[0].mxu0 %v2449
    %v2572 = vpop.f32.mrb[0].mxu0
    %v2573 = vadd.f32 %v2500, %v2572
    %v2574 = vpop.f32.mrb[0].mxu0
    %2575 = vmatprep.mubr.f32.mxu0 0.0
    %2576 = vmatmul.mubr.f32.gmra.mrb[0].mxu0 %v2450
    %v2577 = vpop.f32.mrb[0].mxu0
    %v2578 = vadd.f32 %v2500, %v2577
    %v2579 = vpop.f32.mrb[0].mxu0
    %2580 = vmatprep.mubr.f32.mxu0 0.0
    %2581 = vmatmul.mubr.f32.gmra.mrb[0].mxu0 %v2451
    %v2582 = vpop.f32.mrb[0].mxu0
    %v2583 = vadd.f32 %v2500, %v2582
    %v2584 = vpop.f32.mrb[0].mxu0
    %2585 = vmatprep.mubr.f32.mxu0 0.0
    %2586 = vmatmul.mubr.f32.gmra.mrb[0].mxu0 %v2452
    %v2587 = vpop.f32.mrb[0].mxu0
    %v2588 = vadd.f32 %v2500, %v2587
    %v2589 = vpop.f32.mrb[0].mxu0
    %2590 = vmatprep.mubr.f32.mxu0 0.0
    %2591 = vmatmul.mubr.f32.gmra.mrb[0].mxu0 %v2453
    %v2592 = vpop.f32.mrb[0].mxu0
    %v2593 = vadd.f32 %v2500, %v2592
    %v2594 = vpop.f32.mrb[0].mxu0
    %2595 = vmatprep.mubr.f32.mxu0 0.0
    %2596 = vmatmul.mubr.f32.gmra.mrb[0].mxu0 %v2454
    %v2597 = vpop.f32.mrb[0].mxu0
    %v2598 = vadd.f32 %v2500, %v2597
    %v2599 = vpop.f32.mrb[0].mxu0
    %2600 = vmatprep.mubr.f32.mxu0 0.0
    %2601 = vmatmul.mubr.f32.gmra.mrb[0].mxu0 %v2455
    %v2602 = vpop.f32.mrb[0].mxu0
    %v2603 = vadd.f32 %v2500, %v2602
    %v2604 = vpop.f32.mrb[0].mxu0
    %2605 = vmatprep.mubr.f32.mxu0 0.0
    %2606 = vmatmul.mubr.f32.gmra.mrb[0].mxu0 %v2456
    %v2607 = vpop.f32.mrb[0].mxu0
    %v2608 = vadd.f32 %v2500, %v2607
    %v2609 = vpop.f32.mrb[0].mxu0
    %2610 = vmatprep.mubr.f32.mxu0 0.0
    %2611 = vmatmul.mubr.f32.gmra.mrb[0].mxu0 %v2457
    %v2612 = vpop.f32.mrb[0].mxu0
    %v2613 = vadd.f32 %v2500, %v2612
    %v2614 = vpop.f32.mrb[0].mxu0
    %2615 = vmatprep.mubr.f32.mxu0 0.0
    %2616 = vmatmul.mubr.f32.gmra.mrb[0].mxu0 %v2458
    %v2617 = vpop.f32.mrb[0].mxu0
    %v2618 = vadd.f32 %v2500, %v2617
    %v2619 = vpop.f32.mrb[0].mxu0
    %2620 = vmatprep.mubr.f32.mxu0 0.0
    %2621 = vmatmul.mubr.f32.gmra.mrb[0].mxu0 %v2459
    %v2622 = vpop.f32.mrb[0].mxu0
    %v2623 = vadd.f32 %v2500, %v2622
    %v2624 = vpop.f32.mrb[0].mxu0
    %2625 = vmatprep.mubr.f32.mxu0 0.0
    %2626 = vmatmul.mubr.f32.gmra.mrb[0].mxu0 %v2460
    %v2627 = vpop.f32.mrb[0].mxu0
    %v2628 = vadd.f32 %v2500, %v2627
    %v2629 = vpop.f32.mrb[0].mxu0
    %2630 = vmatprep.mubr.f32.mxu0 0.0
    %2631 = vmatmul.mubr.f32.gmra.mrb[0].mxu0 %v2461
    %v2632 = vpop.f32.mrb[0].mxu0
    %v2633 = vadd.f32 %v2500, %v2632
    %v2634 = vpop.f32.mrb[0].mxu0
    %2635 = vmatprep.mubr.f32.mxu0 0.0
    %2636 = vmatmul.mubr.f32.gmra.mrb[0].mxu0 %v2462
    %v2637 = vpop.f32.mrb[0].mxu0
    %v2638 = vadd.f32 %v2500, %v2637
    %v2639 = vpop.f32.mrb[0].mxu0
    %2640 = vmatprep.mubr.f32.mxu0 0.0
    %2641 = vmatmul.mubr.f32.gmra.mrb[0].mxu0 %v2463
    %v2642 = vpop.f32.mrb[0].mxu0
    %v2643 = vadd.f32 %v2500, %v2642
    %v2644 = vpop.f32.mrb[0].mxu0
    %2645 = vmatprep.mubr.f32.mxu0 0.0
    %2646 = vmatmul.mubr.f32.gmra.mrb[0].mxu0 %v2464
    %v2647 = vpop.f32.mrb[0].mxu0
    %v2648 = vadd.f32 %v2500, %v2647
    %v2649 = vpop.f32.mrb[0].mxu0
    %2650 = vmatprep.mubr.f32.mxu0 0.0
    %2651 = vmatmul.mubr.f32.gmra.mrb[0].mxu0 %v2465
    %v2652 = vpop.f32.mrb[0].mxu0
    %v2653 = vadd.f32 %v2500, %v2652
    %v2654 = vpop.f32.mrb[0].mxu0
    %2655 = vmatprep.mubr.f32.mxu0 0.0
    %2656 = vmatmul.mubr.f32.gmra.mrb[0].mxu0 %v2466
    %v2657 = vpop.f32.mrb[0].mxu0
    %v2658 = vadd.f32 %v2500, %v2657
    %v2659 = vpop.f32.mrb[0].mxu0
    %2660 = vmatprep.mubr.f32.mxu0 0.0
    %2661 = vmatmul.mubr.f32.gmra.mrb[0].mxu0 %v2467
    %v2662 = vpop.f32.mrb[0].mxu0
    %v2663 = vadd.f32 %v2500, %v2662
    %v2664 = vpop.f32.mrb[0].mxu0
    %2665 = vmatprep.mubr.f32.mxu0 0.0
    %2666 = vmatmul.mubr.f32.gmra.mrb[0].mxu0 %v2468
    %v2667 = vpop.f32.mrb[0].mxu0
    %v2668 = vadd.f32 %v2500, %v2667
    %v2669 = vpop.f32.mrb[0].mxu0
    %2670 = vmatprep.mubr.f32.mxu0 0.0
    %2671 = vmatmul.mubr.f32.gmra.mrb[0].mxu0 %v2469
    %v2672 = vpop.f32.mrb[0].mxu0
    %v2673 = vadd.f32 %v2500, %v2672
    %v2674 = vpop.f32.mrb[0].mxu0
    %2675 = vmatprep.mubr.f32.mxu0 0.0
    %2676 = vmatmul.mubr.f32.gmra.mrb[0].mxu0 %v2470
    %v2677 = vpop.f32.mrb[0].mxu0
    %v2678 = vadd.f32 %v2500, %v2677
    %v2679 = vpop.f32.mrb[0].mxu0
    %2680 = vmatprep.mubr.f32.mxu0 0.0
    %2681 = vmatmul.mubr.f32.gmra.mrb[0].mxu0 %v2471
    %v2682 = vpop.f32.mrb[0].mxu0
    %v2683 = vadd.f32 %v2500, %v2682
    %v2684 = vpop.f32.mrb[0].mxu0
    %2685 = vmatprep.mubr.f32.mxu0 0.0
    %2686 = vmatmul.mubr.f32.gmra.mrb[0].mxu0 %v2472
    %v2687 = vpop.f32.mrb[0].mxu0
    %v2688 = vadd.f32 %v2500, %v2687
    %v2689 = vpop.f32.mrb[0].mxu0
    %2690 = vmatprep.mubr.f32.mxu0 0.0
    %2691 = vmatmul.mubr.f32.gmra.mrb[0].mxu0 %v2473
    %v2692 = vpop.f32.mrb[0].mxu0
    %v2693 = vadd.f32 %v2500, %v2692
    %v2694 = vpop.f32.mrb[0].mxu0
    %2695 = vmatprep.mubr.f32.mxu0 0.0
    %2696 = vmatmul.mubr.f32.gmra.mrb[0].mxu0 %v2474
    %v2697 = vpop.f32.mrb[0].mxu0
    %v2698 = vadd.f32 %v2500, %v2697
    %v2699 = vpop.f32.mrb[0].mxu0
    %2700 = vmatprep.mubr.f32.mxu0 0.0
    %2701 = vmatmul.mubr.f32.gmra.mrb[0].mxu0 %v2475
    %v2702 = vpop.f32.mrb[0].mxu0
    %v2703 = vadd.f32 %v2500, %v2702
    %v2704 = vpop.f32.mrb[0].mxu0
    %2705 = vmatprep.mubr.f32.mxu0 0.0
    %2706 = vmatmul.mubr.f32.gmra.mrb[0].mxu0 %v2476
    %v2707 = vpop.f32.mrb[0].mxu0
    %v2708 = vadd.f32 %v2500, %v2707
    %v2709 = vpop.f32.mrb[0].mxu0
    %2710 = vmatprep.mubr.f32.mxu0 0.0
    %2711 = vmatmul.mubr.f32.gmra.mrb[0].mxu0 %v2477
    %v2712 = vpop.f32.mrb[0].mxu0
    %v2713 = vadd.f32 %v2500, %v2712
    %v2714 = vpop.f32.mrb[0].mxu0
    %2715 = vmatprep.mubr.f32.mxu0 0.0
    %2716 = vmatmul.mubr.f32.gmra.mrb[0].mxu0 %v2478
    %v2717 = vpop.f32.mrb[0].mxu0
    %v2718 = vadd.f32 %v2500, %v2717
    %v2719 = vpop.f32.mrb[0].mxu0
    %2720 = vmatprep.mubr.f32.mxu0 0.0
    %2721 = vmatmul.mubr.f32.gmra.mrb[0].mxu0 %v2479
    %v2722 = vpop.f32.mrb[0].mxu0
    %v2723 = vadd.f32 %v2500, %v2722
    %v2724 = vpop.f32.mrb[0].mxu0
    %2725 = vdwg.mxu0
    %2726 = vst [vmem:[#allocation5] sm:$0xff] %v2568
    %2727 = vst [vmem:[#allocation5 + $0x8] sm:$0xff] %v2573
    %2728 = vst [vmem:[#allocation5 + $0x10] sm:$0xff] %v2578
    %2729 = vst [vmem:[#allocation5 + $0x18] sm:$0xff] %v2583
    %2730 = vst [vmem:[#allocation5 + $0x20] sm:$0xff] %v2588
    %2731 = vst [vmem:[#allocation5 + $0x28] sm:$0xff] %v2593
    %2732 = vst [vmem:[#allocation5 + $0x30] sm:$0xff] %v2598
    %2733 = vst [vmem:[#allocation5 + $0x38] sm:$0xff] %v2603
    %2734 = vst [vmem:[#allocation5 + $0x40] sm:$0xff] %v2608
    %2735 = vst [vmem:[#allocation5 + $0x48] sm:$0xff] %v2613
    %2736 = vst [vmem:[#allocation5 + $0x50] sm:$0xff] %v2618
    %2737 = vst [vmem:[#allocation5 + $0x58] sm:$0xff] %v2623
    %2738 = vst [vmem:[#allocation5 + $0x60] sm:$0xff] %v2628
    %2739 = vst [vmem:[#allocation5 + $0x68] sm:$0xff] %v2633
    %2740 = vst [vmem:[#allocation5 + $0x70] sm:$0xff] %v2638
    %2741 = vst [vmem:[#allocation5 + $0x78] sm:$0xff] %v2643
    %2742 = vst [vmem:[#allocation5 + $0x80] sm:$0xff] %v2648
    %2743 = vst [vmem:[#allocation5 + $0x88] sm:$0xff] %v2653
    %2744 = vst [vmem:[#allocation5 + $0x90] sm:$0xff] %v2658
    %2745 = vst [vmem:[#allocation5 + $0x98] sm:$0xff] %v2663
    %2746 = vst [vmem:[#allocation5 + $0xa0] sm:$0xff] %v2668
    %2747 = vst [vmem:[#allocation5 + $0xa8] sm:$0xff] %v2673
    %2748 = vst [vmem:[#allocation5 + $0xb0] sm:$0xff] %v2678
    %2749 = vst [vmem:[#allocation5 + $0xb8] sm:$0xff] %v2683
    %2750 = vst [vmem:[#allocation5 + $0xc0] sm:$0xff] %v2688
    %2751 = vst [vmem:[#allocation5 + $0xc8] sm:$0xff] %v2693
    %2752 = vst [vmem:[#allocation5 + $0xd0] sm:$0xff] %v2698
    %2753 = vst [vmem:[#allocation5 + $0xd8] sm:$0xff] %v2703
    %2754 = vst [vmem:[#allocation5 + $0xe0] sm:$0xff] %v2708
    %2755 = vst [vmem:[#allocation5 + $0xe8] sm:$0xff] %v2713
    %2756 = vst [vmem:[#allocation5 + $0xf0] sm:$0xff] %v2718
    %2757 = vst [vmem:[#allocation5 + $0xf8] sm:$0xff] %v2723
    // Predicated region
    $region14: #{tpu_custom_call.1} parent=1 // pred_check
      _
    $region15: #{tpu_custom_call.1} parent=1 // pred_check_branch
      %2759 = sbr.rel (0) target = $region17
    $region16: #{tpu_custom_call.1} parent=1 // pred_region
      %s2761 = ssub.s32 4096, 4096
      %2762 = vsyncadd [#allocation4], %s2761
      %s2763 = sshll.u32 [#allocation5], 4
      %s2764 = int_to_ptr.vmem [resolvable:$true] %s2763
      %2769 = dma.vmem_to_hbm [thread:$0]  %s2764, 4096, %s2, [#allocation4], 128, 128, 8
    $region17: #{tpu_custom_call.1} parent=1 // pred_fallthru
      _
    // Predicated region
    $region18: #{tpu_custom_call.1} parent=1 // pred_check
      _
    $region19: #{tpu_custom_call.1} parent=1 // pred_check_branch
      %2771 = sbr.rel (0) target = $region21
    $region20: #{tpu_custom_call.1} parent=1 // pred_region
      %s2773 = ssub.s32 4096, 4096
      %2774 = vsyncadd [#allocation7], %s2773
      %s2775 = sshll.u32 [#allocation6], 4
      %s2776 = int_to_ptr.vmem [resolvable:$true] %s2775
      %2781 = dma.vmem_to_hbm [thread:$0]  %s2776, 4096, %s3, [#allocation7], 128, 128, 8
    $region21: #{tpu_custom_call.1} parent=1 // pred_fallthru
      _
    // Predicated region
    $region22: #{tpu_custom_call.1} parent=1 // pred_check
      _
    $region23: #{tpu_custom_call.1} parent=1 // pred_check_branch
      %2783 = sbr.rel (0) target = $region25
    $region24: #{tpu_custom_call.1} parent=1 // pred_region
      %2784 = dma.done [#allocation4], 4096
    $region25: #{tpu_custom_call.1} parent=1 // pred_fallthru
      _
    // Predicated region
    $region26: #{tpu_custom_call.1} parent=1 // pred_check
      _
    $region27: #{tpu_custom_call.1} parent=1 // pred_check_branch
      %2786 = sbr.rel (0) target = $region29
    $region28: #{tpu_custom_call.1} parent=1 // pred_region
      %2787 = dma.done [#allocation7], 4096
    $region29: #{tpu_custom_call.1} parent=1 // pred_fallthru
      _
    %2788 = vsyncpa [#allocation3], 1
    %2789 = vsyncpa [#allocation4], 1
    %2790 = vsyncpa [#allocation7], 1

// kernel: tpu_custom_call.1
$region0: #{tpu_custom_call.1}
  #allocation0 [shape = 'u32[]', space=smem, size = 0x4, offset = 0x4, fixed_abs, tag = 'smem constant byte address 0x4 - core index']
  #allocation1 [shape = 'u32[144,128]{1,0:T(1,128)}', space=vmem, size = 0x12000, scoped, tag = 'internal scratch']
  %s0 = inlined_call_operand.vmem [shape: f32[256,64], index: 0, kind: input, shape index: {}]
  %s1 = inlined_call_operand.hbm [shape: f32[1024,128], index: 1, kind: input, shape index: {}]
  %s2 = inlined_call_operand.hbm [shape: f32[256,128], index: 2, kind: output, shape index: {0}]
  %s3 = inlined_call_operand.hbm [shape: f32[256,128], index: 3, kind: output, shape index: {1}]
  %4 = xla_tuple %s2, %s3
  %s5 = sld [smem:[#allocation0]]
  $region30: #{tpu_custom_call.1} parent=0
    _
  %s7 = ssub.s32 1, %s5
  %s8 = scalar_select 0, %s7, %s5
  $region1: #{tpu_custom_call.1} parent=0
    #allocation2 [shape = 'u8[524288]{0}', space=vmem, size = 0x80000, scoped, tag = 'input window, operand 1, single buffered']
    #allocation3 [shape = 's32[1]{0}', space=sflag, size = 0x4, scoped, tag = 'scoped memory for tpu_custom_call.1']
    #allocation4 [shape = 's32[1]{0}', space=sflag, size = 0x4, scoped, tag = 'scoped memory for tpu_custom_call.1']
    #allocation5 [shape = 'u8[131072]{0}', space=vmem, size = 0x20000, scoped, tag = 'output window, operand 0, single buffered']
    #allocation6 [shape = 'u8[131072]{0}', space=vmem, size = 0x20000, scoped, tag = 'output window, operand 1, single buffered']
    #allocation7 [shape = 's32[1]{0}', space=sflag, size = 0x4, scoped, tag = 'scoped memory for tpu_custom_call.1']
    %9 = vsyncpa [#allocation3], 0
    %10 = vsyncpa [#allocation4], 0
    %11 = vsyncpa [#allocation7], 0
    // Predicated region
    $region2: #{tpu_custom_call.1} parent=1 // pred_check
      _
    $region3: #{tpu_custom_call.1} parent=1 // pred_check_branch
      %13 = sbr.rel (0) target = $region5
    $region4: #{tpu_custom_call.1} parent=1 // pred_region
      _
    $region5: #{tpu_custom_call.1} parent=1 // pred_fallthru
      _
    // Predicated region
    $region6: #{tpu_custom_call.1} parent=1 // pred_check
      _
    $region7: #{tpu_custom_call.1} parent=1 // pred_check_branch
      %15 = sbr.rel (0) target = $region9
    $region8: #{tpu_custom_call.1} parent=1 // pred_region
      %s17 = ssub.s32 16384, 16384
      %18 = vsyncadd [#allocation3], %s17
      %s19 = sshll.u32 [#allocation2], 4
      %s20 = int_to_ptr.vmem [resolvable:$true] %s19
      %25 = dma.hbm_to_vmem [thread:$0]  %s1, 16384, %s20, [#allocation3], 128, 128, 8
    $region9: #{tpu_custom_call.1} parent=1 // pred_fallthru
      _
    // Predicated region
    $region10: #{tpu_custom_call.1} parent=1 // pred_check
      _
    $region11: #{tpu_custom_call.1} parent=1 // pred_check_branch
      %27 = sbr.rel (0) target = $region13
    $region12: #{tpu_custom_call.1} parent=1 // pred_region
      %28 = dma.done [#allocation3], 16384
    $region13: #{tpu_custom_call.1} parent=1 // pred_fallthru
      _
    %v29 = vld [vmem:[%s0] sm:$0xff]
    %v30 = vld [vmem:[%s0 + $0x8] sm:$0xff]
    %v31 = vld [vmem:[%s0 + $0x10] sm:$0xff]
    %v32 = vld [vmem:[%s0 + $0x18] sm:$0xff]
    %v33 = vld [vmem:[%s0 + $0x20] sm:$0xff]
    %v34 = vld [vmem:[%s0 + $0x28] sm:$0xff]
    %v35 = vld [vmem:[%s0 + $0x30] sm:$0xff]
    %v36 = vld [vmem:[%s0 + $0x38] sm:$0xff]
    %v37 = vld [vmem:[%s0 + $0x40] sm:$0xff]
    %v38 = vld [vmem:[%s0 + $0x48] sm:$0xff]
    %v39 = vld [vmem:[%s0 + $0x50] sm:$0xff]
    %v40 = vld [vmem:[%s0 + $0x58] sm:$0xff]
    %v41 = vld [vmem:[%s0 + $0x60] sm:$0xff]
    %v42 = vld [vmem:[%s0 + $0x68] sm:$0xff]
    %v43 = vld [vmem:[%s0 + $0x70] sm:$0xff]
    %v44 = vld [vmem:[%s0 + $0x78] sm:$0xff]
    %v45 = vld [vmem:[%s0 + $0x80] sm:$0xff]
    %v46 = vld [vmem:[%s0 + $0x88] sm:$0xff]
    %v47 = vld [vmem:[%s0 + $0x90] sm:$0xff]
    %v48 = vld [vmem:[%s0 + $0x98] sm:$0xff]
    %v49 = vld [vmem:[%s0 + $0xa0] sm:$0xff]
    %v50 = vld [vmem:[%s0 + $0xa8] sm:$0xff]
    %v51 = vld [vmem:[%s0 + $0xb0] sm:$0xff]
    %v52 = vld [vmem:[%s0 + $0xb8] sm:$0xff]
    %v53 = vld [vmem:[%s0 + $0xc0] sm:$0xff]
    %v54 = vld [vmem:[%s0 + $0xc8] sm:$0xff]
    %v55 = vld [vmem:[%s0 + $0xd0] sm:$0xff]
    %v56 = vld [vmem:[%s0 + $0xd8] sm:$0xff]
    %v57 = vld [vmem:[%s0 + $0xe0] sm:$0xff]
    %v58 = vld [vmem:[%s0 + $0xe8] sm:$0xff]
    %v59 = vld [vmem:[%s0 + $0xf0] sm:$0xff]
    %v60 = vld [vmem:[%s0 + $0xf8] sm:$0xff]
    %v61 = vld [vmem:[#allocation2] sm:$0xff]
    %v62 = vld [vmem:[#allocation2 + $0x8] sm:$0xff]
    %v63 = vld [vmem:[#allocation2 + $0x10] sm:$0xff]
    %v64 = vld [vmem:[#allocation2 + $0x18] sm:$0xff]
    %v65 = vld [vmem:[#allocation2 + $0x20] sm:$0xff]
    %v66 = vld [vmem:[#allocation2 + $0x28] sm:$0xff]
    %v67 = vld [vmem:[#allocation2 + $0x30] sm:$0xff]
    %v68 = vld [vmem:[#allocation2 + $0x38] sm:$0xff]
    %v69 = vld [vmem:[#allocation2 + $0x40] sm:$0x1]
    %v70 = vlaneseq
    %v71 = vshrl.u32 %v70, 7
    %v72 = vsub.s32 0, %v71
    %v73 = vrot.slane %v69, %v72
    %vm74 = vcmask 523264
    %v76 = vsel %vm74, %v29, 0
    %v79 = vsel %vm74, %v30, 0
    %v82 = vsel %vm74, %v31, 0
    %v85 = vsel %vm74, %v32, 0
    %v88 = vsel %vm74, %v33, 0
    %v91 = vsel %vm74, %v34, 0
    %v94 = vsel %vm74, %v35, 0
    %v97 = vsel %vm74, %v36, 0
    %v100 = vsel %vm74, %v37, 0
    %v103 = vsel %vm74, %v38, 0
    %v106 = vsel %vm74, %v39, 0
    %v109 = vsel %vm74, %v40, 0
    %v112 = vsel %vm74, %v41, 0
    %v115 = vsel %vm74, %v42, 0
    %v118 = vsel %vm74, %v43, 0
    %v121 = vsel %vm74, %v44, 0
    %v124 = vsel %vm74, %v45, 0
    %v127 = vsel %vm74, %v46, 0
    %v130 = vsel %vm74, %v47, 0
    %v133 = vsel %vm74, %v48, 0
    %v136 = vsel %vm74, %v49, 0
    %v139 = vsel %vm74, %v50, 0
    %v142 = vsel %vm74, %v51, 0
    %v145 = vsel %vm74, %v52, 0
    %v148 = vsel %vm74, %v53, 0
    %v151 = vsel %vm74, %v54, 0
    %v154 = vsel %vm74, %v55, 0
    %v157 = vsel %vm74, %v56, 0
    %v160 = vsel %vm74, %v57, 0
    %v163 = vsel %vm74, %v58, 0
    %v166 = vsel %vm74, %v59, 0
    %v169 = vsel %vm74, %v60, 0
    %171 = vmatprep.subr.mxu0 0.0
    %172 = vmatpush1.msra.mxu0 %v61
    %173 = vmatprep.subr.mxu0 0.0
    %174 = vmatpush1.msra.mxu0 %v62
    %175 = vmatprep.subr.mxu0 0.0
    %176 = vmatpush1.msra.mxu0 %v63
    %177 = vmatprep.subr.mxu0 0.0
    %178 = vmatpush1.msra.mxu0 %v64
    %179 = vmatprep.subr.mxu0 0.0
    %180 = vmatpush1.msra.mxu0 %v65
    %181 = vmatprep.subr.mxu0 0.0
    %182 = vmatpush1.msra.mxu0 %v66
    %183 = vmatprep.subr.mxu0 0.0
    %184 = vmatpush1.msra.mxu0 %v67
    %185 = vmatprep.subr.mxu0 0.0
    %186 = vmatpush1.msra.mxu0 %v68
    %187 = vmatprep.subr.mxu0 0.0
    %188 = vmatpush1.msra.mxu0 0.0
    %189 = vmatprep.subr.mxu0 0.0
    %190 = vmatpush1.msra.mxu0 0.0
    %191 = vmatprep.subr.mxu0 0.0
    %192 = vmatpush1.msra.mxu0 0.0
    %193 = vmatprep.subr.mxu0 0.0
    %194 = vmatpush1.msra.mxu0 0.0
    %195 = vmatprep.subr.mxu0 0.0
    %196 = vmatpush1.msra.mxu0 0.0
    %197 = vmatprep.subr.mxu0 0.0
    %198 = vmatpush1.msra.mxu0 0.0
    %199 = vmatprep.subr.mxu0 0.0
    %200 = vmatpush1.msra.mxu0 0.0
    %201 = vmatprep.subr.mxu0 0.0
    %202 = vmatpush1.msra.mxu0 0.0
    %203 = vmatprep.subr.mxu0 0.0
    %204 = vmatpush1.msra.mxu0 0.0
    %205 = vmatprep.subr.mxu0 0.0
    %206 = vmatpush1.msra.mxu0 0.0
    %207 = vmatprep.subr.mxu0 0.0
    %208 = vmatpush1.msra.mxu0 0.0
    %209 = vmatprep.subr.mxu0 0.0
    %210 = vmatpush1.msra.mxu0 0.0
    %211 = vmatprep.subr.mxu0 0.0
    %212 = vmatpush1.msra.mxu0 0.0
    %213 = vmatprep.subr.mxu0 0.0
    %214 = vmatpush1.msra.mxu0 0.0
    %215 = vmatprep.subr.mxu0 0.0
    %216 = vmatpush1.msra.mxu0 0.0
    %217 = vmatprep.subr.mxu0 0.0
    %218 = vmatpush1.msra.mxu0 0.0
    %219 = vmatprep.subr.mxu0 0.0
    %220 = vmatpush1.msra.mxu0 0.0
    %221 = vmatprep.subr.mxu0 0.0
    %222 = vmatpush1.msra.mxu0 0.0
    %223 = vmatprep.subr.mxu0 0.0
    %224 = vmatpush1.msra.mxu0 0.0
    %225 = vmatprep.subr.mxu0 0.0
    %226 = vmatpush1.msra.mxu0 0.0
    %227 = vmatprep.subr.mxu0 0.0
    %228 = vmatpush1.msra.mxu0 0.0
    %229 = vmatprep.subr.mxu0 0.0
    %230 = vmatpush1.msra.mxu0 0.0
    %231 = vmatprep.subr.mxu0 0.0
    %232 = vmatpush1.msra.mxu0 0.0
    %233 = vmatprep.subr.mxu0 0.0
    %234 = vmatpush1.msra.mxu0 0.0
    %235 = vmatprep.mubr.f32.mxu0 0.0
    %236 = vmatmul.mubr.f32.gmra.mrb[0].mxu0 %v76
    %v237 = vpop.f32.mrb[0].mxu0
    %v238 = vadd.f32 %v73, %v237
    %v239 = vpop.f32.mrb[0].mxu0
    %240 = vmatprep.mubr.f32.mxu0 0.0
    %241 = vmatmul.mubr.f32.gmra.mrb[0].mxu0 %v79
    %v242 = vpop.f32.mrb[0].mxu0
    %v243 = vadd.f32 %v73, %v242
    %v244 = vpop.f32.mrb[0].mxu0
    %245 = vmatprep.mubr.f32.mxu0 0.0
    %246 = vmatmul.mubr.f32.gmra.mrb[0].mxu0 %v82
    %v247 = vpop.f32.mrb[0].mxu0
    %v248 = vadd.f32 %v73, %v247
    %v249 = vpop.f32.mrb[0].mxu0
    %250 = vmatprep.mubr.f32.mxu0 0.0
    %251 = vmatmul.mubr.f32.gmra.mrb[0].mxu0 %v85
    %v252 = vpop.f32.mrb[0].mxu0
    %v253 = vadd.f32 %v73, %v252
    %v254 = vpop.f32.mrb[0].mxu0
    %255 = vmatprep.mubr.f32.mxu0 0.0
    %256 = vmatmul.mubr.f32.gmra.mrb[0].mxu0 %v88
    %v257 = vpop.f32.mrb[0].mxu0
    %v258 = vadd.f32 %v73, %v257
    %v259 = vpop.f32.mrb[0].mxu0
    %260 = vmatprep.mubr.f32.mxu0 0.0
    %261 = vmatmul.mubr.f32.gmra.mrb[0].mxu0 %v91
    %v262 = vpop.f32.mrb[0].mxu0
    %v263 = vadd.f32 %v73, %v262
    %v264 = vpop.f32.mrb[0].mxu0
    %265 = vmatprep.mubr.f32.mxu0 0.0
    %266 = vmatmul.mubr.f32.gmra.mrb[0].mxu0 %v94
    %v267 = vpop.f32.mrb[0].mxu0
    %v268 = vadd.f32 %v73, %v267
    %v269 = vpop.f32.mrb[0].mxu0
    %270 = vmatprep.mubr.f32.mxu0 0.0
    %271 = vmatmul.mubr.f32.gmra.mrb[0].mxu0 %v97
    %v272 = vpop.f32.mrb[0].mxu0
    %v273 = vadd.f32 %v73, %v272
    %v274 = vpop.f32.mrb[0].mxu0
    %275 = vmatprep.mubr.f32.mxu0 0.0
    %276 = vmatmul.mubr.f32.gmra.mrb[0].mxu0 %v100
    %v277 = vpop.f32.mrb[0].mxu0
    %v278 = vadd.f32 %v73, %v277
    %v279 = vpop.f32.mrb[0].mxu0
    %280 = vmatprep.mubr.f32.mxu0 0.0
    %281 = vmatmul.mubr.f32.gmra.mrb[0].mxu0 %v103
    %v282 = vpop.f32.mrb[0].mxu0
    %v283 = vadd.f32 %v73, %v282
    %v284 = vpop.f32.mrb[0].mxu0
    %285 = vmatprep.mubr.f32.mxu0 0.0
    %286 = vmatmul.mubr.f32.gmra.mrb[0].mxu0 %v106
    %v287 = vpop.f32.mrb[0].mxu0
    %v288 = vadd.f32 %v73, %v287
    %v289 = vpop.f32.mrb[0].mxu0
    %290 = vmatprep.mubr.f32.mxu0 0.0
    %291 = vmatmul.mubr.f32.gmra.mrb[0].mxu0 %v109
    %v292 = vpop.f32.mrb[0].mxu0
    %v293 = vadd.f32 %v73, %v292
    %v294 = vpop.f32.mrb[0].mxu0
    %295 = vmatprep.mubr.f32.mxu0 0.0
    %296 = vmatmul.mubr.f32.gmra.mrb[0].mxu0 %v112
    %v297 = vpop.f32.mrb[0].mxu0
    %v298 = vadd.f32 %v73, %v297
    %v299 = vpop.f32.mrb[0].mxu0
    %300 = vmatprep.mubr.f32.mxu0 0.0
    %301 = vmatmul.mubr.f32.gmra.mrb[0].mxu0 %v115
    %v302 = vpop.f32.mrb[0].mxu0
    %v303 = vadd.f32 %v73, %v302
    %v304 = vpop.f32.mrb[0].mxu0
    %305 = vmatprep.mubr.f32.mxu0 0.0
    %306 = vmatmul.mubr.f32.gmra.mrb[0].mxu0 %v118
    %v307 = vpop.f32.mrb[0].mxu0
    %v308 = vadd.f32 %v73, %v307
    %v309 = vpop.f32.mrb[0].mxu0
    %310 = vmatprep.mubr.f32.mxu0 0.0
    %311 = vmatmul.mubr.f32.gmra.mrb[0].mxu0 %v121
    %v312 = vpop.f32.mrb[0].mxu0
    %v313 = vadd.f32 %v73, %v312
    %v314 = vpop.f32.mrb[0].mxu0
    %315 = vmatprep.mubr.f32.mxu0 0.0
    %316 = vmatmul.mubr.f32.gmra.mrb[0].mxu0 %v124
    %v317 = vpop.f32.mrb[0].mxu0
    %v318 = vadd.f32 %v73, %v317
    %v319 = vpop.f32.mrb[0].mxu0
    %320 = vmatprep.mubr.f32.mxu0 0.0
    %321 = vmatmul.mubr.f32.gmra.mrb[0].mxu0 %v127
    %v322 = vpop.f32.mrb[0].mxu0
    %v323 = vadd.f32 %v73, %v322
    %v324 = vpop.f32.mrb[0].mxu0
    %325 = vmatprep.mubr.f32.mxu0 0.0
    %326 = vmatmul.mubr.f32.gmra.mrb[0].mxu0 %v130
    %v327 = vpop.f32.mrb[0].mxu0
    %v328 = vadd.f32 %v73, %v327
    %v329 = vpop.f32.mrb[0].mxu0
    %330 = vmatprep.mubr.f32.mxu0 0.0
    %331 = vmatmul.mubr.f32.gmra.mrb[0].mxu0 %v133
    %v332 = vpop.f32.mrb[0].mxu0
    %v333 = vadd.f32 %v73, %v332
    %v334 = vpop.f32.mrb[0].mxu0
    %335 = vmatprep.mubr.f32.mxu0 0.0
    %336 = vmatmul.mubr.f32.gmra.mrb[0].mxu0 %v136
    %v337 = vpop.f32.mrb[0].mxu0
    %v338 = vadd.f32 %v73, %v337
    %v339 = vpop.f32.mrb[0].mxu0
    %340 = vmatprep.mubr.f32.mxu0 0.0
    %341 = vmatmul.mubr.f32.gmra.mrb[0].mxu0 %v139
    %v342 = vpop.f32.mrb[0].mxu0
    %v343 = vadd.f32 %v73, %v342
    %v344 = vpop.f32.mrb[0].mxu0
    %345 = vmatprep.mubr.f32.mxu0 0.0
    %346 = vmatmul.mubr.f32.gmra.mrb[0].mxu0 %v142
    %v347 = vpop.f32.mrb[0].mxu0
    %v348 = vadd.f32 %v73, %v347
    %v349 = vpop.f32.mrb[0].mxu0
    %350 = vmatprep.mubr.f32.mxu0 0.0
    %351 = vmatmul.mubr.f32.gmra.mrb[0].mxu0 %v145
    %v352 = vpop.f32.mrb[0].mxu0
    %v353 = vadd.f32 %v73, %v352
    %v354 = vpop.f32.mrb[0].mxu0
    %355 = vmatprep.mubr.f32.mxu0 0.0
    %356 = vmatmul.mubr.f32.gmra.mrb[0].mxu0 %v148
    %v357 = vpop.f32.mrb[0].mxu0
    %v358 = vadd.f32 %v73, %v357
    %v359 = vpop.f32.mrb[0].mxu0
    %360 = vmatprep.mubr.f32.mxu0 0.0
    %361 = vmatmul.mubr.f32.gmra.mrb[0].mxu0 %v151
    %v362 = vpop.f32.mrb[0].mxu0
    %v363 = vadd.f32 %v73, %v362
    %v364 = vpop.f32.mrb[0].mxu0
    %365 = vmatprep.mubr.f32.mxu0 0.0
    %366 = vmatmul.mubr.f32.gmra.mrb[0].mxu0 %v154
    %v367 = vpop.f32.mrb[0].mxu0
    %v368 = vadd.f32 %v73, %v367
    %v369 = vpop.f32.mrb[0].mxu0
    %370 = vmatprep.mubr.f32.mxu0 0.0
    %371 = vmatmul.mubr.f32.gmra.mrb[0].mxu0 %v157
    %v372 = vpop.f32.mrb[0].mxu0
    %v373 = vadd.f32 %v73, %v372
    %v374 = vpop.f32.mrb[0].mxu0
    %375 = vmatprep.mubr.f32.mxu0 0.0
    %376 = vmatmul.mubr.f32.gmra.mrb[0].mxu0 %v160
    %v377 = vpop.f32.mrb[0].mxu0
    %v378 = vadd.f32 %v73, %v377
    %v379 = vpop.f32.mrb[0].mxu0
    %380 = vmatprep.mubr.f32.mxu0 0.0
    %381 = vmatmul.mubr.f32.gmra.mrb[0].mxu0 %v163
    %v382 = vpop.f32.mrb[0].mxu0
    %v383 = vadd.f32 %v73, %v382
    %v384 = vpop.f32.mrb[0].mxu0
    %385 = vmatprep.mubr.f32.mxu0 0.0
    %386 = vmatmul.mubr.f32.gmra.mrb[0].mxu0 %v166
    %v387 = vpop.f32.mrb[0].mxu0
    %v388 = vadd.f32 %v73, %v387
    %v389 = vpop.f32.mrb[0].mxu0
    %390 = vmatprep.mubr.f32.mxu0 0.0
    %391 = vmatmul.mubr.f32.gmra.mrb[0].mxu0 %v169
    %v392 = vpop.f32.mrb[0].mxu0
    %v393 = vadd.f32 %v73, %v392
    %v394 = vpop.f32.mrb[0].mxu0
    %395 = vdwg.mxu0
    %vm396 = vcmp.gt.f32.partialorder %v238, 0.0
    %vm397 = vcmp.gt.f32.partialorder %v243, 0.0
    %vm398 = vcmp.gt.f32.partialorder %v248, 0.0
    %vm399 = vcmp.gt.f32.partialorder %v253, 0.0
    %vm400 = vcmp.gt.f32.partialorder %v258, 0.0
    %vm401 = vcmp.gt.f32.partialorder %v263, 0.0
    %vm402 = vcmp.gt.f32.partialorder %v268, 0.0
    %vm403 = vcmp.gt.f32.partialorder %v273, 0.0
    %vm404 = vcmp.gt.f32.partialorder %v278, 0.0
    %vm405 = vcmp.gt.f32.partialorder %v283, 0.0
    %vm406 = vcmp.gt.f32.partialorder %v288, 0.0
    %vm407 = vcmp.gt.f32.partialorder %v293, 0.0
    %vm408 = vcmp.gt.f32.partialorder %v298, 0.0
    %vm409 = vcmp.gt.f32.partialorder %v303, 0.0
    %vm410 = vcmp.gt.f32.partialorder %v308, 0.0
    %vm411 = vcmp.gt.f32.partialorder %v313, 0.0
    %vm412 = vcmp.gt.f32.partialorder %v318, 0.0
    %vm413 = vcmp.gt.f32.partialorder %v323, 0.0
    %vm414 = vcmp.gt.f32.partialorder %v328, 0.0
    %vm415 = vcmp.gt.f32.partialorder %v333, 0.0
    %vm416 = vcmp.gt.f32.partialorder %v338, 0.0
    %vm417 = vcmp.gt.f32.partialorder %v343, 0.0
    %vm418 = vcmp.gt.f32.partialorder %v348, 0.0
    %vm419 = vcmp.gt.f32.partialorder %v353, 0.0
    %vm420 = vcmp.gt.f32.partialorder %v358, 0.0
    %vm421 = vcmp.gt.f32.partialorder %v363, 0.0
    %vm422 = vcmp.gt.f32.partialorder %v368, 0.0
    %vm423 = vcmp.gt.f32.partialorder %v373, 0.0
    %vm424 = vcmp.gt.f32.partialorder %v378, 0.0
    %vm425 = vcmp.gt.f32.partialorder %v383, 0.0
    %vm426 = vcmp.gt.f32.partialorder %v388, 0.0
    %vm427 = vcmp.gt.f32.partialorder %v393, 0.0
    %v428 = vmul.f32 %v238, 0.2
    %v429 = vmul.f32 %v243, 0.2
    %v430 = vmul.f32 %v248, 0.2
    %v431 = vmul.f32 %v253, 0.2
    %v432 = vmul.f32 %v258, 0.2
    %v433 = vmul.f32 %v263, 0.2
    %v434 = vmul.f32 %v268, 0.2
    %v435 = vmul.f32 %v273, 0.2
    %v436 = vmul.f32 %v278, 0.2
    %v437 = vmul.f32 %v283, 0.2
    %v438 = vmul.f32 %v288, 0.2
    %v439 = vmul.f32 %v293, 0.2
    %v440 = vmul.f32 %v298, 0.2
    %v441 = vmul.f32 %v303, 0.2
    %v442 = vmul.f32 %v308, 0.2
    %v443 = vmul.f32 %v313, 0.2
    %v444 = vmul.f32 %v318, 0.2
    %v445 = vmul.f32 %v323, 0.2
    %v446 = vmul.f32 %v328, 0.2
    %v447 = vmul.f32 %v333, 0.2
    %v448 = vmul.f32 %v338, 0.2
    %v449 = vmul.f32 %v343, 0.2
    %v450 = vmul.f32 %v348, 0.2
    %v451 = vmul.f32 %v353, 0.2
    %v452 = vmul.f32 %v358, 0.2
    %v453 = vmul.f32 %v363, 0.2
    %v454 = vmul.f32 %v368, 0.2
    %v455 = vmul.f32 %v373, 0.2
    %v456 = vmul.f32 %v378, 0.2
    %v457 = vmul.f32 %v383, 0.2
    %v458 = vmul.f32 %v388, 0.2
    %v459 = vmul.f32 %v393, 0.2
    %v460 = vsel %vm396, %v238, %v428
    %v461 = vsel %vm397, %v243, %v429
    %v462 = vsel %vm398, %v248, %v430
    %v463 = vsel %vm399, %v253, %v431
    %v464 = vsel %vm400, %v258, %v432
    %v465 = vsel %vm401, %v263, %v433
    %v466 = vsel %vm402, %v268, %v434
    %v467 = vsel %vm403, %v273, %v435
    %v468 = vsel %vm404, %v278, %v436
    %v469 = vsel %vm405, %v283, %v437
    %v470 = vsel %vm406, %v288, %v438
    %v471 = vsel %vm407, %v293, %v439
    %v472 = vsel %vm408, %v298, %v440
    %v473 = vsel %vm409, %v303, %v441
    %v474 = vsel %vm410, %v308, %v442
    %v475 = vsel %vm411, %v313, %v443
    %v476 = vsel %vm412, %v318, %v444
    %v477 = vsel %vm413, %v323, %v445
    %v478 = vsel %vm414, %v328, %v446
    %v479 = vsel %vm415, %v333, %v447
    %v480 = vsel %vm416, %v338, %v448
    %v481 = vsel %vm417, %v343, %v449
    %v482 = vsel %vm418, %v348, %v450
    %v483 = vsel %vm419, %v353, %v451
    %v484 = vsel %vm420, %v358, %v452
    %v485 = vsel %vm421, %v363, %v453
    %v486 = vsel %vm422, %v368, %v454
    %v487 = vsel %vm423, %v373, %v455
    %v488 = vsel %vm424, %v378, %v456
    %v489 = vsel %vm425, %v383, %v457
    %v490 = vsel %vm426, %v388, %v458
    %v491 = vsel %vm427, %v393, %v459
    %v492 = vld [vmem:[#allocation2 + $0x48] sm:$0xff]
    %v493 = vld [vmem:[#allocation2 + $0x50] sm:$0xff]
    %v494 = vld [vmem:[#allocation2 + $0x58] sm:$0xff]
    %v495 = vld [vmem:[#allocation2 + $0x60] sm:$0xff]
    %v496 = vld [vmem:[#allocation2 + $0x68] sm:$0xff]
    %v497 = vld [vmem:[#allocation2 + $0x70] sm:$0xff]
    %v498 = vld [vmem:[#allocation2 + $0x78] sm:$0xff]
    %v499 = vld [vmem:[#allocation2 + $0x80] sm:$0xff]
    %v500 = vld [vmem:[#allocation2 + $0x88] sm:$0xff]
    %v501 = vld [vmem:[#allocation2 + $0x90] sm:$0xff]
    %v502 = vld [vmem:[#allocation2 + $0x98] sm:$0xff]
    %v503 = vld [vmem:[#allocation2 + $0xa0] sm:$0xff]
    %v504 = vld [vmem:[#allocation2 + $0xa8] sm:$0xff]
    %v505 = vld [vmem:[#allocation2 + $0xb0] sm:$0xff]
    %v506 = vld [vmem:[#allocation2 + $0xb8] sm:$0xff]
    %v507 = vld [vmem:[#allocation2 + $0xc0] sm:$0xff]
    %v508 = vld [vmem:[#allocation2 + $0xc8] sm:$0x1]
    %v509 = vlaneseq
    %v510 = vshrl.u32 %v509, 7
    %v511 = vsub.s32 0, %v510
    %v512 = vrot.slane %v508, %v511
    %513 = vmatprep.subr.mxu0 0.0
    %514 = vmatpush1.msra.mxu0 %v492
    %515 = vmatprep.subr.mxu0 0.0
    %516 = vmatpush1.msra.mxu0 %v493
    %517 = vmatprep.subr.mxu0 0.0
    %518 = vmatpush1.msra.mxu0 %v494
    %519 = vmatprep.subr.mxu0 0.0
    %520 = vmatpush1.msra.mxu0 %v495
    %521 = vmatprep.subr.mxu0 0.0
    %522 = vmatpush1.msra.mxu0 %v496
    %523 = vmatprep.subr.mxu0 0.0
    %524 = vmatpush1.msra.mxu0 %v497
    %525 = vmatprep.subr.mxu0 0.0
    %526 = vmatpush1.msra.mxu0 %v498
    %527 = vmatprep.subr.mxu0 0.0
    %528 = vmatpush1.msra.mxu0 %v499
    %529 = vmatprep.subr.mxu0 0.0
    %530 = vmatpush1.msra.mxu0 %v500
    %531 = vmatprep.subr.mxu0 0.0
    %532 = vmatpush1.msra.mxu0 %v501
    %533 = vmatprep.subr.mxu0 0.0
    %534 = vmatpush1.msra.mxu0 %v502
    %535 = vmatprep.subr.mxu0 0.0
    %536 = vmatpush1.msra.mxu0 %v503
    %537 = vmatprep.subr.mxu0 0.0
    %538 = vmatpush1.msra.mxu0 %v504
    %539 = vmatprep.subr.mxu0 0.0
    %540 = vmatpush1.msra.mxu0 %v505
    %541 = vmatprep.subr.mxu0 0.0
    %542 = vmatpush1.msra.mxu0 %v506
    %543 = vmatprep.subr.mxu0 0.0
    %544 = vmatpush1.msra.mxu0 %v507
    %545 = vmatprep.subr.mxu0 0.0
    %546 = vmatpush1.msra.mxu0 0.0
    %547 = vmatprep.subr.mxu0 0.0
    %548 = vmatpush1.msra.mxu0 0.0
    %549 = vmatprep.subr.mxu0 0.0
    %550 = vmatpush1.msra.mxu0 0.0
    %551 = vmatprep.subr.mxu0 0.0
    %552 = vmatpush1.msra.mxu0 0.0
    %553 = vmatprep.subr.mxu0 0.0
    %554 = vmatpush1.msra.mxu0 0.0
    %555 = vmatprep.subr.mxu0 0.0
    %556 = vmatpush1.msra.mxu0 0.0
    %557 = vmatprep.subr.mxu0 0.0
    %558 = vmatpush1.msra.mxu0 0.0
    %559 = vmatprep.subr.mxu0 0.0
    %560 = vmatpush1.msra.mxu0 0.0
    %561 = vmatprep.subr.mxu0 0.0
    %562 = vmatpush1.msra.mxu0 0.0
    %563 = vmatprep.subr.mxu0 0.0
    %564 = vmatpush1.msra.mxu0 0.0
    %565 = vmatprep.subr.mxu0 0.0
    %566 = vmatpush1.msra.mxu0 0.0
    %567 = vmatprep.subr.mxu0 0.0
    %568 = vmatpush1.msra.mxu0 0.0
    %569 = vmatprep.subr.mxu0 0.0
    %570 = vmatpush1.msra.mxu0 0.0
    %571 = vmatprep.subr.mxu0 0.0
    %572 = vmatpush1.msra.mxu0 0.0
    %573 = vmatprep.subr.mxu0 0.0
    %574 = vmatpush1.msra.mxu0 0.0
    %575 = vmatprep.subr.mxu0 0.0
    %576 = vmatpush1.msra.mxu0 0.0
    %577 = vmatprep.mubr.f32.mxu0 0.0
    %578 = vmatmul.mubr.f32.gmra.mrb[0].mxu0 %v460
    %v579 = vpop.f32.mrb[0].mxu0
    %v580 = vadd.f32 %v512, %v579
    %v581 = vpop.f32.mrb[0].mxu0
    %582 = vmatprep.mubr.f32.mxu0 0.0
    %583 = vmatmul.mubr.f32.gmra.mrb[0].mxu0 %v461
    %v584 = vpop.f32.mrb[0].mxu0
    %v585 = vadd.f32 %v512, %v584
    %v586 = vpop.f32.mrb[0].mxu0
    %587 = vmatprep.mubr.f32.mxu0 0.0
    %588 = vmatmul.mubr.f32.gmra.mrb[0].mxu0 %v462
    %v589 = vpop.f32.mrb[0].mxu0
    %v590 = vadd.f32 %v512, %v589
    %v591 = vpop.f32.mrb[0].mxu0
    %592 = vmatprep.mubr.f32.mxu0 0.0
    %593 = vmatmul.mubr.f32.gmra.mrb[0].mxu0 %v463
    %v594 = vpop.f32.mrb[0].mxu0
    %v595 = vadd.f32 %v512, %v594
    %v596 = vpop.f32.mrb[0].mxu0
    %597 = vmatprep.mubr.f32.mxu0 0.0
    %598 = vmatmul.mubr.f32.gmra.mrb[0].mxu0 %v464
    %v599 = vpop.f32.mrb[0].mxu0
    %v600 = vadd.f32 %v512, %v599
    %v601 = vpop.f32.mrb[0].mxu0
    %602 = vmatprep.mubr.f32.mxu0 0.0
    %603 = vmatmul.mubr.f32.gmra.mrb[0].mxu0 %v465
    %v604 = vpop.f32.mrb[0].mxu0
    %v605 = vadd.f32 %v512, %v604
    %v606 = vpop.f32.mrb[0].mxu0
    %607 = vmatprep.mubr.f32.mxu0 0.0
    %608 = vmatmul.mubr.f32.gmra.mrb[0].mxu0 %v466
    %v609 = vpop.f32.mrb[0].mxu0
    %v610 = vadd.f32 %v512, %v609
    %v611 = vpop.f32.mrb[0].mxu0
    %612 = vmatprep.mubr.f32.mxu0 0.0
    %613 = vmatmul.mubr.f32.gmra.mrb[0].mxu0 %v467
    %v614 = vpop.f32.mrb[0].mxu0
    %v615 = vadd.f32 %v512, %v614
    %v616 = vpop.f32.mrb[0].mxu0
    %617 = vmatprep.mubr.f32.mxu0 0.0
    %618 = vmatmul.mubr.f32.gmra.mrb[0].mxu0 %v468
    %v619 = vpop.f32.mrb[0].mxu0
    %v620 = vadd.f32 %v512, %v619
    %v621 = vpop.f32.mrb[0].mxu0
    %622 = vmatprep.mubr.f32.mxu0 0.0
    %623 = vmatmul.mubr.f32.gmra.mrb[0].mxu0 %v469
    %v624 = vpop.f32.mrb[0].mxu0
    %v625 = vadd.f32 %v512, %v624
    %v626 = vpop.f32.mrb[0].mxu0
    %627 = vmatprep.mubr.f32.mxu0 0.0
    %628 = vmatmul.mubr.f32.gmra.mrb[0].mxu0 %v470
    %v629 = vpop.f32.mrb[0].mxu0
    %v630 = vadd.f32 %v512, %v629
    %v631 = vpop.f32.mrb[0].mxu0
    %632 = vmatprep.mubr.f32.mxu0 0.0
    %633 = vmatmul.mubr.f32.gmra.mrb[0].mxu0 %v471
    %v634 = vpop.f32.mrb[0].mxu0
    %v635 = vadd.f32 %v512, %v634
    %v636 = vpop.f32.mrb[0].mxu0
    %637 = vmatprep.mubr.f32.mxu0 0.0
    %638 = vmatmul.mubr.f32.gmra.mrb[0].mxu0 %v472
    %v639 = vpop.f32.mrb[0].mxu0
    %v640 = vadd.f32 %v512, %v639
    %v641 = vpop.f32.mrb[0].mxu0
    %642 = vmatprep.mubr.f32.mxu0 0.0
    %643 = vmatmul.mubr.f32.gmra.mrb[0].mxu0 %v473
    %v644 = vpop.f32.mrb[0].mxu0
    %v645 = vadd.f32 %v512, %v644
    %v646 = vpop.f32.mrb[0].mxu0
    %647 = vmatprep.mubr.f32.mxu0 0.0
    %648 = vmatmul.mubr.f32.gmra.mrb[0].mxu0 %v474
    %v649 = vpop.f32.mrb[0].mxu0
    %v650 = vadd.f32 %v512, %v649
    %v651 = vpop.f32.mrb[0].mxu0
    %652 = vmatprep.mubr.f32.mxu0 0.0
    %653 = vmatmul.mubr.f32.gmra.mrb[0].mxu0 %v475
    %v654 = vpop.f32.mrb[0].mxu0
    %v655 = vadd.f32 %v512, %v654
    %v656 = vpop.f32.mrb[0].mxu0
    %657 = vmatprep.mubr.f32.mxu0 0.0
    %658 = vmatmul.mubr.f32.gmra.mrb[0].mxu0 %v476
    %v659 = vpop.f32.mrb[0].mxu0
    %v660 = vadd.f32 %v512, %v659
    %v661 = vpop.f32.mrb[0].mxu0
    %662 = vmatprep.mubr.f32.mxu0 0.0
    %663 = vmatmul.mubr.f32.gmra.mrb[0].mxu0 %v477
    %v664 = vpop.f32.mrb[0].mxu0
    %v665 = vadd.f32 %v512, %v664
    %v666 = vpop.f32.mrb[0].mxu0
    %667 = vmatprep.mubr.f32.mxu0 0.0
    %668 = vmatmul.mubr.f32.gmra.mrb[0].mxu0 %v478
    %v669 = vpop.f32.mrb[0].mxu0
    %v670 = vadd.f32 %v512, %v669
    %v671 = vpop.f32.mrb[0].mxu0
    %672 = vmatprep.mubr.f32.mxu0 0.0
    %673 = vmatmul.mubr.f32.gmra.mrb[0].mxu0 %v479
    %v674 = vpop.f32.mrb[0].mxu0
    %v675 = vadd.f32 %v512, %v674
    %v676 = vpop.f32.mrb[0].mxu0
    %677 = vmatprep.mubr.f32.mxu0 0.0
    %678 = vmatmul.mubr.f32.gmra.mrb[0].mxu0 %v480
    %v679 = vpop.f32.mrb[0].mxu0
    %v680 = vadd.f32 %v512, %v679
    %v681 = vpop.f32.mrb[0].mxu0
    %682 = vmatprep.mubr.f32.mxu0 0.0
    %683 = vmatmul.mubr.f32.gmra.mrb[0].mxu0 %v481
    %v684 = vpop.f32.mrb[0].mxu0
    %v685 = vadd.f32 %v512, %v684
    %v686 = vpop.f32.mrb[0].mxu0
    %687 = vmatprep.mubr.f32.mxu0 0.0
    %688 = vmatmul.mubr.f32.gmra.mrb[0].mxu0 %v482
    %v689 = vpop.f32.mrb[0].mxu0
    %v690 = vadd.f32 %v512, %v689
    %v691 = vpop.f32.mrb[0].mxu0
    %692 = vmatprep.mubr.f32.mxu0 0.0
    %693 = vmatmul.mubr.f32.gmra.mrb[0].mxu0 %v483
    %v694 = vpop.f32.mrb[0].mxu0
    %v695 = vadd.f32 %v512, %v694
    %v696 = vpop.f32.mrb[0].mxu0
    %697 = vmatprep.mubr.f32.mxu0 0.0
    %698 = vmatmul.mubr.f32.gmra.mrb[0].mxu0 %v484
    %v699 = vpop.f32.mrb[0].mxu0
    %v700 = vadd.f32 %v512, %v699
    %v701 = vpop.f32.mrb[0].mxu0
    %702 = vmatprep.mubr.f32.mxu0 0.0
    %703 = vmatmul.mubr.f32.gmra.mrb[0].mxu0 %v485
    %v704 = vpop.f32.mrb[0].mxu0
    %v705 = vadd.f32 %v512, %v704
    %v706 = vpop.f32.mrb[0].mxu0
    %707 = vmatprep.mubr.f32.mxu0 0.0
    %708 = vmatmul.mubr.f32.gmra.mrb[0].mxu0 %v486
    %v709 = vpop.f32.mrb[0].mxu0
    %v710 = vadd.f32 %v512, %v709
    %v711 = vpop.f32.mrb[0].mxu0
    %712 = vmatprep.mubr.f32.mxu0 0.0
    %713 = vmatmul.mubr.f32.gmra.mrb[0].mxu0 %v487
    %v714 = vpop.f32.mrb[0].mxu0
    %v715 = vadd.f32 %v512, %v714
    %v716 = vpop.f32.mrb[0].mxu0
    %717 = vmatprep.mubr.f32.mxu0 0.0
    %718 = vmatmul.mubr.f32.gmra.mrb[0].mxu0 %v488
    %v719 = vpop.f32.mrb[0].mxu0
    %v720 = vadd.f32 %v512, %v719
    %v721 = vpop.f32.mrb[0].mxu0
    %722 = vmatprep.mubr.f32.mxu0 0.0
    %723 = vmatmul.mubr.f32.gmra.mrb[0].mxu0 %v489
    %v724 = vpop.f32.mrb[0].mxu0
    %v725 = vadd.f32 %v512, %v724
    %v726 = vpop.f32.mrb[0].mxu0
    %727 = vmatprep.mubr.f32.mxu0 0.0
    %728 = vmatmul.mubr.f32.gmra.mrb[0].mxu0 %v490
    %v729 = vpop.f32.mrb[0].mxu0
    %v730 = vadd.f32 %v512, %v729
    %v731 = vpop.f32.mrb[0].mxu0
    %732 = vmatprep.mubr.f32.mxu0 0.0
    %733 = vmatmul.mubr.f32.gmra.mrb[0].mxu0 %v491
    %v734 = vpop.f32.mrb[0].mxu0
    %v735 = vadd.f32 %v512, %v734
    %v736 = vpop.f32.mrb[0].mxu0
    %737 = vdwg.mxu0
    %vm738 = vcmp.gt.f32.partialorder %v580, 0.0
    %vm739 = vcmp.gt.f32.partialorder %v585, 0.0
    %vm740 = vcmp.gt.f32.partialorder %v590, 0.0
    %vm741 = vcmp.gt.f32.partialorder %v595, 0.0
    %vm742 = vcmp.gt.f32.partialorder %v600, 0.0
    %vm743 = vcmp.gt.f32.partialorder %v605, 0.0
    %vm744 = vcmp.gt.f32.partialorder %v610, 0.0
    %vm745 = vcmp.gt.f32.partialorder %v615, 0.0
    %vm746 = vcmp.gt.f32.partialorder %v620, 0.0
    %vm747 = vcmp.gt.f32.partialorder %v625, 0.0
    %vm748 = vcmp.gt.f32.partialorder %v630, 0.0
    %vm749 = vcmp.gt.f32.partialorder %v635, 0.0
    %vm750 = vcmp.gt.f32.partialorder %v640, 0.0
    %vm751 = vcmp.gt.f32.partialorder %v645, 0.0
    %vm752 = vcmp.gt.f32.partialorder %v650, 0.0
    %vm753 = vcmp.gt.f32.partialorder %v655, 0.0
    %vm754 = vcmp.gt.f32.partialorder %v660, 0.0
    %vm755 = vcmp.gt.f32.partialorder %v665, 0.0
    %vm756 = vcmp.gt.f32.partialorder %v670, 0.0
    %vm757 = vcmp.gt.f32.partialorder %v675, 0.0
    %vm758 = vcmp.gt.f32.partialorder %v680, 0.0
    %vm759 = vcmp.gt.f32.partialorder %v685, 0.0
    %vm760 = vcmp.gt.f32.partialorder %v690, 0.0
    %vm761 = vcmp.gt.f32.partialorder %v695, 0.0
    %vm762 = vcmp.gt.f32.partialorder %v700, 0.0
    %vm763 = vcmp.gt.f32.partialorder %v705, 0.0
    %vm764 = vcmp.gt.f32.partialorder %v710, 0.0
    %vm765 = vcmp.gt.f32.partialorder %v715, 0.0
    %vm766 = vcmp.gt.f32.partialorder %v720, 0.0
    %vm767 = vcmp.gt.f32.partialorder %v725, 0.0
    %vm768 = vcmp.gt.f32.partialorder %v730, 0.0
    %vm769 = vcmp.gt.f32.partialorder %v735, 0.0
    %v770 = vmul.f32 %v580, 0.2
    %v771 = vmul.f32 %v585, 0.2
    %v772 = vmul.f32 %v590, 0.2
    %v773 = vmul.f32 %v595, 0.2
    %v774 = vmul.f32 %v600, 0.2
    %v775 = vmul.f32 %v605, 0.2
    %v776 = vmul.f32 %v610, 0.2
    %v777 = vmul.f32 %v615, 0.2
    %v778 = vmul.f32 %v620, 0.2
    %v779 = vmul.f32 %v625, 0.2
    %v780 = vmul.f32 %v630, 0.2
    %v781 = vmul.f32 %v635, 0.2
    %v782 = vmul.f32 %v640, 0.2
    %v783 = vmul.f32 %v645, 0.2
    %v784 = vmul.f32 %v650, 0.2
    %v785 = vmul.f32 %v655, 0.2
    %v786 = vmul.f32 %v660, 0.2
    %v787 = vmul.f32 %v665, 0.2
    %v788 = vmul.f32 %v670, 0.2
    %v789 = vmul.f32 %v675, 0.2
    %v790 = vmul.f32 %v680, 0.2
    %v791 = vmul.f32 %v685, 0.2
    %v792 = vmul.f32 %v690, 0.2
    %v793 = vmul.f32 %v695, 0.2
    %v794 = vmul.f32 %v700, 0.2
    %v795 = vmul.f32 %v705, 0.2
    %v796 = vmul.f32 %v710, 0.2
    %v797 = vmul.f32 %v715, 0.2
    %v798 = vmul.f32 %v720, 0.2
    %v799 = vmul.f32 %v725, 0.2
    %v800 = vmul.f32 %v730, 0.2
    %v801 = vmul.f32 %v735, 0.2
    %v802 = vsel %vm738, %v580, %v770
    %v803 = vsel %vm739, %v585, %v771
    %v804 = vsel %vm740, %v590, %v772
    %v805 = vsel %vm741, %v595, %v773
    %v806 = vsel %vm742, %v600, %v774
    %v807 = vsel %vm743, %v605, %v775
    %v808 = vsel %vm744, %v610, %v776
    %v809 = vsel %vm745, %v615, %v777
    %v810 = vsel %vm746, %v620, %v778
    %v811 = vsel %vm747, %v625, %v779
    %v812 = vsel %vm748, %v630, %v780
    %v813 = vsel %vm749, %v635, %v781
    %v814 = vsel %vm750, %v640, %v782
    %v815 = vsel %vm751, %v645, %v783
    %v816 = vsel %vm752, %v650, %v784
    %v817 = vsel %vm753, %v655, %v785
    %v818 = vsel %vm754, %v660, %v786
    %v819 = vsel %vm755, %v665, %v787
    %v820 = vsel %vm756, %v670, %v788
    %v821 = vsel %vm757, %v675, %v789
    %v822 = vsel %vm758, %v680, %v790
    %v823 = vsel %vm759, %v685, %v791
    %v824 = vsel %vm760, %v690, %v792
    %v825 = vsel %vm761, %v695, %v793
    %v826 = vsel %vm762, %v700, %v794
    %v827 = vsel %vm763, %v705, %v795
    %v828 = vsel %vm764, %v710, %v796
    %v829 = vsel %vm765, %v715, %v797
    %v830 = vsel %vm766, %v720, %v798
    %v831 = vsel %vm767, %v725, %v799
    %v832 = vsel %vm768, %v730, %v800
    %v833 = vsel %vm769, %v735, %v801
    %v834 = vld [vmem:[#allocation2 + $0xd0] sm:$0xff]
    %v835 = vld [vmem:[#allocation2 + $0xd8] sm:$0xff]
    %v836 = vld [vmem:[#allocation2 + $0xe0] sm:$0xff]
    %v837 = vld [vmem:[#allocation2 + $0xe8] sm:$0xff]
    %v838 = vld [vmem:[#allocation2 + $0xf0] sm:$0xff]
    %v839 = vld [vmem:[#allocation2 + $0xf8] sm:$0xff]
    %v840 = vld [vmem:[#allocation2 + $0x100] sm:$0xff]
    %v841 = vld [vmem:[#allocation2 + $0x108] sm:$0xff]
    %v842 = vld [vmem:[#allocation2 + $0x110] sm:$0xff]
    %v843 = vld [vmem:[#allocation2 + $0x118] sm:$0xff]
    %v844 = vld [vmem:[#allocation2 + $0x120] sm:$0xff]
    %v845 = vld [vmem:[#allocation2 + $0x128] sm:$0xff]
    %v846 = vld [vmem:[#allocation2 + $0x130] sm:$0xff]
    %v847 = vld [vmem:[#allocation2 + $0x138] sm:$0xff]
    %v848 = vld [vmem:[#allocation2 + $0x140] sm:$0xff]
    %v849 = vld [vmem:[#allocation2 + $0x148] sm:$0xff]
    %v850 = vld [vmem:[#allocation2 + $0x150] sm:$0x1]
    %v851 = vlaneseq
    %v852 = vshrl.u32 %v851, 7
    %v853 = vsub.s32 0, %v852
    %v854 = vrot.slane %v850, %v853
    %855 = vmatprep.subr.mxu0 0.0
    %856 = vmatpush1.msra.mxu0 %v834
    %857 = vmatprep.subr.mxu0 0.0
    %858 = vmatpush1.msra.mxu0 %v835
    %859 = vmatprep.subr.mxu0 0.0
    %860 = vmatpush1.msra.mxu0 %v836
    %861 = vmatprep.subr.mxu0 0.0
    %862 = vmatpush1.msra.mxu0 %v837
    %863 = vmatprep.subr.mxu0 0.0
    %864 = vmatpush1.msra.mxu0 %v838
    %865 = vmatprep.subr.mxu0 0.0
    %866 = vmatpush1.msra.mxu0 %v839
    %867 = vmatprep.subr.mxu0 0.0
    %868 = vmatpush1.msra.mxu0 %v840
    %869 = vmatprep.subr.mxu0 0.0
    %870 = vmatpush1.msra.mxu0 %v841
    %871 = vmatprep.subr.mxu0 0.0
    %872 = vmatpush1.msra.mxu0 %v842
    %873 = vmatprep.subr.mxu0 0.0
    %874 = vmatpush1.msra.mxu0 %v843
    %875 = vmatprep.subr.mxu0 0.0
    %876 = vmatpush1.msra.mxu0 %v844
    %877 = vmatprep.subr.mxu0 0.0
    %878 = vmatpush1.msra.mxu0 %v845
    %879 = vmatprep.subr.mxu0 0.0
    %880 = vmatpush1.msra.mxu0 %v846
    %881 = vmatprep.subr.mxu0 0.0
    %882 = vmatpush1.msra.mxu0 %v847
    %883 = vmatprep.subr.mxu0 0.0
    %884 = vmatpush1.msra.mxu0 %v848
    %885 = vmatprep.subr.mxu0 0.0
    %886 = vmatpush1.msra.mxu0 %v849
    %887 = vmatprep.subr.mxu0 0.0
    %888 = vmatpush1.msra.mxu0 0.0
    %889 = vmatprep.subr.mxu0 0.0
    %890 = vmatpush1.msra.mxu0 0.0
    %891 = vmatprep.subr.mxu0 0.0
    %892 = vmatpush1.msra.mxu0 0.0
    %893 = vmatprep.subr.mxu0 0.0
    %894 = vmatpush1.msra.mxu0 0.0
    %895 = vmatprep.subr.mxu0 0.0
    %896 = vmatpush1.msra.mxu0 0.0
    %897 = vmatprep.subr.mxu0 0.0
    %898 = vmatpush1.msra.mxu0 0.0
    %899 = vmatprep.subr.mxu0 0.0
    %900 = vmatpush1.msra.mxu0 0.0
    %901 = vmatprep.subr.mxu0 0.0
    %902 = vmatpush1.msra.mxu0 0.0
    %903 = vmatprep.subr.mxu0 0.0
    %904 = vmatpush1.msra.mxu0 0.0
    %905 = vmatprep.subr.mxu0 0.0
    %906 = vmatpush1.msra.mxu0 0.0
    %907 = vmatprep.subr.mxu0 0.0
    %908 = vmatpush1.msra.mxu0 0.0
    %909 = vmatprep.subr.mxu0 0.0
    %910 = vmatpush1.msra.mxu0 0.0
    %911 = vmatprep.subr.mxu0 0.0
    %912 = vmatpush1.msra.mxu0 0.0
    %913 = vmatprep.subr.mxu0 0.0
    %914 = vmatpush1.msra.mxu0 0.0
    %915 = vmatprep.subr.mxu0 0.0
    %916 = vmatpush1.msra.mxu0 0.0
    %917 = vmatprep.subr.mxu0 0.0
    %918 = vmatpush1.msra.mxu0 0.0
    %919 = vmatprep.mubr.f32.mxu0 0.0
    %920 = vmatmul.mubr.f32.gmra.mrb[0].mxu0 %v802
    %v921 = vpop.f32.mrb[0].mxu0
    %v922 = vadd.f32 %v854, %v921
    %v923 = vpop.f32.mrb[0].mxu0
    %924 = vmatprep.mubr.f32.mxu0 0.0
    %925 = vmatmul.mubr.f32.gmra.mrb[0].mxu0 %v803
    %v926 = vpop.f32.mrb[0].mxu0
    %v927 = vadd.f32 %v854, %v926
    %v928 = vpop.f32.mrb[0].mxu0
    %929 = vmatprep.mubr.f32.mxu0 0.0
    %930 = vmatmul.mubr.f32.gmra.mrb[0].mxu0 %v804
    %v931 = vpop.f32.mrb[0].mxu0
    %v932 = vadd.f32 %v854, %v931
    %v933 = vpop.f32.mrb[0].mxu0
    %934 = vmatprep.mubr.f32.mxu0 0.0
    %935 = vmatmul.mubr.f32.gmra.mrb[0].mxu0 %v805
    %v936 = vpop.f32.mrb[0].mxu0
    %v937 = vadd.f32 %v854, %v936
    %v938 = vpop.f32.mrb[0].mxu0
    %939 = vmatprep.mubr.f32.mxu0 0.0
    %940 = vmatmul.mubr.f32.gmra.mrb[0].mxu0 %v806
    %v941 = vpop.f32.mrb[0].mxu0
    %v942 = vadd.f32 %v854, %v941
    %v943 = vpop.f32.mrb[0].mxu0
    %944 = vmatprep.mubr.f32.mxu0 0.0
    %945 = vmatmul.mubr.f32.gmra.mrb[0].mxu0 %v807
    %v946 = vpop.f32.mrb[0].mxu0
    %v947 = vadd.f32 %v854, %v946
    %v948 = vpop.f32.mrb[0].mxu0
    %949 = vmatprep.mubr.f32.mxu0 0.0
    %950 = vmatmul.mubr.f32.gmra.mrb[0].mxu0 %v808
    %v951 = vpop.f32.mrb[0].mxu0
    %v952 = vadd.f32 %v854, %v951
    %v953 = vpop.f32.mrb[0].mxu0
    %954 = vmatprep.mubr.f32.mxu0 0.0
    %955 = vmatmul.mubr.f32.gmra.mrb[0].mxu0 %v809
    %v956 = vpop.f32.mrb[0].mxu0
    %v957 = vadd.f32 %v854, %v956
    %v958 = vpop.f32.mrb[0].mxu0
    %959 = vmatprep.mubr.f32.mxu0 0.0
    %960 = vmatmul.mubr.f32.gmra.mrb[0].mxu0 %v810
    %v961 = vpop.f32.mrb[0].mxu0
    %v962 = vadd.f32 %v854, %v961
    %v963 = vpop.f32.mrb[0].mxu0
    %964 = vmatprep.mubr.f32.mxu0 0.0
    %965 = vmatmul.mubr.f32.gmra.mrb[0].mxu0 %v811
    %v966 = vpop.f32.mrb[0].mxu0
    %v967 = vadd.f32 %v854, %v966
    %v968 = vpop.f32.mrb[0].mxu0
    %969 = vmatprep.mubr.f32.mxu0 0.0
    %970 = vmatmul.mubr.f32.gmra.mrb[0].mxu0 %v812
    %v971 = vpop.f32.mrb[0].mxu0
    %v972 = vadd.f32 %v854, %v971
    %v973 = vpop.f32.mrb[0].mxu0
    %974 = vmatprep.mubr.f32.mxu0 0.0
    %975 = vmatmul.mubr.f32.gmra.mrb[0].mxu0 %v813
    %v976 = vpop.f32.mrb[0].mxu0
    %v977 = vadd.f32 %v854, %v976
    %v978 = vpop.f32.mrb[0].mxu0
    %979 = vmatprep.mubr.f32.mxu0 0.0
    %980 = vmatmul.mubr.f32.gmra.mrb[0].mxu0 %v814
    %v981 = vpop.f32.mrb[0].mxu0
    %v982 = vadd.f32 %v854, %v981
    %v983 = vpop.f32.mrb[0].mxu0
    %984 = vmatprep.mubr.f32.mxu0 0.0
    %985 = vmatmul.mubr.f32.gmra.mrb[0].mxu0 %v815
    %v986 = vpop.f32.mrb[0].mxu0
    %v987 = vadd.f32 %v854, %v986
    %v988 = vpop.f32.mrb[0].mxu0
    %989 = vmatprep.mubr.f32.mxu0 0.0
    %990 = vmatmul.mubr.f32.gmra.mrb[0].mxu0 %v816
    %v991 = vpop.f32.mrb[0].mxu0
    %v992 = vadd.f32 %v854, %v991
    %v993 = vpop.f32.mrb[0].mxu0
    %994 = vmatprep.mubr.f32.mxu0 0.0
    %995 = vmatmul.mubr.f32.gmra.mrb[0].mxu0 %v817
    %v996 = vpop.f32.mrb[0].mxu0
    %v997 = vadd.f32 %v854, %v996
    %v998 = vpop.f32.mrb[0].mxu0
    %999 = vmatprep.mubr.f32.mxu0 0.0
    %1000 = vmatmul.mubr.f32.gmra.mrb[0].mxu0 %v818
    %v1001 = vpop.f32.mrb[0].mxu0
    %v1002 = vadd.f32 %v854, %v1001
    %v1003 = vpop.f32.mrb[0].mxu0
    %1004 = vmatprep.mubr.f32.mxu0 0.0
    %1005 = vmatmul.mubr.f32.gmra.mrb[0].mxu0 %v819
    %v1006 = vpop.f32.mrb[0].mxu0
    %v1007 = vadd.f32 %v854, %v1006
    %v1008 = vpop.f32.mrb[0].mxu0
    %1009 = vmatprep.mubr.f32.mxu0 0.0
    %1010 = vmatmul.mubr.f32.gmra.mrb[0].mxu0 %v820
    %v1011 = vpop.f32.mrb[0].mxu0
    %v1012 = vadd.f32 %v854, %v1011
    %v1013 = vpop.f32.mrb[0].mxu0
    %1014 = vmatprep.mubr.f32.mxu0 0.0
    %1015 = vmatmul.mubr.f32.gmra.mrb[0].mxu0 %v821
    %v1016 = vpop.f32.mrb[0].mxu0
    %v1017 = vadd.f32 %v854, %v1016
    %v1018 = vpop.f32.mrb[0].mxu0
    %1019 = vmatprep.mubr.f32.mxu0 0.0
    %1020 = vmatmul.mubr.f32.gmra.mrb[0].mxu0 %v822
    %v1021 = vpop.f32.mrb[0].mxu0
    %v1022 = vadd.f32 %v854, %v1021
    %v1023 = vpop.f32.mrb[0].mxu0
    %1024 = vmatprep.mubr.f32.mxu0 0.0
    %1025 = vmatmul.mubr.f32.gmra.mrb[0].mxu0 %v823
    %v1026 = vpop.f32.mrb[0].mxu0
    %v1027 = vadd.f32 %v854, %v1026
    %v1028 = vpop.f32.mrb[0].mxu0
    %1029 = vmatprep.mubr.f32.mxu0 0.0
    %1030 = vmatmul.mubr.f32.gmra.mrb[0].mxu0 %v824
    %v1031 = vpop.f32.mrb[0].mxu0
    %v1032 = vadd.f32 %v854, %v1031
    %v1033 = vpop.f32.mrb[0].mxu0
    %1034 = vmatprep.mubr.f32.mxu0 0.0
    %1035 = vmatmul.mubr.f32.gmra.mrb[0].mxu0 %v825
    %v1036 = vpop.f32.mrb[0].mxu0
    %v1037 = vadd.f32 %v854, %v1036
    %v1038 = vpop.f32.mrb[0].mxu0
    %1039 = vmatprep.mubr.f32.mxu0 0.0
    %1040 = vmatmul.mubr.f32.gmra.mrb[0].mxu0 %v826
    %v1041 = vpop.f32.mrb[0].mxu0
    %v1042 = vadd.f32 %v854, %v1041
    %v1043 = vpop.f32.mrb[0].mxu0
    %1044 = vmatprep.mubr.f32.mxu0 0.0
    %1045 = vmatmul.mubr.f32.gmra.mrb[0].mxu0 %v827
    %v1046 = vpop.f32.mrb[0].mxu0
    %v1047 = vadd.f32 %v854, %v1046
    %v1048 = vpop.f32.mrb[0].mxu0
    %1049 = vmatprep.mubr.f32.mxu0 0.0
    %1050 = vmatmul.mubr.f32.gmra.mrb[0].mxu0 %v828
    %v1051 = vpop.f32.mrb[0].mxu0
    %v1052 = vadd.f32 %v854, %v1051
    %v1053 = vpop.f32.mrb[0].mxu0
    %1054 = vmatprep.mubr.f32.mxu0 0.0
    %1055 = vmatmul.mubr.f32.gmra.mrb[0].mxu0 %v829
    %v1056 = vpop.f32.mrb[0].mxu0
    %v1057 = vadd.f32 %v854, %v1056
    %v1058 = vpop.f32.mrb[0].mxu0
    %1059 = vmatprep.mubr.f32.mxu0 0.0
    %1060 = vmatmul.mubr.f32.gmra.mrb[0].mxu0 %v830
    %v1061 = vpop.f32.mrb[0].mxu0
    %v1062 = vadd.f32 %v854, %v1061
    %v1063 = vpop.f32.mrb[0].mxu0
    %1064 = vmatprep.mubr.f32.mxu0 0.0
    %1065 = vmatmul.mubr.f32.gmra.mrb[0].mxu0 %v831
    %v1066 = vpop.f32.mrb[0].mxu0
    %v1067 = vadd.f32 %v854, %v1066
    %v1068 = vpop.f32.mrb[0].mxu0
    %1069 = vmatprep.mubr.f32.mxu0 0.0
    %1070 = vmatmul.mubr.f32.gmra.mrb[0].mxu0 %v832
    %v1071 = vpop.f32.mrb[0].mxu0
    %v1072 = vadd.f32 %v854, %v1071
    %v1073 = vpop.f32.mrb[0].mxu0
    %1074 = vmatprep.mubr.f32.mxu0 0.0
    %1075 = vmatmul.mubr.f32.gmra.mrb[0].mxu0 %v833
    %v1076 = vpop.f32.mrb[0].mxu0
    %v1077 = vadd.f32 %v854, %v1076
    %v1078 = vpop.f32.mrb[0].mxu0
    %1079 = vdwg.mxu0
    %vm1080 = vcmp.gt.f32.partialorder %v922, 0.0
    %vm1081 = vcmp.gt.f32.partialorder %v927, 0.0
    %vm1082 = vcmp.gt.f32.partialorder %v932, 0.0
    %vm1083 = vcmp.gt.f32.partialorder %v937, 0.0
    %vm1084 = vcmp.gt.f32.partialorder %v942, 0.0
    %vm1085 = vcmp.gt.f32.partialorder %v947, 0.0
    %vm1086 = vcmp.gt.f32.partialorder %v952, 0.0
    %vm1087 = vcmp.gt.f32.partialorder %v957, 0.0
    %vm1088 = vcmp.gt.f32.partialorder %v962, 0.0
    %vm1089 = vcmp.gt.f32.partialorder %v967, 0.0
    %vm1090 = vcmp.gt.f32.partialorder %v972, 0.0
    %vm1091 = vcmp.gt.f32.partialorder %v977, 0.0
    %vm1092 = vcmp.gt.f32.partialorder %v982, 0.0
    %vm1093 = vcmp.gt.f32.partialorder %v987, 0.0
    %vm1094 = vcmp.gt.f32.partialorder %v992, 0.0
    %vm1095 = vcmp.gt.f32.partialorder %v997, 0.0
    %vm1096 = vcmp.gt.f32.partialorder %v1002, 0.0
    %vm1097 = vcmp.gt.f32.partialorder %v1007, 0.0
    %vm1098 = vcmp.gt.f32.partialorder %v1012, 0.0
    %vm1099 = vcmp.gt.f32.partialorder %v1017, 0.0
    %vm1100 = vcmp.gt.f32.partialorder %v1022, 0.0
    %vm1101 = vcmp.gt.f32.partialorder %v1027, 0.0
    %vm1102 = vcmp.gt.f32.partialorder %v1032, 0.0
    %vm1103 = vcmp.gt.f32.partialorder %v1037, 0.0
    %vm1104 = vcmp.gt.f32.partialorder %v1042, 0.0
    %vm1105 = vcmp.gt.f32.partialorder %v1047, 0.0
    %vm1106 = vcmp.gt.f32.partialorder %v1052, 0.0
    %vm1107 = vcmp.gt.f32.partialorder %v1057, 0.0
    %vm1108 = vcmp.gt.f32.partialorder %v1062, 0.0
    %vm1109 = vcmp.gt.f32.partialorder %v1067, 0.0
    %vm1110 = vcmp.gt.f32.partialorder %v1072, 0.0
    %vm1111 = vcmp.gt.f32.partialorder %v1077, 0.0
    %v1112 = vmul.f32 %v922, 0.2
    %v1113 = vmul.f32 %v927, 0.2
    %v1114 = vmul.f32 %v932, 0.2
    %v1115 = vmul.f32 %v937, 0.2
    %v1116 = vmul.f32 %v942, 0.2
    %v1117 = vmul.f32 %v947, 0.2
    %v1118 = vmul.f32 %v952, 0.2
    %v1119 = vmul.f32 %v957, 0.2
    %v1120 = vmul.f32 %v962, 0.2
    %v1121 = vmul.f32 %v967, 0.2
    %v1122 = vmul.f32 %v972, 0.2
    %v1123 = vmul.f32 %v977, 0.2
    %v1124 = vmul.f32 %v982, 0.2
    %v1125 = vmul.f32 %v987, 0.2
    %v1126 = vmul.f32 %v992, 0.2
    %v1127 = vmul.f32 %v997, 0.2
    %v1128 = vmul.f32 %v1002, 0.2
    %v1129 = vmul.f32 %v1007, 0.2
    %v1130 = vmul.f32 %v1012, 0.2
    %v1131 = vmul.f32 %v1017, 0.2
    %v1132 = vmul.f32 %v1022, 0.2
    %v1133 = vmul.f32 %v1027, 0.2
    %v1134 = vmul.f32 %v1032, 0.2
    %v1135 = vmul.f32 %v1037, 0.2
    %v1136 = vmul.f32 %v1042, 0.2
    %v1137 = vmul.f32 %v1047, 0.2
    %v1138 = vmul.f32 %v1052, 0.2
    %v1139 = vmul.f32 %v1057, 0.2
    %v1140 = vmul.f32 %v1062, 0.2
    %v1141 = vmul.f32 %v1067, 0.2
    %v1142 = vmul.f32 %v1072, 0.2
    %v1143 = vmul.f32 %v1077, 0.2
    %v1144 = vsel %vm1080, %v922, %v1112
    %v1145 = vsel %vm1081, %v927, %v1113
    %v1146 = vsel %vm1082, %v932, %v1114
    %v1147 = vsel %vm1083, %v937, %v1115
    %v1148 = vsel %vm1084, %v942, %v1116
    %v1149 = vsel %vm1085, %v947, %v1117
    %v1150 = vsel %vm1086, %v952, %v1118
    %v1151 = vsel %vm1087, %v957, %v1119
    %v1152 = vsel %vm1088, %v962, %v1120
    %v1153 = vsel %vm1089, %v967, %v1121
    %v1154 = vsel %vm1090, %v972, %v1122
    %v1155 = vsel %vm1091, %v977, %v1123
    %v1156 = vsel %vm1092, %v982, %v1124
    %v1157 = vsel %vm1093, %v987, %v1125
    %v1158 = vsel %vm1094, %v992, %v1126
    %v1159 = vsel %vm1095, %v997, %v1127
    %v1160 = vsel %vm1096, %v1002, %v1128
    %v1161 = vsel %vm1097, %v1007, %v1129
    %v1162 = vsel %vm1098, %v1012, %v1130
    %v1163 = vsel %vm1099, %v1017, %v1131
    %v1164 = vsel %vm1100, %v1022, %v1132
    %v1165 = vsel %vm1101, %v1027, %v1133
    %v1166 = vsel %vm1102, %v1032, %v1134
    %v1167 = vsel %vm1103, %v1037, %v1135
    %v1168 = vsel %vm1104, %v1042, %v1136
    %v1169 = vsel %vm1105, %v1047, %v1137
    %v1170 = vsel %vm1106, %v1052, %v1138
    %v1171 = vsel %vm1107, %v1057, %v1139
    %v1172 = vsel %vm1108, %v1062, %v1140
    %v1173 = vsel %vm1109, %v1067, %v1141
    %v1174 = vsel %vm1110, %v1072, %v1142
    %v1175 = vsel %vm1111, %v1077, %v1143
    %v1176 = vld [vmem:[#allocation2 + $0x158] sm:$0xff]
    %v1177 = vld [vmem:[#allocation2 + $0x160] sm:$0xff]
    %v1178 = vld [vmem:[#allocation2 + $0x168] sm:$0xff]
    %v1179 = vld [vmem:[#allocation2 + $0x170] sm:$0xff]
    %v1180 = vld [vmem:[#allocation2 + $0x178] sm:$0xff]
    %v1181 = vld [vmem:[#allocation2 + $0x180] sm:$0xff]
    %v1182 = vld [vmem:[#allocation2 + $0x188] sm:$0xff]
    %v1183 = vld [vmem:[#allocation2 + $0x190] sm:$0xff]
    %v1184 = vld [vmem:[#allocation2 + $0x198] sm:$0xff]
    %v1185 = vld [vmem:[#allocation2 + $0x1a0] sm:$0xff]
    %v1186 = vld [vmem:[#allocation2 + $0x1a8] sm:$0xff]
    %v1187 = vld [vmem:[#allocation2 + $0x1b0] sm:$0xff]
    %v1188 = vld [vmem:[#allocation2 + $0x1b8] sm:$0xff]
    %v1189 = vld [vmem:[#allocation2 + $0x1c0] sm:$0xff]
    %v1190 = vld [vmem:[#allocation2 + $0x1c8] sm:$0xff]
    %v1191 = vld [vmem:[#allocation2 + $0x1d0] sm:$0xff]
    %v1192 = vld [vmem:[#allocation2 + $0x1d8] sm:$0x1]
    %v1193 = vlaneseq
    %v1194 = vshrl.u32 %v1193, 7
    %v1195 = vsub.s32 0, %v1194
    %v1196 = vrot.slane %v1192, %v1195
    %1197 = vmatprep.subr.mxu0 0.0
    %1198 = vmatpush1.msra.mxu0 %v1176
    %1199 = vmatprep.subr.mxu0 0.0
    %1200 = vmatpush1.msra.mxu0 %v1177
    %1201 = vmatprep.subr.mxu0 0.0
    %1202 = vmatpush1.msra.mxu0 %v1178
    %1203 = vmatprep.subr.mxu0 0.0
    %1204 = vmatpush1.msra.mxu0 %v1179
    %1205 = vmatprep.subr.mxu0 0.0
    %1206 = vmatpush1.msra.mxu0 %v1180
    %1207 = vmatprep.subr.mxu0 0.0
    %1208 = vmatpush1.msra.mxu0 %v1181
    %1209 = vmatprep.subr.mxu0 0.0
    %1210 = vmatpush1.msra.mxu0 %v1182
    %1211 = vmatprep.subr.mxu0 0.0
    %1212 = vmatpush1.msra.mxu0 %v1183
    %1213 = vmatprep.subr.mxu0 0.0
    %1214 = vmatpush1.msra.mxu0 %v1184
    %1215 = vmatprep.subr.mxu0 0.0
    %1216 = vmatpush1.msra.mxu0 %v1185
    %1217 = vmatprep.subr.mxu0 0.0
    %1218 = vmatpush1.msra.mxu0 %v1186
    %1219 = vmatprep.subr.mxu0 0.0
    %1220 = vmatpush1.msra.mxu0 %v1187
    %1221 = vmatprep.subr.mxu0 0.0
    %1222 = vmatpush1.msra.mxu0 %v1188
    %1223 = vmatprep.subr.mxu0 0.0
    %1224 = vmatpush1.msra.mxu0 %v1189
    %1225 = vmatprep.subr.mxu0 0.0
    %1226 = vmatpush1.msra.mxu0 %v1190
    %1227 = vmatprep.subr.mxu0 0.0
    %1228 = vmatpush1.msra.mxu0 %v1191
    %1229 = vmatprep.subr.mxu0 0.0
    %1230 = vmatpush1.msra.mxu0 0.0
    %1231 = vmatprep.subr.mxu0 0.0
    %1232 = vmatpush1.msra.mxu0 0.0
    %1233 = vmatprep.subr.mxu0 0.0
    %1234 = vmatpush1.msra.mxu0 0.0
    %1235 = vmatprep.subr.mxu0 0.0
    %1236 = vmatpush1.msra.mxu0 0.0
    %1237 = vmatprep.subr.mxu0 0.0
    %1238 = vmatpush1.msra.mxu0 0.0
    %1239 = vmatprep.subr.mxu0 0.0
    %1240 = vmatpush1.msra.mxu0 0.0
    %1241 = vmatprep.subr.mxu0 0.0
    %1242 = vmatpush1.msra.mxu0 0.0
    %1243 = vmatprep.subr.mxu0 0.0
    %1244 = vmatpush1.msra.mxu0 0.0
    %1245 = vmatprep.subr.mxu0 0.0
    %1246 = vmatpush1.msra.mxu0 0.0
    %1247 = vmatprep.subr.mxu0 0.0
    %1248 = vmatpush1.msra.mxu0 0.0
    %1249 = vmatprep.subr.mxu0 0.0
    %1250 = vmatpush1.msra.mxu0 0.0
    %1251 = vmatprep.subr.mxu0 0.0
    %1252 = vmatpush1.msra.mxu0 0.0
    %1253 = vmatprep.subr.mxu0 0.0
    %1254 = vmatpush1.msra.mxu0 0.0
    %1255 = vmatprep.subr.mxu0 0.0
    %1256 = vmatpush1.msra.mxu0 0.0
    %1257 = vmatprep.subr.mxu0 0.0
    %1258 = vmatpush1.msra.mxu0 0.0
    %1259 = vmatprep.subr.mxu0 0.0
    %1260 = vmatpush1.msra.mxu0 0.0
    %1261 = vmatprep.mubr.f32.mxu0 0.0
    %1262 = vmatmul.mubr.f32.gmra.mrb[0].mxu0 %v1144
    %v1263 = vpop.f32.mrb[0].mxu0
    %v1264 = vadd.f32 %v1196, %v1263
    %v1265 = vpop.f32.mrb[0].mxu0
    %1266 = vmatprep.mubr.f32.mxu0 0.0
    %1267 = vmatmul.mubr.f32.gmra.mrb[0].mxu0 %v1145
    %v1268 = vpop.f32.mrb[0].mxu0
    %v1269 = vadd.f32 %v1196, %v1268
    %v1270 = vpop.f32.mrb[0].mxu0
    %1271 = vmatprep.mubr.f32.mxu0 0.0
    %1272 = vmatmul.mubr.f32.gmra.mrb[0].mxu0 %v1146
    %v1273 = vpop.f32.mrb[0].mxu0
    %v1274 = vadd.f32 %v1196, %v1273
    %v1275 = vpop.f32.mrb[0].mxu0
    %1276 = vmatprep.mubr.f32.mxu0 0.0
    %1277 = vmatmul.mubr.f32.gmra.mrb[0].mxu0 %v1147
    %v1278 = vpop.f32.mrb[0].mxu0
    %v1279 = vadd.f32 %v1196, %v1278
    %v1280 = vpop.f32.mrb[0].mxu0
    %1281 = vmatprep.mubr.f32.mxu0 0.0
    %1282 = vmatmul.mubr.f32.gmra.mrb[0].mxu0 %v1148
    %v1283 = vpop.f32.mrb[0].mxu0
    %v1284 = vadd.f32 %v1196, %v1283
    %v1285 = vpop.f32.mrb[0].mxu0
    %1286 = vmatprep.mubr.f32.mxu0 0.0
    %1287 = vmatmul.mubr.f32.gmra.mrb[0].mxu0 %v1149
    %v1288 = vpop.f32.mrb[0].mxu0
    %v1289 = vadd.f32 %v1196, %v1288
    %v1290 = vpop.f32.mrb[0].mxu0
    %1291 = vmatprep.mubr.f32.mxu0 0.0
    %1292 = vmatmul.mubr.f32.gmra.mrb[0].mxu0 %v1150
    %v1293 = vpop.f32.mrb[0].mxu0
    %v1294 = vadd.f32 %v1196, %v1293
    %v1295 = vpop.f32.mrb[0].mxu0
    %1296 = vmatprep.mubr.f32.mxu0 0.0
    %1297 = vmatmul.mubr.f32.gmra.mrb[0].mxu0 %v1151
    %v1298 = vpop.f32.mrb[0].mxu0
    %v1299 = vadd.f32 %v1196, %v1298
    %v1300 = vpop.f32.mrb[0].mxu0
    %1301 = vmatprep.mubr.f32.mxu0 0.0
    %1302 = vmatmul.mubr.f32.gmra.mrb[0].mxu0 %v1152
    %v1303 = vpop.f32.mrb[0].mxu0
    %v1304 = vadd.f32 %v1196, %v1303
    %v1305 = vpop.f32.mrb[0].mxu0
    %1306 = vmatprep.mubr.f32.mxu0 0.0
    %1307 = vmatmul.mubr.f32.gmra.mrb[0].mxu0 %v1153
    %v1308 = vpop.f32.mrb[0].mxu0
    %v1309 = vadd.f32 %v1196, %v1308
    %v1310 = vpop.f32.mrb[0].mxu0
    %1311 = vmatprep.mubr.f32.mxu0 0.0
    %1312 = vmatmul.mubr.f32.gmra.mrb[0].mxu0 %v1154
    %v1313 = vpop.f32.mrb[0].mxu0
    %v1314 = vadd.f32 %v1196, %v1313
    %v1315 = vpop.f32.mrb[0].mxu0
    %1316 = vmatprep.mubr.f32.mxu0 0.0
    %1317 = vmatmul.mubr.f32.gmra.mrb[0].mxu0 %v1155
    %v1318 = vpop.f32.mrb[0].mxu0
    %v1319 = vadd.f32 %v1196, %v1318
    %v1320 = vpop.f32.mrb[0].mxu0
    %1321 = vmatprep.mubr.f32.mxu0 0.0
    %1322 = vmatmul.mubr.f32.gmra.mrb[0].mxu0 %v1156
    %v1323 = vpop.f32.mrb[0].mxu0
    %v1324 = vadd.f32 %v1196, %v1323
    %v1325 = vpop.f32.mrb[0].mxu0
    %1326 = vmatprep.mubr.f32.mxu0 0.0
    %1327 = vmatmul.mubr.f32.gmra.mrb[0].mxu0 %v1157
    %v1328 = vpop.f32.mrb[0].mxu0
    %v1329 = vadd.f32 %v1196, %v1328
    %v1330 = vpop.f32.mrb[0].mxu0
    %1331 = vmatprep.mubr.f32.mxu0 0.0
    %1332 = vmatmul.mubr.f32.gmra.mrb[0].mxu0 %v1158
    %v1333 = vpop.f32.mrb[0].mxu0
    %v1334 = vadd.f32 %v1196, %v1333
    %v1335 = vpop.f32.mrb[0].mxu0
    %1336 = vmatprep.mubr.f32.mxu0 0.0
    %1337 = vmatmul.mubr.f32.gmra.mrb[0].mxu0 %v1159
    %v1338 = vpop.f32.mrb[0].mxu0
    %v1339 = vadd.f32 %v1196, %v1338
    %v1340 = vpop.f32.mrb[0].mxu0
    %1341 = vmatprep.mubr.f32.mxu0 0.0
    %1342 = vmatmul.mubr.f32.gmra.mrb[0].mxu0 %v1160
    %v1343 = vpop.f32.mrb[0].mxu0
    %v1344 = vadd.f32 %v1196, %v1343
    %v1345 = vpop.f32.mrb[0].mxu0
    %1346 = vmatprep.mubr.f32.mxu0 0.0
    %1347 = vmatmul.mubr.f32.gmra.mrb[0].mxu0 %v1161
    %v1348 = vpop.f32.mrb[0].mxu0
    %v1349 = vadd.f32 %v1196, %v1348
    %v1350 = vpop.f32.mrb[0].mxu0
    %1351 = vmatprep.mubr.f32.mxu0 0.0
    %1352 = vmatmul.mubr.f32.gmra.mrb[0].mxu0 %v1162
    %v1353 = vpop.f32.mrb[0].mxu0
    %v1354 = vadd.f32 %v1196, %v1353
    %v1355 = vpop.f32.mrb[0].mxu0
    %1356 = vmatprep.mubr.f32.mxu0 0.0
    %1357 = vmatmul.mubr.f32.gmra.mrb[0].mxu0 %v1163
    %v1358 = vpop.f32.mrb[0].mxu0
    %v1359 = vadd.f32 %v1196, %v1358
    %v1360 = vpop.f32.mrb[0].mxu0
    %1361 = vmatprep.mubr.f32.mxu0 0.0
    %1362 = vmatmul.mubr.f32.gmra.mrb[0].mxu0 %v1164
    %v1363 = vpop.f32.mrb[0].mxu0
    %v1364 = vadd.f32 %v1196, %v1363
    %v1365 = vpop.f32.mrb[0].mxu0
    %1366 = vmatprep.mubr.f32.mxu0 0.0
    %1367 = vmatmul.mubr.f32.gmra.mrb[0].mxu0 %v1165
    %v1368 = vpop.f32.mrb[0].mxu0
    %v1369 = vadd.f32 %v1196, %v1368
    %v1370 = vpop.f32.mrb[0].mxu0
    %1371 = vmatprep.mubr.f32.mxu0 0.0
    %1372 = vmatmul.mubr.f32.gmra.mrb[0].mxu0 %v1166
    %v1373 = vpop.f32.mrb[0].mxu0
    %v1374 = vadd.f32 %v1196, %v1373
    %v1375 = vpop.f32.mrb[0].mxu0
    %1376 = vmatprep.mubr.f32.mxu0 0.0
    %1377 = vmatmul.mubr.f32.gmra.mrb[0].mxu0 %v1167
    %v1378 = vpop.f32.mrb[0].mxu0
    %v1379 = vadd.f32 %v1196, %v1378
    %v1380 = vpop.f32.mrb[0].mxu0
    %1381 = vmatprep.mubr.f32.mxu0 0.0
    %1382 = vmatmul.mubr.f32.gmra.mrb[0].mxu0 %v1168
    %v1383 = vpop.f32.mrb[0].mxu0
    %v1384 = vadd.f32 %v1196, %v1383
    %v1385 = vpop.f32.mrb[0].mxu0
    %1386 = vmatprep.mubr.f32.mxu0 0.0
    %1387 = vmatmul.mubr.f32.gmra.mrb[0].mxu0 %v1169
    %v1388 = vpop.f32.mrb[0].mxu0
    %v1389 = vadd.f32 %v1196, %v1388
    %v1390 = vpop.f32.mrb[0].mxu0
    %1391 = vmatprep.mubr.f32.mxu0 0.0
    %1392 = vmatmul.mubr.f32.gmra.mrb[0].mxu0 %v1170
    %v1393 = vpop.f32.mrb[0].mxu0
    %v1394 = vadd.f32 %v1196, %v1393
    %v1395 = vpop.f32.mrb[0].mxu0
    %1396 = vmatprep.mubr.f32.mxu0 0.0
    %1397 = vmatmul.mubr.f32.gmra.mrb[0].mxu0 %v1171
    %v1398 = vpop.f32.mrb[0].mxu0
    %v1399 = vadd.f32 %v1196, %v1398
    %v1400 = vpop.f32.mrb[0].mxu0
    %1401 = vmatprep.mubr.f32.mxu0 0.0
    %1402 = vmatmul.mubr.f32.gmra.mrb[0].mxu0 %v1172
    %v1403 = vpop.f32.mrb[0].mxu0
    %v1404 = vadd.f32 %v1196, %v1403
    %v1405 = vpop.f32.mrb[0].mxu0
    %1406 = vmatprep.mubr.f32.mxu0 0.0
    %1407 = vmatmul.mubr.f32.gmra.mrb[0].mxu0 %v1173
    %v1408 = vpop.f32.mrb[0].mxu0
    %v1409 = vadd.f32 %v1196, %v1408
    %v1410 = vpop.f32.mrb[0].mxu0
    %1411 = vmatprep.mubr.f32.mxu0 0.0
    %1412 = vmatmul.mubr.f32.gmra.mrb[0].mxu0 %v1174
    %v1413 = vpop.f32.mrb[0].mxu0
    %v1414 = vadd.f32 %v1196, %v1413
    %v1415 = vpop.f32.mrb[0].mxu0
    %1416 = vmatprep.mubr.f32.mxu0 0.0
    %1417 = vmatmul.mubr.f32.gmra.mrb[0].mxu0 %v1175
    %v1418 = vpop.f32.mrb[0].mxu0
    %v1419 = vadd.f32 %v1196, %v1418
    %v1420 = vpop.f32.mrb[0].mxu0
    %1421 = vdwg.mxu0
    %1422 = vst [vmem:[#allocation6] sm:$0xff] %v1264
    %1423 = vst [vmem:[#allocation6 + $0x8] sm:$0xff] %v1269
    %1424 = vst [vmem:[#allocation6 + $0x10] sm:$0xff] %v1274
    %1425 = vst [vmem:[#allocation6 + $0x18] sm:$0xff] %v1279
    %1426 = vst [vmem:[#allocation6 + $0x20] sm:$0xff] %v1284
    %1427 = vst [vmem:[#allocation6 + $0x28] sm:$0xff] %v1289
    %1428 = vst [vmem:[#allocation6 + $0x30] sm:$0xff] %v1294
    %1429 = vst [vmem:[#allocation6 + $0x38] sm:$0xff] %v1299
    %1430 = vst [vmem:[#allocation6 + $0x40] sm:$0xff] %v1304
    %1431 = vst [vmem:[#allocation6 + $0x48] sm:$0xff] %v1309
    %1432 = vst [vmem:[#allocation6 + $0x50] sm:$0xff] %v1314
    %1433 = vst [vmem:[#allocation6 + $0x58] sm:$0xff] %v1319
    %1434 = vst [vmem:[#allocation6 + $0x60] sm:$0xff] %v1324
    %1435 = vst [vmem:[#allocation6 + $0x68] sm:$0xff] %v1329
    %1436 = vst [vmem:[#allocation6 + $0x70] sm:$0xff] %v1334
    %1437 = vst [vmem:[#allocation6 + $0x78] sm:$0xff] %v1339
    %1438 = vst [vmem:[#allocation6 + $0x80] sm:$0xff] %v1344
    %1439 = vst [vmem:[#allocation6 + $0x88] sm:$0xff] %v1349
    %1440 = vst [vmem:[#allocation6 + $0x90] sm:$0xff] %v1354
    %1441 = vst [vmem:[#allocation6 + $0x98] sm:$0xff] %v1359
    %1442 = vst [vmem:[#allocation6 + $0xa0] sm:$0xff] %v1364
    %1443 = vst [vmem:[#allocation6 + $0xa8] sm:$0xff] %v1369
    %1444 = vst [vmem:[#allocation6 + $0xb0] sm:$0xff] %v1374
    %1445 = vst [vmem:[#allocation6 + $0xb8] sm:$0xff] %v1379
    %1446 = vst [vmem:[#allocation6 + $0xc0] sm:$0xff] %v1384
    %1447 = vst [vmem:[#allocation6 + $0xc8] sm:$0xff] %v1389
    %1448 = vst [vmem:[#allocation6 + $0xd0] sm:$0xff] %v1394
    %1449 = vst [vmem:[#allocation6 + $0xd8] sm:$0xff] %v1399
    %1450 = vst [vmem:[#allocation6 + $0xe0] sm:$0xff] %v1404
    %1451 = vst [vmem:[#allocation6 + $0xe8] sm:$0xff] %v1409
    %1452 = vst [vmem:[#allocation6 + $0xf0] sm:$0xff] %v1414
    %1453 = vst [vmem:[#allocation6 + $0xf8] sm:$0xff] %v1419
    %v1454 = vld [vmem:[#allocation2 + $0x1e0] sm:$0xff]
    %v1455 = vld [vmem:[#allocation2 + $0x1e8] sm:$0xff]
    %v1456 = vld [vmem:[#allocation2 + $0x1f0] sm:$0xff]
    %v1457 = vld [vmem:[#allocation2 + $0x1f8] sm:$0xff]
    %v1458 = vld [vmem:[#allocation2 + $0x200] sm:$0xff]
    %v1459 = vld [vmem:[#allocation2 + $0x208] sm:$0xff]
    %v1460 = vld [vmem:[#allocation2 + $0x210] sm:$0xff]
    %v1461 = vld [vmem:[#allocation2 + $0x218] sm:$0xff]
    %v1462 = vld [vmem:[#allocation2 + $0x220] sm:$0xff]
    %v1463 = vld [vmem:[#allocation2 + $0x228] sm:$0xff]
    %v1464 = vld [vmem:[#allocation2 + $0x230] sm:$0xff]
    %v1465 = vld [vmem:[#allocation2 + $0x238] sm:$0xff]
    %v1466 = vld [vmem:[#allocation2 + $0x240] sm:$0xff]
    %v1467 = vld [vmem:[#allocation2 + $0x248] sm:$0xff]
    %v1468 = vld [vmem:[#allocation2 + $0x250] sm:$0xff]
    %v1469 = vld [vmem:[#allocation2 + $0x258] sm:$0xff]
    %v1470 = vld [vmem:[#allocation2 + $0x260] sm:$0x1]
    %v1471 = vlaneseq
    %v1472 = vshrl.u32 %v1471, 7
    %v1473 = vsub.s32 0, %v1472
    %v1474 = vrot.slane %v1470, %v1473
    %1475 = vmatprep.subr.mxu0 0.0
    %1476 = vmatpush1.msra.mxu0 %v1454
    %1477 = vmatprep.subr.mxu0 0.0
    %1478 = vmatpush1.msra.mxu0 %v1455
    %1479 = vmatprep.subr.mxu0 0.0
    %1480 = vmatpush1.msra.mxu0 %v1456
    %1481 = vmatprep.subr.mxu0 0.0
    %1482 = vmatpush1.msra.mxu0 %v1457
    %1483 = vmatprep.subr.mxu0 0.0
    %1484 = vmatpush1.msra.mxu0 %v1458
    %1485 = vmatprep.subr.mxu0 0.0
    %1486 = vmatpush1.msra.mxu0 %v1459
    %1487 = vmatprep.subr.mxu0 0.0
    %1488 = vmatpush1.msra.mxu0 %v1460
    %1489 = vmatprep.subr.mxu0 0.0
    %1490 = vmatpush1.msra.mxu0 %v1461
    %1491 = vmatprep.subr.mxu0 0.0
    %1492 = vmatpush1.msra.mxu0 %v1462
    %1493 = vmatprep.subr.mxu0 0.0
    %1494 = vmatpush1.msra.mxu0 %v1463
    %1495 = vmatprep.subr.mxu0 0.0
    %1496 = vmatpush1.msra.mxu0 %v1464
    %1497 = vmatprep.subr.mxu0 0.0
    %1498 = vmatpush1.msra.mxu0 %v1465
    %1499 = vmatprep.subr.mxu0 0.0
    %1500 = vmatpush1.msra.mxu0 %v1466
    %1501 = vmatprep.subr.mxu0 0.0
    %1502 = vmatpush1.msra.mxu0 %v1467
    %1503 = vmatprep.subr.mxu0 0.0
    %1504 = vmatpush1.msra.mxu0 %v1468
    %1505 = vmatprep.subr.mxu0 0.0
    %1506 = vmatpush1.msra.mxu0 %v1469
    %1507 = vmatprep.subr.mxu0 0.0
    %1508 = vmatpush1.msra.mxu0 0.0
    %1509 = vmatprep.subr.mxu0 0.0
    %1510 = vmatpush1.msra.mxu0 0.0
    %1511 = vmatprep.subr.mxu0 0.0
    %1512 = vmatpush1.msra.mxu0 0.0
    %1513 = vmatprep.subr.mxu0 0.0
    %1514 = vmatpush1.msra.mxu0 0.0
    %1515 = vmatprep.subr.mxu0 0.0
    %1516 = vmatpush1.msra.mxu0 0.0
    %1517 = vmatprep.subr.mxu0 0.0
    %1518 = vmatpush1.msra.mxu0 0.0
    %1519 = vmatprep.subr.mxu0 0.0
    %1520 = vmatpush1.msra.mxu0 0.0
    %1521 = vmatprep.subr.mxu0 0.0
    %1522 = vmatpush1.msra.mxu0 0.0
    %1523 = vmatprep.subr.mxu0 0.0
    %1524 = vmatpush1.msra.mxu0 0.0
    %1525 = vmatprep.subr.mxu0 0.0
    %1526 = vmatpush1.msra.mxu0 0.0
    %1527 = vmatprep.subr.mxu0 0.0
    %1528 = vmatpush1.msra.mxu0 0.0
    %1529 = vmatprep.subr.mxu0 0.0
    %1530 = vmatpush1.msra.mxu0 0.0
    %1531 = vmatprep.subr.mxu0 0.0
    %1532 = vmatpush1.msra.mxu0 0.0
    %1533 = vmatprep.subr.mxu0 0.0
    %1534 = vmatpush1.msra.mxu0 0.0
    %1535 = vmatprep.subr.mxu0 0.0
    %1536 = vmatpush1.msra.mxu0 0.0
    %1537 = vmatprep.subr.mxu0 0.0
    %1538 = vmatpush1.msra.mxu0 0.0
    %1539 = vmatprep.mubr.f32.mxu0 0.0
    %1540 = vmatmul.mubr.f32.gmra.mrb[0].mxu0 %v1264
    %v1541 = vpop.f32.mrb[0].mxu0
    %v1542 = vadd.f32 %v1474, %v1541
    %v1543 = vpop.f32.mrb[0].mxu0
    %1544 = vmatprep.mubr.f32.mxu0 0.0
    %1545 = vmatmul.mubr.f32.gmra.mrb[0].mxu0 %v1269
    %v1546 = vpop.f32.mrb[0].mxu0
    %v1547 = vadd.f32 %v1474, %v1546
    %v1548 = vpop.f32.mrb[0].mxu0
    %1549 = vmatprep.mubr.f32.mxu0 0.0
    %1550 = vmatmul.mubr.f32.gmra.mrb[0].mxu0 %v1274
    %v1551 = vpop.f32.mrb[0].mxu0
    %v1552 = vadd.f32 %v1474, %v1551
    %v1553 = vpop.f32.mrb[0].mxu0
    %1554 = vmatprep.mubr.f32.mxu0 0.0
    %1555 = vmatmul.mubr.f32.gmra.mrb[0].mxu0 %v1279
    %v1556 = vpop.f32.mrb[0].mxu0
    %v1557 = vadd.f32 %v1474, %v1556
    %v1558 = vpop.f32.mrb[0].mxu0
    %1559 = vmatprep.mubr.f32.mxu0 0.0
    %1560 = vmatmul.mubr.f32.gmra.mrb[0].mxu0 %v1284
    %v1561 = vpop.f32.mrb[0].mxu0
    %v1562 = vadd.f32 %v1474, %v1561
    %v1563 = vpop.f32.mrb[0].mxu0
    %1564 = vmatprep.mubr.f32.mxu0 0.0
    %1565 = vmatmul.mubr.f32.gmra.mrb[0].mxu0 %v1289
    %v1566 = vpop.f32.mrb[0].mxu0
    %v1567 = vadd.f32 %v1474, %v1566
    %v1568 = vpop.f32.mrb[0].mxu0
    %1569 = vmatprep.mubr.f32.mxu0 0.0
    %1570 = vmatmul.mubr.f32.gmra.mrb[0].mxu0 %v1294
    %v1571 = vpop.f32.mrb[0].mxu0
    %v1572 = vadd.f32 %v1474, %v1571
    %v1573 = vpop.f32.mrb[0].mxu0
    %1574 = vmatprep.mubr.f32.mxu0 0.0
    %1575 = vmatmul.mubr.f32.gmra.mrb[0].mxu0 %v1299
    %v1576 = vpop.f32.mrb[0].mxu0
    %v1577 = vadd.f32 %v1474, %v1576
    %v1578 = vpop.f32.mrb[0].mxu0
    %1579 = vmatprep.mubr.f32.mxu0 0.0
    %1580 = vmatmul.mubr.f32.gmra.mrb[0].mxu0 %v1304
    %v1581 = vpop.f32.mrb[0].mxu0
    %v1582 = vadd.f32 %v1474, %v1581
    %v1583 = vpop.f32.mrb[0].mxu0
    %1584 = vmatprep.mubr.f32.mxu0 0.0
    %1585 = vmatmul.mubr.f32.gmra.mrb[0].mxu0 %v1309
    %v1586 = vpop.f32.mrb[0].mxu0
    %v1587 = vadd.f32 %v1474, %v1586
    %v1588 = vpop.f32.mrb[0].mxu0
    %1589 = vmatprep.mubr.f32.mxu0 0.0
    %1590 = vmatmul.mubr.f32.gmra.mrb[0].mxu0 %v1314
    %v1591 = vpop.f32.mrb[0].mxu0
    %v1592 = vadd.f32 %v1474, %v1591
    %v1593 = vpop.f32.mrb[0].mxu0
    %1594 = vmatprep.mubr.f32.mxu0 0.0
    %1595 = vmatmul.mubr.f32.gmra.mrb[0].mxu0 %v1319
    %v1596 = vpop.f32.mrb[0].mxu0
    %v1597 = vadd.f32 %v1474, %v1596
    %v1598 = vpop.f32.mrb[0].mxu0
    %1599 = vmatprep.mubr.f32.mxu0 0.0
    %1600 = vmatmul.mubr.f32.gmra.mrb[0].mxu0 %v1324
    %v1601 = vpop.f32.mrb[0].mxu0
    %v1602 = vadd.f32 %v1474, %v1601
    %v1603 = vpop.f32.mrb[0].mxu0
    %1604 = vmatprep.mubr.f32.mxu0 0.0
    %1605 = vmatmul.mubr.f32.gmra.mrb[0].mxu0 %v1329
    %v1606 = vpop.f32.mrb[0].mxu0
    %v1607 = vadd.f32 %v1474, %v1606
    %v1608 = vpop.f32.mrb[0].mxu0
    %1609 = vmatprep.mubr.f32.mxu0 0.0
    %1610 = vmatmul.mubr.f32.gmra.mrb[0].mxu0 %v1334
    %v1611 = vpop.f32.mrb[0].mxu0
    %v1612 = vadd.f32 %v1474, %v1611
    %v1613 = vpop.f32.mrb[0].mxu0
    %1614 = vmatprep.mubr.f32.mxu0 0.0
    %1615 = vmatmul.mubr.f32.gmra.mrb[0].mxu0 %v1339
    %v1616 = vpop.f32.mrb[0].mxu0
    %v1617 = vadd.f32 %v1474, %v1616
    %v1618 = vpop.f32.mrb[0].mxu0
    %1619 = vmatprep.mubr.f32.mxu0 0.0
    %1620 = vmatmul.mubr.f32.gmra.mrb[0].mxu0 %v1344
    %v1621 = vpop.f32.mrb[0].mxu0
    %v1622 = vadd.f32 %v1474, %v1621
    %v1623 = vpop.f32.mrb[0].mxu0
    %1624 = vmatprep.mubr.f32.mxu0 0.0
    %1625 = vmatmul.mubr.f32.gmra.mrb[0].mxu0 %v1349
    %v1626 = vpop.f32.mrb[0].mxu0
    %v1627 = vadd.f32 %v1474, %v1626
    %v1628 = vpop.f32.mrb[0].mxu0
    %1629 = vmatprep.mubr.f32.mxu0 0.0
    %1630 = vmatmul.mubr.f32.gmra.mrb[0].mxu0 %v1354
    %v1631 = vpop.f32.mrb[0].mxu0
    %v1632 = vadd.f32 %v1474, %v1631
    %v1633 = vpop.f32.mrb[0].mxu0
    %1634 = vmatprep.mubr.f32.mxu0 0.0
    %1635 = vmatmul.mubr.f32.gmra.mrb[0].mxu0 %v1359
    %v1636 = vpop.f32.mrb[0].mxu0
    %v1637 = vadd.f32 %v1474, %v1636
    %v1638 = vpop.f32.mrb[0].mxu0
    %1639 = vmatprep.mubr.f32.mxu0 0.0
    %1640 = vmatmul.mubr.f32.gmra.mrb[0].mxu0 %v1364
    %v1641 = vpop.f32.mrb[0].mxu0
    %v1642 = vadd.f32 %v1474, %v1641
    %v1643 = vpop.f32.mrb[0].mxu0
    %1644 = vmatprep.mubr.f32.mxu0 0.0
    %1645 = vmatmul.mubr.f32.gmra.mrb[0].mxu0 %v1369
    %v1646 = vpop.f32.mrb[0].mxu0
    %v1647 = vadd.f32 %v1474, %v1646
    %v1648 = vpop.f32.mrb[0].mxu0
    %1649 = vmatprep.mubr.f32.mxu0 0.0
    %1650 = vmatmul.mubr.f32.gmra.mrb[0].mxu0 %v1374
    %v1651 = vpop.f32.mrb[0].mxu0
    %v1652 = vadd.f32 %v1474, %v1651
    %v1653 = vpop.f32.mrb[0].mxu0
    %1654 = vmatprep.mubr.f32.mxu0 0.0
    %1655 = vmatmul.mubr.f32.gmra.mrb[0].mxu0 %v1379
    %v1656 = vpop.f32.mrb[0].mxu0
    %v1657 = vadd.f32 %v1474, %v1656
    %v1658 = vpop.f32.mrb[0].mxu0
    %1659 = vmatprep.mubr.f32.mxu0 0.0
    %1660 = vmatmul.mubr.f32.gmra.mrb[0].mxu0 %v1384
    %v1661 = vpop.f32.mrb[0].mxu0
    %v1662 = vadd.f32 %v1474, %v1661
    %v1663 = vpop.f32.mrb[0].mxu0
    %1664 = vmatprep.mubr.f32.mxu0 0.0
    %1665 = vmatmul.mubr.f32.gmra.mrb[0].mxu0 %v1389
    %v1666 = vpop.f32.mrb[0].mxu0
    %v1667 = vadd.f32 %v1474, %v1666
    %v1668 = vpop.f32.mrb[0].mxu0
    %1669 = vmatprep.mubr.f32.mxu0 0.0
    %1670 = vmatmul.mubr.f32.gmra.mrb[0].mxu0 %v1394
    %v1671 = vpop.f32.mrb[0].mxu0
    %v1672 = vadd.f32 %v1474, %v1671
    %v1673 = vpop.f32.mrb[0].mxu0
    %1674 = vmatprep.mubr.f32.mxu0 0.0
    %1675 = vmatmul.mubr.f32.gmra.mrb[0].mxu0 %v1399
    %v1676 = vpop.f32.mrb[0].mxu0
    %v1677 = vadd.f32 %v1474, %v1676
    %v1678 = vpop.f32.mrb[0].mxu0
    %1679 = vmatprep.mubr.f32.mxu0 0.0
    %1680 = vmatmul.mubr.f32.gmra.mrb[0].mxu0 %v1404
    %v1681 = vpop.f32.mrb[0].mxu0
    %v1682 = vadd.f32 %v1474, %v1681
    %v1683 = vpop.f32.mrb[0].mxu0
    %1684 = vmatprep.mubr.f32.mxu0 0.0
    %1685 = vmatmul.mubr.f32.gmra.mrb[0].mxu0 %v1409
    %v1686 = vpop.f32.mrb[0].mxu0
    %v1687 = vadd.f32 %v1474, %v1686
    %v1688 = vpop.f32.mrb[0].mxu0
    %1689 = vmatprep.mubr.f32.mxu0 0.0
    %1690 = vmatmul.mubr.f32.gmra.mrb[0].mxu0 %v1414
    %v1691 = vpop.f32.mrb[0].mxu0
    %v1692 = vadd.f32 %v1474, %v1691
    %v1693 = vpop.f32.mrb[0].mxu0
    %1694 = vmatprep.mubr.f32.mxu0 0.0
    %1695 = vmatmul.mubr.f32.gmra.mrb[0].mxu0 %v1419
    %v1696 = vpop.f32.mrb[0].mxu0
    %v1697 = vadd.f32 %v1474, %v1696
    %v1698 = vpop.f32.mrb[0].mxu0
    %1699 = vdwg.mxu0
    %vm1700 = vcmp.gt.f32.partialorder %v1542, 0.0
    %vm1701 = vcmp.gt.f32.partialorder %v1547, 0.0
    %vm1702 = vcmp.gt.f32.partialorder %v1552, 0.0
    %vm1703 = vcmp.gt.f32.partialorder %v1557, 0.0
    %vm1704 = vcmp.gt.f32.partialorder %v1562, 0.0
    %vm1705 = vcmp.gt.f32.partialorder %v1567, 0.0
    %vm1706 = vcmp.gt.f32.partialorder %v1572, 0.0
    %vm1707 = vcmp.gt.f32.partialorder %v1577, 0.0
    %vm1708 = vcmp.gt.f32.partialorder %v1582, 0.0
    %vm1709 = vcmp.gt.f32.partialorder %v1587, 0.0
    %vm1710 = vcmp.gt.f32.partialorder %v1592, 0.0
    %vm1711 = vcmp.gt.f32.partialorder %v1597, 0.0
    %vm1712 = vcmp.gt.f32.partialorder %v1602, 0.0
    %vm1713 = vcmp.gt.f32.partialorder %v1607, 0.0
    %vm1714 = vcmp.gt.f32.partialorder %v1612, 0.0
    %vm1715 = vcmp.gt.f32.partialorder %v1617, 0.0
    %vm1716 = vcmp.gt.f32.partialorder %v1622, 0.0
    %vm1717 = vcmp.gt.f32.partialorder %v1627, 0.0
    %vm1718 = vcmp.gt.f32.partialorder %v1632, 0.0
    %vm1719 = vcmp.gt.f32.partialorder %v1637, 0.0
    %vm1720 = vcmp.gt.f32.partialorder %v1642, 0.0
    %vm1721 = vcmp.gt.f32.partialorder %v1647, 0.0
    %vm1722 = vcmp.gt.f32.partialorder %v1652, 0.0
    %vm1723 = vcmp.gt.f32.partialorder %v1657, 0.0
    %vm1724 = vcmp.gt.f32.partialorder %v1662, 0.0
    %vm1725 = vcmp.gt.f32.partialorder %v1667, 0.0
    %vm1726 = vcmp.gt.f32.partialorder %v1672, 0.0
    %vm1727 = vcmp.gt.f32.partialorder %v1677, 0.0
    %vm1728 = vcmp.gt.f32.partialorder %v1682, 0.0
    %vm1729 = vcmp.gt.f32.partialorder %v1687, 0.0
    %vm1730 = vcmp.gt.f32.partialorder %v1692, 0.0
    %vm1731 = vcmp.gt.f32.partialorder %v1697, 0.0
    %v1732 = vmul.f32 %v1542, 0.2
    %v1733 = vmul.f32 %v1547, 0.2
    %v1734 = vmul.f32 %v1552, 0.2
    %v1735 = vmul.f32 %v1557, 0.2
    %v1736 = vmul.f32 %v1562, 0.2
    %v1737 = vmul.f32 %v1567, 0.2
    %v1738 = vmul.f32 %v1572, 0.2
    %v1739 = vmul.f32 %v1577, 0.2
    %v1740 = vmul.f32 %v1582, 0.2
    %v1741 = vmul.f32 %v1587, 0.2
    %v1742 = vmul.f32 %v1592, 0.2
    %v1743 = vmul.f32 %v1597, 0.2
    %v1744 = vmul.f32 %v1602, 0.2
    %v1745 = vmul.f32 %v1607, 0.2
    %v1746 = vmul.f32 %v1612, 0.2
    %v1747 = vmul.f32 %v1617, 0.2
    %v1748 = vmul.f32 %v1622, 0.2
    %v1749 = vmul.f32 %v1627, 0.2
    %v1750 = vmul.f32 %v1632, 0.2
    %v1751 = vmul.f32 %v1637, 0.2
    %v1752 = vmul.f32 %v1642, 0.2
    %v1753 = vmul.f32 %v1647, 0.2
    %v1754 = vmul.f32 %v1652, 0.2
    %v1755 = vmul.f32 %v1657, 0.2
    %v1756 = vmul.f32 %v1662, 0.2
    %v1757 = vmul.f32 %v1667, 0.2
    %v1758 = vmul.f32 %v1672, 0.2
    %v1759 = vmul.f32 %v1677, 0.2
    %v1760 = vmul.f32 %v1682, 0.2
    %v1761 = vmul.f32 %v1687, 0.2
    %v1762 = vmul.f32 %v1692, 0.2
    %v1763 = vmul.f32 %v1697, 0.2
    %v1764 = vsel %vm1700, %v1542, %v1732
    %v1765 = vsel %vm1701, %v1547, %v1733
    %v1766 = vsel %vm1702, %v1552, %v1734
    %v1767 = vsel %vm1703, %v1557, %v1735
    %v1768 = vsel %vm1704, %v1562, %v1736
    %v1769 = vsel %vm1705, %v1567, %v1737
    %v1770 = vsel %vm1706, %v1572, %v1738
    %v1771 = vsel %vm1707, %v1577, %v1739
    %v1772 = vsel %vm1708, %v1582, %v1740
    %v1773 = vsel %vm1709, %v1587, %v1741
    %v1774 = vsel %vm1710, %v1592, %v1742
    %v1775 = vsel %vm1711, %v1597, %v1743
    %v1776 = vsel %vm1712, %v1602, %v1744
    %v1777 = vsel %vm1713, %v1607, %v1745
    %v1778 = vsel %vm1714, %v1612, %v1746
    %v1779 = vsel %vm1715, %v1617, %v1747
    %v1780 = vsel %vm1716, %v1622, %v1748
    %v1781 = vsel %vm1717, %v1627, %v1749
    %v1782 = vsel %vm1718, %v1632, %v1750
    %v1783 = vsel %vm1719, %v1637, %v1751
    %v1784 = vsel %vm1720, %v1642, %v1752
    %v1785 = vsel %vm1721, %v1647, %v1753
    %v1786 = vsel %vm1722, %v1652, %v1754
    %v1787 = vsel %vm1723, %v1657, %v1755
    %v1788 = vsel %vm1724, %v1662, %v1756
    %v1789 = vsel %vm1725, %v1667, %v1757
    %v1790 = vsel %vm1726, %v1672, %v1758
    %v1791 = vsel %vm1727, %v1677, %v1759
    %v1792 = vsel %vm1728, %v1682, %v1760
    %v1793 = vsel %vm1729, %v1687, %v1761
    %v1794 = vsel %vm1730, %v1692, %v1762
    %v1795 = vsel %vm1731, %v1697, %v1763
    %v1796 = vld [vmem:[#allocation2 + $0x268] sm:$0xff]
    %v1797 = vld [vmem:[#allocation2 + $0x270] sm:$0xff]
    %v1798 = vld [vmem:[#allocation2 + $0x278] sm:$0xff]
    %v1799 = vld [vmem:[#allocation2 + $0x280] sm:$0xff]
    %v1800 = vld [vmem:[#allocation2 + $0x288] sm:$0xff]
    %v1801 = vld [vmem:[#allocation2 + $0x290] sm:$0xff]
    %v1802 = vld [vmem:[#allocation2 + $0x298] sm:$0xff]
    %v1803 = vld [vmem:[#allocation2 + $0x2a0] sm:$0xff]
    %v1804 = vld [vmem:[#allocation2 + $0x2a8] sm:$0xff]
    %v1805 = vld [vmem:[#allocation2 + $0x2b0] sm:$0xff]
    %v1806 = vld [vmem:[#allocation2 + $0x2b8] sm:$0xff]
    %v1807 = vld [vmem:[#allocation2 + $0x2c0] sm:$0xff]
    %v1808 = vld [vmem:[#allocation2 + $0x2c8] sm:$0xff]
    %v1809 = vld [vmem:[#allocation2 + $0x2d0] sm:$0xff]
    %v1810 = vld [vmem:[#allocation2 + $0x2d8] sm:$0xff]
    %v1811 = vld [vmem:[#allocation2 + $0x2e0] sm:$0xff]
    %v1812 = vld [vmem:[#allocation2 + $0x2e8] sm:$0x1]
    %v1813 = vlaneseq
    %v1814 = vshrl.u32 %v1813, 7
    %v1815 = vsub.s32 0, %v1814
    %v1816 = vrot.slane %v1812, %v1815
    %1817 = vmatprep.subr.mxu0 0.0
    %1818 = vmatpush1.msra.mxu0 %v1796
    %1819 = vmatprep.subr.mxu0 0.0
    %1820 = vmatpush1.msra.mxu0 %v1797
    %1821 = vmatprep.subr.mxu0 0.0
    %1822 = vmatpush1.msra.mxu0 %v1798
    %1823 = vmatprep.subr.mxu0 0.0
    %1824 = vmatpush1.msra.mxu0 %v1799
    %1825 = vmatprep.subr.mxu0 0.0
    %1826 = vmatpush1.msra.mxu0 %v1800
    %1827 = vmatprep.subr.mxu0 0.0
    %1828 = vmatpush1.msra.mxu0 %v1801
    %1829 = vmatprep.subr.mxu0 0.0
    %1830 = vmatpush1.msra.mxu0 %v1802
    %1831 = vmatprep.subr.mxu0 0.0
    %1832 = vmatpush1.msra.mxu0 %v1803
    %1833 = vmatprep.subr.mxu0 0.0
    %1834 = vmatpush1.msra.mxu0 %v1804
    %1835 = vmatprep.subr.mxu0 0.0
    %1836 = vmatpush1.msra.mxu0 %v1805
    %1837 = vmatprep.subr.mxu0 0.0
    %1838 = vmatpush1.msra.mxu0 %v1806
    %1839 = vmatprep.subr.mxu0 0.0
    %1840 = vmatpush1.msra.mxu0 %v1807
    %1841 = vmatprep.subr.mxu0 0.0
    %1842 = vmatpush1.msra.mxu0 %v1808
    %1843 = vmatprep.subr.mxu0 0.0
    %1844 = vmatpush1.msra.mxu0 %v1809
    %1845 = vmatprep.subr.mxu0 0.0
    %1846 = vmatpush1.msra.mxu0 %v1810
    %1847 = vmatprep.subr.mxu0 0.0
    %1848 = vmatpush1.msra.mxu0 %v1811
    %1849 = vmatprep.subr.mxu0 0.0
    %1850 = vmatpush1.msra.mxu0 0.0
    %1851 = vmatprep.subr.mxu0 0.0
    %1852 = vmatpush1.msra.mxu0 0.0
    %1853 = vmatprep.subr.mxu0 0.0
    %1854 = vmatpush1.msra.mxu0 0.0
    %1855 = vmatprep.subr.mxu0 0.0
    %1856 = vmatpush1.msra.mxu0 0.0
    %1857 = vmatprep.subr.mxu0 0.0
    %1858 = vmatpush1.msra.mxu0 0.0
    %1859 = vmatprep.subr.mxu0 0.0
    %1860 = vmatpush1.msra.mxu0 0.0
    %1861 = vmatprep.subr.mxu0 0.0
    %1862 = vmatpush1.msra.mxu0 0.0
    %1863 = vmatprep.subr.mxu0 0.0
    %1864 = vmatpush1.msra.mxu0 0.0
    %1865 = vmatprep.subr.mxu0 0.0
    %1866 = vmatpush1.msra.mxu0 0.0
    %1867 = vmatprep.subr.mxu0 0.0
    %1868 = vmatpush1.msra.mxu0 0.0
    %1869 = vmatprep.subr.mxu0 0.0
    %1870 = vmatpush1.msra.mxu0 0.0
    %1871 = vmatprep.subr.mxu0 0.0
    %1872 = vmatpush1.msra.mxu0 0.0
    %1873 = vmatprep.subr.mxu0 0.0
    %1874 = vmatpush1.msra.mxu0 0.0
    %1875 = vmatprep.subr.mxu0 0.0
    %1876 = vmatpush1.msra.mxu0 0.0
    %1877 = vmatprep.subr.mxu0 0.0
    %1878 = vmatpush1.msra.mxu0 0.0
    %1879 = vmatprep.subr.mxu0 0.0
    %1880 = vmatpush1.msra.mxu0 0.0
    %1881 = vmatprep.mubr.f32.mxu0 0.0
    %1882 = vmatmul.mubr.f32.gmra.mrb[0].mxu0 %v1764
    %v1883 = vpop.f32.mrb[0].mxu0
    %v1884 = vadd.f32 %v1816, %v1883
    %v1885 = vpop.f32.mrb[0].mxu0
    %1886 = vmatprep.mubr.f32.mxu0 0.0
    %1887 = vmatmul.mubr.f32.gmra.mrb[0].mxu0 %v1765
    %v1888 = vpop.f32.mrb[0].mxu0
    %v1889 = vadd.f32 %v1816, %v1888
    %v1890 = vpop.f32.mrb[0].mxu0
    %1891 = vmatprep.mubr.f32.mxu0 0.0
    %1892 = vmatmul.mubr.f32.gmra.mrb[0].mxu0 %v1766
    %v1893 = vpop.f32.mrb[0].mxu0
    %v1894 = vadd.f32 %v1816, %v1893
    %v1895 = vpop.f32.mrb[0].mxu0
    %1896 = vmatprep.mubr.f32.mxu0 0.0
    %1897 = vmatmul.mubr.f32.gmra.mrb[0].mxu0 %v1767
    %v1898 = vpop.f32.mrb[0].mxu0
    %v1899 = vadd.f32 %v1816, %v1898
    %v1900 = vpop.f32.mrb[0].mxu0
    %1901 = vmatprep.mubr.f32.mxu0 0.0
    %1902 = vmatmul.mubr.f32.gmra.mrb[0].mxu0 %v1768
    %v1903 = vpop.f32.mrb[0].mxu0
    %v1904 = vadd.f32 %v1816, %v1903
    %v1905 = vpop.f32.mrb[0].mxu0
    %1906 = vmatprep.mubr.f32.mxu0 0.0
    %1907 = vmatmul.mubr.f32.gmra.mrb[0].mxu0 %v1769
    %v1908 = vpop.f32.mrb[0].mxu0
    %v1909 = vadd.f32 %v1816, %v1908
    %v1910 = vpop.f32.mrb[0].mxu0
    %1911 = vmatprep.mubr.f32.mxu0 0.0
    %1912 = vmatmul.mubr.f32.gmra.mrb[0].mxu0 %v1770
    %v1913 = vpop.f32.mrb[0].mxu0
    %v1914 = vadd.f32 %v1816, %v1913
    %v1915 = vpop.f32.mrb[0].mxu0
    %1916 = vmatprep.mubr.f32.mxu0 0.0
    %1917 = vmatmul.mubr.f32.gmra.mrb[0].mxu0 %v1771
    %v1918 = vpop.f32.mrb[0].mxu0
    %v1919 = vadd.f32 %v1816, %v1918
    %v1920 = vpop.f32.mrb[0].mxu0
    %1921 = vmatprep.mubr.f32.mxu0 0.0
    %1922 = vmatmul.mubr.f32.gmra.mrb[0].mxu0 %v1772
    %v1923 = vpop.f32.mrb[0].mxu0
    %v1924 = vadd.f32 %v1816, %v1923
    %v1925 = vpop.f32.mrb[0].mxu0
    %1926 = vmatprep.mubr.f32.mxu0 0.0
    %1927 = vmatmul.mubr.f32.gmra.mrb[0].mxu0 %v1773
    %v1928 = vpop.f32.mrb[0].mxu0
    %v1929 = vadd.f32 %v1816, %v1928
    %v1930 = vpop.f32.mrb[0].mxu0
    %1931 = vmatprep.mubr.f32.mxu0 0.0
    %1932 = vmatmul.mubr.f32.gmra.mrb[0].mxu0 %v1774
    %v1933 = vpop.f32.mrb[0].mxu0
    %v1934 = vadd.f32 %v1816, %v1933
    %v1935 = vpop.f32.mrb[0].mxu0
    %1936 = vmatprep.mubr.f32.mxu0 0.0
    %1937 = vmatmul.mubr.f32.gmra.mrb[0].mxu0 %v1775
    %v1938 = vpop.f32.mrb[0].mxu0
    %v1939 = vadd.f32 %v1816, %v1938
    %v1940 = vpop.f32.mrb[0].mxu0
    %1941 = vmatprep.mubr.f32.mxu0 0.0
    %1942 = vmatmul.mubr.f32.gmra.mrb[0].mxu0 %v1776
    %v1943 = vpop.f32.mrb[0].mxu0
    %v1944 = vadd.f32 %v1816, %v1943
    %v1945 = vpop.f32.mrb[0].mxu0
    %1946 = vmatprep.mubr.f32.mxu0 0.0
    %1947 = vmatmul.mubr.f32.gmra.mrb[0].mxu0 %v1777
    %v1948 = vpop.f32.mrb[0].mxu0
    %v1949 = vadd.f32 %v1816, %v1948
    %v1950 = vpop.f32.mrb[0].mxu0
    %1951 = vmatprep.mubr.f32.mxu0 0.0
    %1952 = vmatmul.mubr.f32.gmra.mrb[0].mxu0 %v1778
    %v1953 = vpop.f32.mrb[0].mxu0
    %v1954 = vadd.f32 %v1816, %v1953
    %v1955 = vpop.f32.mrb[0].mxu0
    %1956 = vmatprep.mubr.f32.mxu0 0.0
    %1957 = vmatmul.mubr.f32.gmra.mrb[0].mxu0 %v1779
    %v1958 = vpop.f32.mrb[0].mxu0
    %v1959 = vadd.f32 %v1816, %v1958
    %v1960 = vpop.f32.mrb[0].mxu0
    %1961 = vmatprep.mubr.f32.mxu0 0.0
    %1962 = vmatmul.mubr.f32.gmra.mrb[0].mxu0 %v1780
    %v1963 = vpop.f32.mrb[0].mxu0
    %v1964 = vadd.f32 %v1816, %v1963
    %v1965 = vpop.f32.mrb[0].mxu0
    %1966 = vmatprep.mubr.f32.mxu0 0.0
    %1967 = vmatmul.mubr.f32.gmra.mrb[0].mxu0 %v1781
    %v1968 = vpop.f32.mrb[0].mxu0
    %v1969 = vadd.f32 %v1816, %v1968
    %v1970 = vpop.f32.mrb[0].mxu0
    %1971 = vmatprep.mubr.f32.mxu0 0.0
    %1972 = vmatmul.mubr.f32.gmra.mrb[0].mxu0 %v1782
    %v1973 = vpop.f32.mrb[0].mxu0
    %v1974 = vadd.f32 %v1816, %v1973
    %v1975 = vpop.f32.mrb[0].mxu0
    %1976 = vmatprep.mubr.f32.mxu0 0.0
    %1977 = vmatmul.mubr.f32.gmra.mrb[0].mxu0 %v1783
    %v1978 = vpop.f32.mrb[0].mxu0
    %v1979 = vadd.f32 %v1816, %v1978
    %v1980 = vpop.f32.mrb[0].mxu0
    %1981 = vmatprep.mubr.f32.mxu0 0.0
    %1982 = vmatmul.mubr.f32.gmra.mrb[0].mxu0 %v1784
    %v1983 = vpop.f32.mrb[0].mxu0
    %v1984 = vadd.f32 %v1816, %v1983
    %v1985 = vpop.f32.mrb[0].mxu0
    %1986 = vmatprep.mubr.f32.mxu0 0.0
    %1987 = vmatmul.mubr.f32.gmra.mrb[0].mxu0 %v1785
    %v1988 = vpop.f32.mrb[0].mxu0
    %v1989 = vadd.f32 %v1816, %v1988
    %v1990 = vpop.f32.mrb[0].mxu0
    %1991 = vmatprep.mubr.f32.mxu0 0.0
    %1992 = vmatmul.mubr.f32.gmra.mrb[0].mxu0 %v1786
    %v1993 = vpop.f32.mrb[0].mxu0
    %v1994 = vadd.f32 %v1816, %v1993
    %v1995 = vpop.f32.mrb[0].mxu0
    %1996 = vmatprep.mubr.f32.mxu0 0.0
    %1997 = vmatmul.mubr.f32.gmra.mrb[0].mxu0 %v1787
    %v1998 = vpop.f32.mrb[0].mxu0
    %v1999 = vadd.f32 %v1816, %v1998
    %v2000 = vpop.f32.mrb[0].mxu0
    %2001 = vmatprep.mubr.f32.mxu0 0.0
    %2002 = vmatmul.mubr.f32.gmra.mrb[0].mxu0 %v1788
    %v2003 = vpop.f32.mrb[0].mxu0
    %v2004 = vadd.f32 %v1816, %v2003
    %v2005 = vpop.f32.mrb[0].mxu0
    %2006 = vmatprep.mubr.f32.mxu0 0.0
    %2007 = vmatmul.mubr.f32.gmra.mrb[0].mxu0 %v1789
    %v2008 = vpop.f32.mrb[0].mxu0
    %v2009 = vadd.f32 %v1816, %v2008
    %v2010 = vpop.f32.mrb[0].mxu0
    %2011 = vmatprep.mubr.f32.mxu0 0.0
    %2012 = vmatmul.mubr.f32.gmra.mrb[0].mxu0 %v1790
    %v2013 = vpop.f32.mrb[0].mxu0
    %v2014 = vadd.f32 %v1816, %v2013
    %v2015 = vpop.f32.mrb[0].mxu0
    %2016 = vmatprep.mubr.f32.mxu0 0.0
    %2017 = vmatmul.mubr.f32.gmra.mrb[0].mxu0 %v1791
    %v2018 = vpop.f32.mrb[0].mxu0
    %v2019 = vadd.f32 %v1816, %v2018
    %v2020 = vpop.f32.mrb[0].mxu0
    %2021 = vmatprep.mubr.f32.mxu0 0.0
    %2022 = vmatmul.mubr.f32.gmra.mrb[0].mxu0 %v1792
    %v2023 = vpop.f32.mrb[0].mxu0
    %v2024 = vadd.f32 %v1816, %v2023
    %v2025 = vpop.f32.mrb[0].mxu0
    %2026 = vmatprep.mubr.f32.mxu0 0.0
    %2027 = vmatmul.mubr.f32.gmra.mrb[0].mxu0 %v1793
    %v2028 = vpop.f32.mrb[0].mxu0
    %v2029 = vadd.f32 %v1816, %v2028
    %v2030 = vpop.f32.mrb[0].mxu0
    %2031 = vmatprep.mubr.f32.mxu0 0.0
    %2032 = vmatmul.mubr.f32.gmra.mrb[0].mxu0 %v1794
    %v2033 = vpop.f32.mrb[0].mxu0
    %v2034 = vadd.f32 %v1816, %v2033
    %v2035 = vpop.f32.mrb[0].mxu0
    %2036 = vmatprep.mubr.f32.mxu0 0.0
    %2037 = vmatmul.mubr.f32.gmra.mrb[0].mxu0 %v1795
    %v2038 = vpop.f32.mrb[0].mxu0
    %v2039 = vadd.f32 %v1816, %v2038
    %v2040 = vpop.f32.mrb[0].mxu0
    %2041 = vdwg.mxu0
    %vm2042 = vcmp.gt.f32.partialorder %v1884, 0.0
    %vm2043 = vcmp.gt.f32.partialorder %v1889, 0.0
    %vm2044 = vcmp.gt.f32.partialorder %v1894, 0.0
    %vm2045 = vcmp.gt.f32.partialorder %v1899, 0.0
    %vm2046 = vcmp.gt.f32.partialorder %v1904, 0.0
    %vm2047 = vcmp.gt.f32.partialorder %v1909, 0.0
    %vm2048 = vcmp.gt.f32.partialorder %v1914, 0.0
    %vm2049 = vcmp.gt.f32.partialorder %v1919, 0.0
    %vm2050 = vcmp.gt.f32.partialorder %v1924, 0.0
    %vm2051 = vcmp.gt.f32.partialorder %v1929, 0.0
    %vm2052 = vcmp.gt.f32.partialorder %v1934, 0.0
    %vm2053 = vcmp.gt.f32.partialorder %v1939, 0.0
    %vm2054 = vcmp.gt.f32.partialorder %v1944, 0.0
    %vm2055 = vcmp.gt.f32.partialorder %v1949, 0.0
    %vm2056 = vcmp.gt.f32.partialorder %v1954, 0.0
    %vm2057 = vcmp.gt.f32.partialorder %v1959, 0.0
    %vm2058 = vcmp.gt.f32.partialorder %v1964, 0.0
    %vm2059 = vcmp.gt.f32.partialorder %v1969, 0.0
    %vm2060 = vcmp.gt.f32.partialorder %v1974, 0.0
    %vm2061 = vcmp.gt.f32.partialorder %v1979, 0.0
    %vm2062 = vcmp.gt.f32.partialorder %v1984, 0.0
    %vm2063 = vcmp.gt.f32.partialorder %v1989, 0.0
    %vm2064 = vcmp.gt.f32.partialorder %v1994, 0.0
    %vm2065 = vcmp.gt.f32.partialorder %v1999, 0.0
    %vm2066 = vcmp.gt.f32.partialorder %v2004, 0.0
    %vm2067 = vcmp.gt.f32.partialorder %v2009, 0.0
    %vm2068 = vcmp.gt.f32.partialorder %v2014, 0.0
    %vm2069 = vcmp.gt.f32.partialorder %v2019, 0.0
    %vm2070 = vcmp.gt.f32.partialorder %v2024, 0.0
    %vm2071 = vcmp.gt.f32.partialorder %v2029, 0.0
    %vm2072 = vcmp.gt.f32.partialorder %v2034, 0.0
    %vm2073 = vcmp.gt.f32.partialorder %v2039, 0.0
    %v2074 = vmul.f32 %v1884, 0.2
    %v2075 = vmul.f32 %v1889, 0.2
    %v2076 = vmul.f32 %v1894, 0.2
    %v2077 = vmul.f32 %v1899, 0.2
    %v2078 = vmul.f32 %v1904, 0.2
    %v2079 = vmul.f32 %v1909, 0.2
    %v2080 = vmul.f32 %v1914, 0.2
    %v2081 = vmul.f32 %v1919, 0.2
    %v2082 = vmul.f32 %v1924, 0.2
    %v2083 = vmul.f32 %v1929, 0.2
    %v2084 = vmul.f32 %v1934, 0.2
    %v2085 = vmul.f32 %v1939, 0.2
    %v2086 = vmul.f32 %v1944, 0.2
    %v2087 = vmul.f32 %v1949, 0.2
    %v2088 = vmul.f32 %v1954, 0.2
    %v2089 = vmul.f32 %v1959, 0.2
    %v2090 = vmul.f32 %v1964, 0.2
    %v2091 = vmul.f32 %v1969, 0.2
    %v2092 = vmul.f32 %v1974, 0.2
    %v2093 = vmul.f32 %v1979, 0.2
    %v2094 = vmul.f32 %v1984, 0.2
    %v2095 = vmul.f32 %v1989, 0.2
    %v2096 = vmul.f32 %v1994, 0.2
    %v2097 = vmul.f32 %v1999, 0.2
    %v2098 = vmul.f32 %v2004, 0.2
    %v2099 = vmul.f32 %v2009, 0.2
    %v2100 = vmul.f32 %v2014, 0.2
    %v2101 = vmul.f32 %v2019, 0.2
    %v2102 = vmul.f32 %v2024, 0.2
    %v2103 = vmul.f32 %v2029, 0.2
    %v2104 = vmul.f32 %v2034, 0.2
    %v2105 = vmul.f32 %v2039, 0.2
    %v2106 = vsel %vm2042, %v1884, %v2074
    %v2107 = vsel %vm2043, %v1889, %v2075
    %v2108 = vsel %vm2044, %v1894, %v2076
    %v2109 = vsel %vm2045, %v1899, %v2077
    %v2110 = vsel %vm2046, %v1904, %v2078
    %v2111 = vsel %vm2047, %v1909, %v2079
    %v2112 = vsel %vm2048, %v1914, %v2080
    %v2113 = vsel %vm2049, %v1919, %v2081
    %v2114 = vsel %vm2050, %v1924, %v2082
    %v2115 = vsel %vm2051, %v1929, %v2083
    %v2116 = vsel %vm2052, %v1934, %v2084
    %v2117 = vsel %vm2053, %v1939, %v2085
    %v2118 = vsel %vm2054, %v1944, %v2086
    %v2119 = vsel %vm2055, %v1949, %v2087
    %v2120 = vsel %vm2056, %v1954, %v2088
    %v2121 = vsel %vm2057, %v1959, %v2089
    %v2122 = vsel %vm2058, %v1964, %v2090
    %v2123 = vsel %vm2059, %v1969, %v2091
    %v2124 = vsel %vm2060, %v1974, %v2092
    %v2125 = vsel %vm2061, %v1979, %v2093
    %v2126 = vsel %vm2062, %v1984, %v2094
    %v2127 = vsel %vm2063, %v1989, %v2095
    %v2128 = vsel %vm2064, %v1994, %v2096
    %v2129 = vsel %vm2065, %v1999, %v2097
    %v2130 = vsel %vm2066, %v2004, %v2098
    %v2131 = vsel %vm2067, %v2009, %v2099
    %v2132 = vsel %vm2068, %v2014, %v2100
    %v2133 = vsel %vm2069, %v2019, %v2101
    %v2134 = vsel %vm2070, %v2024, %v2102
    %v2135 = vsel %vm2071, %v2029, %v2103
    %v2136 = vsel %vm2072, %v2034, %v2104
    %v2137 = vsel %vm2073, %v2039, %v2105
    %v2138 = vld [vmem:[#allocation2 + $0x2f0] sm:$0xff]
    %v2139 = vld [vmem:[#allocation2 + $0x2f8] sm:$0xff]
    %v2140 = vld [vmem:[#allocation2 + $0x300] sm:$0xff]
    %v2141 = vld [vmem:[#allocation2 + $0x308] sm:$0xff]
    %v2142 = vld [vmem:[#allocation2 + $0x310] sm:$0xff]
    %v2143 = vld [vmem:[#allocation2 + $0x318] sm:$0xff]
    %v2144 = vld [vmem:[#allocation2 + $0x320] sm:$0xff]
    %v2145 = vld [vmem:[#allocation2 + $0x328] sm:$0xff]
    %v2146 = vld [vmem:[#allocation2 + $0x330] sm:$0xff]
    %v2147 = vld [vmem:[#allocation2 + $0x338] sm:$0xff]
    %v2148 = vld [vmem:[#allocation2 + $0x340] sm:$0xff]
    %v2149 = vld [vmem:[#allocation2 + $0x348] sm:$0xff]
    %v2150 = vld [vmem:[#allocation2 + $0x350] sm:$0xff]
    %v2151 = vld [vmem:[#allocation2 + $0x358] sm:$0xff]
    %v2152 = vld [vmem:[#allocation2 + $0x360] sm:$0xff]
    %v2153 = vld [vmem:[#allocation2 + $0x368] sm:$0xff]
    %v2154 = vld [vmem:[#allocation2 + $0x370] sm:$0x1]
    %v2155 = vlaneseq
    %v2156 = vshrl.u32 %v2155, 7
    %v2157 = vsub.s32 0, %v2156
    %v2158 = vrot.slane %v2154, %v2157
    %2159 = vmatprep.subr.mxu0 0.0
    %2160 = vmatpush1.msra.mxu0 %v2138
    %2161 = vmatprep.subr.mxu0 0.0
    %2162 = vmatpush1.msra.mxu0 %v2139
    %2163 = vmatprep.subr.mxu0 0.0
    %2164 = vmatpush1.msra.mxu0 %v2140
    %2165 = vmatprep.subr.mxu0 0.0
    %2166 = vmatpush1.msra.mxu0 %v2141
    %2167 = vmatprep.subr.mxu0 0.0
    %2168 = vmatpush1.msra.mxu0 %v2142
    %2169 = vmatprep.subr.mxu0 0.0
    %2170 = vmatpush1.msra.mxu0 %v2143
    %2171 = vmatprep.subr.mxu0 0.0
    %2172 = vmatpush1.msra.mxu0 %v2144
    %2173 = vmatprep.subr.mxu0 0.0
    %2174 = vmatpush1.msra.mxu0 %v2145
    %2175 = vmatprep.subr.mxu0 0.0
    %2176 = vmatpush1.msra.mxu0 %v2146
    %2177 = vmatprep.subr.mxu0 0.0
    %2178 = vmatpush1.msra.mxu0 %v2147
    %2179 = vmatprep.subr.mxu0 0.0
    %2180 = vmatpush1.msra.mxu0 %v2148
    %2181 = vmatprep.subr.mxu0 0.0
    %2182 = vmatpush1.msra.mxu0 %v2149
    %2183 = vmatprep.subr.mxu0 0.0
    %2184 = vmatpush1.msra.mxu0 %v2150
    %2185 = vmatprep.subr.mxu0 0.0
    %2186 = vmatpush1.msra.mxu0 %v2151
    %2187 = vmatprep.subr.mxu0 0.0
    %2188 = vmatpush1.msra.mxu0 %v2152
    %2189 = vmatprep.subr.mxu0 0.0
    %2190 = vmatpush1.msra.mxu0 %v2153
    %2191 = vmatprep.subr.mxu0 0.0
    %2192 = vmatpush1.msra.mxu0 0.0
    %2193 = vmatprep.subr.mxu0 0.0
    %2194 = vmatpush1.msra.mxu0 0.0
    %2195 = vmatprep.subr.mxu0 0.0
    %2196 = vmatpush1.msra.mxu0 0.0
    %2197 = vmatprep.subr.mxu0 0.0
    %2198 = vmatpush1.msra.mxu0 0.0
    %2199 = vmatprep.subr.mxu0 0.0
    %2200 = vmatpush1.msra.mxu0 0.0
    %2201 = vmatprep.subr.mxu0 0.0
    %2202 = vmatpush1.msra.mxu0 0.0
    %2203 = vmatprep.subr.mxu0 0.0
    %2204 = vmatpush1.msra.mxu0 0.0
    %2205 = vmatprep.subr.mxu0 0.0
    %2206 = vmatpush1.msra.mxu0 0.0
    %2207 = vmatprep.subr.mxu0 0.0
    %2208 = vmatpush1.msra.mxu0 0.0
    %2209 = vmatprep.subr.mxu0 0.0
    %2210 = vmatpush1.msra.mxu0 0.0
    %2211 = vmatprep.subr.mxu0 0.0
    %2212 = vmatpush1.msra.mxu0 0.0
    %2213 = vmatprep.subr.mxu0 0.0
    %2214 = vmatpush1.msra.mxu0 0.0
    %2215 = vmatprep.subr.mxu0 0.0
    %2216 = vmatpush1.msra.mxu0 0.0
    %2217 = vmatprep.subr.mxu0 0.0
    %2218 = vmatpush1.msra.mxu0 0.0
    %2219 = vmatprep.subr.mxu0 0.0
    %2220 = vmatpush1.msra.mxu0 0.0
    %2221 = vmatprep.subr.mxu0 0.0
    %2222 = vmatpush1.msra.mxu0 0.0
    %2223 = vmatprep.mubr.f32.mxu0 0.0
    %2224 = vmatmul.mubr.f32.gmra.mrb[0].mxu0 %v2106
    %v2225 = vpop.f32.mrb[0].mxu0
    %v2226 = vadd.f32 %v2158, %v2225
    %v2227 = vpop.f32.mrb[0].mxu0
    %2228 = vmatprep.mubr.f32.mxu0 0.0
    %2229 = vmatmul.mubr.f32.gmra.mrb[0].mxu0 %v2107
    %v2230 = vpop.f32.mrb[0].mxu0
    %v2231 = vadd.f32 %v2158, %v2230
    %v2232 = vpop.f32.mrb[0].mxu0
    %2233 = vmatprep.mubr.f32.mxu0 0.0
    %2234 = vmatmul.mubr.f32.gmra.mrb[0].mxu0 %v2108
    %v2235 = vpop.f32.mrb[0].mxu0
    %v2236 = vadd.f32 %v2158, %v2235
    %v2237 = vpop.f32.mrb[0].mxu0
    %2238 = vmatprep.mubr.f32.mxu0 0.0
    %2239 = vmatmul.mubr.f32.gmra.mrb[0].mxu0 %v2109
    %v2240 = vpop.f32.mrb[0].mxu0
    %v2241 = vadd.f32 %v2158, %v2240
    %v2242 = vpop.f32.mrb[0].mxu0
    %2243 = vmatprep.mubr.f32.mxu0 0.0
    %2244 = vmatmul.mubr.f32.gmra.mrb[0].mxu0 %v2110
    %v2245 = vpop.f32.mrb[0].mxu0
    %v2246 = vadd.f32 %v2158, %v2245
    %v2247 = vpop.f32.mrb[0].mxu0
    %2248 = vmatprep.mubr.f32.mxu0 0.0
    %2249 = vmatmul.mubr.f32.gmra.mrb[0].mxu0 %v2111
    %v2250 = vpop.f32.mrb[0].mxu0
    %v2251 = vadd.f32 %v2158, %v2250
    %v2252 = vpop.f32.mrb[0].mxu0
    %2253 = vmatprep.mubr.f32.mxu0 0.0
    %2254 = vmatmul.mubr.f32.gmra.mrb[0].mxu0 %v2112
    %v2255 = vpop.f32.mrb[0].mxu0
    %v2256 = vadd.f32 %v2158, %v2255
    %v2257 = vpop.f32.mrb[0].mxu0
    %2258 = vmatprep.mubr.f32.mxu0 0.0
    %2259 = vmatmul.mubr.f32.gmra.mrb[0].mxu0 %v2113
    %v2260 = vpop.f32.mrb[0].mxu0
    %v2261 = vadd.f32 %v2158, %v2260
    %v2262 = vpop.f32.mrb[0].mxu0
    %2263 = vmatprep.mubr.f32.mxu0 0.0
    %2264 = vmatmul.mubr.f32.gmra.mrb[0].mxu0 %v2114
    %v2265 = vpop.f32.mrb[0].mxu0
    %v2266 = vadd.f32 %v2158, %v2265
    %v2267 = vpop.f32.mrb[0].mxu0
    %2268 = vmatprep.mubr.f32.mxu0 0.0
    %2269 = vmatmul.mubr.f32.gmra.mrb[0].mxu0 %v2115
    %v2270 = vpop.f32.mrb[0].mxu0
    %v2271 = vadd.f32 %v2158, %v2270
    %v2272 = vpop.f32.mrb[0].mxu0
    %2273 = vmatprep.mubr.f32.mxu0 0.0
    %2274 = vmatmul.mubr.f32.gmra.mrb[0].mxu0 %v2116
    %v2275 = vpop.f32.mrb[0].mxu0
    %v2276 = vadd.f32 %v2158, %v2275
    %v2277 = vpop.f32.mrb[0].mxu0
    %2278 = vmatprep.mubr.f32.mxu0 0.0
    %2279 = vmatmul.mubr.f32.gmra.mrb[0].mxu0 %v2117
    %v2280 = vpop.f32.mrb[0].mxu0
    %v2281 = vadd.f32 %v2158, %v2280
    %v2282 = vpop.f32.mrb[0].mxu0
    %2283 = vmatprep.mubr.f32.mxu0 0.0
    %2284 = vmatmul.mubr.f32.gmra.mrb[0].mxu0 %v2118
    %v2285 = vpop.f32.mrb[0].mxu0
    %v2286 = vadd.f32 %v2158, %v2285
    %v2287 = vpop.f32.mrb[0].mxu0
    %2288 = vmatprep.mubr.f32.mxu0 0.0
    %2289 = vmatmul.mubr.f32.gmra.mrb[0].mxu0 %v2119
    %v2290 = vpop.f32.mrb[0].mxu0
    %v2291 = vadd.f32 %v2158, %v2290
    %v2292 = vpop.f32.mrb[0].mxu0
    %2293 = vmatprep.mubr.f32.mxu0 0.0
    %2294 = vmatmul.mubr.f32.gmra.mrb[0].mxu0 %v2120
    %v2295 = vpop.f32.mrb[0].mxu0
    %v2296 = vadd.f32 %v2158, %v2295
    %v2297 = vpop.f32.mrb[0].mxu0
    %2298 = vmatprep.mubr.f32.mxu0 0.0
    %2299 = vmatmul.mubr.f32.gmra.mrb[0].mxu0 %v2121
    %v2300 = vpop.f32.mrb[0].mxu0
    %v2301 = vadd.f32 %v2158, %v2300
    %v2302 = vpop.f32.mrb[0].mxu0
    %2303 = vmatprep.mubr.f32.mxu0 0.0
    %2304 = vmatmul.mubr.f32.gmra.mrb[0].mxu0 %v2122
    %v2305 = vpop.f32.mrb[0].mxu0
    %v2306 = vadd.f32 %v2158, %v2305
    %v2307 = vpop.f32.mrb[0].mxu0
    %2308 = vmatprep.mubr.f32.mxu0 0.0
    %2309 = vmatmul.mubr.f32.gmra.mrb[0].mxu0 %v2123
    %v2310 = vpop.f32.mrb[0].mxu0
    %v2311 = vadd.f32 %v2158, %v2310
    %v2312 = vpop.f32.mrb[0].mxu0
    %2313 = vmatprep.mubr.f32.mxu0 0.0
    %2314 = vmatmul.mubr.f32.gmra.mrb[0].mxu0 %v2124
    %v2315 = vpop.f32.mrb[0].mxu0
    %v2316 = vadd.f32 %v2158, %v2315
    %v2317 = vpop.f32.mrb[0].mxu0
    %2318 = vmatprep.mubr.f32.mxu0 0.0
    %2319 = vmatmul.mubr.f32.gmra.mrb[0].mxu0 %v2125
    %v2320 = vpop.f32.mrb[0].mxu0
    %v2321 = vadd.f32 %v2158, %v2320
    %v2322 = vpop.f32.mrb[0].mxu0
    %2323 = vmatprep.mubr.f32.mxu0 0.0
    %2324 = vmatmul.mubr.f32.gmra.mrb[0].mxu0 %v2126
    %v2325 = vpop.f32.mrb[0].mxu0
    %v2326 = vadd.f32 %v2158, %v2325
    %v2327 = vpop.f32.mrb[0].mxu0
    %2328 = vmatprep.mubr.f32.mxu0 0.0
    %2329 = vmatmul.mubr.f32.gmra.mrb[0].mxu0 %v2127
    %v2330 = vpop.f32.mrb[0].mxu0
    %v2331 = vadd.f32 %v2158, %v2330
    %v2332 = vpop.f32.mrb[0].mxu0
    %2333 = vmatprep.mubr.f32.mxu0 0.0
    %2334 = vmatmul.mubr.f32.gmra.mrb[0].mxu0 %v2128
    %v2335 = vpop.f32.mrb[0].mxu0
    %v2336 = vadd.f32 %v2158, %v2335
    %v2337 = vpop.f32.mrb[0].mxu0
    %2338 = vmatprep.mubr.f32.mxu0 0.0
    %2339 = vmatmul.mubr.f32.gmra.mrb[0].mxu0 %v2129
    %v2340 = vpop.f32.mrb[0].mxu0
    %v2341 = vadd.f32 %v2158, %v2340
    %v2342 = vpop.f32.mrb[0].mxu0
    %2343 = vmatprep.mubr.f32.mxu0 0.0
    %2344 = vmatmul.mubr.f32.gmra.mrb[0].mxu0 %v2130
    %v2345 = vpop.f32.mrb[0].mxu0
    %v2346 = vadd.f32 %v2158, %v2345
    %v2347 = vpop.f32.mrb[0].mxu0
    %2348 = vmatprep.mubr.f32.mxu0 0.0
    %2349 = vmatmul.mubr.f32.gmra.mrb[0].mxu0 %v2131
    %v2350 = vpop.f32.mrb[0].mxu0
    %v2351 = vadd.f32 %v2158, %v2350
    %v2352 = vpop.f32.mrb[0].mxu0
    %2353 = vmatprep.mubr.f32.mxu0 0.0
    %2354 = vmatmul.mubr.f32.gmra.mrb[0].mxu0 %v2132
    %v2355 = vpop.f32.mrb[0].mxu0
    %v2356 = vadd.f32 %v2158, %v2355
    %v2357 = vpop.f32.mrb[0].mxu0
    %2358 = vmatprep.mubr.f32.mxu0 0.0
    %2359 = vmatmul.mubr.f32.gmra.mrb[0].mxu0 %v2133
    %v2360 = vpop.f32.mrb[0].mxu0
    %v2361 = vadd.f32 %v2158, %v2360
    %v2362 = vpop.f32.mrb[0].mxu0
    %2363 = vmatprep.mubr.f32.mxu0 0.0
    %2364 = vmatmul.mubr.f32.gmra.mrb[0].mxu0 %v2134
    %v2365 = vpop.f32.mrb[0].mxu0
    %v2366 = vadd.f32 %v2158, %v2365
    %v2367 = vpop.f32.mrb[0].mxu0
    %2368 = vmatprep.mubr.f32.mxu0 0.0
    %2369 = vmatmul.mubr.f32.gmra.mrb[0].mxu0 %v2135
    %v2370 = vpop.f32.mrb[0].mxu0
    %v2371 = vadd.f32 %v2158, %v2370
    %v2372 = vpop.f32.mrb[0].mxu0
    %2373 = vmatprep.mubr.f32.mxu0 0.0
    %2374 = vmatmul.mubr.f32.gmra.mrb[0].mxu0 %v2136
    %v2375 = vpop.f32.mrb[0].mxu0
    %v2376 = vadd.f32 %v2158, %v2375
    %v2377 = vpop.f32.mrb[0].mxu0
    %2378 = vmatprep.mubr.f32.mxu0 0.0
    %2379 = vmatmul.mubr.f32.gmra.mrb[0].mxu0 %v2137
    %v2380 = vpop.f32.mrb[0].mxu0
    %v2381 = vadd.f32 %v2158, %v2380
    %v2382 = vpop.f32.mrb[0].mxu0
    %2383 = vdwg.mxu0
    %vm2384 = vcmp.gt.f32.partialorder %v2226, 0.0
    %vm2385 = vcmp.gt.f32.partialorder %v2231, 0.0
    %vm2386 = vcmp.gt.f32.partialorder %v2236, 0.0
    %vm2387 = vcmp.gt.f32.partialorder %v2241, 0.0
    %vm2388 = vcmp.gt.f32.partialorder %v2246, 0.0
    %vm2389 = vcmp.gt.f32.partialorder %v2251, 0.0
    %vm2390 = vcmp.gt.f32.partialorder %v2256, 0.0
    %vm2391 = vcmp.gt.f32.partialorder %v2261, 0.0
    %vm2392 = vcmp.gt.f32.partialorder %v2266, 0.0
    %vm2393 = vcmp.gt.f32.partialorder %v2271, 0.0
    %vm2394 = vcmp.gt.f32.partialorder %v2276, 0.0
    %vm2395 = vcmp.gt.f32.partialorder %v2281, 0.0
    %vm2396 = vcmp.gt.f32.partialorder %v2286, 0.0
    %vm2397 = vcmp.gt.f32.partialorder %v2291, 0.0
    %vm2398 = vcmp.gt.f32.partialorder %v2296, 0.0
    %vm2399 = vcmp.gt.f32.partialorder %v2301, 0.0
    %vm2400 = vcmp.gt.f32.partialorder %v2306, 0.0
    %vm2401 = vcmp.gt.f32.partialorder %v2311, 0.0
    %vm2402 = vcmp.gt.f32.partialorder %v2316, 0.0
    %vm2403 = vcmp.gt.f32.partialorder %v2321, 0.0
    %vm2404 = vcmp.gt.f32.partialorder %v2326, 0.0
    %vm2405 = vcmp.gt.f32.partialorder %v2331, 0.0
    %vm2406 = vcmp.gt.f32.partialorder %v2336, 0.0
    %vm2407 = vcmp.gt.f32.partialorder %v2341, 0.0
    %vm2408 = vcmp.gt.f32.partialorder %v2346, 0.0
    %vm2409 = vcmp.gt.f32.partialorder %v2351, 0.0
    %vm2410 = vcmp.gt.f32.partialorder %v2356, 0.0
    %vm2411 = vcmp.gt.f32.partialorder %v2361, 0.0
    %vm2412 = vcmp.gt.f32.partialorder %v2366, 0.0
    %vm2413 = vcmp.gt.f32.partialorder %v2371, 0.0
    %vm2414 = vcmp.gt.f32.partialorder %v2376, 0.0
    %vm2415 = vcmp.gt.f32.partialorder %v2381, 0.0
    %v2416 = vmul.f32 %v2226, 0.2
    %v2417 = vmul.f32 %v2231, 0.2
    %v2418 = vmul.f32 %v2236, 0.2
    %v2419 = vmul.f32 %v2241, 0.2
    %v2420 = vmul.f32 %v2246, 0.2
    %v2421 = vmul.f32 %v2251, 0.2
    %v2422 = vmul.f32 %v2256, 0.2
    %v2423 = vmul.f32 %v2261, 0.2
    %v2424 = vmul.f32 %v2266, 0.2
    %v2425 = vmul.f32 %v2271, 0.2
    %v2426 = vmul.f32 %v2276, 0.2
    %v2427 = vmul.f32 %v2281, 0.2
    %v2428 = vmul.f32 %v2286, 0.2
    %v2429 = vmul.f32 %v2291, 0.2
    %v2430 = vmul.f32 %v2296, 0.2
    %v2431 = vmul.f32 %v2301, 0.2
    %v2432 = vmul.f32 %v2306, 0.2
    %v2433 = vmul.f32 %v2311, 0.2
    %v2434 = vmul.f32 %v2316, 0.2
    %v2435 = vmul.f32 %v2321, 0.2
    %v2436 = vmul.f32 %v2326, 0.2
    %v2437 = vmul.f32 %v2331, 0.2
    %v2438 = vmul.f32 %v2336, 0.2
    %v2439 = vmul.f32 %v2341, 0.2
    %v2440 = vmul.f32 %v2346, 0.2
    %v2441 = vmul.f32 %v2351, 0.2
    %v2442 = vmul.f32 %v2356, 0.2
    %v2443 = vmul.f32 %v2361, 0.2
    %v2444 = vmul.f32 %v2366, 0.2
    %v2445 = vmul.f32 %v2371, 0.2
    %v2446 = vmul.f32 %v2376, 0.2
    %v2447 = vmul.f32 %v2381, 0.2
    %v2448 = vsel %vm2384, %v2226, %v2416
    %v2449 = vsel %vm2385, %v2231, %v2417
    %v2450 = vsel %vm2386, %v2236, %v2418
    %v2451 = vsel %vm2387, %v2241, %v2419
    %v2452 = vsel %vm2388, %v2246, %v2420
    %v2453 = vsel %vm2389, %v2251, %v2421
    %v2454 = vsel %vm2390, %v2256, %v2422
    %v2455 = vsel %vm2391, %v2261, %v2423
    %v2456 = vsel %vm2392, %v2266, %v2424
    %v2457 = vsel %vm2393, %v2271, %v2425
    %v2458 = vsel %vm2394, %v2276, %v2426
    %v2459 = vsel %vm2395, %v2281, %v2427
    %v2460 = vsel %vm2396, %v2286, %v2428
    %v2461 = vsel %vm2397, %v2291, %v2429
    %v2462 = vsel %vm2398, %v2296, %v2430
    %v2463 = vsel %vm2399, %v2301, %v2431
    %v2464 = vsel %vm2400, %v2306, %v2432
    %v2465 = vsel %vm2401, %v2311, %v2433
    %v2466 = vsel %vm2402, %v2316, %v2434
    %v2467 = vsel %vm2403, %v2321, %v2435
    %v2468 = vsel %vm2404, %v2326, %v2436
    %v2469 = vsel %vm2405, %v2331, %v2437
    %v2470 = vsel %vm2406, %v2336, %v2438
    %v2471 = vsel %vm2407, %v2341, %v2439
    %v2472 = vsel %vm2408, %v2346, %v2440
    %v2473 = vsel %vm2409, %v2351, %v2441
    %v2474 = vsel %vm2410, %v2356, %v2442
    %v2475 = vsel %vm2411, %v2361, %v2443
    %v2476 = vsel %vm2412, %v2366, %v2444
    %v2477 = vsel %vm2413, %v2371, %v2445
    %v2478 = vsel %vm2414, %v2376, %v2446
    %v2479 = vsel %vm2415, %v2381, %v2447
    %v2480 = vld [vmem:[#allocation2 + $0x378] sm:$0xff]
    %v2481 = vld [vmem:[#allocation2 + $0x380] sm:$0xff]
    %v2482 = vld [vmem:[#allocation2 + $0x388] sm:$0xff]
    %v2483 = vld [vmem:[#allocation2 + $0x390] sm:$0xff]
    %v2484 = vld [vmem:[#allocation2 + $0x398] sm:$0xff]
    %v2485 = vld [vmem:[#allocation2 + $0x3a0] sm:$0xff]
    %v2486 = vld [vmem:[#allocation2 + $0x3a8] sm:$0xff]
    %v2487 = vld [vmem:[#allocation2 + $0x3b0] sm:$0xff]
    %v2488 = vld [vmem:[#allocation2 + $0x3b8] sm:$0xff]
    %v2489 = vld [vmem:[#allocation2 + $0x3c0] sm:$0xff]
    %v2490 = vld [vmem:[#allocation2 + $0x3c8] sm:$0xff]
    %v2491 = vld [vmem:[#allocation2 + $0x3d0] sm:$0xff]
    %v2492 = vld [vmem:[#allocation2 + $0x3d8] sm:$0xff]
    %v2493 = vld [vmem:[#allocation2 + $0x3e0] sm:$0xff]
    %v2494 = vld [vmem:[#allocation2 + $0x3e8] sm:$0xff]
    %v2495 = vld [vmem:[#allocation2 + $0x3f0] sm:$0xff]
    %v2496 = vld [vmem:[#allocation2 + $0x3f8] sm:$0x1]
    %v2497 = vlaneseq
    %v2498 = vshrl.u32 %v2497, 7
    %v2499 = vsub.s32 0, %v2498
    %v2500 = vrot.slane %v2496, %v2499
    %2501 = vmatprep.subr.mxu0 0.0
    %2502 = vmatpush1.msra.mxu0 %v2480
    %2503 = vmatprep.subr.mxu0 0.0
    %2504 = vmatpush1.msra.mxu0 %v2481
    %2505 = vmatprep.subr.mxu0 0.0
    %2506 = vmatpush1.msra.mxu0 %v2482
    %2507 = vmatprep.subr.mxu0 0.0
    %2508 = vmatpush1.msra.mxu0 %v2483
    %2509 = vmatprep.subr.mxu0 0.0
    %2510 = vmatpush1.msra.mxu0 %v2484
    %2511 = vmatprep.subr.mxu0 0.0
    %2512 = vmatpush1.msra.mxu0 %v2485
    %2513 = vmatprep.subr.mxu0 0.0
    %2514 = vmatpush1.msra.mxu0 %v2486
    %2515 = vmatprep.subr.mxu0 0.0
    %2516 = vmatpush1.msra.mxu0 %v2487
    %2517 = vmatprep.subr.mxu0 0.0
    %2518 = vmatpush1.msra.mxu0 %v2488
    %2519 = vmatprep.subr.mxu0 0.0
    %2520 = vmatpush1.msra.mxu0 %v2489
    %2521 = vmatprep.subr.mxu0 0.0
    %2522 = vmatpush1.msra.mxu0 %v2490
    %2523 = vmatprep.subr.mxu0 0.0
    %2524 = vmatpush1.msra.mxu0 %v2491
    %2525 = vmatprep.subr.mxu0 0.0
    %2526 = vmatpush1.msra.mxu0 %v2492
    %2527 = vmatprep.subr.mxu0 0.0
    %2528 = vmatpush1.msra.mxu0 %v2493
    %2529 = vmatprep.subr.mxu0 0.0
    %2530 = vmatpush1.msra.mxu0 %v2494
    %2531 = vmatprep.subr.mxu0 0.0
    %2532 = vmatpush1.msra.mxu0 %v2495
    %2533 = vmatprep.subr.mxu0 0.0
    %2534 = vmatpush1.msra.mxu0 0.0
    %2535 = vmatprep.subr.mxu0 0.0
    %2536 = vmatpush1.msra.mxu0 0.0
    %2537 = vmatprep.subr.mxu0 0.0
    %2538 = vmatpush1.msra.mxu0 0.0
    %2539 = vmatprep.subr.mxu0 0.0
    %2540 = vmatpush1.msra.mxu0 0.0
    %2541 = vmatprep.subr.mxu0 0.0
    %2542 = vmatpush1.msra.mxu0 0.0
    %2543 = vmatprep.subr.mxu0 0.0
    %2544 = vmatpush1.msra.mxu0 0.0
    %2545 = vmatprep.subr.mxu0 0.0
    %2546 = vmatpush1.msra.mxu0 0.0
    %2547 = vmatprep.subr.mxu0 0.0
    %2548 = vmatpush1.msra.mxu0 0.0
    %2549 = vmatprep.subr.mxu0 0.0
    %2550 = vmatpush1.msra.mxu0 0.0
    %2551 = vmatprep.subr.mxu0 0.0
    %2552 = vmatpush1.msra.mxu0 0.0
    %2553 = vmatprep.subr.mxu0 0.0
    %2554 = vmatpush1.msra.mxu0 0.0
    %2555 = vmatprep.subr.mxu0 0.0
    %2556 = vmatpush1.msra.mxu0 0.0
    %2557 = vmatprep.subr.mxu0 0.0
    %2558 = vmatpush1.msra.mxu0 0.0
    %2559 = vmatprep.subr.mxu0 0.0
    %2560 = vmatpush1.msra.mxu0 0.0
    %2561 = vmatprep.subr.mxu0 0.0
    %2562 = vmatpush1.msra.mxu0 0.0
    %2563 = vmatprep.subr.mxu0 0.0
    %2564 = vmatpush1.msra.mxu0 0.0
    %2565 = vmatprep.mubr.f32.mxu0 0.0
    %2566 = vmatmul.mubr.f32.gmra.mrb[0].mxu0 %v2448
    %v2567 = vpop.f32.mrb[0].mxu0
    %v2568 = vadd.f32 %v2500, %v2567
    %v2569 = vpop.f32.mrb[0].mxu0
    %2570 = vmatprep.mubr.f32.mxu0 0.0
    %2571 = vmatmul.mubr.f32.gmra.mrb[0].mxu0 %v2449
    %v2572 = vpop.f32.mrb[0].mxu0
    %v2573 = vadd.f32 %v2500, %v2572
    %v2574 = vpop.f32.mrb[0].mxu0
    %2575 = vmatprep.mubr.f32.mxu0 0.0
    %2576 = vmatmul.mubr.f32.gmra.mrb[0].mxu0 %v2450
    %v2577 = vpop.f32.mrb[0].mxu0
    %v2578 = vadd.f32 %v2500, %v2577
    %v2579 = vpop.f32.mrb[0].mxu0
    %2580 = vmatprep.mubr.f32.mxu0 0.0
    %2581 = vmatmul.mubr.f32.gmra.mrb[0].mxu0 %v2451
    %v2582 = vpop.f32.mrb[0].mxu0
    %v2583 = vadd.f32 %v2500, %v2582
    %v2584 = vpop.f32.mrb[0].mxu0
    %2585 = vmatprep.mubr.f32.mxu0 0.0
    %2586 = vmatmul.mubr.f32.gmra.mrb[0].mxu0 %v2452
    %v2587 = vpop.f32.mrb[0].mxu0
    %v2588 = vadd.f32 %v2500, %v2587
    %v2589 = vpop.f32.mrb[0].mxu0
    %2590 = vmatprep.mubr.f32.mxu0 0.0
    %2591 = vmatmul.mubr.f32.gmra.mrb[0].mxu0 %v2453
    %v2592 = vpop.f32.mrb[0].mxu0
    %v2593 = vadd.f32 %v2500, %v2592
    %v2594 = vpop.f32.mrb[0].mxu0
    %2595 = vmatprep.mubr.f32.mxu0 0.0
    %2596 = vmatmul.mubr.f32.gmra.mrb[0].mxu0 %v2454
    %v2597 = vpop.f32.mrb[0].mxu0
    %v2598 = vadd.f32 %v2500, %v2597
    %v2599 = vpop.f32.mrb[0].mxu0
    %2600 = vmatprep.mubr.f32.mxu0 0.0
    %2601 = vmatmul.mubr.f32.gmra.mrb[0].mxu0 %v2455
    %v2602 = vpop.f32.mrb[0].mxu0
    %v2603 = vadd.f32 %v2500, %v2602
    %v2604 = vpop.f32.mrb[0].mxu0
    %2605 = vmatprep.mubr.f32.mxu0 0.0
    %2606 = vmatmul.mubr.f32.gmra.mrb[0].mxu0 %v2456
    %v2607 = vpop.f32.mrb[0].mxu0
    %v2608 = vadd.f32 %v2500, %v2607
    %v2609 = vpop.f32.mrb[0].mxu0
    %2610 = vmatprep.mubr.f32.mxu0 0.0
    %2611 = vmatmul.mubr.f32.gmra.mrb[0].mxu0 %v2457
    %v2612 = vpop.f32.mrb[0].mxu0
    %v2613 = vadd.f32 %v2500, %v2612
    %v2614 = vpop.f32.mrb[0].mxu0
    %2615 = vmatprep.mubr.f32.mxu0 0.0
    %2616 = vmatmul.mubr.f32.gmra.mrb[0].mxu0 %v2458
    %v2617 = vpop.f32.mrb[0].mxu0
    %v2618 = vadd.f32 %v2500, %v2617
    %v2619 = vpop.f32.mrb[0].mxu0
    %2620 = vmatprep.mubr.f32.mxu0 0.0
    %2621 = vmatmul.mubr.f32.gmra.mrb[0].mxu0 %v2459
    %v2622 = vpop.f32.mrb[0].mxu0
    %v2623 = vadd.f32 %v2500, %v2622
    %v2624 = vpop.f32.mrb[0].mxu0
    %2625 = vmatprep.mubr.f32.mxu0 0.0
    %2626 = vmatmul.mubr.f32.gmra.mrb[0].mxu0 %v2460
    %v2627 = vpop.f32.mrb[0].mxu0
    %v2628 = vadd.f32 %v2500, %v2627
    %v2629 = vpop.f32.mrb[0].mxu0
    %2630 = vmatprep.mubr.f32.mxu0 0.0
    %2631 = vmatmul.mubr.f32.gmra.mrb[0].mxu0 %v2461
    %v2632 = vpop.f32.mrb[0].mxu0
    %v2633 = vadd.f32 %v2500, %v2632
    %v2634 = vpop.f32.mrb[0].mxu0
    %2635 = vmatprep.mubr.f32.mxu0 0.0
    %2636 = vmatmul.mubr.f32.gmra.mrb[0].mxu0 %v2462
    %v2637 = vpop.f32.mrb[0].mxu0
    %v2638 = vadd.f32 %v2500, %v2637
    %v2639 = vpop.f32.mrb[0].mxu0
    %2640 = vmatprep.mubr.f32.mxu0 0.0
    %2641 = vmatmul.mubr.f32.gmra.mrb[0].mxu0 %v2463
    %v2642 = vpop.f32.mrb[0].mxu0
    %v2643 = vadd.f32 %v2500, %v2642
    %v2644 = vpop.f32.mrb[0].mxu0
    %2645 = vmatprep.mubr.f32.mxu0 0.0
    %2646 = vmatmul.mubr.f32.gmra.mrb[0].mxu0 %v2464
    %v2647 = vpop.f32.mrb[0].mxu0
    %v2648 = vadd.f32 %v2500, %v2647
    %v2649 = vpop.f32.mrb[0].mxu0
    %2650 = vmatprep.mubr.f32.mxu0 0.0
    %2651 = vmatmul.mubr.f32.gmra.mrb[0].mxu0 %v2465
    %v2652 = vpop.f32.mrb[0].mxu0
    %v2653 = vadd.f32 %v2500, %v2652
    %v2654 = vpop.f32.mrb[0].mxu0
    %2655 = vmatprep.mubr.f32.mxu0 0.0
    %2656 = vmatmul.mubr.f32.gmra.mrb[0].mxu0 %v2466
    %v2657 = vpop.f32.mrb[0].mxu0
    %v2658 = vadd.f32 %v2500, %v2657
    %v2659 = vpop.f32.mrb[0].mxu0
    %2660 = vmatprep.mubr.f32.mxu0 0.0
    %2661 = vmatmul.mubr.f32.gmra.mrb[0].mxu0 %v2467
    %v2662 = vpop.f32.mrb[0].mxu0
    %v2663 = vadd.f32 %v2500, %v2662
    %v2664 = vpop.f32.mrb[0].mxu0
    %2665 = vmatprep.mubr.f32.mxu0 0.0
    %2666 = vmatmul.mubr.f32.gmra.mrb[0].mxu0 %v2468
    %v2667 = vpop.f32.mrb[0].mxu0
    %v2668 = vadd.f32 %v2500, %v2667
    %v2669 = vpop.f32.mrb[0].mxu0
    %2670 = vmatprep.mubr.f32.mxu0 0.0
    %2671 = vmatmul.mubr.f32.gmra.mrb[0].mxu0 %v2469
    %v2672 = vpop.f32.mrb[0].mxu0
    %v2673 = vadd.f32 %v2500, %v2672
    %v2674 = vpop.f32.mrb[0].mxu0
    %2675 = vmatprep.mubr.f32.mxu0 0.0
    %2676 = vmatmul.mubr.f32.gmra.mrb[0].mxu0 %v2470
    %v2677 = vpop.f32.mrb[0].mxu0
    %v2678 = vadd.f32 %v2500, %v2677
    %v2679 = vpop.f32.mrb[0].mxu0
    %2680 = vmatprep.mubr.f32.mxu0 0.0
    %2681 = vmatmul.mubr.f32.gmra.mrb[0].mxu0 %v2471
    %v2682 = vpop.f32.mrb[0].mxu0
    %v2683 = vadd.f32 %v2500, %v2682
    %v2684 = vpop.f32.mrb[0].mxu0
    %2685 = vmatprep.mubr.f32.mxu0 0.0
    %2686 = vmatmul.mubr.f32.gmra.mrb[0].mxu0 %v2472
    %v2687 = vpop.f32.mrb[0].mxu0
    %v2688 = vadd.f32 %v2500, %v2687
    %v2689 = vpop.f32.mrb[0].mxu0
    %2690 = vmatprep.mubr.f32.mxu0 0.0
    %2691 = vmatmul.mubr.f32.gmra.mrb[0].mxu0 %v2473
    %v2692 = vpop.f32.mrb[0].mxu0
    %v2693 = vadd.f32 %v2500, %v2692
    %v2694 = vpop.f32.mrb[0].mxu0
    %2695 = vmatprep.mubr.f32.mxu0 0.0
    %2696 = vmatmul.mubr.f32.gmra.mrb[0].mxu0 %v2474
    %v2697 = vpop.f32.mrb[0].mxu0
    %v2698 = vadd.f32 %v2500, %v2697
    %v2699 = vpop.f32.mrb[0].mxu0
    %2700 = vmatprep.mubr.f32.mxu0 0.0
    %2701 = vmatmul.mubr.f32.gmra.mrb[0].mxu0 %v2475
    %v2702 = vpop.f32.mrb[0].mxu0
    %v2703 = vadd.f32 %v2500, %v2702
    %v2704 = vpop.f32.mrb[0].mxu0
    %2705 = vmatprep.mubr.f32.mxu0 0.0
    %2706 = vmatmul.mubr.f32.gmra.mrb[0].mxu0 %v2476
    %v2707 = vpop.f32.mrb[0].mxu0
    %v2708 = vadd.f32 %v2500, %v2707
    %v2709 = vpop.f32.mrb[0].mxu0
    %2710 = vmatprep.mubr.f32.mxu0 0.0
    %2711 = vmatmul.mubr.f32.gmra.mrb[0].mxu0 %v2477
    %v2712 = vpop.f32.mrb[0].mxu0
    %v2713 = vadd.f32 %v2500, %v2712
    %v2714 = vpop.f32.mrb[0].mxu0
    %2715 = vmatprep.mubr.f32.mxu0 0.0
    %2716 = vmatmul.mubr.f32.gmra.mrb[0].mxu0 %v2478
    %v2717 = vpop.f32.mrb[0].mxu0
    %v2718 = vadd.f32 %v2500, %v2717
    %v2719 = vpop.f32.mrb[0].mxu0
    %2720 = vmatprep.mubr.f32.mxu0 0.0
    %2721 = vmatmul.mubr.f32.gmra.mrb[0].mxu0 %v2479
    %v2722 = vpop.f32.mrb[0].mxu0
    %v2723 = vadd.f32 %v2500, %v2722
    %v2724 = vpop.f32.mrb[0].mxu0
    %2725 = vdwg.mxu0
    %2726 = vst [vmem:[#allocation5] sm:$0xff] %v2568
    %2727 = vst [vmem:[#allocation5 + $0x8] sm:$0xff] %v2573
    %2728 = vst [vmem:[#allocation5 + $0x10] sm:$0xff] %v2578
    %2729 = vst [vmem:[#allocation5 + $0x18] sm:$0xff] %v2583
    %2730 = vst [vmem:[#allocation5 + $0x20] sm:$0xff] %v2588
    %2731 = vst [vmem:[#allocation5 + $0x28] sm:$0xff] %v2593
    %2732 = vst [vmem:[#allocation5 + $0x30] sm:$0xff] %v2598
    %2733 = vst [vmem:[#allocation5 + $0x38] sm:$0xff] %v2603
    %2734 = vst [vmem:[#allocation5 + $0x40] sm:$0xff] %v2608
    %2735 = vst [vmem:[#allocation5 + $0x48] sm:$0xff] %v2613
    %2736 = vst [vmem:[#allocation5 + $0x50] sm:$0xff] %v2618
    %2737 = vst [vmem:[#allocation5 + $0x58] sm:$0xff] %v2623
    %2738 = vst [vmem:[#allocation5 + $0x60] sm:$0xff] %v2628
    %2739 = vst [vmem:[#allocation5 + $0x68] sm:$0xff] %v2633
    %2740 = vst [vmem:[#allocation5 + $0x70] sm:$0xff] %v2638
    %2741 = vst [vmem:[#allocation5 + $0x78] sm:$0xff] %v2643
    %2742 = vst [vmem:[#allocation5 + $0x80] sm:$0xff] %v2648
    %2743 = vst [vmem:[#allocation5 + $0x88] sm:$0xff] %v2653
    %2744 = vst [vmem:[#allocation5 + $0x90] sm:$0xff] %v2658
    %2745 = vst [vmem:[#allocation5 + $0x98] sm:$0xff] %v2663
    %2746 = vst [vmem:[#allocation5 + $0xa0] sm:$0xff] %v2668
    %2747 = vst [vmem:[#allocation5 + $0xa8] sm:$0xff] %v2673
    %2748 = vst [vmem:[#allocation5 + $0xb0] sm:$0xff] %v2678
    %2749 = vst [vmem:[#allocation5 + $0xb8] sm:$0xff] %v2683
    %2750 = vst [vmem:[#allocation5 + $0xc0] sm:$0xff] %v2688
    %2751 = vst [vmem:[#allocation5 + $0xc8] sm:$0xff] %v2693
    %2752 = vst [vmem:[#allocation5 + $0xd0] sm:$0xff] %v2698
    %2753 = vst [vmem:[#allocation5 + $0xd8] sm:$0xff] %v2703
    %2754 = vst [vmem:[#allocation5 + $0xe0] sm:$0xff] %v2708
    %2755 = vst [vmem:[#allocation5 + $0xe8] sm:$0xff] %v2713
    %2756 = vst [vmem:[#allocation5 + $0xf0] sm:$0xff] %v2718
    %2757 = vst [vmem:[#allocation5 + $0xf8] sm:$0xff] %v2723
    // Predicated region
    $region14: #{tpu_custom_call.1} parent=1 // pred_check
      _
    $region15: #{tpu_custom_call.1} parent=1 // pred_check_branch
      %2759 = sbr.rel (0) target = $region17
    $region16: #{tpu_custom_call.1} parent=1 // pred_region
      %s2761 = ssub.s32 4096, 4096
      %2762 = vsyncadd [#allocation4], %s2761
      %s2763 = sshll.u32 [#allocation5], 4
      %s2764 = int_to_ptr.vmem [resolvable:$true] %s2763
      %2769 = dma.vmem_to_hbm [thread:$0]  %s2764, 4096, %s2, [#allocation4], 128, 128, 8
    $region17: #{tpu_custom_call.1} parent=1 // pred_fallthru
      _
    // Predicated region
    $region18: #{tpu_custom_call.1} parent=1 // pred_check
      _
    $region19: #{tpu_custom_call.1} parent=1 // pred_check_branch
      %2771 = sbr.rel (0) target = $region21
    $region20: #{tpu_custom_call.1} parent=1 // pred_region
      %s2773 = ssub.s32 4096, 4096
      %2774 = vsyncadd [#allocation7], %s2773
      %s2775 = sshll.u32 [#allocation6], 4
      %s2776 = int_to_ptr.vmem [resolvable:$true] %s2775
      %2781 = dma.vmem_to_hbm [thread:$0]  %s2776, 4096, %s3, [#allocation7], 128, 128, 8
    $region21: #{tpu_custom_call.1} parent=1 // pred_fallthru
      _
    // Predicated region
    $region22: #{tpu_custom_call.1} parent=1 // pred_check
      _
    $region23: #{tpu_custom_call.1} parent=1 // pred_check_branch
      %2783 = sbr.rel (0) target = $region25
    $region24: #{tpu_custom_call.1} parent=1 // pred_region
      %2784 = dma.done [#allocation4], 4096
    $region25: #{tpu_custom_call.1} parent=1 // pred_fallthru
      _
    // Predicated region
    $region26: #{tpu_custom_call.1} parent=1 // pred_check
      _
    $region27: #{tpu_custom_call.1} parent=1 // pred_check_branch
      %2786 = sbr.rel (0) target = $region29
    $region28: #{tpu_custom_call.1} parent=1 // pred_region
      %2787 = dma.done [#allocation7], 4096
    $region29: #{tpu_custom_call.1} parent=1 // pred_fallthru
      _
    %2788 = vsyncpa [#allocation3], 1
    %2789 = vsyncpa [#allocation4], 1
    %2790 = vsyncpa [#allocation7], 1

</llo_original>
